<compile_context>
chip_gen: v6e
topology: v6e:2x2x1
jax: 0.10.0
libtpu: 0.0.40
codegen_flags: <defaults>
</compile_context>

<pallas_src>
import functools

import numpy as np
import jax
import jax.numpy as jnp
from jax.experimental import pallas as pl
from jax.experimental.pallas import tpu as pltpu

LRELU_SLOPE = 0.1
INV_SQRT2 = 0.7071067811865476


def _round8(n):
    return ((n + 7) // 8) * 8


def _lrelu(x):
    return jnp.where(x > 0, x, LRELU_SLOPE * x)


# ----------------------------------------------------------------------------
# In-kernel helpers (all shapes / offsets are static Python ints).
# ----------------------------------------------------------------------------
def _fill_pad_and_col(x, offsets, ci, cb, t_out, pad_l, pad_ref, col_ref):
    """Write x into the pre-zeroed interior of pad_ref, then build the im2col
    matrix: row-block n of col_ref holds zero-padded x shifted by offsets[n]."""
    t_in = x.shape[1]
    pad_ref[:, pad_l:pad_l + t_in] = x
    for n, off in enumerate(offsets):
        s = pad_l + off
        col_ref[n * cb:n * cb + ci, :] = pad_ref[:, s:s + t_out]


def _conv1d_im2col(x, w, b, *, offsets, read_rows, ci, cb, t_out, pad_l,
                   pad_ref, col_ref):
    """SAME (dilated) conv1d as a single MXU dot.
    x: (Ci, T) f32 value, w: (Co, read_rows) bf16 value, b: (Co, 1) f32/None."""
    _fill_pad_and_col(x, offsets, ci, cb, t_out, pad_l, pad_ref, col_ref)
    col = col_ref[0:read_rows, :].astype(jnp.bfloat16)
    y = jnp.dot(w, col, preferred_element_type=jnp.float32)
    return y if b is None else y + b


# ----------------------------------------------------------------------------
# Fused generator kernel factory.
# Ref order:  inputs  = x, pre_w, pre_b,
#                       [up_w, up_b, scat, rb_w, rb_b] per stage,
#                       post_w, idwt
#             outputs = o
#             scratch = pre_pad, pre_col,
#                       [up_pad, up_col, rb_pad, rb_col] per stage,
#                       post_pad, post_col
# ----------------------------------------------------------------------------
def _make_generator_kernel(plan):
    pre = plan["pre"]
    stages = plan["stages"]
    post = plan["post"]
    n_stage = len(stages)
    n_in = 3 + 5 * n_stage + 2

    def kernel(*refs):
        x_ref, pre_w_ref, pre_b_ref = refs[0], refs[1], refs[2]
        stage_refs = [refs[3 + 5 * i:3 + 5 * (i + 1)] for i in range(n_stage)]
        post_w_ref = refs[3 + 5 * n_stage]
        idwt_ref = refs[4 + 5 * n_stage]
        o_ref = refs[n_in]
        sc = refs[n_in + 1:]
        pre_pad, pre_col = sc[0], sc[1]
        stage_sc = [sc[2 + 4 * i:2 + 4 * (i + 1)] for i in range(n_stage)]
        post_pad, post_col = sc[2 + 4 * n_stage], sc[3 + 4 * n_stage]

        # Zero all pad / im2col scratches once per grid step; pad columns and
        # channel-padding rows stay zero afterwards (only interiors rewritten).
        for s_ref in sc:
            s_ref[...] = jnp.zeros_like(s_ref)

        # ---- conv_pre ------------------------------------------------------
        h = _conv1d_im2col(
            x_ref[0], pre_w_ref[...], pre_b_ref[...],
            offsets=pre["offsets"], read_rows=pre["col_rows"], ci=pre["ci"],
            cb=pre["cb"], t_out=pre["t"], pad_l=pre["pad_l"],
            pad_ref=pre_pad, col_ref=pre_col)

        # ---- fused upsample stages ------------------------------------------
        for i, st in enumerate(stages):
            up_w_ref, up_b_ref, scat_ref, rb_w_ref, rb_b_ref = stage_refs[i]
            up_pad, up_col, rb_pad, rb_col = stage_sc[i]

            # leaky_relu -> polyphase ConvTranspose1d: one im2col over the
            # union of phase offsets, one dot per phase, constant scatter
            # matmul to interleave the phases.
            xin = _lrelu(h)
            _fill_pad_and_col(xin, st["up_offsets"], st["ci_up"], st["cb_up"],
                              st["t_half"], st["up_pad_l"], up_pad, up_col)
            col_up = up_col[...].astype(jnp.bfloat16)
            y = None
            for r in range(st["stride"]):
                ph = jnp.dot(up_w_ref[r], col_up,
                             preferred_element_type=jnp.float32)
                yr = jnp.dot(ph, scat_ref[r],
                             preferred_element_type=jnp.float32)
                y = yr if y is None else y + yr
            y = y + up_b_ref[...]                           # (C, T_stage)

            # both ResBlock1's; every intermediate stays in VMEM / vregs.
            c, cb, t = st["c"], st["cb"], st["t_out"]
            pad_l = st["rb_pad_l"]
            rows = st["rb_col_rows"]
            xs = None
            cidx = 0
            for _, (ksz, dils) in enumerate(st["rb_meta"]):
                xr = y
                for m, d in enumerate(dils):
                    xt = _lrelu(xr)
                    p1 = d * (ksz - 1) // 2
                    xt = _conv1d_im2col(
                        xt, rb_w_ref[cidx], rb_b_ref[:, cidx:cidx + 1],
                        offsets=[k * d - p1 for k in range(ksz)],
                        read_rows=rows, ci=c, cb=cb, t_out=t, pad_l=pad_l,
                        pad_ref=rb_pad, col_ref=rb_col)
                    xt = _lrelu(xt)
                    p2 = (ksz - 1) // 2
                    xt = _conv1d_im2col(
                        xt, rb_w_ref[cidx + 1], rb_b_ref[:, cidx + 1:cidx + 2],
                        offsets=[k - p2 for k in range(ksz)],
                        read_rows=rows, ci=c, cb=cb, t_out=t, pad_l=pad_l,
                        pad_ref=rb_pad, col_ref=rb_col)
                    xr = xt + xr                            # fused residual
                    cidx += 2
                xs = xr if xs is None else xs + xr
            h = xs * (1.0 / len(st["rb_meta"]))             # xs / num_kernels

        # ---- leaky_relu -> conv_post -> tanh -> folded Haar IDWT -------------
        xo = _lrelu(h)
        yp = _conv1d_im2col(
            xo, post_w_ref[...], None,
            offsets=post["offsets"], read_rows=post["col_rows"], ci=post["ci"],
            cb=post["cb"], t_out=post["t"], pad_l=post["pad_l"],
            pad_ref=post_pad, col_ref=post_col)
        yp = jnp.tanh(yp)                                   # (2, T): lo ; hi
        out = (jnp.dot(yp[0:1, :], idwt_ref[0], preferred_element_type=jnp.float32)
               + jnp.dot(yp[1:2, :], idwt_ref[1], preferred_element_type=jnp.float32))
        o_ref[0] = out.astype(o_ref.dtype)                  # (1, 2T) interleaved

    return kernel


def generator_forward(plan, x):
    bsz, c_in, t = x.shape
    assert c_in == 80 and t == plan["t_mel"], (x.shape, plan["t_mel"])
    kernel = _make_generator_kernel(plan)
    inputs = [x] + plan["inputs"]
    in_specs = [pl.BlockSpec((1, c_in, t), lambda i: (i, 0, 0))]
    for a in plan["inputs"]:
        in_specs.append(pl.BlockSpec(a.shape, lambda i, nd=a.ndim: (0,) * nd))
    t_final = plan["t_final"]
    return pl.pallas_call(
        kernel,
        out_shape=jax.ShapeDtypeStruct((bsz, 1, t_final), jnp.float32),
        grid=(bsz,),
        in_specs=in_specs,
        out_specs=pl.BlockSpec((1, 1, t_final), lambda i: (i, 0, 0)),
        scratch_shapes=[pltpu.VMEM(s, d) for (s, d) in plan["scratch"]],
        compiler_params=pltpu.CompilerParams(dimension_semantics=("parallel",)),
    )(*inputs)


# ----------------------------------------------------------------------------
# Parameters (PyTorch layouts) and packing into kernel-friendly layouts.
# ----------------------------------------------------------------------------
class HParams:
    upsample_rates = (2, 2)
    upsample_kernel_sizes = (4, 4)
    upsample_initial_channel = 16
    resblock_kernel_sizes = (3, 5)
    resblock_dilation_sizes = ((1, 3, 5), (1, 3, 5))


def _init(key, shape, scale=0.01):
    return scale * jax.random.normal(key, shape, jnp.float32)


def init_generator_params(key, h):
    """Weights in PyTorch layouts.  weight_norm is identity at init -> folded."""
    keys = iter(jax.random.split(key, 256))
    p = {}
    c0 = h.upsample_initial_channel
    p["conv_pre_w"] = _init(next(keys), (c0, 80, 7))        # Conv1d (Co, Ci, K)
    p["conv_pre_b"] = _init(next(keys), (c0,))
    p["ups"] = []
    for i, (u, k) in enumerate(zip(h.upsample_rates, h.upsample_kernel_sizes)):
        ci, co = c0 // (2 ** i), c0 // (2 ** (i + 1))
        p["ups"].append({"w": _init(next(keys), (ci, co, k)),  # ConvT (Ci, Co, K)
                         "b": _init(next(keys), (co,))})
    p["resblocks"] = []
    for i in range(len(h.upsample_rates)):
        ch = c0 // (2 ** (i + 1))
        for k in h.resblock_kernel_sizes:
            rb = {"convs1": [], "convs2": []}
            for _ in range(3):
                rb["convs1"].append({"w": _init(next(keys), (ch, ch, k)),
                                     "b": _init(next(keys), (ch,))})
                rb["convs2"].append({"w": _init(next(keys), (ch, ch, k)),
                                     "b": _init(next(keys), (ch,))})
            p["resblocks"].append(rb)
    ch_last = c0 // (2 ** len(h.upsample_rates))
    p["conv_post_w"] = _init(next(keys), (2, ch_last, 7))   # bias=False
    return p


def prepare_params(params, h, t_mel):
    """Pack PyTorch-layout weights into per-kernel slabs + static plan."""
    c0 = h.upsample_initial_channel
    rb_meta = [(k, tuple(d)) for k, d in zip(h.resblock_kernel_sizes,
                                             h.resblock_dilation_sizes)]
    num_k = len(rb_meta)
    kmax = max(h.resblock_kernel_sizes)

    inputs, scratch = [], []

    # ---- conv_pre -----------------------------------------------------------
    w = np.asarray(params["conv_pre_w"], np.float32)        # (c0, 80, 7)
    co, ci, k = w.shape
    cb = _round8(ci)
    p = (k - 1) // 2
    wp = np.zeros((co, k * cb), np.float32)
    for kk in range(k):
        wp[:, kk * cb:kk * cb + ci] = w[:, :, kk]
    pre = dict(ci=ci, cb=cb, t=t_mel, pad_l=p, col_rows=k * cb,
               offsets=[kk - p for kk in range(k)])
    inputs += [jnp.asarray(wp, jnp.bfloat16),
               jnp.asarray(np.asarray(params["conv_pre_b"],
                                      np.float32).reshape(-1, 1))]
    scratch += [((ci, t_mel + 2 * p), jnp.float32),
                ((k * cb, t_mel), jnp.float32)]

    # ---- upsample stages ----------------------------------------------------
    t_cur, c_cur = t_mel, c0
    stages = []
    for i, (u, k_up) in enumerate(zip(h.upsample_rates, h.upsample_kernel_sizes)):
        p_up = (k_up - u) // 2
        ci_up, c_out = c_cur, c0 // (2 ** (i + 1))
        t_out = (t_cur - 1) * u - 2 * p_up + k_up
        assert t_out % u == 0
        t_half = t_out // u
        cb_up = _round8(ci_up)

        wt = np.asarray(params["ups"][i]["w"], np.float32)  # (ci_up, c_out, k_up)
        phase_taps, all_offs = [], set()
        for r in range(u):
            j0 = (r + p_up) % u
            q0 = (r + p_up) // u
            taps = []
            for n, j in enumerate(range(j0, k_up, u)):
                taps.append((j, q0 - n))
                all_offs.add(q0 - n)
            phase_taps.append(taps)
        union = sorted(all_offs)
        n_off = len(union)
        up_pad_l = max(0, -union[0])
        up_pad_r = max(0, union[-1] + t_half - 1 - (t_cur - 1))

        up_w = np.zeros((u, c_out, n_off * cb_up), np.float32)
        for r in range(u):
            for (j, q) in phase_taps[r]:
                n = union.index(q)
                up_w[r, :, n * cb_up:n * cb_up + ci_up] = wt[:, :, j].T
        up_b = np.asarray(params["ups"][i]["b"], np.float32).reshape(-1, 1)

        scat = np.zeros((u, t_half, t_out), np.float32)     # S_r[m, u*m + r] = 1
        for r in range(u):
            for m in range(t_half):
                scat[r, m, u * m + r] = 1.0

        # resblock weights / biases packed into one slab per stage.
        c = c_out
        cb_rb = _round8(c)
        rb_col_rows = kmax * cb_rb
        n_conv = 2 * sum(len(d) for _, d in rb_meta)
        rb_w = np.zeros((n_conv, c, rb_col_rows), np.float32)
        rb_b = np.zeros((c, n_conv), np.float32)
        pad_max = 0
        cidx = 0
        for rb_idx, (ksz, dils) in enumerate(rb_meta):
            rb = params["resblocks"][i * num_k + rb_idx]
            for m, d in enumerate(dils):
                for which, conv, dd in ((0, rb["convs1"][m], d),
                                        (1, rb["convs2"][m], 1)):
                    wcv = np.asarray(conv["w"], np.float32)  # (c, c, ksz)
                    for kk in range(ksz):
                        rb_w[cidx + which, :, kk * cb_rb:kk * cb_rb + c] = wcv[:, :, kk]
                    rb_b[:, cidx + which] = np.asarray(conv["b"], np.float32)
                    pad_max = max(pad_max, dd * (ksz - 1) // 2)
                cidx += 2

        inputs += [jnp.asarray(up_w, jnp.bfloat16), jnp.asarray(up_b),
                   jnp.asarray(scat), jnp.asarray(rb_w, jnp.bfloat16),
                   jnp.asarray(rb_b)]
        scratch += [((ci_up, t_cur + up_pad_l + up_pad_r), jnp.float32),
                    ((n_off * cb_up, t_half), jnp.float32),
                    ((c, t_out + 2 * pad_max), jnp.float32),
                    ((rb_col_rows, t_out), jnp.float32)]

        stages.append(dict(stride=u, ci_up=ci_up, cb_up=cb_up, t_half=t_half,
                           up_offsets=union, up_pad_l=up_pad_l,
                           c=c, cb=cb_rb, t_out=t_out, rb_pad_l=pad_max,
                           rb_col_rows=rb_col_rows, rb_meta=rb_meta))
        t_cur, c_cur = t_out, c_out

    # ---- conv_post (no bias) + folded Haar IDWT -----------------------------
    wpost = np.asarray(params["conv_post_w"], np.float32)   # (2, c_cur, 7)
    kp = wpost.shape[2]
    pp = (kp - 1) // 2
    cbp = _round8(c_cur)
    post_w = np.zeros((2, kp * cbp), np.float32)
    for kk in range(kp):
        post_w[:, kk * cbp:kk * cbp + c_cur] = wpost[:, :, kk]
    post = dict(ci=c_cur, cb=cbp, t=t_cur, pad_l=pp, col_rows=kp * cbp,
                offsets=[kk - pp for kk in range(kp)])
    # out = lo @ (S0+S1)/sqrt2 + hi @ (S0-S1)/sqrt2  (db1 inverse, mode='zero')
    s0 = np.zeros((t_cur, 2 * t_cur), np.float32)
    s1 = np.zeros((t_cur, 2 * t_cur), np.float32)
    for m in range(t_cur):
        s0[m, 2 * m] = 1.0
        s1[m, 2 * m + 1] = 1.0
    idwt = np.stack([(s0 + s1) * INV_SQRT2, (s0 - s1) * INV_SQRT2], axis=0)
    inputs += [jnp.asarray(post_w, jnp.bfloat16), jnp.asarray(idwt)]
    scratch += [((c_cur, t_cur + 2 * pp), jnp.float32),
                ((kp * cbp, t_cur), jnp.float32)]

    return dict(pre=pre, stages=stages, post=post, inputs=inputs,
                scratch=scratch, t_mel=t_mel, t_final=2 * t_cur)


if __name__ == "__main__":
    h = HParams()
    key = jax.random.PRNGKey(0)
    pkey, xkey = jax.random.split(key)
    params = init_generator_params(pkey, h)

    B, T = 2, 8
    plan = prepare_params(params, h, t_mel=T)
    x = jax.random.normal(xkey, (B, 80, T), jnp.float32)     # mel input (B, 80, T)

    fwd = jax.jit(functools.partial(generator_forward, plan))
    out = fwd(x)
    jax.block_until_ready(out)

    total_up = 1
    for u in h.upsample_rates:
        total_up *= u
    expected = (B, 1, T * total_up * 2)      # x2 from the inverse Haar DWT
    assert out.shape == expected, (out.shape, expected)
    assert bool(jnp.all(jnp.isfinite(out)))
    print("KERNEL_OK")
</pallas_src>

<mosaic_0001>
module attributes {stable_mosaic.version = 11 : i64} {
  func.func @kernel(%arg0: i32, %arg1: memref<1x80x8xf32, #tpu.memory_space<vmem>>, %arg2: memref<16x560xbf16, #tpu.memory_space<vmem>>, %arg3: memref<16x1xf32, #tpu.memory_space<vmem>>, %arg4: memref<2x8x48xbf16, #tpu.memory_space<vmem>>, %arg5: memref<8x1xf32, #tpu.memory_space<vmem>>, %arg6: memref<2x8x16xf32, #tpu.memory_space<vmem>>, %arg7: memref<12x8x40xbf16, #tpu.memory_space<vmem>>, %arg8: memref<8x12xf32, #tpu.memory_space<vmem>>, %arg9: memref<2x4x24xbf16, #tpu.memory_space<vmem>>, %arg10: memref<4x1xf32, #tpu.memory_space<vmem>>, %arg11: memref<2x16x32xf32, #tpu.memory_space<vmem>>, %arg12: memref<12x4x40xbf16, #tpu.memory_space<vmem>>, %arg13: memref<4x12xf32, #tpu.memory_space<vmem>>, %arg14: memref<2x56xbf16, #tpu.memory_space<vmem>>, %arg15: memref<2x32x64xf32, #tpu.memory_space<vmem>>, %arg16: memref<1x1x64xf32, #tpu.memory_space<vmem>>, %arg17: memref<80x14xf32, #tpu.memory_space<vmem>>, %arg18: memref<560x8xf32, #tpu.memory_space<vmem>>, %arg19: memref<16x10xf32, #tpu.memory_space<vmem>>, %arg20: memref<48x8xf32, #tpu.memory_space<vmem>>, %arg21: memref<8x36xf32, #tpu.memory_space<vmem>>, %arg22: memref<40x16xf32, #tpu.memory_space<vmem>>, %arg23: memref<8x18xf32, #tpu.memory_space<vmem>>, %arg24: memref<24x16xf32, #tpu.memory_space<vmem>>, %arg25: memref<4x52xf32, #tpu.memory_space<vmem>>, %arg26: memref<40x32xf32, #tpu.memory_space<vmem>>, %arg27: memref<4x38xf32, #tpu.memory_space<vmem>>, %arg28: memref<56x32xf32, #tpu.memory_space<vmem>>) attributes {dimension_semantics = [#tpu.dimension_semantics<parallel>], iteration_bounds = array<i64: 2>, scalar_prefetch = 0 : i64, scratch_operands = 12 : i64, tpu.core_type = #tpu.core_type<tc>, window_params = [{transform_indices = @transform_0, window_bounds = array<i64: 1, 80, 8>}, {pipeline_mode = #tpu.pipeline_mode<synchronous>, transform_indices = @transform_1, window_bounds = array<i64: 16, 560>}, {pipeline_mode = #tpu.pipeline_mode<synchronous>, transform_indices = @transform_2, window_bounds = array<i64: 16, 1>}, {pipeline_mode = #tpu.pipeline_mode<synchronous>, transform_indices = @transform_3, window_bounds = array<i64: 2, 8, 48>}, {pipeline_mode = #tpu.pipeline_mode<synchronous>, transform_indices = @transform_4, window_bounds = array<i64: 8, 1>}, {pipeline_mode = #tpu.pipeline_mode<synchronous>, transform_indices = @transform_5, window_bounds = array<i64: 2, 8, 16>}, {pipeline_mode = #tpu.pipeline_mode<synchronous>, transform_indices = @transform_6, window_bounds = array<i64: 12, 8, 40>}, {pipeline_mode = #tpu.pipeline_mode<synchronous>, transform_indices = @transform_7, window_bounds = array<i64: 8, 12>}, {pipeline_mode = #tpu.pipeline_mode<synchronous>, transform_indices = @transform_8, window_bounds = array<i64: 2, 4, 24>}, {pipeline_mode = #tpu.pipeline_mode<synchronous>, transform_indices = @transform_9, window_bounds = array<i64: 4, 1>}, {pipeline_mode = #tpu.pipeline_mode<synchronous>, transform_indices = @transform_10, window_bounds = array<i64: 2, 16, 32>}, {pipeline_mode = #tpu.pipeline_mode<synchronous>, transform_indices = @transform_11, window_bounds = array<i64: 12, 4, 40>}, {pipeline_mode = #tpu.pipeline_mode<synchronous>, transform_indices = @transform_12, window_bounds = array<i64: 4, 12>}, {pipeline_mode = #tpu.pipeline_mode<synchronous>, transform_indices = @transform_13, window_bounds = array<i64: 2, 56>}, {pipeline_mode = #tpu.pipeline_mode<synchronous>, transform_indices = @transform_14, window_bounds = array<i64: 2, 32, 64>}, {transform_indices = @transform_15, window_bounds = array<i64: 1, 1, 64>}]} {
    %cst = arith.constant 0.000000e+00 : f32
    %0 = vector.broadcast %cst : f32 to vector<80x14xf32>
    %c0 = arith.constant 0 : index
    %c0_0 = arith.constant 0 : index
    %1 = vector.load %arg17[%c0, %c0_0] : memref<80x14xf32, #tpu.memory_space<vmem>>, vector<80x14xf32>
    tpu.vector_store %arg17[%c0, %c0_0], %0 {strides = array<i32>} : memref<80x14xf32, #tpu.memory_space<vmem>>, vector<80x14xf32>,
    %cst_1 = arith.constant 0.000000e+00 : f32
    %2 = vector.broadcast %cst_1 : f32 to vector<560x8xf32>
    %c0_2 = arith.constant 0 : index
    %c0_3 = arith.constant 0 : index
    %3 = vector.load %arg18[%c0_2, %c0_3] : memref<560x8xf32, #tpu.memory_space<vmem>>, vector<560x8xf32>
    tpu.vector_store %arg18[%c0_2, %c0_3], %2 {strides = array<i32>} : memref<560x8xf32, #tpu.memory_space<vmem>>, vector<560x8xf32>,
    %cst_4 = arith.constant 0.000000e+00 : f32
    %4 = vector.broadcast %cst_4 : f32 to vector<16x10xf32>
    %c0_5 = arith.constant 0 : index
    %c0_6 = arith.constant 0 : index
    %5 = vector.load %arg19[%c0_5, %c0_6] : memref<16x10xf32, #tpu.memory_space<vmem>>, vector<16x10xf32>
    tpu.vector_store %arg19[%c0_5, %c0_6], %4 {strides = array<i32>} : memref<16x10xf32, #tpu.memory_space<vmem>>, vector<16x10xf32>,
    %cst_7 = arith.constant 0.000000e+00 : f32
    %6 = vector.broadcast %cst_7 : f32 to vector<48x8xf32>
    %c0_8 = arith.constant 0 : index
    %c0_9 = arith.constant 0 : index
    %7 = vector.load %arg20[%c0_8, %c0_9] : memref<48x8xf32, #tpu.memory_space<vmem>>, vector<48x8xf32>
    tpu.vector_store %arg20[%c0_8, %c0_9], %6 {strides = array<i32>} : memref<48x8xf32, #tpu.memory_space<vmem>>, vector<48x8xf32>,
    %cst_10 = arith.constant 0.000000e+00 : f32
    %8 = vector.broadcast %cst_10 : f32 to vector<8x36xf32>
    %c0_11 = arith.constant 0 : index
    %c0_12 = arith.constant 0 : index
    %9 = vector.load %arg21[%c0_11, %c0_12] : memref<8x36xf32, #tpu.memory_space<vmem>>, vector<8x36xf32>
    tpu.vector_store %arg21[%c0_11, %c0_12], %8 {strides = array<i32>} : memref<8x36xf32, #tpu.memory_space<vmem>>, vector<8x36xf32>,
    %cst_13 = arith.constant 0.000000e+00 : f32
    %10 = vector.broadcast %cst_13 : f32 to vector<40x16xf32>
    %c0_14 = arith.constant 0 : index
    %c0_15 = arith.constant 0 : index
    %11 = vector.load %arg22[%c0_14, %c0_15] : memref<40x16xf32, #tpu.memory_space<vmem>>, vector<40x16xf32>
    tpu.vector_store %arg22[%c0_14, %c0_15], %10 {strides = array<i32>} : memref<40x16xf32, #tpu.memory_space<vmem>>, vector<40x16xf32>,
    %cst_16 = arith.constant 0.000000e+00 : f32
    %12 = vector.broadcast %cst_16 : f32 to vector<8x18xf32>
    %c0_17 = arith.constant 0 : index
    %c0_18 = arith.constant 0 : index
    %13 = vector.load %arg23[%c0_17, %c0_18] : memref<8x18xf32, #tpu.memory_space<vmem>>, vector<8x18xf32>
    tpu.vector_store %arg23[%c0_17, %c0_18], %12 {strides = array<i32>} : memref<8x18xf32, #tpu.memory_space<vmem>>, vector<8x18xf32>,
    %cst_19 = arith.constant 0.000000e+00 : f32
    %14 = vector.broadcast %cst_19 : f32 to vector<24x16xf32>
    %c0_20 = arith.constant 0 : index
    %c0_21 = arith.constant 0 : index
    %15 = vector.load %arg24[%c0_20, %c0_21] : memref<24x16xf32, #tpu.memory_space<vmem>>, vector<24x16xf32>
    tpu.vector_store %arg24[%c0_20, %c0_21], %14 {strides = array<i32>} : memref<24x16xf32, #tpu.memory_space<vmem>>, vector<24x16xf32>,
    %cst_22 = arith.constant 0.000000e+00 : f32
    %16 = vector.broadcast %cst_22 : f32 to vector<4x52xf32>
    %c0_23 = arith.constant 0 : index
    %c0_24 = arith.constant 0 : index
    %17 = vector.load %arg25[%c0_23, %c0_24] : memref<4x52xf32, #tpu.memory_space<vmem>>, vector<4x52xf32>
    tpu.vector_store %arg25[%c0_23, %c0_24], %16 {strides = array<i32>} : memref<4x52xf32, #tpu.memory_space<vmem>>, vector<4x52xf32>,
    %cst_25 = arith.constant 0.000000e+00 : f32
    %18 = vector.broadcast %cst_25 : f32 to vector<40x32xf32>
    %c0_26 = arith.constant 0 : index
    %c0_27 = arith.constant 0 : index
    %19 = vector.load %arg26[%c0_26, %c0_27] : memref<40x32xf32, #tpu.memory_space<vmem>>, vector<40x32xf32>
    tpu.vector_store %arg26[%c0_26, %c0_27], %18 {strides = array<i32>} : memref<40x32xf32, #tpu.memory_space<vmem>>, vector<40x32xf32>,
    %cst_28 = arith.constant 0.000000e+00 : f32
    %20 = vector.broadcast %cst_28 : f32 to vector<4x38xf32>
    %c0_29 = arith.constant 0 : index
    %c0_30 = arith.constant 0 : index
    %21 = vector.load %arg27[%c0_29, %c0_30] : memref<4x38xf32, #tpu.memory_space<vmem>>, vector<4x38xf32>
    tpu.vector_store %arg27[%c0_29, %c0_30], %20 {strides = array<i32>} : memref<4x38xf32, #tpu.memory_space<vmem>>, vector<4x38xf32>,
    %cst_31 = arith.constant 0.000000e+00 : f32
    %22 = vector.broadcast %cst_31 : f32 to vector<56x32xf32>
    %c0_32 = arith.constant 0 : index
    %c0_33 = arith.constant 0 : index
    %23 = vector.load %arg28[%c0_32, %c0_33] : memref<56x32xf32, #tpu.memory_space<vmem>>, vector<56x32xf32>
    tpu.vector_store %arg28[%c0_32, %c0_33], %22 {strides = array<i32>} : memref<56x32xf32, #tpu.memory_space<vmem>>, vector<56x32xf32>,
    %c0_34 = arith.constant 0 : index
    %c0_35 = arith.constant 0 : index
    %c0_36 = arith.constant 0 : index
    %24 = vector.load %arg1[%c0_34, %c0_35, %c0_36] : memref<1x80x8xf32, #tpu.memory_space<vmem>>, vector<1x80x8xf32>
    %25 = vector.shape_cast %24 : vector<1x80x8xf32> to vector<80x8xf32>
    %c0_37 = arith.constant 0 : index
    %c0_38 = arith.constant 0 : index
    %26 = vector.load %arg2[%c0_37, %c0_38] : memref<16x560xbf16, #tpu.memory_space<vmem>>, vector<16x560xbf16>
    %c0_39 = arith.constant 0 : index
    %c0_40 = arith.constant 0 : index
    %27 = vector.load %arg3[%c0_39, %c0_40] : memref<16x1xf32, #tpu.memory_space<vmem>>, vector<16x1xf32>
    %c0_41 = arith.constant 0 : index
    %c3 = arith.constant 3 : index
    %28 = vector.load %arg17[%c0_41, %c3] : memref<80x14xf32, #tpu.memory_space<vmem>>, vector<80x8xf32>
    tpu.vector_store %arg17[%c0_41, %c3], %25 {strides = array<i32>} : memref<80x14xf32, #tpu.memory_space<vmem>>, vector<80x8xf32>,
    %c0_42 = arith.constant 0 : index
    %c0_43 = arith.constant 0 : index
    %29 = vector.load %arg17[%c0_42, %c0_43] : memref<80x14xf32, #tpu.memory_space<vmem>>, vector<80x8xf32>
    %c0_44 = arith.constant 0 : index
    %c0_45 = arith.constant 0 : index
    %30 = vector.load %arg18[%c0_44, %c0_45] : memref<560x8xf32, #tpu.memory_space<vmem>>, vector<80x8xf32>
    tpu.vector_store %arg18[%c0_44, %c0_45], %29 {strides = array<i32>} : memref<560x8xf32, #tpu.memory_space<vmem>>, vector<80x8xf32>,
    %c0_46 = arith.constant 0 : index
    %c1 = arith.constant 1 : index
    %31 = vector.load %arg17[%c0_46, %c1] : memref<80x14xf32, #tpu.memory_space<vmem>>, vector<80x8xf32>
    %c80 = arith.constant 80 : index
    %c0_47 = arith.constant 0 : index
    %32 = vector.load %arg18[%c80, %c0_47] : memref<560x8xf32, #tpu.memory_space<vmem>>, vector<80x8xf32>
    tpu.vector_store %arg18[%c80, %c0_47], %31 {strides = array<i32>} : memref<560x8xf32, #tpu.memory_space<vmem>>, vector<80x8xf32>,
    %c0_48 = arith.constant 0 : index
    %c2 = arith.constant 2 : index
    %33 = vector.load %arg17[%c0_48, %c2] : memref<80x14xf32, #tpu.memory_space<vmem>>, vector<80x8xf32>
    %c160 = arith.constant 160 : index
    %c0_49 = arith.constant 0 : index
    %34 = vector.load %arg18[%c160, %c0_49] : memref<560x8xf32, #tpu.memory_space<vmem>>, vector<80x8xf32>
    tpu.vector_store %arg18[%c160, %c0_49], %33 {strides = array<i32>} : memref<560x8xf32, #tpu.memory_space<vmem>>, vector<80x8xf32>,
    %c0_50 = arith.constant 0 : index
    %c3_51 = arith.constant 3 : index
    %35 = vector.load %arg17[%c0_50, %c3_51] : memref<80x14xf32, #tpu.memory_space<vmem>>, vector<80x8xf32>
    %c240 = arith.constant 240 : index
    %c0_52 = arith.constant 0 : index
    %36 = vector.load %arg18[%c240, %c0_52] : memref<560x8xf32, #tpu.memory_space<vmem>>, vector<80x8xf32>
    tpu.vector_store %arg18[%c240, %c0_52], %35 {strides = array<i32>} : memref<560x8xf32, #tpu.memory_space<vmem>>, vector<80x8xf32>,
    %c0_53 = arith.constant 0 : index
    %c4 = arith.constant 4 : index
    %37 = vector.load %arg17[%c0_53, %c4] : memref<80x14xf32, #tpu.memory_space<vmem>>, vector<80x8xf32>
    %c320 = arith.constant 320 : index
    %c0_54 = arith.constant 0 : index
    %38 = vector.load %arg18[%c320, %c0_54] : memref<560x8xf32, #tpu.memory_space<vmem>>, vector<80x8xf32>
    tpu.vector_store %arg18[%c320, %c0_54], %37 {strides = array<i32>} : memref<560x8xf32, #tpu.memory_space<vmem>>, vector<80x8xf32>,
    %c0_55 = arith.constant 0 : index
    %c5 = arith.constant 5 : index
    %39 = vector.load %arg17[%c0_55, %c5] : memref<80x14xf32, #tpu.memory_space<vmem>>, vector<80x8xf32>
    %c400 = arith.constant 400 : index
    %c0_56 = arith.constant 0 : index
    %40 = vector.load %arg18[%c400, %c0_56] : memref<560x8xf32, #tpu.memory_space<vmem>>, vector<80x8xf32>
    tpu.vector_store %arg18[%c400, %c0_56], %39 {strides = array<i32>} : memref<560x8xf32, #tpu.memory_space<vmem>>, vector<80x8xf32>,
    %c0_57 = arith.constant 0 : index
    %c6 = arith.constant 6 : index
    %41 = vector.load %arg17[%c0_57, %c6] : memref<80x14xf32, #tpu.memory_space<vmem>>, vector<80x8xf32>
    %c480 = arith.constant 480 : index
    %c0_58 = arith.constant 0 : index
    %42 = vector.load %arg18[%c480, %c0_58] : memref<560x8xf32, #tpu.memory_space<vmem>>, vector<80x8xf32>
    tpu.vector_store %arg18[%c480, %c0_58], %41 {strides = array<i32>} : memref<560x8xf32, #tpu.memory_space<vmem>>, vector<80x8xf32>,
    %c0_59 = arith.constant 0 : index
    %c0_60 = arith.constant 0 : index
    %43 = vector.load %arg18[%c0_59, %c0_60] : memref<560x8xf32, #tpu.memory_space<vmem>>, vector<560x8xf32>
    %44 = arith.truncf %43 : vector<560x8xf32> to vector<560x8xbf16>
    %cst_61 = arith.constant dense<0.000000e+00> : vector<16x8xf32>
    %45 = tpu.matmul %26, %44, %cst_61 {dimension_numbers = #tpu.dot_dimension_numbers<[1], [0], [0], [1], [0, 0, 1, 1], [], []>} : vector<16x560xbf16>, vector<560x8xbf16>, vector<16x8xf32> -> vector<16x8xf32>
    %46 = vector.broadcast %27 : vector<16x1xf32> to vector<16x8xf32>
    %47 = arith.addf %45, %46 : vector<16x8xf32>
    %cst_62 = arith.constant 0.000000e+00 : f32
    %48 = vector.broadcast %cst_62 : f32 to vector<16x8xf32>
    %49 = arith.cmpf ogt, %47, %48 : vector<16x8xf32>
    %cst_63 = arith.constant 1.000000e-01 : f32
    %50 = vector.broadcast %cst_63 : f32 to vector<16x8xf32>
    %51 = arith.mulf %50, %47 : vector<16x8xf32>
    %52 = arith.select %49, %47, %51 : vector<16x8xi1>, vector<16x8xf32>
    %c0_64 = arith.constant 0 : index
    %c1_65 = arith.constant 1 : index
    %53 = vector.load %arg19[%c0_64, %c1_65] : memref<16x10xf32, #tpu.memory_space<vmem>>, vector<16x8xf32>
    tpu.vector_store %arg19[%c0_64, %c1_65], %52 {strides = array<i32>} : memref<16x10xf32, #tpu.memory_space<vmem>>, vector<16x8xf32>,
    %c0_66 = arith.constant 0 : index
    %c0_67 = arith.constant 0 : index
    %54 = vector.load %arg19[%c0_66, %c0_67] : memref<16x10xf32, #tpu.memory_space<vmem>>, vector<16x8xf32>
    %c0_68 = arith.constant 0 : index
    %c0_69 = arith.constant 0 : index
    %55 = vector.load %arg20[%c0_68, %c0_69] : memref<48x8xf32, #tpu.memory_space<vmem>>, vector<16x8xf32>
    tpu.vector_store %arg20[%c0_68, %c0_69], %54 {strides = array<i32>} : memref<48x8xf32, #tpu.memory_space<vmem>>, vector<16x8xf32>,
    %c0_70 = arith.constant 0 : index
    %c1_71 = arith.constant 1 : index
    %56 = vector.load %arg19[%c0_70, %c1_71] : memref<16x10xf32, #tpu.memory_space<vmem>>, vector<16x8xf32>
    %c16 = arith.constant 16 : index
    %c0_72 = arith.constant 0 : index
    %57 = vector.load %arg20[%c16, %c0_72] : memref<48x8xf32, #tpu.memory_space<vmem>>, vector<16x8xf32>
    tpu.vector_store %arg20[%c16, %c0_72], %56 {strides = array<i32>} : memref<48x8xf32, #tpu.memory_space<vmem>>, vector<16x8xf32>,
    %c0_73 = arith.constant 0 : index
    %c2_74 = arith.constant 2 : index
    %58 = vector.load %arg19[%c0_73, %c2_74] : memref<16x10xf32, #tpu.memory_space<vmem>>, vector<16x8xf32>
    %c32 = arith.constant 32 : index
    %c0_75 = arith.constant 0 : index
    %59 = vector.load %arg20[%c32, %c0_75] : memref<48x8xf32, #tpu.memory_space<vmem>>, vector<16x8xf32>
    tpu.vector_store %arg20[%c32, %c0_75], %58 {strides = array<i32>} : memref<48x8xf32, #tpu.memory_space<vmem>>, vector<16x8xf32>,
    %c0_76 = arith.constant 0 : index
    %c0_77 = arith.constant 0 : index
    %60 = vector.load %arg20[%c0_76, %c0_77] : memref<48x8xf32, #tpu.memory_space<vmem>>, vector<48x8xf32>
    %61 = arith.truncf %60 : vector<48x8xf32> to vector<48x8xbf16>
    %c0_78 = arith.constant 0 : index
    %c0_79 = arith.constant 0 : index
    %c0_80 = arith.constant 0 : index
    %62 = vector.load %arg4[%c0_78, %c0_79, %c0_80] : memref<2x8x48xbf16, #tpu.memory_space<vmem>>, vector<1x8x48xbf16>
    %63 = vector.shape_cast %62 : vector<1x8x48xbf16> to vector<8x48xbf16>
    %cst_81 = arith.constant dense<0.000000e+00> : vector<8x8xf32>
    %64 = tpu.matmul %63, %61, %cst_81 {dimension_numbers = #tpu.dot_dimension_numbers<[1], [0], [0], [1], [0, 0, 1, 1], [], []>} : vector<8x48xbf16>, vector<48x8xbf16>, vector<8x8xf32> -> vector<8x8xf32>
    %c0_82 = arith.constant 0 : index
    %c0_83 = arith.constant 0 : index
    %c0_84 = arith.constant 0 : index
    %65 = vector.load %arg6[%c0_82, %c0_83, %c0_84] : memref<2x8x16xf32, #tpu.memory_space<vmem>>, vector<1x8x16xf32>
    %66 = vector.shape_cast %65 : vector<1x8x16xf32> to vector<8x16xf32>
    %cst_85 = arith.constant dense<0.000000e+00> : vector<8x16xf32>
    %67 = tpu.matmul %64, %66, %cst_85 {dimension_numbers = #tpu.dot_dimension_numbers<[1], [0], [0], [1], [0, 0, 1, 1], [], []>} : vector<8x8xf32>, vector<8x16xf32>, vector<8x16xf32> -> vector<8x16xf32>
    %c1_86 = arith.constant 1 : index
    %c0_87 = arith.constant 0 : index
    %c0_88 = arith.constant 0 : index
    %68 = vector.load %arg4[%c1_86, %c0_87, %c0_88] : memref<2x8x48xbf16, #tpu.memory_space<vmem>>, vector<1x8x48xbf16>
    %69 = vector.shape_cast %68 : vector<1x8x48xbf16> to vector<8x48xbf16>
    %cst_89 = arith.constant dense<0.000000e+00> : vector<8x8xf32>
    %70 = tpu.matmul %69, %61, %cst_89 {dimension_numbers = #tpu.dot_dimension_numbers<[1], [0], [0], [1], [0, 0, 1, 1], [], []>} : vector<8x48xbf16>, vector<48x8xbf16>, vector<8x8xf32> -> vector<8x8xf32>
    %c1_90 = arith.constant 1 : index
    %c0_91 = arith.constant 0 : index
    %c0_92 = arith.constant 0 : index
    %71 = vector.load %arg6[%c1_90, %c0_91, %c0_92] : memref<2x8x16xf32, #tpu.memory_space<vmem>>, vector<1x8x16xf32>
    %72 = vector.shape_cast %71 : vector<1x8x16xf32> to vector<8x16xf32>
    %cst_93 = arith.constant dense<0.000000e+00> : vector<8x16xf32>
    %73 = tpu.matmul %70, %72, %cst_93 {dimension_numbers = #tpu.dot_dimension_numbers<[1], [0], [0], [1], [0, 0, 1, 1], [], []>} : vector<8x8xf32>, vector<8x16xf32>, vector<8x16xf32> -> vector<8x16xf32>
    %74 = arith.addf %67, %73 : vector<8x16xf32>
    %c0_94 = arith.constant 0 : index
    %c0_95 = arith.constant 0 : index
    %75 = vector.load %arg5[%c0_94, %c0_95] : memref<8x1xf32, #tpu.memory_space<vmem>>, vector<8x1xf32>
    %76 = vector.broadcast %75 : vector<8x1xf32> to vector<8x16xf32>
    %77 = arith.addf %74, %76 : vector<8x16xf32>
    %cst_96 = arith.constant 0.000000e+00 : f32
    %78 = vector.broadcast %cst_96 : f32 to vector<8x16xf32>
    %79 = arith.cmpf ogt, %77, %78 : vector<8x16xf32>
    %cst_97 = arith.constant 1.000000e-01 : f32
    %80 = vector.broadcast %cst_97 : f32 to vector<8x16xf32>
    %81 = arith.mulf %80, %77 : vector<8x16xf32>
    %82 = arith.select %79, %77, %81 : vector<8x16xi1>, vector<8x16xf32>
    %c0_98 = arith.constant 0 : index
    %c0_99 = arith.constant 0 : index
    %c0_100 = arith.constant 0 : index
    %83 = vector.load %arg7[%c0_98, %c0_99, %c0_100] : memref<12x8x40xbf16, #tpu.memory_space<vmem>>, vector<1x8x40xbf16>
    %84 = vector.shape_cast %83 : vector<1x8x40xbf16> to vector<8x40xbf16>
    %c0_101 = arith.constant 0 : index
    %c0_102 = arith.constant 0 : index
    %85 = vector.load %arg8[%c0_101, %c0_102] : memref<8x12xf32, #tpu.memory_space<vmem>>, vector<8x1xf32>
    %c0_103 = arith.constant 0 : index
    %c10 = arith.constant 10 : index
    %86 = vector.load %arg21[%c0_103, %c10] : memref<8x36xf32, #tpu.memory_space<vmem>>, vector<8x16xf32>
    tpu.vector_store %arg21[%c0_103, %c10], %82 {strides = array<i32>} : memref<8x36xf32, #tpu.memory_space<vmem>>, vector<8x16xf32>,
    %c0_104 = arith.constant 0 : index
    %c9 = arith.constant 9 : index
    %87 = vector.load %arg21[%c0_104, %c9] : memref<8x36xf32, #tpu.memory_space<vmem>>, vector<8x16xf32>
    %c0_105 = arith.constant 0 : index
    %c0_106 = arith.constant 0 : index
    %88 = vector.load %arg22[%c0_105, %c0_106] : memref<40x16xf32, #tpu.memory_space<vmem>>, vector<8x16xf32>
    tpu.vector_store %arg22[%c0_105, %c0_106], %87 {strides = array<i32>} : memref<40x16xf32, #tpu.memory_space<vmem>>, vector<8x16xf32>,
    %c0_107 = arith.constant 0 : index
    %c10_108 = arith.constant 10 : index
    %89 = vector.load %arg21[%c0_107, %c10_108] : memref<8x36xf32, #tpu.memory_space<vmem>>, vector<8x16xf32>
    %c8 = arith.constant 8 : index
    %c0_109 = arith.constant 0 : index
    %90 = vector.load %arg22[%c8, %c0_109] : memref<40x16xf32, #tpu.memory_space<vmem>>, vector<8x16xf32>
    tpu.vector_store %arg22[%c8, %c0_109], %89 {strides = array<i32>} : memref<40x16xf32, #tpu.memory_space<vmem>>, vector<8x16xf32>,
    %c0_110 = arith.constant 0 : index
    %c11 = arith.constant 11 : index
    %91 = vector.load %arg21[%c0_110, %c11] : memref<8x36xf32, #tpu.memory_space<vmem>>, vector<8x16xf32>
    %c16_111 = arith.constant 16 : index
    %c0_112 = arith.constant 0 : index
    %92 = vector.load %arg22[%c16_111, %c0_112] : memref<40x16xf32, #tpu.memory_space<vmem>>, vector<8x16xf32>
    tpu.vector_store %arg22[%c16_111, %c0_112], %91 {strides = array<i32>} : memref<40x16xf32, #tpu.memory_space<vmem>>, vector<8x16xf32>,
    %c0_113 = arith.constant 0 : index
    %c0_114 = arith.constant 0 : index
    %93 = vector.load %arg22[%c0_113, %c0_114] : memref<40x16xf32, #tpu.memory_space<vmem>>, vector<40x16xf32>
    %94 = arith.truncf %93 : vector<40x16xf32> to vector<40x16xbf16>
    %cst_115 = arith.constant dense<0.000000e+00> : vector<8x16xf32>
    %95 = tpu.matmul %84, %94, %cst_115 {dimension_numbers = #tpu.dot_dimension_numbers<[1], [0], [0], [1], [0, 0, 1, 1], [], []>} : vector<8x40xbf16>, vector<40x16xbf16>, vector<8x16xf32> -> vector<8x16xf32>
    %96 = vector.broadcast %85 : vector<8x1xf32> to vector<8x16xf32>
    %97 = arith.addf %95, %96 : vector<8x16xf32>
    %cst_116 = arith.constant 0.000000e+00 : f32
    %98 = vector.broadcast %cst_116 : f32 to vector<8x16xf32>
    %99 = arith.cmpf ogt, %97, %98 : vector<8x16xf32>
    %cst_117 = arith.constant 1.000000e-01 : f32
    %100 = vector.broadcast %cst_117 : f32 to vector<8x16xf32>
    %101 = arith.mulf %100, %97 : vector<8x16xf32>
    %102 = arith.select %99, %97, %101 : vector<8x16xi1>, vector<8x16xf32>
    %c1_118 = arith.constant 1 : index
    %c0_119 = arith.constant 0 : index
    %c0_120 = arith.constant 0 : index
    %103 = vector.load %arg7[%c1_118, %c0_119, %c0_120] : memref<12x8x40xbf16, #tpu.memory_space<vmem>>, vector<1x8x40xbf16>
    %104 = vector.shape_cast %103 : vector<1x8x40xbf16> to vector<8x40xbf16>
    %c0_121 = arith.constant 0 : index
    %c1_122 = arith.constant 1 : index
    %105 = vector.load %arg8[%c0_121, %c1_122] : memref<8x12xf32, #tpu.memory_space<vmem>>, vector<8x1xf32>
    %c0_123 = arith.constant 0 : index
    %c10_124 = arith.constant 10 : index
    %106 = vector.load %arg21[%c0_123, %c10_124] : memref<8x36xf32, #tpu.memory_space<vmem>>, vector<8x16xf32>
    tpu.vector_store %arg21[%c0_123, %c10_124], %102 {strides = array<i32>} : memref<8x36xf32, #tpu.memory_space<vmem>>, vector<8x16xf32>,
    %c0_125 = arith.constant 0 : index
    %c9_126 = arith.constant 9 : index
    %107 = vector.load %arg21[%c0_125, %c9_126] : memref<8x36xf32, #tpu.memory_space<vmem>>, vector<8x16xf32>
    %c0_127 = arith.constant 0 : index
    %c0_128 = arith.constant 0 : index
    %108 = vector.load %arg22[%c0_127, %c0_128] : memref<40x16xf32, #tpu.memory_space<vmem>>, vector<8x16xf32>
    tpu.vector_store %arg22[%c0_127, %c0_128], %107 {strides = array<i32>} : memref<40x16xf32, #tpu.memory_space<vmem>>, vector<8x16xf32>,
    %c0_129 = arith.constant 0 : index
    %c10_130 = arith.constant 10 : index
    %109 = vector.load %arg21[%c0_129, %c10_130] : memref<8x36xf32, #tpu.memory_space<vmem>>, vector<8x16xf32>
    %c8_131 = arith.constant 8 : index
    %c0_132 = arith.constant 0 : index
    %110 = vector.load %arg22[%c8_131, %c0_132] : memref<40x16xf32, #tpu.memory_space<vmem>>, vector<8x16xf32>
    tpu.vector_store %arg22[%c8_131, %c0_132], %109 {strides = array<i32>} : memref<40x16xf32, #tpu.memory_space<vmem>>, vector<8x16xf32>,
    %c0_133 = arith.constant 0 : index
    %c11_134 = arith.constant 11 : index
    %111 = vector.load %arg21[%c0_133, %c11_134] : memref<8x36xf32, #tpu.memory_space<vmem>>, vector<8x16xf32>
    %c16_135 = arith.constant 16 : index
    %c0_136 = arith.constant 0 : index
    %112 = vector.load %arg22[%c16_135, %c0_136] : memref<40x16xf32, #tpu.memory_space<vmem>>, vector<8x16xf32>
    tpu.vector_store %arg22[%c16_135, %c0_136], %111 {strides = array<i32>} : memref<40x16xf32, #tpu.memory_space<vmem>>, vector<8x16xf32>,
    %c0_137 = arith.constant 0 : index
    %c0_138 = arith.constant 0 : index
    %113 = vector.load %arg22[%c0_137, %c0_138] : memref<40x16xf32, #tpu.memory_space<vmem>>, vector<40x16xf32>
    %114 = arith.truncf %113 : vector<40x16xf32> to vector<40x16xbf16>
    %cst_139 = arith.constant dense<0.000000e+00> : vector<8x16xf32>
    %115 = tpu.matmul %104, %114, %cst_139 {dimension_numbers = #tpu.dot_dimension_numbers<[1], [0], [0], [1], [0, 0, 1, 1], [], []>} : vector<8x40xbf16>, vector<40x16xbf16>, vector<8x16xf32> -> vector<8x16xf32>
    %116 = vector.broadcast %105 : vector<8x1xf32> to vector<8x16xf32>
    %117 = arith.addf %115, %116 : vector<8x16xf32>
    %118 = arith.addf %117, %77 : vector<8x16xf32>
    %cst_140 = arith.constant 0.000000e+00 : f32
    %119 = vector.broadcast %cst_140 : f32 to vector<8x16xf32>
    %120 = arith.cmpf ogt, %118, %119 : vector<8x16xf32>
    %cst_141 = arith.constant 1.000000e-01 : f32
    %121 = vector.broadcast %cst_141 : f32 to vector<8x16xf32>
    %122 = arith.mulf %121, %118 : vector<8x16xf32>
    %123 = arith.select %120, %118, %122 : vector<8x16xi1>, vector<8x16xf32>
    %c2_142 = arith.constant 2 : index
    %c0_143 = arith.constant 0 : index
    %c0_144 = arith.constant 0 : index
    %124 = vector.load %arg7[%c2_142, %c0_143, %c0_144] : memref<12x8x40xbf16, #tpu.memory_space<vmem>>, vector<1x8x40xbf16>
    %125 = vector.shape_cast %124 : vector<1x8x40xbf16> to vector<8x40xbf16>
    %c0_145 = arith.constant 0 : index
    %c2_146 = arith.constant 2 : index
    %126 = vector.load %arg8[%c0_145, %c2_146] : memref<8x12xf32, #tpu.memory_space<vmem>>, vector<8x1xf32>
    %c0_147 = arith.constant 0 : index
    %c10_148 = arith.constant 10 : index
    %127 = vector.load %arg21[%c0_147, %c10_148] : memref<8x36xf32, #tpu.memory_space<vmem>>, vector<8x16xf32>
    tpu.vector_store %arg21[%c0_147, %c10_148], %123 {strides = array<i32>} : memref<8x36xf32, #tpu.memory_space<vmem>>, vector<8x16xf32>,
    %c0_149 = arith.constant 0 : index
    %c7 = arith.constant 7 : index
    %128 = vector.load %arg21[%c0_149, %c7] : memref<8x36xf32, #tpu.memory_space<vmem>>, vector<8x16xf32>
    %c0_150 = arith.constant 0 : index
    %c0_151 = arith.constant 0 : index
    %129 = vector.load %arg22[%c0_150, %c0_151] : memref<40x16xf32, #tpu.memory_space<vmem>>, vector<8x16xf32>
    tpu.vector_store %arg22[%c0_150, %c0_151], %128 {strides = array<i32>} : memref<40x16xf32, #tpu.memory_space<vmem>>, vector<8x16xf32>,
    %c0_152 = arith.constant 0 : index
    %c10_153 = arith.constant 10 : index
    %130 = vector.load %arg21[%c0_152, %c10_153] : memref<8x36xf32, #tpu.memory_space<vmem>>, vector<8x16xf32>
    %c8_154 = arith.constant 8 : index
    %c0_155 = arith.constant 0 : index
    %131 = vector.load %arg22[%c8_154, %c0_155] : memref<40x16xf32, #tpu.memory_space<vmem>>, vector<8x16xf32>
    tpu.vector_store %arg22[%c8_154, %c0_155], %130 {strides = array<i32>} : memref<40x16xf32, #tpu.memory_space<vmem>>, vector<8x16xf32>,
    %c0_156 = arith.constant 0 : index
    %c13 = arith.constant 13 : index
    %132 = vector.load %arg21[%c0_156, %c13] : memref<8x36xf32, #tpu.memory_space<vmem>>, vector<8x16xf32>
    %c16_157 = arith.constant 16 : index
    %c0_158 = arith.constant 0 : index
    %133 = vector.load %arg22[%c16_157, %c0_158] : memref<40x16xf32, #tpu.memory_space<vmem>>, vector<8x16xf32>
    tpu.vector_store %arg22[%c16_157, %c0_158], %132 {strides = array<i32>} : memref<40x16xf32, #tpu.memory_space<vmem>>, vector<8x16xf32>,
    %c0_159 = arith.constant 0 : index
    %c0_160 = arith.constant 0 : index
    %134 = vector.load %arg22[%c0_159, %c0_160] : memref<40x16xf32, #tpu.memory_space<vmem>>, vector<40x16xf32>
    %135 = arith.truncf %134 : vector<40x16xf32> to vector<40x16xbf16>
    %cst_161 = arith.constant dense<0.000000e+00> : vector<8x16xf32>
    %136 = tpu.matmul %125, %135, %cst_161 {dimension_numbers = #tpu.dot_dimension_numbers<[1], [0], [0], [1], [0, 0, 1, 1], [], []>} : vector<8x40xbf16>, vector<40x16xbf16>, vector<8x16xf32> -> vector<8x16xf32>
    %137 = vector.broadcast %126 : vector<8x1xf32> to vector<8x16xf32>
    %138 = arith.addf %136, %137 : vector<8x16xf32>
    %cst_162 = arith.constant 0.000000e+00 : f32
    %139 = vector.broadcast %cst_162 : f32 to vector<8x16xf32>
    %140 = arith.cmpf ogt, %138, %139 : vector<8x16xf32>
    %cst_163 = arith.constant 1.000000e-01 : f32
    %141 = vector.broadcast %cst_163 : f32 to vector<8x16xf32>
    %142 = arith.mulf %141, %138 : vector<8x16xf32>
    %143 = arith.select %140, %138, %142 : vector<8x16xi1>, vector<8x16xf32>
    %c3_164 = arith.constant 3 : index
    %c0_165 = arith.constant 0 : index
    %c0_166 = arith.constant 0 : index
    %144 = vector.load %arg7[%c3_164, %c0_165, %c0_166] : memref<12x8x40xbf16, #tpu.memory_space<vmem>>, vector<1x8x40xbf16>
    %145 = vector.shape_cast %144 : vector<1x8x40xbf16> to vector<8x40xbf16>
    %c0_167 = arith.constant 0 : index
    %c3_168 = arith.constant 3 : index
    %146 = vector.load %arg8[%c0_167, %c3_168] : memref<8x12xf32, #tpu.memory_space<vmem>>, vector<8x1xf32>
    %c0_169 = arith.constant 0 : index
    %c10_170 = arith.constant 10 : index
    %147 = vector.load %arg21[%c0_169, %c10_170] : memref<8x36xf32, #tpu.memory_space<vmem>>, vector<8x16xf32>
    tpu.vector_store %arg21[%c0_169, %c10_170], %143 {strides = array<i32>} : memref<8x36xf32, #tpu.memory_space<vmem>>, vector<8x16xf32>,
    %c0_171 = arith.constant 0 : index
    %c9_172 = arith.constant 9 : index
    %148 = vector.load %arg21[%c0_171, %c9_172] : memref<8x36xf32, #tpu.memory_space<vmem>>, vector<8x16xf32>
    %c0_173 = arith.constant 0 : index
    %c0_174 = arith.constant 0 : index
    %149 = vector.load %arg22[%c0_173, %c0_174] : memref<40x16xf32, #tpu.memory_space<vmem>>, vector<8x16xf32>
    tpu.vector_store %arg22[%c0_173, %c0_174], %148 {strides = array<i32>} : memref<40x16xf32, #tpu.memory_space<vmem>>, vector<8x16xf32>,
    %c0_175 = arith.constant 0 : index
    %c10_176 = arith.constant 10 : index
    %150 = vector.load %arg21[%c0_175, %c10_176] : memref<8x36xf32, #tpu.memory_space<vmem>>, vector<8x16xf32>
    %c8_177 = arith.constant 8 : index
    %c0_178 = arith.constant 0 : index
    %151 = vector.load %arg22[%c8_177, %c0_178] : memref<40x16xf32, #tpu.memory_space<vmem>>, vector<8x16xf32>
    tpu.vector_store %arg22[%c8_177, %c0_178], %150 {strides = array<i32>} : memref<40x16xf32, #tpu.memory_space<vmem>>, vector<8x16xf32>,
    %c0_179 = arith.constant 0 : index
    %c11_180 = arith.constant 11 : index
    %152 = vector.load %arg21[%c0_179, %c11_180] : memref<8x36xf32, #tpu.memory_space<vmem>>, vector<8x16xf32>
    %c16_181 = arith.constant 16 : index
    %c0_182 = arith.constant 0 : index
    %153 = vector.load %arg22[%c16_181, %c0_182] : memref<40x16xf32, #tpu.memory_space<vmem>>, vector<8x16xf32>
    tpu.vector_store %arg22[%c16_181, %c0_182], %152 {strides = array<i32>} : memref<40x16xf32, #tpu.memory_space<vmem>>, vector<8x16xf32>,
    %c0_183 = arith.constant 0 : index
    %c0_184 = arith.constant 0 : index
    %154 = vector.load %arg22[%c0_183, %c0_184] : memref<40x16xf32, #tpu.memory_space<vmem>>, vector<40x16xf32>
    %155 = arith.truncf %154 : vector<40x16xf32> to vector<40x16xbf16>
    %cst_185 = arith.constant dense<0.000000e+00> : vector<8x16xf32>
    %156 = tpu.matmul %145, %155, %cst_185 {dimension_numbers = #tpu.dot_dimension_numbers<[1], [0], [0], [1], [0, 0, 1, 1], [], []>} : vector<8x40xbf16>, vector<40x16xbf16>, vector<8x16xf32> -> vector<8x16xf32>
    %157 = vector.broadcast %146 : vector<8x1xf32> to vector<8x16xf32>
    %158 = arith.addf %156, %157 : vector<8x16xf32>
    %159 = arith.addf %158, %118 : vector<8x16xf32>
    %cst_186 = arith.constant 0.000000e+00 : f32
    %160 = vector.broadcast %cst_186 : f32 to vector<8x16xf32>
    %161 = arith.cmpf ogt, %159, %160 : vector<8x16xf32>
    %cst_187 = arith.constant 1.000000e-01 : f32
    %162 = vector.broadcast %cst_187 : f32 to vector<8x16xf32>
    %163 = arith.mulf %162, %159 : vector<8x16xf32>
    %164 = arith.select %161, %159, %163 : vector<8x16xi1>, vector<8x16xf32>
    %c4_188 = arith.constant 4 : index
    %c0_189 = arith.constant 0 : index
    %c0_190 = arith.constant 0 : index
    %165 = vector.load %arg7[%c4_188, %c0_189, %c0_190] : memref<12x8x40xbf16, #tpu.memory_space<vmem>>, vector<1x8x40xbf16>
    %166 = vector.shape_cast %165 : vector<1x8x40xbf16> to vector<8x40xbf16>
    %c0_191 = arith.constant 0 : index
    %c4_192 = arith.constant 4 : index
    %167 = vector.load %arg8[%c0_191, %c4_192] : memref<8x12xf32, #tpu.memory_space<vmem>>, vector<8x1xf32>
    %c0_193 = arith.constant 0 : index
    %c10_194 = arith.constant 10 : index
    %168 = vector.load %arg21[%c0_193, %c10_194] : memref<8x36xf32, #tpu.memory_space<vmem>>, vector<8x16xf32>
    tpu.vector_store %arg21[%c0_193, %c10_194], %164 {strides = array<i32>} : memref<8x36xf32, #tpu.memory_space<vmem>>, vector<8x16xf32>,
    %c0_195 = arith.constant 0 : index
    %c5_196 = arith.constant 5 : index
    %169 = vector.load %arg21[%c0_195, %c5_196] : memref<8x36xf32, #tpu.memory_space<vmem>>, vector<8x16xf32>
    %c0_197 = arith.constant 0 : index
    %c0_198 = arith.constant 0 : index
    %170 = vector.load %arg22[%c0_197, %c0_198] : memref<40x16xf32, #tpu.memory_space<vmem>>, vector<8x16xf32>
    tpu.vector_store %arg22[%c0_197, %c0_198], %169 {strides = array<i32>} : memref<40x16xf32, #tpu.memory_space<vmem>>, vector<8x16xf32>,
    %c0_199 = arith.constant 0 : index
    %c10_200 = arith.constant 10 : index
    %171 = vector.load %arg21[%c0_199, %c10_200] : memref<8x36xf32, #tpu.memory_space<vmem>>, vector<8x16xf32>
    %c8_201 = arith.constant 8 : index
    %c0_202 = arith.constant 0 : index
    %172 = vector.load %arg22[%c8_201, %c0_202] : memref<40x16xf32, #tpu.memory_space<vmem>>, vector<8x16xf32>
    tpu.vector_store %arg22[%c8_201, %c0_202], %171 {strides = array<i32>} : memref<40x16xf32, #tpu.memory_space<vmem>>, vector<8x16xf32>,
    %c0_203 = arith.constant 0 : index
    %c15 = arith.constant 15 : index
    %173 = vector.load %arg21[%c0_203, %c15] : memref<8x36xf32, #tpu.memory_space<vmem>>, vector<8x16xf32>
    %c16_204 = arith.constant 16 : index
    %c0_205 = arith.constant 0 : index
    %174 = vector.load %arg22[%c16_204, %c0_205] : memref<40x16xf32, #tpu.memory_space<vmem>>, vector<8x16xf32>
    tpu.vector_store %arg22[%c16_204, %c0_205], %173 {strides = array<i32>} : memref<40x16xf32, #tpu.memory_space<vmem>>, vector<8x16xf32>,
    %c0_206 = arith.constant 0 : index
    %c0_207 = arith.constant 0 : index
    %175 = vector.load %arg22[%c0_206, %c0_207] : memref<40x16xf32, #tpu.memory_space<vmem>>, vector<40x16xf32>
    %176 = arith.truncf %175 : vector<40x16xf32> to vector<40x16xbf16>
    %cst_208 = arith.constant dense<0.000000e+00> : vector<8x16xf32>
    %177 = tpu.matmul %166, %176, %cst_208 {dimension_numbers = #tpu.dot_dimension_numbers<[1], [0], [0], [1], [0, 0, 1, 1], [], []>} : vector<8x40xbf16>, vector<40x16xbf16>, vector<8x16xf32> -> vector<8x16xf32>
    %178 = vector.broadcast %167 : vector<8x1xf32> to vector<8x16xf32>
    %179 = arith.addf %177, %178 : vector<8x16xf32>
    %cst_209 = arith.constant 0.000000e+00 : f32
    %180 = vector.broadcast %cst_209 : f32 to vector<8x16xf32>
    %181 = arith.cmpf ogt, %179, %180 : vector<8x16xf32>
    %cst_210 = arith.constant 1.000000e-01 : f32
    %182 = vector.broadcast %cst_210 : f32 to vector<8x16xf32>
    %183 = arith.mulf %182, %179 : vector<8x16xf32>
    %184 = arith.select %181, %179, %183 : vector<8x16xi1>, vector<8x16xf32>
    %c5_211 = arith.constant 5 : index
    %c0_212 = arith.constant 0 : index
    %c0_213 = arith.constant 0 : index
    %185 = vector.load %arg7[%c5_211, %c0_212, %c0_213] : memref<12x8x40xbf16, #tpu.memory_space<vmem>>, vector<1x8x40xbf16>
    %186 = vector.shape_cast %185 : vector<1x8x40xbf16> to vector<8x40xbf16>
    %c0_214 = arith.constant 0 : index
    %c5_215 = arith.constant 5 : index
    %187 = vector.load %arg8[%c0_214, %c5_215] : memref<8x12xf32, #tpu.memory_space<vmem>>, vector<8x1xf32>
    %c0_216 = arith.constant 0 : index
    %c10_217 = arith.constant 10 : index
    %188 = vector.load %arg21[%c0_216, %c10_217] : memref<8x36xf32, #tpu.memory_space<vmem>>, vector<8x16xf32>
    tpu.vector_store %arg21[%c0_216, %c10_217], %184 {strides = array<i32>} : memref<8x36xf32, #tpu.memory_space<vmem>>, vector<8x16xf32>,
    %c0_218 = arith.constant 0 : index
    %c9_219 = arith.constant 9 : index
    %189 = vector.load %arg21[%c0_218, %c9_219] : memref<8x36xf32, #tpu.memory_space<vmem>>, vector<8x16xf32>
    %c0_220 = arith.constant 0 : index
    %c0_221 = arith.constant 0 : index
    %190 = vector.load %arg22[%c0_220, %c0_221] : memref<40x16xf32, #tpu.memory_space<vmem>>, vector<8x16xf32>
    tpu.vector_store %arg22[%c0_220, %c0_221], %189 {strides = array<i32>} : memref<40x16xf32, #tpu.memory_space<vmem>>, vector<8x16xf32>,
    %c0_222 = arith.constant 0 : index
    %c10_223 = arith.constant 10 : index
    %191 = vector.load %arg21[%c0_222, %c10_223] : memref<8x36xf32, #tpu.memory_space<vmem>>, vector<8x16xf32>
    %c8_224 = arith.constant 8 : index
    %c0_225 = arith.constant 0 : index
    %192 = vector.load %arg22[%c8_224, %c0_225] : memref<40x16xf32, #tpu.memory_space<vmem>>, vector<8x16xf32>
    tpu.vector_store %arg22[%c8_224, %c0_225], %191 {strides = array<i32>} : memref<40x16xf32, #tpu.memory_space<vmem>>, vector<8x16xf32>,
    %c0_226 = arith.constant 0 : index
    %c11_227 = arith.constant 11 : index
    %193 = vector.load %arg21[%c0_226, %c11_227] : memref<8x36xf32, #tpu.memory_space<vmem>>, vector<8x16xf32>
    %c16_228 = arith.constant 16 : index
    %c0_229 = arith.constant 0 : index
    %194 = vector.load %arg22[%c16_228, %c0_229] : memref<40x16xf32, #tpu.memory_space<vmem>>, vector<8x16xf32>
    tpu.vector_store %arg22[%c16_228, %c0_229], %193 {strides = array<i32>} : memref<40x16xf32, #tpu.memory_space<vmem>>, vector<8x16xf32>,
    %c0_230 = arith.constant 0 : index
    %c0_231 = arith.constant 0 : index
    %195 = vector.load %arg22[%c0_230, %c0_231] : memref<40x16xf32, #tpu.memory_space<vmem>>, vector<40x16xf32>
    %196 = arith.truncf %195 : vector<40x16xf32> to vector<40x16xbf16>
    %cst_232 = arith.constant dense<0.000000e+00> : vector<8x16xf32>
    %197 = tpu.matmul %186, %196, %cst_232 {dimension_numbers = #tpu.dot_dimension_numbers<[1], [0], [0], [1], [0, 0, 1, 1], [], []>} : vector<8x40xbf16>, vector<40x16xbf16>, vector<8x16xf32> -> vector<8x16xf32>
    %198 = vector.broadcast %187 : vector<8x1xf32> to vector<8x16xf32>
    %199 = arith.addf %197, %198 : vector<8x16xf32>
    %200 = arith.addf %199, %159 : vector<8x16xf32>
    %cst_233 = arith.constant 0.000000e+00 : f32
    %201 = vector.broadcast %cst_233 : f32 to vector<8x16xf32>
    %202 = arith.cmpf ogt, %77, %201 : vector<8x16xf32>
    %cst_234 = arith.constant 1.000000e-01 : f32
    %203 = vector.broadcast %cst_234 : f32 to vector<8x16xf32>
    %204 = arith.mulf %203, %77 : vector<8x16xf32>
    %205 = arith.select %202, %77, %204 : vector<8x16xi1>, vector<8x16xf32>
    %c6_235 = arith.constant 6 : index
    %c0_236 = arith.constant 0 : index
    %c0_237 = arith.constant 0 : index
    %206 = vector.load %arg7[%c6_235, %c0_236, %c0_237] : memref<12x8x40xbf16, #tpu.memory_space<vmem>>, vector<1x8x40xbf16>
    %207 = vector.shape_cast %206 : vector<1x8x40xbf16> to vector<8x40xbf16>
    %c0_238 = arith.constant 0 : index
    %c6_239 = arith.constant 6 : index
    %208 = vector.load %arg8[%c0_238, %c6_239] : memref<8x12xf32, #tpu.memory_space<vmem>>, vector<8x1xf32>
    %c0_240 = arith.constant 0 : index
    %c10_241 = arith.constant 10 : index
    %209 = vector.load %arg21[%c0_240, %c10_241] : memref<8x36xf32, #tpu.memory_space<vmem>>, vector<8x16xf32>
    tpu.vector_store %arg21[%c0_240, %c10_241], %205 {strides = array<i32>} : memref<8x36xf32, #tpu.memory_space<vmem>>, vector<8x16xf32>,
    %c0_242 = arith.constant 0 : index
    %c8_243 = arith.constant 8 : index
    %210 = vector.load %arg21[%c0_242, %c8_243] : memref<8x36xf32, #tpu.memory_space<vmem>>, vector<8x16xf32>
    %c0_244 = arith.constant 0 : index
    %c0_245 = arith.constant 0 : index
    %211 = vector.load %arg22[%c0_244, %c0_245] : memref<40x16xf32, #tpu.memory_space<vmem>>, vector<8x16xf32>
    tpu.vector_store %arg22[%c0_244, %c0_245], %210 {strides = array<i32>} : memref<40x16xf32, #tpu.memory_space<vmem>>, vector<8x16xf32>,
    %c0_246 = arith.constant 0 : index
    %c9_247 = arith.constant 9 : index
    %212 = vector.load %arg21[%c0_246, %c9_247] : memref<8x36xf32, #tpu.memory_space<vmem>>, vector<8x16xf32>
    %c8_248 = arith.constant 8 : index
    %c0_249 = arith.constant 0 : index
    %213 = vector.load %arg22[%c8_248, %c0_249] : memref<40x16xf32, #tpu.memory_space<vmem>>, vector<8x16xf32>
    tpu.vector_store %arg22[%c8_248, %c0_249], %212 {strides = array<i32>} : memref<40x16xf32, #tpu.memory_space<vmem>>, vector<8x16xf32>,
    %c0_250 = arith.constant 0 : index
    %c10_251 = arith.constant 10 : index
    %214 = vector.load %arg21[%c0_250, %c10_251] : memref<8x36xf32, #tpu.memory_space<vmem>>, vector<8x16xf32>
    %c16_252 = arith.constant 16 : index
    %c0_253 = arith.constant 0 : index
    %215 = vector.load %arg22[%c16_252, %c0_253] : memref<40x16xf32, #tpu.memory_space<vmem>>, vector<8x16xf32>
    tpu.vector_store %arg22[%c16_252, %c0_253], %214 {strides = array<i32>} : memref<40x16xf32, #tpu.memory_space<vmem>>, vector<8x16xf32>,
    %c0_254 = arith.constant 0 : index
    %c11_255 = arith.constant 11 : index
    %216 = vector.load %arg21[%c0_254, %c11_255] : memref<8x36xf32, #tpu.memory_space<vmem>>, vector<8x16xf32>
    %c24 = arith.constant 24 : index
    %c0_256 = arith.constant 0 : index
    %217 = vector.load %arg22[%c24, %c0_256] : memref<40x16xf32, #tpu.memory_space<vmem>>, vector<8x16xf32>
    tpu.vector_store %arg22[%c24, %c0_256], %216 {strides = array<i32>} : memref<40x16xf32, #tpu.memory_space<vmem>>, vector<8x16xf32>,
    %c0_257 = arith.constant 0 : index
    %c12 = arith.constant 12 : index
    %218 = vector.load %arg21[%c0_257, %c12] : memref<8x36xf32, #tpu.memory_space<vmem>>, vector<8x16xf32>
    %c32_258 = arith.constant 32 : index
    %c0_259 = arith.constant 0 : index
    %219 = vector.load %arg22[%c32_258, %c0_259] : memref<40x16xf32, #tpu.memory_space<vmem>>, vector<8x16xf32>
    tpu.vector_store %arg22[%c32_258, %c0_259], %218 {strides = array<i32>} : memref<40x16xf32, #tpu.memory_space<vmem>>, vector<8x16xf32>,
    %c0_260 = arith.constant 0 : index
    %c0_261 = arith.constant 0 : index
    %220 = vector.load %arg22[%c0_260, %c0_261] : memref<40x16xf32, #tpu.memory_space<vmem>>, vector<40x16xf32>
    %221 = arith.truncf %220 : vector<40x16xf32> to vector<40x16xbf16>
    %cst_262 = arith.constant dense<0.000000e+00> : vector<8x16xf32>
    %222 = tpu.matmul %207, %221, %cst_262 {dimension_numbers = #tpu.dot_dimension_numbers<[1], [0], [0], [1], [0, 0, 1, 1], [], []>} : vector<8x40xbf16>, vector<40x16xbf16>, vector<8x16xf32> -> vector<8x16xf32>
    %223 = vector.broadcast %208 : vector<8x1xf32> to vector<8x16xf32>
    %224 = arith.addf %222, %223 : vector<8x16xf32>
    %cst_263 = arith.constant 0.000000e+00 : f32
    %225 = vector.broadcast %cst_263 : f32 to vector<8x16xf32>
    %226 = arith.cmpf ogt, %224, %225 : vector<8x16xf32>
    %cst_264 = arith.constant 1.000000e-01 : f32
    %227 = vector.broadcast %cst_264 : f32 to vector<8x16xf32>
    %228 = arith.mulf %227, %224 : vector<8x16xf32>
    %229 = arith.select %226, %224, %228 : vector<8x16xi1>, vector<8x16xf32>
    %c7_265 = arith.constant 7 : index
    %c0_266 = arith.constant 0 : index
    %c0_267 = arith.constant 0 : index
    %230 = vector.load %arg7[%c7_265, %c0_266, %c0_267] : memref<12x8x40xbf16, #tpu.memory_space<vmem>>, vector<1x8x40xbf16>
    %231 = vector.shape_cast %230 : vector<1x8x40xbf16> to vector<8x40xbf16>
    %c0_268 = arith.constant 0 : index
    %c7_269 = arith.constant 7 : index
    %232 = vector.load %arg8[%c0_268, %c7_269] : memref<8x12xf32, #tpu.memory_space<vmem>>, vector<8x1xf32>
    %c0_270 = arith.constant 0 : index
    %c10_271 = arith.constant 10 : index
    %233 = vector.load %arg21[%c0_270, %c10_271] : memref<8x36xf32, #tpu.memory_space<vmem>>, vector<8x16xf32>
    tpu.vector_store %arg21[%c0_270, %c10_271], %229 {strides = array<i32>} : memref<8x36xf32, #tpu.memory_space<vmem>>, vector<8x16xf32>,
    %c0_272 = arith.constant 0 : index
    %c8_273 = arith.constant 8 : index
    %234 = vector.load %arg21[%c0_272, %c8_273] : memref<8x36xf32, #tpu.memory_space<vmem>>, vector<8x16xf32>
    %c0_274 = arith.constant 0 : index
    %c0_275 = arith.constant 0 : index
    %235 = vector.load %arg22[%c0_274, %c0_275] : memref<40x16xf32, #tpu.memory_space<vmem>>, vector<8x16xf32>
    tpu.vector_store %arg22[%c0_274, %c0_275], %234 {strides = array<i32>} : memref<40x16xf32, #tpu.memory_space<vmem>>, vector<8x16xf32>,
    %c0_276 = arith.constant 0 : index
    %c9_277 = arith.constant 9 : index
    %236 = vector.load %arg21[%c0_276, %c9_277] : memref<8x36xf32, #tpu.memory_space<vmem>>, vector<8x16xf32>
    %c8_278 = arith.constant 8 : index
    %c0_279 = arith.constant 0 : index
    %237 = vector.load %arg22[%c8_278, %c0_279] : memref<40x16xf32, #tpu.memory_space<vmem>>, vector<8x16xf32>
    tpu.vector_store %arg22[%c8_278, %c0_279], %236 {strides = array<i32>} : memref<40x16xf32, #tpu.memory_space<vmem>>, vector<8x16xf32>,
    %c0_280 = arith.constant 0 : index
    %c10_281 = arith.constant 10 : index
    %238 = vector.load %arg21[%c0_280, %c10_281] : memref<8x36xf32, #tpu.memory_space<vmem>>, vector<8x16xf32>
    %c16_282 = arith.constant 16 : index
    %c0_283 = arith.constant 0 : index
    %239 = vector.load %arg22[%c16_282, %c0_283] : memref<40x16xf32, #tpu.memory_space<vmem>>, vector<8x16xf32>
    tpu.vector_store %arg22[%c16_282, %c0_283], %238 {strides = array<i32>} : memref<40x16xf32, #tpu.memory_space<vmem>>, vector<8x16xf32>,
    %c0_284 = arith.constant 0 : index
    %c11_285 = arith.constant 11 : index
    %240 = vector.load %arg21[%c0_284, %c11_285] : memref<8x36xf32, #tpu.memory_space<vmem>>, vector<8x16xf32>
    %c24_286 = arith.constant 24 : index
    %c0_287 = arith.constant 0 : index
    %241 = vector.load %arg22[%c24_286, %c0_287] : memref<40x16xf32, #tpu.memory_space<vmem>>, vector<8x16xf32>
    tpu.vector_store %arg22[%c24_286, %c0_287], %240 {strides = array<i32>} : memref<40x16xf32, #tpu.memory_space<vmem>>, vector<8x16xf32>,
    %c0_288 = arith.constant 0 : index
    %c12_289 = arith.constant 12 : index
    %242 = vector.load %arg21[%c0_288, %c12_289] : memref<8x36xf32, #tpu.memory_space<vmem>>, vector<8x16xf32>
    %c32_290 = arith.constant 32 : index
    %c0_291 = arith.constant 0 : index
    %243 = vector.load %arg22[%c32_290, %c0_291] : memref<40x16xf32, #tpu.memory_space<vmem>>, vector<8x16xf32>
    tpu.vector_store %arg22[%c32_290, %c0_291], %242 {strides = array<i32>} : memref<40x16xf32, #tpu.memory_space<vmem>>, vector<8x16xf32>,
    %c0_292 = arith.constant 0 : index
    %c0_293 = arith.constant 0 : index
    %244 = vector.load %arg22[%c0_292, %c0_293] : memref<40x16xf32, #tpu.memory_space<vmem>>, vector<40x16xf32>
    %245 = arith.truncf %244 : vector<40x16xf32> to vector<40x16xbf16>
    %cst_294 = arith.constant dense<0.000000e+00> : vector<8x16xf32>
    %246 = tpu.matmul %231, %245, %cst_294 {dimension_numbers = #tpu.dot_dimension_numbers<[1], [0], [0], [1], [0, 0, 1, 1], [], []>} : vector<8x40xbf16>, vector<40x16xbf16>, vector<8x16xf32> -> vector<8x16xf32>
    %247 = vector.broadcast %232 : vector<8x1xf32> to vector<8x16xf32>
    %248 = arith.addf %246, %247 : vector<8x16xf32>
    %249 = arith.addf %248, %77 : vector<8x16xf32>
    %cst_295 = arith.constant 0.000000e+00 : f32
    %250 = vector.broadcast %cst_295 : f32 to vector<8x16xf32>
    %251 = arith.cmpf ogt, %249, %250 : vector<8x16xf32>
    %cst_296 = arith.constant 1.000000e-01 : f32
    %252 = vector.broadcast %cst_296 : f32 to vector<8x16xf32>
    %253 = arith.mulf %252, %249 : vector<8x16xf32>
    %254 = arith.select %251, %249, %253 : vector<8x16xi1>, vector<8x16xf32>
    %c8_297 = arith.constant 8 : index
    %c0_298 = arith.constant 0 : index
    %c0_299 = arith.constant 0 : index
    %255 = vector.load %arg7[%c8_297, %c0_298, %c0_299] : memref<12x8x40xbf16, #tpu.memory_space<vmem>>, vector<1x8x40xbf16>
    %256 = vector.shape_cast %255 : vector<1x8x40xbf16> to vector<8x40xbf16>
    %c0_300 = arith.constant 0 : index
    %c8_301 = arith.constant 8 : index
    %257 = vector.load %arg8[%c0_300, %c8_301] : memref<8x12xf32, #tpu.memory_space<vmem>>, vector<8x1xf32>
    %c0_302 = arith.constant 0 : index
    %c10_303 = arith.constant 10 : index
    %258 = vector.load %arg21[%c0_302, %c10_303] : memref<8x36xf32, #tpu.memory_space<vmem>>, vector<8x16xf32>
    tpu.vector_store %arg21[%c0_302, %c10_303], %254 {strides = array<i32>} : memref<8x36xf32, #tpu.memory_space<vmem>>, vector<8x16xf32>,
    %c0_304 = arith.constant 0 : index
    %c4_305 = arith.constant 4 : index
    %259 = vector.load %arg21[%c0_304, %c4_305] : memref<8x36xf32, #tpu.memory_space<vmem>>, vector<8x16xf32>
    %c0_306 = arith.constant 0 : index
    %c0_307 = arith.constant 0 : index
    %260 = vector.load %arg22[%c0_306, %c0_307] : memref<40x16xf32, #tpu.memory_space<vmem>>, vector<8x16xf32>
    tpu.vector_store %arg22[%c0_306, %c0_307], %259 {strides = array<i32>} : memref<40x16xf32, #tpu.memory_space<vmem>>, vector<8x16xf32>,
    %c0_308 = arith.constant 0 : index
    %c7_309 = arith.constant 7 : index
    %261 = vector.load %arg21[%c0_308, %c7_309] : memref<8x36xf32, #tpu.memory_space<vmem>>, vector<8x16xf32>
    %c8_310 = arith.constant 8 : index
    %c0_311 = arith.constant 0 : index
    %262 = vector.load %arg22[%c8_310, %c0_311] : memref<40x16xf32, #tpu.memory_space<vmem>>, vector<8x16xf32>
    tpu.vector_store %arg22[%c8_310, %c0_311], %261 {strides = array<i32>} : memref<40x16xf32, #tpu.memory_space<vmem>>, vector<8x16xf32>,
    %c0_312 = arith.constant 0 : index
    %c10_313 = arith.constant 10 : index
    %263 = vector.load %arg21[%c0_312, %c10_313] : memref<8x36xf32, #tpu.memory_space<vmem>>, vector<8x16xf32>
    %c16_314 = arith.constant 16 : index
    %c0_315 = arith.constant 0 : index
    %264 = vector.load %arg22[%c16_314, %c0_315] : memref<40x16xf32, #tpu.memory_space<vmem>>, vector<8x16xf32>
    tpu.vector_store %arg22[%c16_314, %c0_315], %263 {strides = array<i32>} : memref<40x16xf32, #tpu.memory_space<vmem>>, vector<8x16xf32>,
    %c0_316 = arith.constant 0 : index
    %c13_317 = arith.constant 13 : index
    %265 = vector.load %arg21[%c0_316, %c13_317] : memref<8x36xf32, #tpu.memory_space<vmem>>, vector<8x16xf32>
    %c24_318 = arith.constant 24 : index
    %c0_319 = arith.constant 0 : index
    %266 = vector.load %arg22[%c24_318, %c0_319] : memref<40x16xf32, #tpu.memory_space<vmem>>, vector<8x16xf32>
    tpu.vector_store %arg22[%c24_318, %c0_319], %265 {strides = array<i32>} : memref<40x16xf32, #tpu.memory_space<vmem>>, vector<8x16xf32>,
    %c0_320 = arith.constant 0 : index
    %c16_321 = arith.constant 16 : index
    %267 = vector.load %arg21[%c0_320, %c16_321] : memref<8x36xf32, #tpu.memory_space<vmem>>, vector<8x16xf32>
    %c32_322 = arith.constant 32 : index
    %c0_323 = arith.constant 0 : index
    %268 = vector.load %arg22[%c32_322, %c0_323] : memref<40x16xf32, #tpu.memory_space<vmem>>, vector<8x16xf32>
    tpu.vector_store %arg22[%c32_322, %c0_323], %267 {strides = array<i32>} : memref<40x16xf32, #tpu.memory_space<vmem>>, vector<8x16xf32>,
    %c0_324 = arith.constant 0 : index
    %c0_325 = arith.constant 0 : index
    %269 = vector.load %arg22[%c0_324, %c0_325] : memref<40x16xf32, #tpu.memory_space<vmem>>, vector<40x16xf32>
    %270 = arith.truncf %269 : vector<40x16xf32> to vector<40x16xbf16>
    %cst_326 = arith.constant dense<0.000000e+00> : vector<8x16xf32>
    %271 = tpu.matmul %256, %270, %cst_326 {dimension_numbers = #tpu.dot_dimension_numbers<[1], [0], [0], [1], [0, 0, 1, 1], [], []>} : vector<8x40xbf16>, vector<40x16xbf16>, vector<8x16xf32> -> vector<8x16xf32>
    %272 = vector.broadcast %257 : vector<8x1xf32> to vector<8x16xf32>
    %273 = arith.addf %271, %272 : vector<8x16xf32>
    %cst_327 = arith.constant 0.000000e+00 : f32
    %274 = vector.broadcast %cst_327 : f32 to vector<8x16xf32>
    %275 = arith.cmpf ogt, %273, %274 : vector<8x16xf32>
    %cst_328 = arith.constant 1.000000e-01 : f32
    %276 = vector.broadcast %cst_328 : f32 to vector<8x16xf32>
    %277 = arith.mulf %276, %273 : vector<8x16xf32>
    %278 = arith.select %275, %273, %277 : vector<8x16xi1>, vector<8x16xf32>
    %c9_329 = arith.constant 9 : index
    %c0_330 = arith.constant 0 : index
    %c0_331 = arith.constant 0 : index
    %279 = vector.load %arg7[%c9_329, %c0_330, %c0_331] : memref<12x8x40xbf16, #tpu.memory_space<vmem>>, vector<1x8x40xbf16>
    %280 = vector.shape_cast %279 : vector<1x8x40xbf16> to vector<8x40xbf16>
    %c0_332 = arith.constant 0 : index
    %c9_333 = arith.constant 9 : index
    %281 = vector.load %arg8[%c0_332, %c9_333] : memref<8x12xf32, #tpu.memory_space<vmem>>, vector<8x1xf32>
    %c0_334 = arith.constant 0 : index
    %c10_335 = arith.constant 10 : index
    %282 = vector.load %arg21[%c0_334, %c10_335] : memref<8x36xf32, #tpu.memory_space<vmem>>, vector<8x16xf32>
    tpu.vector_store %arg21[%c0_334, %c10_335], %278 {strides = array<i32>} : memref<8x36xf32, #tpu.memory_space<vmem>>, vector<8x16xf32>,
    %c0_336 = arith.constant 0 : index
    %c8_337 = arith.constant 8 : index
    %283 = vector.load %arg21[%c0_336, %c8_337] : memref<8x36xf32, #tpu.memory_space<vmem>>, vector<8x16xf32>
    %c0_338 = arith.constant 0 : index
    %c0_339 = arith.constant 0 : index
    %284 = vector.load %arg22[%c0_338, %c0_339] : memref<40x16xf32, #tpu.memory_space<vmem>>, vector<8x16xf32>
    tpu.vector_store %arg22[%c0_338, %c0_339], %283 {strides = array<i32>} : memref<40x16xf32, #tpu.memory_space<vmem>>, vector<8x16xf32>,
    %c0_340 = arith.constant 0 : index
    %c9_341 = arith.constant 9 : index
    %285 = vector.load %arg21[%c0_340, %c9_341] : memref<8x36xf32, #tpu.memory_space<vmem>>, vector<8x16xf32>
    %c8_342 = arith.constant 8 : index
    %c0_343 = arith.constant 0 : index
    %286 = vector.load %arg22[%c8_342, %c0_343] : memref<40x16xf32, #tpu.memory_space<vmem>>, vector<8x16xf32>
    tpu.vector_store %arg22[%c8_342, %c0_343], %285 {strides = array<i32>} : memref<40x16xf32, #tpu.memory_space<vmem>>, vector<8x16xf32>,
    %c0_344 = arith.constant 0 : index
    %c10_345 = arith.constant 10 : index
    %287 = vector.load %arg21[%c0_344, %c10_345] : memref<8x36xf32, #tpu.memory_space<vmem>>, vector<8x16xf32>
    %c16_346 = arith.constant 16 : index
    %c0_347 = arith.constant 0 : index
    %288 = vector.load %arg22[%c16_346, %c0_347] : memref<40x16xf32, #tpu.memory_space<vmem>>, vector<8x16xf32>
    tpu.vector_store %arg22[%c16_346, %c0_347], %287 {strides = array<i32>} : memref<40x16xf32, #tpu.memory_space<vmem>>, vector<8x16xf32>,
    %c0_348 = arith.constant 0 : index
    %c11_349 = arith.constant 11 : index
    %289 = vector.load %arg21[%c0_348, %c11_349] : memref<8x36xf32, #tpu.memory_space<vmem>>, vector<8x16xf32>
    %c24_350 = arith.constant 24 : index
    %c0_351 = arith.constant 0 : index
    %290 = vector.load %arg22[%c24_350, %c0_351] : memref<40x16xf32, #tpu.memory_space<vmem>>, vector<8x16xf32>
    tpu.vector_store %arg22[%c24_350, %c0_351], %289 {strides = array<i32>} : memref<40x16xf32, #tpu.memory_space<vmem>>, vector<8x16xf32>,
    %c0_352 = arith.constant 0 : index
    %c12_353 = arith.constant 12 : index
    %291 = vector.load %arg21[%c0_352, %c12_353] : memref<8x36xf32, #tpu.memory_space<vmem>>, vector<8x16xf32>
    %c32_354 = arith.constant 32 : index
    %c0_355 = arith.constant 0 : index
    %292 = vector.load %arg22[%c32_354, %c0_355] : memref<40x16xf32, #tpu.memory_space<vmem>>, vector<8x16xf32>
    tpu.vector_store %arg22[%c32_354, %c0_355], %291 {strides = array<i32>} : memref<40x16xf32, #tpu.memory_space<vmem>>, vector<8x16xf32>,
    %c0_356 = arith.constant 0 : index
    %c0_357 = arith.constant 0 : index
    %293 = vector.load %arg22[%c0_356, %c0_357] : memref<40x16xf32, #tpu.memory_space<vmem>>, vector<40x16xf32>
    %294 = arith.truncf %293 : vector<40x16xf32> to vector<40x16xbf16>
    %cst_358 = arith.constant dense<0.000000e+00> : vector<8x16xf32>
    %295 = tpu.matmul %280, %294, %cst_358 {dimension_numbers = #tpu.dot_dimension_numbers<[1], [0], [0], [1], [0, 0, 1, 1], [], []>} : vector<8x40xbf16>, vector<40x16xbf16>, vector<8x16xf32> -> vector<8x16xf32>
    %296 = vector.broadcast %281 : vector<8x1xf32> to vector<8x16xf32>
    %297 = arith.addf %295, %296 : vector<8x16xf32>
    %298 = arith.addf %297, %249 : vector<8x16xf32>
    %cst_359 = arith.constant 0.000000e+00 : f32
    %299 = vector.broadcast %cst_359 : f32 to vector<8x16xf32>
    %300 = arith.cmpf ogt, %298, %299 : vector<8x16xf32>
    %cst_360 = arith.constant 1.000000e-01 : f32
    %301 = vector.broadcast %cst_360 : f32 to vector<8x16xf32>
    %302 = arith.mulf %301, %298 : vector<8x16xf32>
    %303 = arith.select %300, %298, %302 : vector<8x16xi1>, vector<8x16xf32>
    %c10_361 = arith.constant 10 : index
    %c0_362 = arith.constant 0 : index
    %c0_363 = arith.constant 0 : index
    %304 = vector.load %arg7[%c10_361, %c0_362, %c0_363] : memref<12x8x40xbf16, #tpu.memory_space<vmem>>, vector<1x8x40xbf16>
    %305 = vector.shape_cast %304 : vector<1x8x40xbf16> to vector<8x40xbf16>
    %c0_364 = arith.constant 0 : index
    %c10_365 = arith.constant 10 : index
    %306 = vector.load %arg8[%c0_364, %c10_365] : memref<8x12xf32, #tpu.memory_space<vmem>>, vector<8x1xf32>
    %c0_366 = arith.constant 0 : index
    %c10_367 = arith.constant 10 : index
    %307 = vector.load %arg21[%c0_366, %c10_367] : memref<8x36xf32, #tpu.memory_space<vmem>>, vector<8x16xf32>
    tpu.vector_store %arg21[%c0_366, %c10_367], %303 {strides = array<i32>} : memref<8x36xf32, #tpu.memory_space<vmem>>, vector<8x16xf32>,
    %c0_368 = arith.constant 0 : index
    %c0_369 = arith.constant 0 : index
    %308 = vector.load %arg21[%c0_368, %c0_369] : memref<8x36xf32, #tpu.memory_space<vmem>>, vector<8x16xf32>
    %c0_370 = arith.constant 0 : index
    %c0_371 = arith.constant 0 : index
    %309 = vector.load %arg22[%c0_370, %c0_371] : memref<40x16xf32, #tpu.memory_space<vmem>>, vector<8x16xf32>
    tpu.vector_store %arg22[%c0_370, %c0_371], %308 {strides = array<i32>} : memref<40x16xf32, #tpu.memory_space<vmem>>, vector<8x16xf32>,
    %c0_372 = arith.constant 0 : index
    %c5_373 = arith.constant 5 : index
    %310 = vector.load %arg21[%c0_372, %c5_373] : memref<8x36xf32, #tpu.memory_space<vmem>>, vector<8x16xf32>
    %c8_374 = arith.constant 8 : index
    %c0_375 = arith.constant 0 : index
    %311 = vector.load %arg22[%c8_374, %c0_375] : memref<40x16xf32, #tpu.memory_space<vmem>>, vector<8x16xf32>
    tpu.vector_store %arg22[%c8_374, %c0_375], %310 {strides = array<i32>} : memref<40x16xf32, #tpu.memory_space<vmem>>, vector<8x16xf32>,
    %c0_376 = arith.constant 0 : index
    %c10_377 = arith.constant 10 : index
    %312 = vector.load %arg21[%c0_376, %c10_377] : memref<8x36xf32, #tpu.memory_space<vmem>>, vector<8x16xf32>
    %c16_378 = arith.constant 16 : index
    %c0_379 = arith.constant 0 : index
    %313 = vector.load %arg22[%c16_378, %c0_379] : memref<40x16xf32, #tpu.memory_space<vmem>>, vector<8x16xf32>
    tpu.vector_store %arg22[%c16_378, %c0_379], %312 {strides = array<i32>} : memref<40x16xf32, #tpu.memory_space<vmem>>, vector<8x16xf32>,
    %c0_380 = arith.constant 0 : index
    %c15_381 = arith.constant 15 : index
    %314 = vector.load %arg21[%c0_380, %c15_381] : memref<8x36xf32, #tpu.memory_space<vmem>>, vector<8x16xf32>
    %c24_382 = arith.constant 24 : index
    %c0_383 = arith.constant 0 : index
    %315 = vector.load %arg22[%c24_382, %c0_383] : memref<40x16xf32, #tpu.memory_space<vmem>>, vector<8x16xf32>
    tpu.vector_store %arg22[%c24_382, %c0_383], %314 {strides = array<i32>} : memref<40x16xf32, #tpu.memory_space<vmem>>, vector<8x16xf32>,
    %c0_384 = arith.constant 0 : index
    %c20 = arith.constant 20 : index
    %316 = vector.load %arg21[%c0_384, %c20] : memref<8x36xf32, #tpu.memory_space<vmem>>, vector<8x16xf32>
    %c32_385 = arith.constant 32 : index
    %c0_386 = arith.constant 0 : index
    %317 = vector.load %arg22[%c32_385, %c0_386] : memref<40x16xf32, #tpu.memory_space<vmem>>, vector<8x16xf32>
    tpu.vector_store %arg22[%c32_385, %c0_386], %316 {strides = array<i32>} : memref<40x16xf32, #tpu.memory_space<vmem>>, vector<8x16xf32>,
    %c0_387 = arith.constant 0 : index
    %c0_388 = arith.constant 0 : index
    %318 = vector.load %arg22[%c0_387, %c0_388] : memref<40x16xf32, #tpu.memory_space<vmem>>, vector<40x16xf32>
    %319 = arith.truncf %318 : vector<40x16xf32> to vector<40x16xbf16>
    %cst_389 = arith.constant dense<0.000000e+00> : vector<8x16xf32>
    %320 = tpu.matmul %305, %319, %cst_389 {dimension_numbers = #tpu.dot_dimension_numbers<[1], [0], [0], [1], [0, 0, 1, 1], [], []>} : vector<8x40xbf16>, vector<40x16xbf16>, vector<8x16xf32> -> vector<8x16xf32>
    %321 = vector.broadcast %306 : vector<8x1xf32> to vector<8x16xf32>
    %322 = arith.addf %320, %321 : vector<8x16xf32>
    %cst_390 = arith.constant 0.000000e+00 : f32
    %323 = vector.broadcast %cst_390 : f32 to vector<8x16xf32>
    %324 = arith.cmpf ogt, %322, %323 : vector<8x16xf32>
    %cst_391 = arith.constant 1.000000e-01 : f32
    %325 = vector.broadcast %cst_391 : f32 to vector<8x16xf32>
    %326 = arith.mulf %325, %322 : vector<8x16xf32>
    %327 = arith.select %324, %322, %326 : vector<8x16xi1>, vector<8x16xf32>
    %c11_392 = arith.constant 11 : index
    %c0_393 = arith.constant 0 : index
    %c0_394 = arith.constant 0 : index
    %328 = vector.load %arg7[%c11_392, %c0_393, %c0_394] : memref<12x8x40xbf16, #tpu.memory_space<vmem>>, vector<1x8x40xbf16>
    %329 = vector.shape_cast %328 : vector<1x8x40xbf16> to vector<8x40xbf16>
    %c0_395 = arith.constant 0 : index
    %c11_396 = arith.constant 11 : index
    %330 = vector.load %arg8[%c0_395, %c11_396] : memref<8x12xf32, #tpu.memory_space<vmem>>, vector<8x1xf32>
    %c0_397 = arith.constant 0 : index
    %c10_398 = arith.constant 10 : index
    %331 = vector.load %arg21[%c0_397, %c10_398] : memref<8x36xf32, #tpu.memory_space<vmem>>, vector<8x16xf32>
    tpu.vector_store %arg21[%c0_397, %c10_398], %327 {strides = array<i32>} : memref<8x36xf32, #tpu.memory_space<vmem>>, vector<8x16xf32>,
    %c0_399 = arith.constant 0 : index
    %c8_400 = arith.constant 8 : index
    %332 = vector.load %arg21[%c0_399, %c8_400] : memref<8x36xf32, #tpu.memory_space<vmem>>, vector<8x16xf32>
    %c0_401 = arith.constant 0 : index
    %c0_402 = arith.constant 0 : index
    %333 = vector.load %arg22[%c0_401, %c0_402] : memref<40x16xf32, #tpu.memory_space<vmem>>, vector<8x16xf32>
    tpu.vector_store %arg22[%c0_401, %c0_402], %332 {strides = array<i32>} : memref<40x16xf32, #tpu.memory_space<vmem>>, vector<8x16xf32>,
    %c0_403 = arith.constant 0 : index
    %c9_404 = arith.constant 9 : index
    %334 = vector.load %arg21[%c0_403, %c9_404] : memref<8x36xf32, #tpu.memory_space<vmem>>, vector<8x16xf32>
    %c8_405 = arith.constant 8 : index
    %c0_406 = arith.constant 0 : index
    %335 = vector.load %arg22[%c8_405, %c0_406] : memref<40x16xf32, #tpu.memory_space<vmem>>, vector<8x16xf32>
    tpu.vector_store %arg22[%c8_405, %c0_406], %334 {strides = array<i32>} : memref<40x16xf32, #tpu.memory_space<vmem>>, vector<8x16xf32>,
    %c0_407 = arith.constant 0 : index
    %c10_408 = arith.constant 10 : index
    %336 = vector.load %arg21[%c0_407, %c10_408] : memref<8x36xf32, #tpu.memory_space<vmem>>, vector<8x16xf32>
    %c16_409 = arith.constant 16 : index
    %c0_410 = arith.constant 0 : index
    %337 = vector.load %arg22[%c16_409, %c0_410] : memref<40x16xf32, #tpu.memory_space<vmem>>, vector<8x16xf32>
    tpu.vector_store %arg22[%c16_409, %c0_410], %336 {strides = array<i32>} : memref<40x16xf32, #tpu.memory_space<vmem>>, vector<8x16xf32>,
    %c0_411 = arith.constant 0 : index
    %c11_412 = arith.constant 11 : index
    %338 = vector.load %arg21[%c0_411, %c11_412] : memref<8x36xf32, #tpu.memory_space<vmem>>, vector<8x16xf32>
    %c24_413 = arith.constant 24 : index
    %c0_414 = arith.constant 0 : index
    %339 = vector.load %arg22[%c24_413, %c0_414] : memref<40x16xf32, #tpu.memory_space<vmem>>, vector<8x16xf32>
    tpu.vector_store %arg22[%c24_413, %c0_414], %338 {strides = array<i32>} : memref<40x16xf32, #tpu.memory_space<vmem>>, vector<8x16xf32>,
    %c0_415 = arith.constant 0 : index
    %c12_416 = arith.constant 12 : index
    %340 = vector.load %arg21[%c0_415, %c12_416] : memref<8x36xf32, #tpu.memory_space<vmem>>, vector<8x16xf32>
    %c32_417 = arith.constant 32 : index
    %c0_418 = arith.constant 0 : index
    %341 = vector.load %arg22[%c32_417, %c0_418] : memref<40x16xf32, #tpu.memory_space<vmem>>, vector<8x16xf32>
    tpu.vector_store %arg22[%c32_417, %c0_418], %340 {strides = array<i32>} : memref<40x16xf32, #tpu.memory_space<vmem>>, vector<8x16xf32>,
    %c0_419 = arith.constant 0 : index
    %c0_420 = arith.constant 0 : index
    %342 = vector.load %arg22[%c0_419, %c0_420] : memref<40x16xf32, #tpu.memory_space<vmem>>, vector<40x16xf32>
    %343 = arith.truncf %342 : vector<40x16xf32> to vector<40x16xbf16>
    %cst_421 = arith.constant dense<0.000000e+00> : vector<8x16xf32>
    %344 = tpu.matmul %329, %343, %cst_421 {dimension_numbers = #tpu.dot_dimension_numbers<[1], [0], [0], [1], [0, 0, 1, 1], [], []>} : vector<8x40xbf16>, vector<40x16xbf16>, vector<8x16xf32> -> vector<8x16xf32>
    %345 = vector.broadcast %330 : vector<8x1xf32> to vector<8x16xf32>
    %346 = arith.addf %344, %345 : vector<8x16xf32>
    %347 = arith.addf %346, %298 : vector<8x16xf32>
    %348 = arith.addf %200, %347 : vector<8x16xf32>
    %cst_422 = arith.constant 5.000000e-01 : f32
    %349 = vector.broadcast %cst_422 : f32 to vector<8x16xf32>
    %350 = arith.mulf %348, %349 : vector<8x16xf32>
    %cst_423 = arith.constant 0.000000e+00 : f32
    %351 = vector.broadcast %cst_423 : f32 to vector<8x16xf32>
    %352 = arith.cmpf ogt, %350, %351 : vector<8x16xf32>
    %cst_424 = arith.constant 1.000000e-01 : f32
    %353 = vector.broadcast %cst_424 : f32 to vector<8x16xf32>
    %354 = arith.mulf %353, %350 : vector<8x16xf32>
    %355 = arith.select %352, %350, %354 : vector<8x16xi1>, vector<8x16xf32>
    %c0_425 = arith.constant 0 : index
    %c1_426 = arith.constant 1 : index
    %356 = vector.load %arg23[%c0_425, %c1_426] : memref<8x18xf32, #tpu.memory_space<vmem>>, vector<8x16xf32>
    tpu.vector_store %arg23[%c0_425, %c1_426], %355 {strides = array<i32>} : memref<8x18xf32, #tpu.memory_space<vmem>>, vector<8x16xf32>,
    %c0_427 = arith.constant 0 : index
    %c0_428 = arith.constant 0 : index
    %357 = vector.load %arg23[%c0_427, %c0_428] : memref<8x18xf32, #tpu.memory_space<vmem>>, vector<8x16xf32>
    %c0_429 = arith.constant 0 : index
    %c0_430 = arith.constant 0 : index
    %358 = vector.load %arg24[%c0_429, %c0_430] : memref<24x16xf32, #tpu.memory_space<vmem>>, vector<8x16xf32>
    tpu.vector_store %arg24[%c0_429, %c0_430], %357 {strides = array<i32>} : memref<24x16xf32, #tpu.memory_space<vmem>>, vector<8x16xf32>,
    %c0_431 = arith.constant 0 : index
    %c1_432 = arith.constant 1 : index
    %359 = vector.load %arg23[%c0_431, %c1_432] : memref<8x18xf32, #tpu.memory_space<vmem>>, vector<8x16xf32>
    %c8_433 = arith.constant 8 : index
    %c0_434 = arith.constant 0 : index
    %360 = vector.load %arg24[%c8_433, %c0_434] : memref<24x16xf32, #tpu.memory_space<vmem>>, vector<8x16xf32>
    tpu.vector_store %arg24[%c8_433, %c0_434], %359 {strides = array<i32>} : memref<24x16xf32, #tpu.memory_space<vmem>>, vector<8x16xf32>,
    %c0_435 = arith.constant 0 : index
    %c2_436 = arith.constant 2 : index
    %361 = vector.load %arg23[%c0_435, %c2_436] : memref<8x18xf32, #tpu.memory_space<vmem>>, vector<8x16xf32>
    %c16_437 = arith.constant 16 : index
    %c0_438 = arith.constant 0 : index
    %362 = vector.load %arg24[%c16_437, %c0_438] : memref<24x16xf32, #tpu.memory_space<vmem>>, vector<8x16xf32>
    tpu.vector_store %arg24[%c16_437, %c0_438], %361 {strides = array<i32>} : memref<24x16xf32, #tpu.memory_space<vmem>>, vector<8x16xf32>,
    %c0_439 = arith.constant 0 : index
    %c0_440 = arith.constant 0 : index
    %363 = vector.load %arg24[%c0_439, %c0_440] : memref<24x16xf32, #tpu.memory_space<vmem>>, vector<24x16xf32>
    %364 = arith.truncf %363 : vector<24x16xf32> to vector<24x16xbf16>
    %c0_441 = arith.constant 0 : index
    %c0_442 = arith.constant 0 : index
    %c0_443 = arith.constant 0 : index
    %365 = vector.load %arg9[%c0_441, %c0_442, %c0_443] : memref<2x4x24xbf16, #tpu.memory_space<vmem>>, vector<1x4x24xbf16>
    %366 = vector.shape_cast %365 : vector<1x4x24xbf16> to vector<4x24xbf16>
    %cst_444 = arith.constant dense<0.000000e+00> : vector<4x16xf32>
    %367 = tpu.matmul %366, %364, %cst_444 {dimension_numbers = #tpu.dot_dimension_numbers<[1], [0], [0], [1], [0, 0, 1, 1], [], []>} : vector<4x24xbf16>, vector<24x16xbf16>, vector<4x16xf32> -> vector<4x16xf32>
    %c0_445 = arith.constant 0 : index
    %c0_446 = arith.constant 0 : index
    %c0_447 = arith.constant 0 : index
    %368 = vector.load %arg11[%c0_445, %c0_446, %c0_447] : memref<2x16x32xf32, #tpu.memory_space<vmem>>, vector<1x16x32xf32>
    %369 = vector.shape_cast %368 : vector<1x16x32xf32> to vector<16x32xf32>
    %cst_448 = arith.constant dense<0.000000e+00> : vector<4x32xf32>
    %370 = tpu.matmul %367, %369, %cst_448 {dimension_numbers = #tpu.dot_dimension_numbers<[1], [0], [0], [1], [0, 0, 1, 1], [], []>} : vector<4x16xf32>, vector<16x32xf32>, vector<4x32xf32> -> vector<4x32xf32>
    %c1_449 = arith.constant 1 : index
    %c0_450 = arith.constant 0 : index
    %c0_451 = arith.constant 0 : index
    %371 = vector.load %arg9[%c1_449, %c0_450, %c0_451] : memref<2x4x24xbf16, #tpu.memory_space<vmem>>, vector<1x4x24xbf16>
    %372 = vector.shape_cast %371 : vector<1x4x24xbf16> to vector<4x24xbf16>
    %cst_452 = arith.constant dense<0.000000e+00> : vector<4x16xf32>
    %373 = tpu.matmul %372, %364, %cst_452 {dimension_numbers = #tpu.dot_dimension_numbers<[1], [0], [0], [1], [0, 0, 1, 1], [], []>} : vector<4x24xbf16>, vector<24x16xbf16>, vector<4x16xf32> -> vector<4x16xf32>
    %c1_453 = arith.constant 1 : index
    %c0_454 = arith.constant 0 : index
    %c0_455 = arith.constant 0 : index
    %374 = vector.load %arg11[%c1_453, %c0_454, %c0_455] : memref<2x16x32xf32, #tpu.memory_space<vmem>>, vector<1x16x32xf32>
    %375 = vector.shape_cast %374 : vector<1x16x32xf32> to vector<16x32xf32>
    %cst_456 = arith.constant dense<0.000000e+00> : vector<4x32xf32>
    %376 = tpu.matmul %373, %375, %cst_456 {dimension_numbers = #tpu.dot_dimension_numbers<[1], [0], [0], [1], [0, 0, 1, 1], [], []>} : vector<4x16xf32>, vector<16x32xf32>, vector<4x32xf32> -> vector<4x32xf32>
    %377 = arith.addf %370, %376 : vector<4x32xf32>
    %c0_457 = arith.constant 0 : index
    %c0_458 = arith.constant 0 : index
    %378 = vector.load %arg10[%c0_457, %c0_458] : memref<4x1xf32, #tpu.memory_space<vmem>>, vector<4x1xf32>
    %379 = vector.broadcast %378 : vector<4x1xf32> to vector<4x32xf32>
    %380 = arith.addf %377, %379 : vector<4x32xf32>
    %cst_459 = arith.constant 0.000000e+00 : f32
    %381 = vector.broadcast %cst_459 : f32 to vector<4x32xf32>
    %382 = arith.cmpf ogt, %380, %381 : vector<4x32xf32>
    %cst_460 = arith.constant 1.000000e-01 : f32
    %383 = vector.broadcast %cst_460 : f32 to vector<4x32xf32>
    %384 = arith.mulf %383, %380 : vector<4x32xf32>
    %385 = arith.select %382, %380, %384 : vector<4x32xi1>, vector<4x32xf32>
    %c0_461 = arith.constant 0 : index
    %c0_462 = arith.constant 0 : index
    %c0_463 = arith.constant 0 : index
    %386 = vector.load %arg12[%c0_461, %c0_462, %c0_463] : memref<12x4x40xbf16, #tpu.memory_space<vmem>>, vector<1x4x40xbf16>
    %387 = vector.shape_cast %386 : vector<1x4x40xbf16> to vector<4x40xbf16>
    %c0_464 = arith.constant 0 : index
    %c0_465 = arith.constant 0 : index
    %388 = vector.load %arg13[%c0_464, %c0_465] : memref<4x12xf32, #tpu.memory_space<vmem>>, vector<4x1xf32>
    %c0_466 = arith.constant 0 : index
    %c10_467 = arith.constant 10 : index
    %389 = vector.load %arg25[%c0_466, %c10_467] : memref<4x52xf32, #tpu.memory_space<vmem>>, vector<4x32xf32>
    tpu.vector_store %arg25[%c0_466, %c10_467], %385 {strides = array<i32>} : memref<4x52xf32, #tpu.memory_space<vmem>>, vector<4x32xf32>,
    %c0_468 = arith.constant 0 : index
    %c9_469 = arith.constant 9 : index
    %390 = vector.load %arg25[%c0_468, %c9_469] : memref<4x52xf32, #tpu.memory_space<vmem>>, vector<4x32xf32>
    %c0_470 = arith.constant 0 : index
    %c0_471 = arith.constant 0 : index
    %391 = vector.load %arg26[%c0_470, %c0_471] : memref<40x32xf32, #tpu.memory_space<vmem>>, vector<4x32xf32>
    tpu.vector_store %arg26[%c0_470, %c0_471], %390 {strides = array<i32>} : memref<40x32xf32, #tpu.memory_space<vmem>>, vector<4x32xf32>,
    %c0_472 = arith.constant 0 : index
    %c10_473 = arith.constant 10 : index
    %392 = vector.load %arg25[%c0_472, %c10_473] : memref<4x52xf32, #tpu.memory_space<vmem>>, vector<4x32xf32>
    %c8_474 = arith.constant 8 : index
    %c0_475 = arith.constant 0 : index
    %393 = vector.load %arg26[%c8_474, %c0_475] : memref<40x32xf32, #tpu.memory_space<vmem>>, vector<4x32xf32>
    tpu.vector_store %arg26[%c8_474, %c0_475], %392 {strides = array<i32>} : memref<40x32xf32, #tpu.memory_space<vmem>>, vector<4x32xf32>,
    %c0_476 = arith.constant 0 : index
    %c11_477 = arith.constant 11 : index
    %394 = vector.load %arg25[%c0_476, %c11_477] : memref<4x52xf32, #tpu.memory_space<vmem>>, vector<4x32xf32>
    %c16_478 = arith.constant 16 : index
    %c0_479 = arith.constant 0 : index
    %395 = vector.load %arg26[%c16_478, %c0_479] : memref<40x32xf32, #tpu.memory_space<vmem>>, vector<4x32xf32>
    tpu.vector_store %arg26[%c16_478, %c0_479], %394 {strides = array<i32>} : memref<40x32xf32, #tpu.memory_space<vmem>>, vector<4x32xf32>,
    %c0_480 = arith.constant 0 : index
    %c0_481 = arith.constant 0 : index
    %396 = vector.load %arg26[%c0_480, %c0_481] : memref<40x32xf32, #tpu.memory_space<vmem>>, vector<40x32xf32>
    %397 = arith.truncf %396 : vector<40x32xf32> to vector<40x32xbf16>
    %cst_482 = arith.constant dense<0.000000e+00> : vector<4x32xf32>
    %398 = tpu.matmul %387, %397, %cst_482 {dimension_numbers = #tpu.dot_dimension_numbers<[1], [0], [0], [1], [0, 0, 1, 1], [], []>} : vector<4x40xbf16>, vector<40x32xbf16>, vector<4x32xf32> -> vector<4x32xf32>
    %399 = vector.broadcast %388 : vector<4x1xf32> to vector<4x32xf32>
    %400 = arith.addf %398, %399 : vector<4x32xf32>
    %cst_483 = arith.constant 0.000000e+00 : f32
    %401 = vector.broadcast %cst_483 : f32 to vector<4x32xf32>
    %402 = arith.cmpf ogt, %400, %401 : vector<4x32xf32>
    %cst_484 = arith.constant 1.000000e-01 : f32
    %403 = vector.broadcast %cst_484 : f32 to vector<4x32xf32>
    %404 = arith.mulf %403, %400 : vector<4x32xf32>
    %405 = arith.select %402, %400, %404 : vector<4x32xi1>, vector<4x32xf32>
    %c1_485 = arith.constant 1 : index
    %c0_486 = arith.constant 0 : index
    %c0_487 = arith.constant 0 : index
    %406 = vector.load %arg12[%c1_485, %c0_486, %c0_487] : memref<12x4x40xbf16, #tpu.memory_space<vmem>>, vector<1x4x40xbf16>
    %407 = vector.shape_cast %406 : vector<1x4x40xbf16> to vector<4x40xbf16>
    %c0_488 = arith.constant 0 : index
    %c1_489 = arith.constant 1 : index
    %408 = vector.load %arg13[%c0_488, %c1_489] : memref<4x12xf32, #tpu.memory_space<vmem>>, vector<4x1xf32>
    %c0_490 = arith.constant 0 : index
    %c10_491 = arith.constant 10 : index
    %409 = vector.load %arg25[%c0_490, %c10_491] : memref<4x52xf32, #tpu.memory_space<vmem>>, vector<4x32xf32>
    tpu.vector_store %arg25[%c0_490, %c10_491], %405 {strides = array<i32>} : memref<4x52xf32, #tpu.memory_space<vmem>>, vector<4x32xf32>,
    %c0_492 = arith.constant 0 : index
    %c9_493 = arith.constant 9 : index
    %410 = vector.load %arg25[%c0_492, %c9_493] : memref<4x52xf32, #tpu.memory_space<vmem>>, vector<4x32xf32>
    %c0_494 = arith.constant 0 : index
    %c0_495 = arith.constant 0 : index
    %411 = vector.load %arg26[%c0_494, %c0_495] : memref<40x32xf32, #tpu.memory_space<vmem>>, vector<4x32xf32>
    tpu.vector_store %arg26[%c0_494, %c0_495], %410 {strides = array<i32>} : memref<40x32xf32, #tpu.memory_space<vmem>>, vector<4x32xf32>,
    %c0_496 = arith.constant 0 : index
    %c10_497 = arith.constant 10 : index
    %412 = vector.load %arg25[%c0_496, %c10_497] : memref<4x52xf32, #tpu.memory_space<vmem>>, vector<4x32xf32>
    %c8_498 = arith.constant 8 : index
    %c0_499 = arith.constant 0 : index
    %413 = vector.load %arg26[%c8_498, %c0_499] : memref<40x32xf32, #tpu.memory_space<vmem>>, vector<4x32xf32>
    tpu.vector_store %arg26[%c8_498, %c0_499], %412 {strides = array<i32>} : memref<40x32xf32, #tpu.memory_space<vmem>>, vector<4x32xf32>,
    %c0_500 = arith.constant 0 : index
    %c11_501 = arith.constant 11 : index
    %414 = vector.load %arg25[%c0_500, %c11_501] : memref<4x52xf32, #tpu.memory_space<vmem>>, vector<4x32xf32>
    %c16_502 = arith.constant 16 : index
    %c0_503 = arith.constant 0 : index
    %415 = vector.load %arg26[%c16_502, %c0_503] : memref<40x32xf32, #tpu.memory_space<vmem>>, vector<4x32xf32>
    tpu.vector_store %arg26[%c16_502, %c0_503], %414 {strides = array<i32>} : memref<40x32xf32, #tpu.memory_space<vmem>>, vector<4x32xf32>,
    %c0_504 = arith.constant 0 : index
    %c0_505 = arith.constant 0 : index
    %416 = vector.load %arg26[%c0_504, %c0_505] : memref<40x32xf32, #tpu.memory_space<vmem>>, vector<40x32xf32>
    %417 = arith.truncf %416 : vector<40x32xf32> to vector<40x32xbf16>
    %cst_506 = arith.constant dense<0.000000e+00> : vector<4x32xf32>
    %418 = tpu.matmul %407, %417, %cst_506 {dimension_numbers = #tpu.dot_dimension_numbers<[1], [0], [0], [1], [0, 0, 1, 1], [], []>} : vector<4x40xbf16>, vector<40x32xbf16>, vector<4x32xf32> -> vector<4x32xf32>
    %419 = vector.broadcast %408 : vector<4x1xf32> to vector<4x32xf32>
    %420 = arith.addf %418, %419 : vector<4x32xf32>
    %421 = arith.addf %420, %380 : vector<4x32xf32>
    %cst_507 = arith.constant 0.000000e+00 : f32
    %422 = vector.broadcast %cst_507 : f32 to vector<4x32xf32>
    %423 = arith.cmpf ogt, %421, %422 : vector<4x32xf32>
    %cst_508 = arith.constant 1.000000e-01 : f32
    %424 = vector.broadcast %cst_508 : f32 to vector<4x32xf32>
    %425 = arith.mulf %424, %421 : vector<4x32xf32>
    %426 = arith.select %423, %421, %425 : vector<4x32xi1>, vector<4x32xf32>
    %c2_509 = arith.constant 2 : index
    %c0_510 = arith.constant 0 : index
    %c0_511 = arith.constant 0 : index
    %427 = vector.load %arg12[%c2_509, %c0_510, %c0_511] : memref<12x4x40xbf16, #tpu.memory_space<vmem>>, vector<1x4x40xbf16>
    %428 = vector.shape_cast %427 : vector<1x4x40xbf16> to vector<4x40xbf16>
    %c0_512 = arith.constant 0 : index
    %c2_513 = arith.constant 2 : index
    %429 = vector.load %arg13[%c0_512, %c2_513] : memref<4x12xf32, #tpu.memory_space<vmem>>, vector<4x1xf32>
    %c0_514 = arith.constant 0 : index
    %c10_515 = arith.constant 10 : index
    %430 = vector.load %arg25[%c0_514, %c10_515] : memref<4x52xf32, #tpu.memory_space<vmem>>, vector<4x32xf32>
    tpu.vector_store %arg25[%c0_514, %c10_515], %426 {strides = array<i32>} : memref<4x52xf32, #tpu.memory_space<vmem>>, vector<4x32xf32>,
    %c0_516 = arith.constant 0 : index
    %c7_517 = arith.constant 7 : index
    %431 = vector.load %arg25[%c0_516, %c7_517] : memref<4x52xf32, #tpu.memory_space<vmem>>, vector<4x32xf32>
    %c0_518 = arith.constant 0 : index
    %c0_519 = arith.constant 0 : index
    %432 = vector.load %arg26[%c0_518, %c0_519] : memref<40x32xf32, #tpu.memory_space<vmem>>, vector<4x32xf32>
    tpu.vector_store %arg26[%c0_518, %c0_519], %431 {strides = array<i32>} : memref<40x32xf32, #tpu.memory_space<vmem>>, vector<4x32xf32>,
    %c0_520 = arith.constant 0 : index
    %c10_521 = arith.constant 10 : index
    %433 = vector.load %arg25[%c0_520, %c10_521] : memref<4x52xf32, #tpu.memory_space<vmem>>, vector<4x32xf32>
    %c8_522 = arith.constant 8 : index
    %c0_523 = arith.constant 0 : index
    %434 = vector.load %arg26[%c8_522, %c0_523] : memref<40x32xf32, #tpu.memory_space<vmem>>, vector<4x32xf32>
    tpu.vector_store %arg26[%c8_522, %c0_523], %433 {strides = array<i32>} : memref<40x32xf32, #tpu.memory_space<vmem>>, vector<4x32xf32>,
    %c0_524 = arith.constant 0 : index
    %c13_525 = arith.constant 13 : index
    %435 = vector.load %arg25[%c0_524, %c13_525] : memref<4x52xf32, #tpu.memory_space<vmem>>, vector<4x32xf32>
    %c16_526 = arith.constant 16 : index
    %c0_527 = arith.constant 0 : index
    %436 = vector.load %arg26[%c16_526, %c0_527] : memref<40x32xf32, #tpu.memory_space<vmem>>, vector<4x32xf32>
    tpu.vector_store %arg26[%c16_526, %c0_527], %435 {strides = array<i32>} : memref<40x32xf32, #tpu.memory_space<vmem>>, vector<4x32xf32>,
    %c0_528 = arith.constant 0 : index
    %c0_529 = arith.constant 0 : index
    %437 = vector.load %arg26[%c0_528, %c0_529] : memref<40x32xf32, #tpu.memory_space<vmem>>, vector<40x32xf32>
    %438 = arith.truncf %437 : vector<40x32xf32> to vector<40x32xbf16>
    %cst_530 = arith.constant dense<0.000000e+00> : vector<4x32xf32>
    %439 = tpu.matmul %428, %438, %cst_530 {dimension_numbers = #tpu.dot_dimension_numbers<[1], [0], [0], [1], [0, 0, 1, 1], [], []>} : vector<4x40xbf16>, vector<40x32xbf16>, vector<4x32xf32> -> vector<4x32xf32>
    %440 = vector.broadcast %429 : vector<4x1xf32> to vector<4x32xf32>
    %441 = arith.addf %439, %440 : vector<4x32xf32>
    %cst_531 = arith.constant 0.000000e+00 : f32
    %442 = vector.broadcast %cst_531 : f32 to vector<4x32xf32>
    %443 = arith.cmpf ogt, %441, %442 : vector<4x32xf32>
    %cst_532 = arith.constant 1.000000e-01 : f32
    %444 = vector.broadcast %cst_532 : f32 to vector<4x32xf32>
    %445 = arith.mulf %444, %441 : vector<4x32xf32>
    %446 = arith.select %443, %441, %445 : vector<4x32xi1>, vector<4x32xf32>
    %c3_533 = arith.constant 3 : index
    %c0_534 = arith.constant 0 : index
    %c0_535 = arith.constant 0 : index
    %447 = vector.load %arg12[%c3_533, %c0_534, %c0_535] : memref<12x4x40xbf16, #tpu.memory_space<vmem>>, vector<1x4x40xbf16>
    %448 = vector.shape_cast %447 : vector<1x4x40xbf16> to vector<4x40xbf16>
    %c0_536 = arith.constant 0 : index
    %c3_537 = arith.constant 3 : index
    %449 = vector.load %arg13[%c0_536, %c3_537] : memref<4x12xf32, #tpu.memory_space<vmem>>, vector<4x1xf32>
    %c0_538 = arith.constant 0 : index
    %c10_539 = arith.constant 10 : index
    %450 = vector.load %arg25[%c0_538, %c10_539] : memref<4x52xf32, #tpu.memory_space<vmem>>, vector<4x32xf32>
    tpu.vector_store %arg25[%c0_538, %c10_539], %446 {strides = array<i32>} : memref<4x52xf32, #tpu.memory_space<vmem>>, vector<4x32xf32>,
    %c0_540 = arith.constant 0 : index
    %c9_541 = arith.constant 9 : index
    %451 = vector.load %arg25[%c0_540, %c9_541] : memref<4x52xf32, #tpu.memory_space<vmem>>, vector<4x32xf32>
    %c0_542 = arith.constant 0 : index
    %c0_543 = arith.constant 0 : index
    %452 = vector.load %arg26[%c0_542, %c0_543] : memref<40x32xf32, #tpu.memory_space<vmem>>, vector<4x32xf32>
    tpu.vector_store %arg26[%c0_542, %c0_543], %451 {strides = array<i32>} : memref<40x32xf32, #tpu.memory_space<vmem>>, vector<4x32xf32>,
    %c0_544 = arith.constant 0 : index
    %c10_545 = arith.constant 10 : index
    %453 = vector.load %arg25[%c0_544, %c10_545] : memref<4x52xf32, #tpu.memory_space<vmem>>, vector<4x32xf32>
    %c8_546 = arith.constant 8 : index
    %c0_547 = arith.constant 0 : index
    %454 = vector.load %arg26[%c8_546, %c0_547] : memref<40x32xf32, #tpu.memory_space<vmem>>, vector<4x32xf32>
    tpu.vector_store %arg26[%c8_546, %c0_547], %453 {strides = array<i32>} : memref<40x32xf32, #tpu.memory_space<vmem>>, vector<4x32xf32>,
    %c0_548 = arith.constant 0 : index
    %c11_549 = arith.constant 11 : index
    %455 = vector.load %arg25[%c0_548, %c11_549] : memref<4x52xf32, #tpu.memory_space<vmem>>, vector<4x32xf32>
    %c16_550 = arith.constant 16 : index
    %c0_551 = arith.constant 0 : index
    %456 = vector.load %arg26[%c16_550, %c0_551] : memref<40x32xf32, #tpu.memory_space<vmem>>, vector<4x32xf32>
    tpu.vector_store %arg26[%c16_550, %c0_551], %455 {strides = array<i32>} : memref<40x32xf32, #tpu.memory_space<vmem>>, vector<4x32xf32>,
    %c0_552 = arith.constant 0 : index
    %c0_553 = arith.constant 0 : index
    %457 = vector.load %arg26[%c0_552, %c0_553] : memref<40x32xf32, #tpu.memory_space<vmem>>, vector<40x32xf32>
    %458 = arith.truncf %457 : vector<40x32xf32> to vector<40x32xbf16>
    %cst_554 = arith.constant dense<0.000000e+00> : vector<4x32xf32>
    %459 = tpu.matmul %448, %458, %cst_554 {dimension_numbers = #tpu.dot_dimension_numbers<[1], [0], [0], [1], [0, 0, 1, 1], [], []>} : vector<4x40xbf16>, vector<40x32xbf16>, vector<4x32xf32> -> vector<4x32xf32>
    %460 = vector.broadcast %449 : vector<4x1xf32> to vector<4x32xf32>
    %461 = arith.addf %459, %460 : vector<4x32xf32>
    %462 = arith.addf %461, %421 : vector<4x32xf32>
    %cst_555 = arith.constant 0.000000e+00 : f32
    %463 = vector.broadcast %cst_555 : f32 to vector<4x32xf32>
    %464 = arith.cmpf ogt, %462, %463 : vector<4x32xf32>
    %cst_556 = arith.constant 1.000000e-01 : f32
    %465 = vector.broadcast %cst_556 : f32 to vector<4x32xf32>
    %466 = arith.mulf %465, %462 : vector<4x32xf32>
    %467 = arith.select %464, %462, %466 : vector<4x32xi1>, vector<4x32xf32>
    %c4_557 = arith.constant 4 : index
    %c0_558 = arith.constant 0 : index
    %c0_559 = arith.constant 0 : index
    %468 = vector.load %arg12[%c4_557, %c0_558, %c0_559] : memref<12x4x40xbf16, #tpu.memory_space<vmem>>, vector<1x4x40xbf16>
    %469 = vector.shape_cast %468 : vector<1x4x40xbf16> to vector<4x40xbf16>
    %c0_560 = arith.constant 0 : index
    %c4_561 = arith.constant 4 : index
    %470 = vector.load %arg13[%c0_560, %c4_561] : memref<4x12xf32, #tpu.memory_space<vmem>>, vector<4x1xf32>
    %c0_562 = arith.constant 0 : index
    %c10_563 = arith.constant 10 : index
    %471 = vector.load %arg25[%c0_562, %c10_563] : memref<4x52xf32, #tpu.memory_space<vmem>>, vector<4x32xf32>
    tpu.vector_store %arg25[%c0_562, %c10_563], %467 {strides = array<i32>} : memref<4x52xf32, #tpu.memory_space<vmem>>, vector<4x32xf32>,
    %c0_564 = arith.constant 0 : index
    %c5_565 = arith.constant 5 : index
    %472 = vector.load %arg25[%c0_564, %c5_565] : memref<4x52xf32, #tpu.memory_space<vmem>>, vector<4x32xf32>
    %c0_566 = arith.constant 0 : index
    %c0_567 = arith.constant 0 : index
    %473 = vector.load %arg26[%c0_566, %c0_567] : memref<40x32xf32, #tpu.memory_space<vmem>>, vector<4x32xf32>
    tpu.vector_store %arg26[%c0_566, %c0_567], %472 {strides = array<i32>} : memref<40x32xf32, #tpu.memory_space<vmem>>, vector<4x32xf32>,
    %c0_568 = arith.constant 0 : index
    %c10_569 = arith.constant 10 : index
    %474 = vector.load %arg25[%c0_568, %c10_569] : memref<4x52xf32, #tpu.memory_space<vmem>>, vector<4x32xf32>
    %c8_570 = arith.constant 8 : index
    %c0_571 = arith.constant 0 : index
    %475 = vector.load %arg26[%c8_570, %c0_571] : memref<40x32xf32, #tpu.memory_space<vmem>>, vector<4x32xf32>
    tpu.vector_store %arg26[%c8_570, %c0_571], %474 {strides = array<i32>} : memref<40x32xf32, #tpu.memory_space<vmem>>, vector<4x32xf32>,
    %c0_572 = arith.constant 0 : index
    %c15_573 = arith.constant 15 : index
    %476 = vector.load %arg25[%c0_572, %c15_573] : memref<4x52xf32, #tpu.memory_space<vmem>>, vector<4x32xf32>
    %c16_574 = arith.constant 16 : index
    %c0_575 = arith.constant 0 : index
    %477 = vector.load %arg26[%c16_574, %c0_575] : memref<40x32xf32, #tpu.memory_space<vmem>>, vector<4x32xf32>
    tpu.vector_store %arg26[%c16_574, %c0_575], %476 {strides = array<i32>} : memref<40x32xf32, #tpu.memory_space<vmem>>, vector<4x32xf32>,
    %c0_576 = arith.constant 0 : index
    %c0_577 = arith.constant 0 : index
    %478 = vector.load %arg26[%c0_576, %c0_577] : memref<40x32xf32, #tpu.memory_space<vmem>>, vector<40x32xf32>
    %479 = arith.truncf %478 : vector<40x32xf32> to vector<40x32xbf16>
    %cst_578 = arith.constant dense<0.000000e+00> : vector<4x32xf32>
    %480 = tpu.matmul %469, %479, %cst_578 {dimension_numbers = #tpu.dot_dimension_numbers<[1], [0], [0], [1], [0, 0, 1, 1], [], []>} : vector<4x40xbf16>, vector<40x32xbf16>, vector<4x32xf32> -> vector<4x32xf32>
    %481 = vector.broadcast %470 : vector<4x1xf32> to vector<4x32xf32>
    %482 = arith.addf %480, %481 : vector<4x32xf32>
    %cst_579 = arith.constant 0.000000e+00 : f32
    %483 = vector.broadcast %cst_579 : f32 to vector<4x32xf32>
    %484 = arith.cmpf ogt, %482, %483 : vector<4x32xf32>
    %cst_580 = arith.constant 1.000000e-01 : f32
    %485 = vector.broadcast %cst_580 : f32 to vector<4x32xf32>
    %486 = arith.mulf %485, %482 : vector<4x32xf32>
    %487 = arith.select %484, %482, %486 : vector<4x32xi1>, vector<4x32xf32>
    %c5_581 = arith.constant 5 : index
    %c0_582 = arith.constant 0 : index
    %c0_583 = arith.constant 0 : index
    %488 = vector.load %arg12[%c5_581, %c0_582, %c0_583] : memref<12x4x40xbf16, #tpu.memory_space<vmem>>, vector<1x4x40xbf16>
    %489 = vector.shape_cast %488 : vector<1x4x40xbf16> to vector<4x40xbf16>
    %c0_584 = arith.constant 0 : index
    %c5_585 = arith.constant 5 : index
    %490 = vector.load %arg13[%c0_584, %c5_585] : memref<4x12xf32, #tpu.memory_space<vmem>>, vector<4x1xf32>
    %c0_586 = arith.constant 0 : index
    %c10_587 = arith.constant 10 : index
    %491 = vector.load %arg25[%c0_586, %c10_587] : memref<4x52xf32, #tpu.memory_space<vmem>>, vector<4x32xf32>
    tpu.vector_store %arg25[%c0_586, %c10_587], %487 {strides = array<i32>} : memref<4x52xf32, #tpu.memory_space<vmem>>, vector<4x32xf32>,
    %c0_588 = arith.constant 0 : index
    %c9_589 = arith.constant 9 : index
    %492 = vector.load %arg25[%c0_588, %c9_589] : memref<4x52xf32, #tpu.memory_space<vmem>>, vector<4x32xf32>
    %c0_590 = arith.constant 0 : index
    %c0_591 = arith.constant 0 : index
    %493 = vector.load %arg26[%c0_590, %c0_591] : memref<40x32xf32, #tpu.memory_space<vmem>>, vector<4x32xf32>
    tpu.vector_store %arg26[%c0_590, %c0_591], %492 {strides = array<i32>} : memref<40x32xf32, #tpu.memory_space<vmem>>, vector<4x32xf32>,
    %c0_592 = arith.constant 0 : index
    %c10_593 = arith.constant 10 : index
    %494 = vector.load %arg25[%c0_592, %c10_593] : memref<4x52xf32, #tpu.memory_space<vmem>>, vector<4x32xf32>
    %c8_594 = arith.constant 8 : index
    %c0_595 = arith.constant 0 : index
    %495 = vector.load %arg26[%c8_594, %c0_595] : memref<40x32xf32, #tpu.memory_space<vmem>>, vector<4x32xf32>
    tpu.vector_store %arg26[%c8_594, %c0_595], %494 {strides = array<i32>} : memref<40x32xf32, #tpu.memory_space<vmem>>, vector<4x32xf32>,
    %c0_596 = arith.constant 0 : index
    %c11_597 = arith.constant 11 : index
    %496 = vector.load %arg25[%c0_596, %c11_597] : memref<4x52xf32, #tpu.memory_space<vmem>>, vector<4x32xf32>
    %c16_598 = arith.constant 16 : index
    %c0_599 = arith.constant 0 : index
    %497 = vector.load %arg26[%c16_598, %c0_599] : memref<40x32xf32, #tpu.memory_space<vmem>>, vector<4x32xf32>
    tpu.vector_store %arg26[%c16_598, %c0_599], %496 {strides = array<i32>} : memref<40x32xf32, #tpu.memory_space<vmem>>, vector<4x32xf32>,
    %c0_600 = arith.constant 0 : index
    %c0_601 = arith.constant 0 : index
    %498 = vector.load %arg26[%c0_600, %c0_601] : memref<40x32xf32, #tpu.memory_space<vmem>>, vector<40x32xf32>
    %499 = arith.truncf %498 : vector<40x32xf32> to vector<40x32xbf16>
    %cst_602 = arith.constant dense<0.000000e+00> : vector<4x32xf32>
    %500 = tpu.matmul %489, %499, %cst_602 {dimension_numbers = #tpu.dot_dimension_numbers<[1], [0], [0], [1], [0, 0, 1, 1], [], []>} : vector<4x40xbf16>, vector<40x32xbf16>, vector<4x32xf32> -> vector<4x32xf32>
    %501 = vector.broadcast %490 : vector<4x1xf32> to vector<4x32xf32>
    %502 = arith.addf %500, %501 : vector<4x32xf32>
    %503 = arith.addf %502, %462 : vector<4x32xf32>
    %cst_603 = arith.constant 0.000000e+00 : f32
    %504 = vector.broadcast %cst_603 : f32 to vector<4x32xf32>
    %505 = arith.cmpf ogt, %380, %504 : vector<4x32xf32>
    %cst_604 = arith.constant 1.000000e-01 : f32
    %506 = vector.broadcast %cst_604 : f32 to vector<4x32xf32>
    %507 = arith.mulf %506, %380 : vector<4x32xf32>
    %508 = arith.select %505, %380, %507 : vector<4x32xi1>, vector<4x32xf32>
    %c6_605 = arith.constant 6 : index
    %c0_606 = arith.constant 0 : index
    %c0_607 = arith.constant 0 : index
    %509 = vector.load %arg12[%c6_605, %c0_606, %c0_607] : memref<12x4x40xbf16, #tpu.memory_space<vmem>>, vector<1x4x40xbf16>
    %510 = vector.shape_cast %509 : vector<1x4x40xbf16> to vector<4x40xbf16>
    %c0_608 = arith.constant 0 : index
    %c6_609 = arith.constant 6 : index
    %511 = vector.load %arg13[%c0_608, %c6_609] : memref<4x12xf32, #tpu.memory_space<vmem>>, vector<4x1xf32>
    %c0_610 = arith.constant 0 : index
    %c10_611 = arith.constant 10 : index
    %512 = vector.load %arg25[%c0_610, %c10_611] : memref<4x52xf32, #tpu.memory_space<vmem>>, vector<4x32xf32>
    tpu.vector_store %arg25[%c0_610, %c10_611], %508 {strides = array<i32>} : memref<4x52xf32, #tpu.memory_space<vmem>>, vector<4x32xf32>,
    %c0_612 = arith.constant 0 : index
    %c8_613 = arith.constant 8 : index
    %513 = vector.load %arg25[%c0_612, %c8_613] : memref<4x52xf32, #tpu.memory_space<vmem>>, vector<4x32xf32>
    %c0_614 = arith.constant 0 : index
    %c0_615 = arith.constant 0 : index
    %514 = vector.load %arg26[%c0_614, %c0_615] : memref<40x32xf32, #tpu.memory_space<vmem>>, vector<4x32xf32>
    tpu.vector_store %arg26[%c0_614, %c0_615], %513 {strides = array<i32>} : memref<40x32xf32, #tpu.memory_space<vmem>>, vector<4x32xf32>,
    %c0_616 = arith.constant 0 : index
    %c9_617 = arith.constant 9 : index
    %515 = vector.load %arg25[%c0_616, %c9_617] : memref<4x52xf32, #tpu.memory_space<vmem>>, vector<4x32xf32>
    %c8_618 = arith.constant 8 : index
    %c0_619 = arith.constant 0 : index
    %516 = vector.load %arg26[%c8_618, %c0_619] : memref<40x32xf32, #tpu.memory_space<vmem>>, vector<4x32xf32>
    tpu.vector_store %arg26[%c8_618, %c0_619], %515 {strides = array<i32>} : memref<40x32xf32, #tpu.memory_space<vmem>>, vector<4x32xf32>,
    %c0_620 = arith.constant 0 : index
    %c10_621 = arith.constant 10 : index
    %517 = vector.load %arg25[%c0_620, %c10_621] : memref<4x52xf32, #tpu.memory_space<vmem>>, vector<4x32xf32>
    %c16_622 = arith.constant 16 : index
    %c0_623 = arith.constant 0 : index
    %518 = vector.load %arg26[%c16_622, %c0_623] : memref<40x32xf32, #tpu.memory_space<vmem>>, vector<4x32xf32>
    tpu.vector_store %arg26[%c16_622, %c0_623], %517 {strides = array<i32>} : memref<40x32xf32, #tpu.memory_space<vmem>>, vector<4x32xf32>,
    %c0_624 = arith.constant 0 : index
    %c11_625 = arith.constant 11 : index
    %519 = vector.load %arg25[%c0_624, %c11_625] : memref<4x52xf32, #tpu.memory_space<vmem>>, vector<4x32xf32>
    %c24_626 = arith.constant 24 : index
    %c0_627 = arith.constant 0 : index
    %520 = vector.load %arg26[%c24_626, %c0_627] : memref<40x32xf32, #tpu.memory_space<vmem>>, vector<4x32xf32>
    tpu.vector_store %arg26[%c24_626, %c0_627], %519 {strides = array<i32>} : memref<40x32xf32, #tpu.memory_space<vmem>>, vector<4x32xf32>,
    %c0_628 = arith.constant 0 : index
    %c12_629 = arith.constant 12 : index
    %521 = vector.load %arg25[%c0_628, %c12_629] : memref<4x52xf32, #tpu.memory_space<vmem>>, vector<4x32xf32>
    %c32_630 = arith.constant 32 : index
    %c0_631 = arith.constant 0 : index
    %522 = vector.load %arg26[%c32_630, %c0_631] : memref<40x32xf32, #tpu.memory_space<vmem>>, vector<4x32xf32>
    tpu.vector_store %arg26[%c32_630, %c0_631], %521 {strides = array<i32>} : memref<40x32xf32, #tpu.memory_space<vmem>>, vector<4x32xf32>,
    %c0_632 = arith.constant 0 : index
    %c0_633 = arith.constant 0 : index
    %523 = vector.load %arg26[%c0_632, %c0_633] : memref<40x32xf32, #tpu.memory_space<vmem>>, vector<40x32xf32>
    %524 = arith.truncf %523 : vector<40x32xf32> to vector<40x32xbf16>
    %cst_634 = arith.constant dense<0.000000e+00> : vector<4x32xf32>
    %525 = tpu.matmul %510, %524, %cst_634 {dimension_numbers = #tpu.dot_dimension_numbers<[1], [0], [0], [1], [0, 0, 1, 1], [], []>} : vector<4x40xbf16>, vector<40x32xbf16>, vector<4x32xf32> -> vector<4x32xf32>
    %526 = vector.broadcast %511 : vector<4x1xf32> to vector<4x32xf32>
    %527 = arith.addf %525, %526 : vector<4x32xf32>
    %cst_635 = arith.constant 0.000000e+00 : f32
    %528 = vector.broadcast %cst_635 : f32 to vector<4x32xf32>
    %529 = arith.cmpf ogt, %527, %528 : vector<4x32xf32>
    %cst_636 = arith.constant 1.000000e-01 : f32
    %530 = vector.broadcast %cst_636 : f32 to vector<4x32xf32>
    %531 = arith.mulf %530, %527 : vector<4x32xf32>
    %532 = arith.select %529, %527, %531 : vector<4x32xi1>, vector<4x32xf32>
    %c7_637 = arith.constant 7 : index
    %c0_638 = arith.constant 0 : index
    %c0_639 = arith.constant 0 : index
    %533 = vector.load %arg12[%c7_637, %c0_638, %c0_639] : memref<12x4x40xbf16, #tpu.memory_space<vmem>>, vector<1x4x40xbf16>
    %534 = vector.shape_cast %533 : vector<1x4x40xbf16> to vector<4x40xbf16>
    %c0_640 = arith.constant 0 : index
    %c7_641 = arith.constant 7 : index
    %535 = vector.load %arg13[%c0_640, %c7_641] : memref<4x12xf32, #tpu.memory_space<vmem>>, vector<4x1xf32>
    %c0_642 = arith.constant 0 : index
    %c10_643 = arith.constant 10 : index
    %536 = vector.load %arg25[%c0_642, %c10_643] : memref<4x52xf32, #tpu.memory_space<vmem>>, vector<4x32xf32>
    tpu.vector_store %arg25[%c0_642, %c10_643], %532 {strides = array<i32>} : memref<4x52xf32, #tpu.memory_space<vmem>>, vector<4x32xf32>,
    %c0_644 = arith.constant 0 : index
    %c8_645 = arith.constant 8 : index
    %537 = vector.load %arg25[%c0_644, %c8_645] : memref<4x52xf32, #tpu.memory_space<vmem>>, vector<4x32xf32>
    %c0_646 = arith.constant 0 : index
    %c0_647 = arith.constant 0 : index
    %538 = vector.load %arg26[%c0_646, %c0_647] : memref<40x32xf32, #tpu.memory_space<vmem>>, vector<4x32xf32>
    tpu.vector_store %arg26[%c0_646, %c0_647], %537 {strides = array<i32>} : memref<40x32xf32, #tpu.memory_space<vmem>>, vector<4x32xf32>,
    %c0_648 = arith.constant 0 : index
    %c9_649 = arith.constant 9 : index
    %539 = vector.load %arg25[%c0_648, %c9_649] : memref<4x52xf32, #tpu.memory_space<vmem>>, vector<4x32xf32>
    %c8_650 = arith.constant 8 : index
    %c0_651 = arith.constant 0 : index
    %540 = vector.load %arg26[%c8_650, %c0_651] : memref<40x32xf32, #tpu.memory_space<vmem>>, vector<4x32xf32>
    tpu.vector_store %arg26[%c8_650, %c0_651], %539 {strides = array<i32>} : memref<40x32xf32, #tpu.memory_space<vmem>>, vector<4x32xf32>,
    %c0_652 = arith.constant 0 : index
    %c10_653 = arith.constant 10 : index
    %541 = vector.load %arg25[%c0_652, %c10_653] : memref<4x52xf32, #tpu.memory_space<vmem>>, vector<4x32xf32>
    %c16_654 = arith.constant 16 : index
    %c0_655 = arith.constant 0 : index
    %542 = vector.load %arg26[%c16_654, %c0_655] : memref<40x32xf32, #tpu.memory_space<vmem>>, vector<4x32xf32>
    tpu.vector_store %arg26[%c16_654, %c0_655], %541 {strides = array<i32>} : memref<40x32xf32, #tpu.memory_space<vmem>>, vector<4x32xf32>,
    %c0_656 = arith.constant 0 : index
    %c11_657 = arith.constant 11 : index
    %543 = vector.load %arg25[%c0_656, %c11_657] : memref<4x52xf32, #tpu.memory_space<vmem>>, vector<4x32xf32>
    %c24_658 = arith.constant 24 : index
    %c0_659 = arith.constant 0 : index
    %544 = vector.load %arg26[%c24_658, %c0_659] : memref<40x32xf32, #tpu.memory_space<vmem>>, vector<4x32xf32>
    tpu.vector_store %arg26[%c24_658, %c0_659], %543 {strides = array<i32>} : memref<40x32xf32, #tpu.memory_space<vmem>>, vector<4x32xf32>,
    %c0_660 = arith.constant 0 : index
    %c12_661 = arith.constant 12 : index
    %545 = vector.load %arg25[%c0_660, %c12_661] : memref<4x52xf32, #tpu.memory_space<vmem>>, vector<4x32xf32>
    %c32_662 = arith.constant 32 : index
    %c0_663 = arith.constant 0 : index
    %546 = vector.load %arg26[%c32_662, %c0_663] : memref<40x32xf32, #tpu.memory_space<vmem>>, vector<4x32xf32>
    tpu.vector_store %arg26[%c32_662, %c0_663], %545 {strides = array<i32>} : memref<40x32xf32, #tpu.memory_space<vmem>>, vector<4x32xf32>,
    %c0_664 = arith.constant 0 : index
    %c0_665 = arith.constant 0 : index
    %547 = vector.load %arg26[%c0_664, %c0_665] : memref<40x32xf32, #tpu.memory_space<vmem>>, vector<40x32xf32>
    %548 = arith.truncf %547 : vector<40x32xf32> to vector<40x32xbf16>
    %cst_666 = arith.constant dense<0.000000e+00> : vector<4x32xf32>
    %549 = tpu.matmul %534, %548, %cst_666 {dimension_numbers = #tpu.dot_dimension_numbers<[1], [0], [0], [1], [0, 0, 1, 1], [], []>} : vector<4x40xbf16>, vector<40x32xbf16>, vector<4x32xf32> -> vector<4x32xf32>
    %550 = vector.broadcast %535 : vector<4x1xf32> to vector<4x32xf32>
    %551 = arith.addf %549, %550 : vector<4x32xf32>
    %552 = arith.addf %551, %380 : vector<4x32xf32>
    %cst_667 = arith.constant 0.000000e+00 : f32
    %553 = vector.broadcast %cst_667 : f32 to vector<4x32xf32>
    %554 = arith.cmpf ogt, %552, %553 : vector<4x32xf32>
    %cst_668 = arith.constant 1.000000e-01 : f32
    %555 = vector.broadcast %cst_668 : f32 to vector<4x32xf32>
    %556 = arith.mulf %555, %552 : vector<4x32xf32>
    %557 = arith.select %554, %552, %556 : vector<4x32xi1>, vector<4x32xf32>
    %c8_669 = arith.constant 8 : index
    %c0_670 = arith.constant 0 : index
    %c0_671 = arith.constant 0 : index
    %558 = vector.load %arg12[%c8_669, %c0_670, %c0_671] : memref<12x4x40xbf16, #tpu.memory_space<vmem>>, vector<1x4x40xbf16>
    %559 = vector.shape_cast %558 : vector<1x4x40xbf16> to vector<4x40xbf16>
    %c0_672 = arith.constant 0 : index
    %c8_673 = arith.constant 8 : index
    %560 = vector.load %arg13[%c0_672, %c8_673] : memref<4x12xf32, #tpu.memory_space<vmem>>, vector<4x1xf32>
    %c0_674 = arith.constant 0 : index
    %c10_675 = arith.constant 10 : index
    %561 = vector.load %arg25[%c0_674, %c10_675] : memref<4x52xf32, #tpu.memory_space<vmem>>, vector<4x32xf32>
    tpu.vector_store %arg25[%c0_674, %c10_675], %557 {strides = array<i32>} : memref<4x52xf32, #tpu.memory_space<vmem>>, vector<4x32xf32>,
    %c0_676 = arith.constant 0 : index
    %c4_677 = arith.constant 4 : index
    %562 = vector.load %arg25[%c0_676, %c4_677] : memref<4x52xf32, #tpu.memory_space<vmem>>, vector<4x32xf32>
    %c0_678 = arith.constant 0 : index
    %c0_679 = arith.constant 0 : index
    %563 = vector.load %arg26[%c0_678, %c0_679] : memref<40x32xf32, #tpu.memory_space<vmem>>, vector<4x32xf32>
    tpu.vector_store %arg26[%c0_678, %c0_679], %562 {strides = array<i32>} : memref<40x32xf32, #tpu.memory_space<vmem>>, vector<4x32xf32>,
    %c0_680 = arith.constant 0 : index
    %c7_681 = arith.constant 7 : index
    %564 = vector.load %arg25[%c0_680, %c7_681] : memref<4x52xf32, #tpu.memory_space<vmem>>, vector<4x32xf32>
    %c8_682 = arith.constant 8 : index
    %c0_683 = arith.constant 0 : index
    %565 = vector.load %arg26[%c8_682, %c0_683] : memref<40x32xf32, #tpu.memory_space<vmem>>, vector<4x32xf32>
    tpu.vector_store %arg26[%c8_682, %c0_683], %564 {strides = array<i32>} : memref<40x32xf32, #tpu.memory_space<vmem>>, vector<4x32xf32>,
    %c0_684 = arith.constant 0 : index
    %c10_685 = arith.constant 10 : index
    %566 = vector.load %arg25[%c0_684, %c10_685] : memref<4x52xf32, #tpu.memory_space<vmem>>, vector<4x32xf32>
    %c16_686 = arith.constant 16 : index
    %c0_687 = arith.constant 0 : index
    %567 = vector.load %arg26[%c16_686, %c0_687] : memref<40x32xf32, #tpu.memory_space<vmem>>, vector<4x32xf32>
    tpu.vector_store %arg26[%c16_686, %c0_687], %566 {strides = array<i32>} : memref<40x32xf32, #tpu.memory_space<vmem>>, vector<4x32xf32>,
    %c0_688 = arith.constant 0 : index
    %c13_689 = arith.constant 13 : index
    %568 = vector.load %arg25[%c0_688, %c13_689] : memref<4x52xf32, #tpu.memory_space<vmem>>, vector<4x32xf32>
    %c24_690 = arith.constant 24 : index
    %c0_691 = arith.constant 0 : index
    %569 = vector.load %arg26[%c24_690, %c0_691] : memref<40x32xf32, #tpu.memory_space<vmem>>, vector<4x32xf32>
    tpu.vector_store %arg26[%c24_690, %c0_691], %568 {strides = array<i32>} : memref<40x32xf32, #tpu.memory_space<vmem>>, vector<4x32xf32>,
    %c0_692 = arith.constant 0 : index
    %c16_693 = arith.constant 16 : index
    %570 = vector.load %arg25[%c0_692, %c16_693] : memref<4x52xf32, #tpu.memory_space<vmem>>, vector<4x32xf32>
    %c32_694 = arith.constant 32 : index
    %c0_695 = arith.constant 0 : index
    %571 = vector.load %arg26[%c32_694, %c0_695] : memref<40x32xf32, #tpu.memory_space<vmem>>, vector<4x32xf32>
    tpu.vector_store %arg26[%c32_694, %c0_695], %570 {strides = array<i32>} : memref<40x32xf32, #tpu.memory_space<vmem>>, vector<4x32xf32>,
    %c0_696 = arith.constant 0 : index
    %c0_697 = arith.constant 0 : index
    %572 = vector.load %arg26[%c0_696, %c0_697] : memref<40x32xf32, #tpu.memory_space<vmem>>, vector<40x32xf32>
    %573 = arith.truncf %572 : vector<40x32xf32> to vector<40x32xbf16>
    %cst_698 = arith.constant dense<0.000000e+00> : vector<4x32xf32>
    %574 = tpu.matmul %559, %573, %cst_698 {dimension_numbers = #tpu.dot_dimension_numbers<[1], [0], [0], [1], [0, 0, 1, 1], [], []>} : vector<4x40xbf16>, vector<40x32xbf16>, vector<4x32xf32> -> vector<4x32xf32>
    %575 = vector.broadcast %560 : vector<4x1xf32> to vector<4x32xf32>
    %576 = arith.addf %574, %575 : vector<4x32xf32>
    %cst_699 = arith.constant 0.000000e+00 : f32
    %577 = vector.broadcast %cst_699 : f32 to vector<4x32xf32>
    %578 = arith.cmpf ogt, %576, %577 : vector<4x32xf32>
    %cst_700 = arith.constant 1.000000e-01 : f32
    %579 = vector.broadcast %cst_700 : f32 to vector<4x32xf32>
    %580 = arith.mulf %579, %576 : vector<4x32xf32>
    %581 = arith.select %578, %576, %580 : vector<4x32xi1>, vector<4x32xf32>
    %c9_701 = arith.constant 9 : index
    %c0_702 = arith.constant 0 : index
    %c0_703 = arith.constant 0 : index
    %582 = vector.load %arg12[%c9_701, %c0_702, %c0_703] : memref<12x4x40xbf16, #tpu.memory_space<vmem>>, vector<1x4x40xbf16>
    %583 = vector.shape_cast %582 : vector<1x4x40xbf16> to vector<4x40xbf16>
    %c0_704 = arith.constant 0 : index
    %c9_705 = arith.constant 9 : index
    %584 = vector.load %arg13[%c0_704, %c9_705] : memref<4x12xf32, #tpu.memory_space<vmem>>, vector<4x1xf32>
    %c0_706 = arith.constant 0 : index
    %c10_707 = arith.constant 10 : index
    %585 = vector.load %arg25[%c0_706, %c10_707] : memref<4x52xf32, #tpu.memory_space<vmem>>, vector<4x32xf32>
    tpu.vector_store %arg25[%c0_706, %c10_707], %581 {strides = array<i32>} : memref<4x52xf32, #tpu.memory_space<vmem>>, vector<4x32xf32>,
    %c0_708 = arith.constant 0 : index
    %c8_709 = arith.constant 8 : index
    %586 = vector.load %arg25[%c0_708, %c8_709] : memref<4x52xf32, #tpu.memory_space<vmem>>, vector<4x32xf32>
    %c0_710 = arith.constant 0 : index
    %c0_711 = arith.constant 0 : index
    %587 = vector.load %arg26[%c0_710, %c0_711] : memref<40x32xf32, #tpu.memory_space<vmem>>, vector<4x32xf32>
    tpu.vector_store %arg26[%c0_710, %c0_711], %586 {strides = array<i32>} : memref<40x32xf32, #tpu.memory_space<vmem>>, vector<4x32xf32>,
    %c0_712 = arith.constant 0 : index
    %c9_713 = arith.constant 9 : index
    %588 = vector.load %arg25[%c0_712, %c9_713] : memref<4x52xf32, #tpu.memory_space<vmem>>, vector<4x32xf32>
    %c8_714 = arith.constant 8 : index
    %c0_715 = arith.constant 0 : index
    %589 = vector.load %arg26[%c8_714, %c0_715] : memref<40x32xf32, #tpu.memory_space<vmem>>, vector<4x32xf32>
    tpu.vector_store %arg26[%c8_714, %c0_715], %588 {strides = array<i32>} : memref<40x32xf32, #tpu.memory_space<vmem>>, vector<4x32xf32>,
    %c0_716 = arith.constant 0 : index
    %c10_717 = arith.constant 10 : index
    %590 = vector.load %arg25[%c0_716, %c10_717] : memref<4x52xf32, #tpu.memory_space<vmem>>, vector<4x32xf32>
    %c16_718 = arith.constant 16 : index
    %c0_719 = arith.constant 0 : index
    %591 = vector.load %arg26[%c16_718, %c0_719] : memref<40x32xf32, #tpu.memory_space<vmem>>, vector<4x32xf32>
    tpu.vector_store %arg26[%c16_718, %c0_719], %590 {strides = array<i32>} : memref<40x32xf32, #tpu.memory_space<vmem>>, vector<4x32xf32>,
    %c0_720 = arith.constant 0 : index
    %c11_721 = arith.constant 11 : index
    %592 = vector.load %arg25[%c0_720, %c11_721] : memref<4x52xf32, #tpu.memory_space<vmem>>, vector<4x32xf32>
    %c24_722 = arith.constant 24 : index
    %c0_723 = arith.constant 0 : index
    %593 = vector.load %arg26[%c24_722, %c0_723] : memref<40x32xf32, #tpu.memory_space<vmem>>, vector<4x32xf32>
    tpu.vector_store %arg26[%c24_722, %c0_723], %592 {strides = array<i32>} : memref<40x32xf32, #tpu.memory_space<vmem>>, vector<4x32xf32>,
    %c0_724 = arith.constant 0 : index
    %c12_725 = arith.constant 12 : index
    %594 = vector.load %arg25[%c0_724, %c12_725] : memref<4x52xf32, #tpu.memory_space<vmem>>, vector<4x32xf32>
    %c32_726 = arith.constant 32 : index
    %c0_727 = arith.constant 0 : index
    %595 = vector.load %arg26[%c32_726, %c0_727] : memref<40x32xf32, #tpu.memory_space<vmem>>, vector<4x32xf32>
    tpu.vector_store %arg26[%c32_726, %c0_727], %594 {strides = array<i32>} : memref<40x32xf32, #tpu.memory_space<vmem>>, vector<4x32xf32>,
    %c0_728 = arith.constant 0 : index
    %c0_729 = arith.constant 0 : index
    %596 = vector.load %arg26[%c0_728, %c0_729] : memref<40x32xf32, #tpu.memory_space<vmem>>, vector<40x32xf32>
    %597 = arith.truncf %596 : vector<40x32xf32> to vector<40x32xbf16>
    %cst_730 = arith.constant dense<0.000000e+00> : vector<4x32xf32>
    %598 = tpu.matmul %583, %597, %cst_730 {dimension_numbers = #tpu.dot_dimension_numbers<[1], [0], [0], [1], [0, 0, 1, 1], [], []>} : vector<4x40xbf16>, vector<40x32xbf16>, vector<4x32xf32> -> vector<4x32xf32>
    %599 = vector.broadcast %584 : vector<4x1xf32> to vector<4x32xf32>
    %600 = arith.addf %598, %599 : vector<4x32xf32>
    %601 = arith.addf %600, %552 : vector<4x32xf32>
    %cst_731 = arith.constant 0.000000e+00 : f32
    %602 = vector.broadcast %cst_731 : f32 to vector<4x32xf32>
    %603 = arith.cmpf ogt, %601, %602 : vector<4x32xf32>
    %cst_732 = arith.constant 1.000000e-01 : f32
    %604 = vector.broadcast %cst_732 : f32 to vector<4x32xf32>
    %605 = arith.mulf %604, %601 : vector<4x32xf32>
    %606 = arith.select %603, %601, %605 : vector<4x32xi1>, vector<4x32xf32>
    %c10_733 = arith.constant 10 : index
    %c0_734 = arith.constant 0 : index
    %c0_735 = arith.constant 0 : index
    %607 = vector.load %arg12[%c10_733, %c0_734, %c0_735] : memref<12x4x40xbf16, #tpu.memory_space<vmem>>, vector<1x4x40xbf16>
    %608 = vector.shape_cast %607 : vector<1x4x40xbf16> to vector<4x40xbf16>
    %c0_736 = arith.constant 0 : index
    %c10_737 = arith.constant 10 : index
    %609 = vector.load %arg13[%c0_736, %c10_737] : memref<4x12xf32, #tpu.memory_space<vmem>>, vector<4x1xf32>
    %c0_738 = arith.constant 0 : index
    %c10_739 = arith.constant 10 : index
    %610 = vector.load %arg25[%c0_738, %c10_739] : memref<4x52xf32, #tpu.memory_space<vmem>>, vector<4x32xf32>
    tpu.vector_store %arg25[%c0_738, %c10_739], %606 {strides = array<i32>} : memref<4x52xf32, #tpu.memory_space<vmem>>, vector<4x32xf32>,
    %c0_740 = arith.constant 0 : index
    %c0_741 = arith.constant 0 : index
    %611 = vector.load %arg25[%c0_740, %c0_741] : memref<4x52xf32, #tpu.memory_space<vmem>>, vector<4x32xf32>
    %c0_742 = arith.constant 0 : index
    %c0_743 = arith.constant 0 : index
    %612 = vector.load %arg26[%c0_742, %c0_743] : memref<40x32xf32, #tpu.memory_space<vmem>>, vector<4x32xf32>
    tpu.vector_store %arg26[%c0_742, %c0_743], %611 {strides = array<i32>} : memref<40x32xf32, #tpu.memory_space<vmem>>, vector<4x32xf32>,
    %c0_744 = arith.constant 0 : index
    %c5_745 = arith.constant 5 : index
    %613 = vector.load %arg25[%c0_744, %c5_745] : memref<4x52xf32, #tpu.memory_space<vmem>>, vector<4x32xf32>
    %c8_746 = arith.constant 8 : index
    %c0_747 = arith.constant 0 : index
    %614 = vector.load %arg26[%c8_746, %c0_747] : memref<40x32xf32, #tpu.memory_space<vmem>>, vector<4x32xf32>
    tpu.vector_store %arg26[%c8_746, %c0_747], %613 {strides = array<i32>} : memref<40x32xf32, #tpu.memory_space<vmem>>, vector<4x32xf32>,
    %c0_748 = arith.constant 0 : index
    %c10_749 = arith.constant 10 : index
    %615 = vector.load %arg25[%c0_748, %c10_749] : memref<4x52xf32, #tpu.memory_space<vmem>>, vector<4x32xf32>
    %c16_750 = arith.constant 16 : index
    %c0_751 = arith.constant 0 : index
    %616 = vector.load %arg26[%c16_750, %c0_751] : memref<40x32xf32, #tpu.memory_space<vmem>>, vector<4x32xf32>
    tpu.vector_store %arg26[%c16_750, %c0_751], %615 {strides = array<i32>} : memref<40x32xf32, #tpu.memory_space<vmem>>, vector<4x32xf32>,
    %c0_752 = arith.constant 0 : index
    %c15_753 = arith.constant 15 : index
    %617 = vector.load %arg25[%c0_752, %c15_753] : memref<4x52xf32, #tpu.memory_space<vmem>>, vector<4x32xf32>
    %c24_754 = arith.constant 24 : index
    %c0_755 = arith.constant 0 : index
    %618 = vector.load %arg26[%c24_754, %c0_755] : memref<40x32xf32, #tpu.memory_space<vmem>>, vector<4x32xf32>
    tpu.vector_store %arg26[%c24_754, %c0_755], %617 {strides = array<i32>} : memref<40x32xf32, #tpu.memory_space<vmem>>, vector<4x32xf32>,
    %c0_756 = arith.constant 0 : index
    %c20_757 = arith.constant 20 : index
    %619 = vector.load %arg25[%c0_756, %c20_757] : memref<4x52xf32, #tpu.memory_space<vmem>>, vector<4x32xf32>
    %c32_758 = arith.constant 32 : index
    %c0_759 = arith.constant 0 : index
    %620 = vector.load %arg26[%c32_758, %c0_759] : memref<40x32xf32, #tpu.memory_space<vmem>>, vector<4x32xf32>
    tpu.vector_store %arg26[%c32_758, %c0_759], %619 {strides = array<i32>} : memref<40x32xf32, #tpu.memory_space<vmem>>, vector<4x32xf32>,
    %c0_760 = arith.constant 0 : index
    %c0_761 = arith.constant 0 : index
    %621 = vector.load %arg26[%c0_760, %c0_761] : memref<40x32xf32, #tpu.memory_space<vmem>>, vector<40x32xf32>
    %622 = arith.truncf %621 : vector<40x32xf32> to vector<40x32xbf16>
    %cst_762 = arith.constant dense<0.000000e+00> : vector<4x32xf32>
    %623 = tpu.matmul %608, %622, %cst_762 {dimension_numbers = #tpu.dot_dimension_numbers<[1], [0], [0], [1], [0, 0, 1, 1], [], []>} : vector<4x40xbf16>, vector<40x32xbf16>, vector<4x32xf32> -> vector<4x32xf32>
    %624 = vector.broadcast %609 : vector<4x1xf32> to vector<4x32xf32>
    %625 = arith.addf %623, %624 : vector<4x32xf32>
    %cst_763 = arith.constant 0.000000e+00 : f32
    %626 = vector.broadcast %cst_763 : f32 to vector<4x32xf32>
    %627 = arith.cmpf ogt, %625, %626 : vector<4x32xf32>
    %cst_764 = arith.constant 1.000000e-01 : f32
    %628 = vector.broadcast %cst_764 : f32 to vector<4x32xf32>
    %629 = arith.mulf %628, %625 : vector<4x32xf32>
    %630 = arith.select %627, %625, %629 : vector<4x32xi1>, vector<4x32xf32>
    %c11_765 = arith.constant 11 : index
    %c0_766 = arith.constant 0 : index
    %c0_767 = arith.constant 0 : index
    %631 = vector.load %arg12[%c11_765, %c0_766, %c0_767] : memref<12x4x40xbf16, #tpu.memory_space<vmem>>, vector<1x4x40xbf16>
    %632 = vector.shape_cast %631 : vector<1x4x40xbf16> to vector<4x40xbf16>
    %c0_768 = arith.constant 0 : index
    %c11_769 = arith.constant 11 : index
    %633 = vector.load %arg13[%c0_768, %c11_769] : memref<4x12xf32, #tpu.memory_space<vmem>>, vector<4x1xf32>
    %c0_770 = arith.constant 0 : index
    %c10_771 = arith.constant 10 : index
    %634 = vector.load %arg25[%c0_770, %c10_771] : memref<4x52xf32, #tpu.memory_space<vmem>>, vector<4x32xf32>
    tpu.vector_store %arg25[%c0_770, %c10_771], %630 {strides = array<i32>} : memref<4x52xf32, #tpu.memory_space<vmem>>, vector<4x32xf32>,
    %c0_772 = arith.constant 0 : index
    %c8_773 = arith.constant 8 : index
    %635 = vector.load %arg25[%c0_772, %c8_773] : memref<4x52xf32, #tpu.memory_space<vmem>>, vector<4x32xf32>
    %c0_774 = arith.constant 0 : index
    %c0_775 = arith.constant 0 : index
    %636 = vector.load %arg26[%c0_774, %c0_775] : memref<40x32xf32, #tpu.memory_space<vmem>>, vector<4x32xf32>
    tpu.vector_store %arg26[%c0_774, %c0_775], %635 {strides = array<i32>} : memref<40x32xf32, #tpu.memory_space<vmem>>, vector<4x32xf32>,
    %c0_776 = arith.constant 0 : index
    %c9_777 = arith.constant 9 : index
    %637 = vector.load %arg25[%c0_776, %c9_777] : memref<4x52xf32, #tpu.memory_space<vmem>>, vector<4x32xf32>
    %c8_778 = arith.constant 8 : index
    %c0_779 = arith.constant 0 : index
    %638 = vector.load %arg26[%c8_778, %c0_779] : memref<40x32xf32, #tpu.memory_space<vmem>>, vector<4x32xf32>
    tpu.vector_store %arg26[%c8_778, %c0_779], %637 {strides = array<i32>} : memref<40x32xf32, #tpu.memory_space<vmem>>, vector<4x32xf32>,
    %c0_780 = arith.constant 0 : index
    %c10_781 = arith.constant 10 : index
    %639 = vector.load %arg25[%c0_780, %c10_781] : memref<4x52xf32, #tpu.memory_space<vmem>>, vector<4x32xf32>
    %c16_782 = arith.constant 16 : index
    %c0_783 = arith.constant 0 : index
    %640 = vector.load %arg26[%c16_782, %c0_783] : memref<40x32xf32, #tpu.memory_space<vmem>>, vector<4x32xf32>
    tpu.vector_store %arg26[%c16_782, %c0_783], %639 {strides = array<i32>} : memref<40x32xf32, #tpu.memory_space<vmem>>, vector<4x32xf32>,
    %c0_784 = arith.constant 0 : index
    %c11_785 = arith.constant 11 : index
    %641 = vector.load %arg25[%c0_784, %c11_785] : memref<4x52xf32, #tpu.memory_space<vmem>>, vector<4x32xf32>
    %c24_786 = arith.constant 24 : index
    %c0_787 = arith.constant 0 : index
    %642 = vector.load %arg26[%c24_786, %c0_787] : memref<40x32xf32, #tpu.memory_space<vmem>>, vector<4x32xf32>
    tpu.vector_store %arg26[%c24_786, %c0_787], %641 {strides = array<i32>} : memref<40x32xf32, #tpu.memory_space<vmem>>, vector<4x32xf32>,
    %c0_788 = arith.constant 0 : index
    %c12_789 = arith.constant 12 : index
    %643 = vector.load %arg25[%c0_788, %c12_789] : memref<4x52xf32, #tpu.memory_space<vmem>>, vector<4x32xf32>
    %c32_790 = arith.constant 32 : index
    %c0_791 = arith.constant 0 : index
    %644 = vector.load %arg26[%c32_790, %c0_791] : memref<40x32xf32, #tpu.memory_space<vmem>>, vector<4x32xf32>
    tpu.vector_store %arg26[%c32_790, %c0_791], %643 {strides = array<i32>} : memref<40x32xf32, #tpu.memory_space<vmem>>, vector<4x32xf32>,
    %c0_792 = arith.constant 0 : index
    %c0_793 = arith.constant 0 : index
    %645 = vector.load %arg26[%c0_792, %c0_793] : memref<40x32xf32, #tpu.memory_space<vmem>>, vector<40x32xf32>
    %646 = arith.truncf %645 : vector<40x32xf32> to vector<40x32xbf16>
    %cst_794 = arith.constant dense<0.000000e+00> : vector<4x32xf32>
    %647 = tpu.matmul %632, %646, %cst_794 {dimension_numbers = #tpu.dot_dimension_numbers<[1], [0], [0], [1], [0, 0, 1, 1], [], []>} : vector<4x40xbf16>, vector<40x32xbf16>, vector<4x32xf32> -> vector<4x32xf32>
    %648 = vector.broadcast %633 : vector<4x1xf32> to vector<4x32xf32>
    %649 = arith.addf %647, %648 : vector<4x32xf32>
    %650 = arith.addf %649, %601 : vector<4x32xf32>
    %651 = arith.addf %503, %650 : vector<4x32xf32>
    %cst_795 = arith.constant 5.000000e-01 : f32
    %652 = vector.broadcast %cst_795 : f32 to vector<4x32xf32>
    %653 = arith.mulf %651, %652 : vector<4x32xf32>
    %cst_796 = arith.constant 0.000000e+00 : f32
    %654 = vector.broadcast %cst_796 : f32 to vector<4x32xf32>
    %655 = arith.cmpf ogt, %653, %654 : vector<4x32xf32>
    %cst_797 = arith.constant 1.000000e-01 : f32
    %656 = vector.broadcast %cst_797 : f32 to vector<4x32xf32>
    %657 = arith.mulf %656, %653 : vector<4x32xf32>
    %658 = arith.select %655, %653, %657 : vector<4x32xi1>, vector<4x32xf32>
    %c0_798 = arith.constant 0 : index
    %c0_799 = arith.constant 0 : index
    %659 = vector.load %arg14[%c0_798, %c0_799] : memref<2x56xbf16, #tpu.memory_space<vmem>>, vector<2x56xbf16>
    %c0_800 = arith.constant 0 : index
    %c3_801 = arith.constant 3 : index
    %660 = vector.load %arg27[%c0_800, %c3_801] : memref<4x38xf32, #tpu.memory_space<vmem>>, vector<4x32xf32>
    tpu.vector_store %arg27[%c0_800, %c3_801], %658 {strides = array<i32>} : memref<4x38xf32, #tpu.memory_space<vmem>>, vector<4x32xf32>,
    %c0_802 = arith.constant 0 : index
    %c0_803 = arith.constant 0 : index
    %661 = vector.load %arg27[%c0_802, %c0_803] : memref<4x38xf32, #tpu.memory_space<vmem>>, vector<4x32xf32>
    %c0_804 = arith.constant 0 : index
    %c0_805 = arith.constant 0 : index
    %662 = vector.load %arg28[%c0_804, %c0_805] : memref<56x32xf32, #tpu.memory_space<vmem>>, vector<4x32xf32>
    tpu.vector_store %arg28[%c0_804, %c0_805], %661 {strides = array<i32>} : memref<56x32xf32, #tpu.memory_space<vmem>>, vector<4x32xf32>,
    %c0_806 = arith.constant 0 : index
    %c1_807 = arith.constant 1 : index
    %663 = vector.load %arg27[%c0_806, %c1_807] : memref<4x38xf32, #tpu.memory_space<vmem>>, vector<4x32xf32>
    %c8_808 = arith.constant 8 : index
    %c0_809 = arith.constant 0 : index
    %664 = vector.load %arg28[%c8_808, %c0_809] : memref<56x32xf32, #tpu.memory_space<vmem>>, vector<4x32xf32>
    tpu.vector_store %arg28[%c8_808, %c0_809], %663 {strides = array<i32>} : memref<56x32xf32, #tpu.memory_space<vmem>>, vector<4x32xf32>,
    %c0_810 = arith.constant 0 : index
    %c2_811 = arith.constant 2 : index
    %665 = vector.load %arg27[%c0_810, %c2_811] : memref<4x38xf32, #tpu.memory_space<vmem>>, vector<4x32xf32>
    %c16_812 = arith.constant 16 : index
    %c0_813 = arith.constant 0 : index
    %666 = vector.load %arg28[%c16_812, %c0_813] : memref<56x32xf32, #tpu.memory_space<vmem>>, vector<4x32xf32>
    tpu.vector_store %arg28[%c16_812, %c0_813], %665 {strides = array<i32>} : memref<56x32xf32, #tpu.memory_space<vmem>>, vector<4x32xf32>,
    %c0_814 = arith.constant 0 : index
    %c3_815 = arith.constant 3 : index
    %667 = vector.load %arg27[%c0_814, %c3_815] : memref<4x38xf32, #tpu.memory_space<vmem>>, vector<4x32xf32>
    %c24_816 = arith.constant 24 : index
    %c0_817 = arith.constant 0 : index
    %668 = vector.load %arg28[%c24_816, %c0_817] : memref<56x32xf32, #tpu.memory_space<vmem>>, vector<4x32xf32>
    tpu.vector_store %arg28[%c24_816, %c0_817], %667 {strides = array<i32>} : memref<56x32xf32, #tpu.memory_space<vmem>>, vector<4x32xf32>,
    %c0_818 = arith.constant 0 : index
    %c4_819 = arith.constant 4 : index
    %669 = vector.load %arg27[%c0_818, %c4_819] : memref<4x38xf32, #tpu.memory_space<vmem>>, vector<4x32xf32>
    %c32_820 = arith.constant 32 : index
    %c0_821 = arith.constant 0 : index
    %670 = vector.load %arg28[%c32_820, %c0_821] : memref<56x32xf32, #tpu.memory_space<vmem>>, vector<4x32xf32>
    tpu.vector_store %arg28[%c32_820, %c0_821], %669 {strides = array<i32>} : memref<56x32xf32, #tpu.memory_space<vmem>>, vector<4x32xf32>,
    %c0_822 = arith.constant 0 : index
    %c5_823 = arith.constant 5 : index
    %671 = vector.load %arg27[%c0_822, %c5_823] : memref<4x38xf32, #tpu.memory_space<vmem>>, vector<4x32xf32>
    %c40 = arith.constant 40 : index
    %c0_824 = arith.constant 0 : index
    %672 = vector.load %arg28[%c40, %c0_824] : memref<56x32xf32, #tpu.memory_space<vmem>>, vector<4x32xf32>
    tpu.vector_store %arg28[%c40, %c0_824], %671 {strides = array<i32>} : memref<56x32xf32, #tpu.memory_space<vmem>>, vector<4x32xf32>,
    %c0_825 = arith.constant 0 : index
    %c6_826 = arith.constant 6 : index
    %673 = vector.load %arg27[%c0_825, %c6_826] : memref<4x38xf32, #tpu.memory_space<vmem>>, vector<4x32xf32>
    %c48 = arith.constant 48 : index
    %c0_827 = arith.constant 0 : index
    %674 = vector.load %arg28[%c48, %c0_827] : memref<56x32xf32, #tpu.memory_space<vmem>>, vector<4x32xf32>
    tpu.vector_store %arg28[%c48, %c0_827], %673 {strides = array<i32>} : memref<56x32xf32, #tpu.memory_space<vmem>>, vector<4x32xf32>,
    %c0_828 = arith.constant 0 : index
    %c0_829 = arith.constant 0 : index
    %675 = vector.load %arg28[%c0_828, %c0_829] : memref<56x32xf32, #tpu.memory_space<vmem>>, vector<56x32xf32>
    %676 = arith.truncf %675 : vector<56x32xf32> to vector<56x32xbf16>
    %cst_830 = arith.constant dense<0.000000e+00> : vector<2x32xf32>
    %677 = tpu.matmul %659, %676, %cst_830 {dimension_numbers = #tpu.dot_dimension_numbers<[1], [0], [0], [1], [0, 0, 1, 1], [], []>} : vector<2x56xbf16>, vector<56x32xbf16>, vector<2x32xf32> -> vector<2x32xf32>
    %678 = math.tanh %677 : vector<2x32xf32>
    %679 = vector.extract_strided_slice %678 {offsets = [0, 0], sizes = [1, 32], strides = [1, 1]} : vector<2x32xf32> to vector<1x32xf32>
    %c0_831 = arith.constant 0 : index
    %c0_832 = arith.constant 0 : index
    %c0_833 = arith.constant 0 : index
    %680 = vector.load %arg15[%c0_831, %c0_832, %c0_833] : memref<2x32x64xf32, #tpu.memory_space<vmem>>, vector<1x32x64xf32>
    %681 = vector.shape_cast %680 : vector<1x32x64xf32> to vector<32x64xf32>
    %cst_834 = arith.constant dense<0.000000e+00> : vector<1x64xf32>
    %682 = tpu.matmul %679, %681, %cst_834 {dimension_numbers = #tpu.dot_dimension_numbers<[1], [0], [0], [1], [0, 0, 1, 1], [], []>} : vector<1x32xf32>, vector<32x64xf32>, vector<1x64xf32> -> vector<1x64xf32>
    %683 = vector.extract_strided_slice %678 {offsets = [1, 0], sizes = [1, 32], strides = [1, 1]} : vector<2x32xf32> to vector<1x32xf32>
    %c1_835 = arith.constant 1 : index
    %c0_836 = arith.constant 0 : index
    %c0_837 = arith.constant 0 : index
    %684 = vector.load %arg15[%c1_835, %c0_836, %c0_837] : memref<2x32x64xf32, #tpu.memory_space<vmem>>, vector<1x32x64xf32>
    %685 = vector.shape_cast %684 : vector<1x32x64xf32> to vector<32x64xf32>
    %cst_838 = arith.constant dense<0.000000e+00> : vector<1x64xf32>
    %686 = tpu.matmul %683, %685, %cst_838 {dimension_numbers = #tpu.dot_dimension_numbers<[1], [0], [0], [1], [0, 0, 1, 1], [], []>} : vector<1x32xf32>, vector<32x64xf32>, vector<1x64xf32> -> vector<1x64xf32>
    %687 = arith.addf %682, %686 : vector<1x64xf32>
    %c0_839 = arith.constant 0 : index
    %c0_840 = arith.constant 0 : index
    %c0_841 = arith.constant 0 : index
    %688 = vector.load %arg16[%c0_839, %c0_840, %c0_841] : memref<1x1x64xf32, #tpu.memory_space<vmem>>, vector<1x1x64xf32>
    %689 = vector.shape_cast %688 : vector<1x1x64xf32> to vector<1x64xf32>
    %690 = vector.shape_cast %687 : vector<1x64xf32> to vector<1x1x64xf32>
    tpu.vector_store %arg16[%c0_839, %c0_840, %c0_841], %690 {strides = array<i32>} : memref<1x1x64xf32, #tpu.memory_space<vmem>>, vector<1x1x64xf32>,
    return
  }
  func.func @transform_0(%arg0: i32) -> (i32, i32, i32) {
    %c0_i32 = arith.constant 0 : i32
    %c0_i32_0 = arith.constant 0 : i32
    %c0_i32_1 = arith.constant 0 : i32
    return %arg0, %c0_i32, %c0_i32_0 : i32, i32, i32
  }
  func.func @transform_1(%arg0: i32) -> (i32, i32) {
    %c0_i32 = arith.constant 0 : i32
    %c0_i32_0 = arith.constant 0 : i32
    %c0_i32_1 = arith.constant 0 : i32
    return %c0_i32, %c0_i32_0 : i32, i32
  }
  func.func @transform_2(%arg0: i32) -> (i32, i32) {
    %c0_i32 = arith.constant 0 : i32
    %c0_i32_0 = arith.constant 0 : i32
    %c0_i32_1 = arith.constant 0 : i32
    return %c0_i32, %c0_i32_0 : i32, i32
  }
  func.func @transform_3(%arg0: i32) -> (i32, i32, i32) {
    %c0_i32 = arith.constant 0 : i32
    %c0_i32_0 = arith.constant 0 : i32
    %c0_i32_1 = arith.constant 0 : i32
    %c0_i32_2 = arith.constant 0 : i32
    return %c0_i32, %c0_i32_0, %c0_i32_1 : i32, i32, i32
  }
  func.func @transform_4(%arg0: i32) -> (i32, i32) {
    %c0_i32 = arith.constant 0 : i32
    %c0_i32_0 = arith.constant 0 : i32
    %c0_i32_1 = arith.constant 0 : i32
    return %c0_i32, %c0_i32_0 : i32, i32
  }
  func.func @transform_5(%arg0: i32) -> (i32, i32, i32) {
    %c0_i32 = arith.constant 0 : i32
    %c0_i32_0 = arith.constant 0 : i32
    %c0_i32_1 = arith.constant 0 : i32
    %c0_i32_2 = arith.constant 0 : i32
    return %c0_i32, %c0_i32_0, %c0_i32_1 : i32, i32, i32
  }
  func.func @transform_6(%arg0: i32) -> (i32, i32, i32) {
    %c0_i32 = arith.constant 0 : i32
    %c0_i32_0 = arith.constant 0 : i32
    %c0_i32_1 = arith.constant 0 : i32
    %c0_i32_2 = arith.constant 0 : i32
    return %c0_i32, %c0_i32_0, %c0_i32_1 : i32, i32, i32
  }
  func.func @transform_7(%arg0: i32) -> (i32, i32) {
    %c0_i32 = arith.constant 0 : i32
    %c0_i32_0 = arith.constant 0 : i32
    %c0_i32_1 = arith.constant 0 : i32
    return %c0_i32, %c0_i32_0 : i32, i32
  }
  func.func @transform_8(%arg0: i32) -> (i32, i32, i32) {
    %c0_i32 = arith.constant 0 : i32
    %c0_i32_0 = arith.constant 0 : i32
    %c0_i32_1 = arith.constant 0 : i32
    %c0_i32_2 = arith.constant 0 : i32
    return %c0_i32, %c0_i32_0, %c0_i32_1 : i32, i32, i32
  }
  func.func @transform_9(%arg0: i32) -> (i32, i32) {
    %c0_i32 = arith.constant 0 : i32
    %c0_i32_0 = arith.constant 0 : i32
    %c0_i32_1 = arith.constant 0 : i32
    return %c0_i32, %c0_i32_0 : i32, i32
  }
  func.func @transform_10(%arg0: i32) -> (i32, i32, i32) {
    %c0_i32 = arith.constant 0 : i32
    %c0_i32_0 = arith.constant 0 : i32
    %c0_i32_1 = arith.constant 0 : i32
    %c0_i32_2 = arith.constant 0 : i32
    return %c0_i32, %c0_i32_0, %c0_i32_1 : i32, i32, i32
  }
  func.func @transform_11(%arg0: i32) -> (i32, i32, i32) {
    %c0_i32 = arith.constant 0 : i32
    %c0_i32_0 = arith.constant 0 : i32
    %c0_i32_1 = arith.constant 0 : i32
    %c0_i32_2 = arith.constant 0 : i32
    return %c0_i32, %c0_i32_0, %c0_i32_1 : i32, i32, i32
  }
  func.func @transform_12(%arg0: i32) -> (i32, i32) {
    %c0_i32 = arith.constant 0 : i32
    %c0_i32_0 = arith.constant 0 : i32
    %c0_i32_1 = arith.constant 0 : i32
    return %c0_i32, %c0_i32_0 : i32, i32
  }
  func.func @transform_13(%arg0: i32) -> (i32, i32) {
    %c0_i32 = arith.constant 0 : i32
    %c0_i32_0 = arith.constant 0 : i32
    %c0_i32_1 = arith.constant 0 : i32
    return %c0_i32, %c0_i32_0 : i32, i32
  }
  func.func @transform_14(%arg0: i32) -> (i32, i32, i32) {
    %c0_i32 = arith.constant 0 : i32
    %c0_i32_0 = arith.constant 0 : i32
    %c0_i32_1 = arith.constant 0 : i32
    %c0_i32_2 = arith.constant 0 : i32
    return %c0_i32, %c0_i32_0, %c0_i32_1 : i32, i32, i32
  }
  func.func @transform_15(%arg0: i32) -> (i32, i32, i32) {
    %c0_i32 = arith.constant 0 : i32
    %c0_i32_0 = arith.constant 0 : i32
    %c0_i32_1 = arith.constant 0 : i32
    return %arg0, %c0_i32, %c0_i32_0 : i32, i32, i32
  }
}

</mosaic_0001>

<llo_original>
// kernel: generator_forward.1
$region0: #{generator_forward.1}
  #allocation0 [shape = 'u32[]', space=smem, size = 0x4, offset = 0x4, fixed_abs, tag = 'smem constant byte address 0x4 - core index']
  #allocation1 [shape = 'u32[144,128]{1,0:T(1,128)}', space=vmem, size = 0x12000, scoped, tag = 'internal scratch']
  #allocation2 [shape = 'f32[80,14]{1,0:T(8,128)}', space=vmem, size = 0xa000, scoped, tag = 'scratch operand']
  #allocation3 [shape = 'f32[560,8]{1,0:T(8,128)}', space=vmem, size = 0x46000, scoped, tag = 'scratch operand']
  #allocation4 [shape = 'f32[16,10]{1,0:T(8,128)}', space=vmem, size = 0x2000, scoped, tag = 'scratch operand']
  #allocation5 [shape = 'f32[48,8]{1,0:T(8,128)}', space=vmem, size = 0x6000, scoped, tag = 'scratch operand']
  #allocation6 [shape = 'f32[8,36]{1,0:T(8,128)}', space=vmem, size = 0x1000, scoped, tag = 'scratch operand']
  #allocation7 [shape = 'f32[40,16]{1,0:T(8,128)}', space=vmem, size = 0x5000, scoped, tag = 'scratch operand']
  #allocation8 [shape = 'f32[8,18]{1,0:T(8,128)}', space=vmem, size = 0x1000, scoped, tag = 'scratch operand']
  #allocation9 [shape = 'f32[24,16]{1,0:T(8,128)}', space=vmem, size = 0x3000, scoped, tag = 'scratch operand']
  #allocation10 [shape = 'f32[4,52]{1,0:T(4,128)}', space=vmem, size = 0x800, scoped, tag = 'scratch operand']
  #allocation11 [shape = 'f32[40,32]{1,0:T(8,128)}', space=vmem, size = 0x5000, scoped, tag = 'scratch operand']
  #allocation12 [shape = 'f32[4,38]{1,0:T(4,128)}', space=vmem, size = 0x800, scoped, tag = 'scratch operand']
  #allocation13 [shape = 'f32[56,32]{1,0:T(8,128)}', space=vmem, size = 0x7000, scoped, tag = 'scratch operand']
  %s0 = inlined_call_operand.vmem [shape: f32[2,80,8], index: 0, kind: input, shape index: {}]
  %s1 = inlined_call_operand.vmem [shape: bf16[16,560], index: 1, kind: input, shape index: {}]
  %s2 = inlined_call_operand.hbm [shape: f32[16,1], index: 2, kind: input, shape index: {}]
  %s3 = inlined_call_operand.hbm [shape: bf16[2,8,48], index: 3, kind: input, shape index: {}]
  %s4 = inlined_call_operand.hbm [shape: f32[8,1], index: 4, kind: input, shape index: {}]
  %s5 = inlined_call_operand.hbm [shape: f32[2,8,16], index: 5, kind: input, shape index: {}]
  %s6 = inlined_call_operand.vmem [shape: bf16[12,8,40], index: 6, kind: input, shape index: {}]
  %s7 = inlined_call_operand.hbm [shape: f32[8,12], index: 7, kind: input, shape index: {}]
  %s8 = inlined_call_operand.hbm [shape: bf16[2,4,24], index: 8, kind: input, shape index: {}]
  %s9 = inlined_call_operand.hbm [shape: f32[4,1], index: 9, kind: input, shape index: {}]
  %s10 = inlined_call_operand.vmem [shape: f32[2,16,32], index: 10, kind: input, shape index: {}]
  %s11 = inlined_call_operand.hbm [shape: bf16[12,4,40], index: 11, kind: input, shape index: {}]
  %s12 = inlined_call_operand.vmem [shape: f32[4,12], index: 12, kind: input, shape index: {}]
  %s13 = inlined_call_operand.vmem [shape: bf16[2,56], index: 13, kind: input, shape index: {}]
  %s14 = inlined_call_operand.vmem [shape: f32[2,32,64], index: 14, kind: input, shape index: {}]
  %s15 = inlined_call_operand.hbm [shape: f32[2,1,64], index: 15, kind: output, shape index: {}]
  %s16 = sld [smem:[#allocation0]]
  $region125: #{generator_forward.1} parent=0
    _
  %s18 = ssub.s32 1, %s16
  %s19 = scalar_select 0, %s18, %s16
  $region1: #{generator_forward.1} parent=0
    #allocation14 [shape = 'u8[8192]{0}', space=vmem, size = 0x2000, scoped, tag = 'input window, operand 2, single buffered']
    #allocation15 [shape = 's32[2]{0}', space=sflag, size = 0x8, scoped, tag = 'scoped memory for generator_forward.1']
    #allocation16 [shape = 's32[2]{0}', space=sflag, size = 0x8, scoped, tag = 'scoped memory for generator_forward.1']
    #allocation17 [shape = 'u8[4096]{0}', space=vmem, size = 0x1000, scoped, tag = 'input window, operand 3, single buffered']
    #allocation18 [shape = 's32[1]{0}', space=sflag, size = 0x4, scoped, tag = 'scoped memory for generator_forward.1']
    #allocation19 [shape = 'u8[4096]{0}', space=vmem, size = 0x1000, scoped, tag = 'input window, operand 4, single buffered']
    #allocation20 [shape = 'u8[8192]{0}', space=vmem, size = 0x2000, scoped, tag = 'input window, operand 5, single buffered']
    #allocation21 [shape = 's32[1]{0}', space=sflag, size = 0x4, scoped, tag = 'scoped memory for generator_forward.1']
    #allocation22 [shape = 'u8[4096]{0}', space=vmem, size = 0x1000, scoped, tag = 'input window, operand 7, single buffered']
    #allocation23 [shape = 'u8[2048]{0}', space=vmem, size = 0x800, scoped, tag = 'input window, operand 8, single buffered']
    #allocation24 [shape = 's32[1]{0}', space=sflag, size = 0x4, scoped, tag = 'scoped memory for generator_forward.1']
    #allocation25 [shape = 'u8[2048]{0}', space=vmem, size = 0x800, scoped, tag = 'input window, operand 9, single buffered']
    #allocation26 [shape = 'u8[12288]{0}', space=vmem, size = 0x3000, scoped, tag = 'input window, operand 11, single buffered']
    #allocation27 [shape = 's32[1]{0}', space=sflag, size = 0x4, scoped, tag = 'scoped memory for generator_forward.1']
    #allocation28 [shape = 'u8[1024]{0}', space=vmem, size = 0x400, scoped, tag = 'output window, operand 0']
    %20 = vsyncpa [#allocation15], 0
    %21 = vsyncpa [#allocation18], 0
    %22 = vsyncpa [#allocation21], 0
    %23 = vsyncpa [#allocation24], 0
    %24 = vsyncpa [#allocation27], 0
    %25 = vsyncpa [#allocation16], 0
    %s26 = scalar_lea.sflag [#allocation16], 1
    %27 = vsyncpa %s26, 0
    loop: start=0, step=1, limit=4
    $region2: #{generator_forward.1} parent=1 // loop_pre_header
      _
    $region3: #{generator_forward.1} parent=1 // loop_header
      %s29 = sphi 0, %s33
      %p30 = scmp.ge.s32.totalorder %s29, 4
      %s39 = sphi 0, %s41
      %s42 = sphi 0, %s39
      %s43 = sphi 0, %s42
      %s59 = sphi 0, %s43
      %s63 = sphi 0, %s63
      %s65 = sphi 0, %s63
      %s66 = sphi 0, %s65
      %s80 = sphi 0, %s66
      %s84 = sphi 0, %s84
      %s86 = sphi 0, %s84
      %s87 = sphi 0, %s86
      %s101 = sphi 0, %s87
      %s105 = sphi 0, %s105
      %s107 = sphi 0, %s105
      %s108 = sphi 0, %s107
      %s122 = sphi 0, %s108
      %s126 = sphi 0, %s126
      %s128 = sphi 0, %s126
      %s129 = sphi 0, %s128
      %s143 = sphi 0, %s129
      %s147 = sphi 0, %s147
      %s149 = sphi 0, %s147
      %s150 = sphi 0, %s149
      %s164 = sphi 0, %s150
      %s168 = sphi 0, %s168
      %s170 = sphi 0, %s168
      %s171 = sphi 0, %s170
      %s185 = sphi 0, %s171
      %s189 = sphi 0, %s189
      %s191 = sphi 0, %s189
      %s192 = sphi 0, %s191
      %s206 = sphi 0, %s192
      %s210 = sphi 0, %s210
      %s212 = sphi 0, %s210
      %s213 = sphi 0, %s212
      %s227 = sphi 0, %s213
      %s231 = sphi 0, %s231
      %s233 = sphi 0, %s231
      %s234 = sphi 0, %s233
      %s248 = sphi 0, %s234
      %s252 = sphi 0, %s252
      %s254 = sphi 0, %s252
      %s255 = sphi 0, %s254
      %s269 = sphi 0, %s255
      %s273 = sphi 0, %s273
      %s275 = sphi 0, %s273
      %s276 = sphi 0, %s275
      %s290 = sphi 0, %s276
      %s294 = sphi 0, %s294
      %s296 = sphi 0, %s294
      %s297 = sphi 0, %s296
      %s311 = sphi 0, %s297
      %s315 = sphi 0, %s315
      %s317 = sphi 0, %s315
      %s318 = sphi 0, %s317
      %s332 = sphi 0, %s318
      %s336 = sphi 0, %s336
      %s338 = sphi 0, %s336
      %s339 = sphi 0, %s338
      %s353 = sphi 0, %s339
      %s359 = sphi 0, %s361
      %s362 = sphi 0, %s359
      %s363 = sphi 0, %s362
      %s379 = sphi 0, %s363
    $region4: #{generator_forward.1} parent=1 // loop_header_branch
      %32 = sbr.rel (%p30) target = $region8
    $region5: #{generator_forward.1} parent=1 // loop_body
      %s34 = ssub.s32 %s29, 1
      %s35 = ssub.s32 %s29, 2
      %s36 = sadd.s32 %s29, 1
      %s37 = ssub.s32 %s29, %s36
      %p38 = scmp.eq.s32.totalorder %s37, 0
      %s40 = sadd.s32 %s39, 1
      %s41 = scalar_select %p38, %s39, %s40
      %p44 = pneg %p38
      %p45 = scmp.eq.s32.totalorder %s29, 1
      %p46 = por %p44, %p45
      %p47 = scmp.ne.s32.totalorder %s39, %s42
      %p48 = scmp.eq.s32.totalorder %s29, 0
      %p49 = por %p47, %p48
      %p50 = scmp.ne.s32.totalorder %s39, %s42
      %p51 = scmp.eq.s32.totalorder %s34, 1
      %p52 = por %p50, %p51
      %p53 = scmp.ne.s32.totalorder %s42, %s43
      %p54 = scmp.eq.s32.totalorder %s34, 0
      %p55 = por %p53, %p54
      %p56 = scmp.ne.s32.totalorder %s42, %s43
      %p57 = scmp.eq.s32.totalorder %s35, 1
      %p58 = por %p56, %p57
      %p60 = scmp.ne.s32.totalorder %s43, %s59
      %p61 = scmp.eq.s32.totalorder %s35, 0
      %p62 = por %p60, %p61
      %s64 = sadd.s32 %s63, 1
      %p67 = scmp.eq.s32.totalorder %s29, 1
      %p68 = scmp.ne.s32.totalorder %s63, %s65
      %p69 = scmp.eq.s32.totalorder %s29, 0
      %p70 = por %p68, %p69
      %p71 = scmp.ne.s32.totalorder %s63, %s65
      %p72 = scmp.eq.s32.totalorder %s34, 1
      %p73 = por %p71, %p72
      %p74 = scmp.ne.s32.totalorder %s65, %s66
      %p75 = scmp.eq.s32.totalorder %s34, 0
      %p76 = por %p74, %p75
      %p77 = scmp.ne.s32.totalorder %s65, %s66
      %p78 = scmp.eq.s32.totalorder %s35, 1
      %p79 = por %p77, %p78
      %p81 = scmp.ne.s32.totalorder %s66, %s80
      %p82 = scmp.eq.s32.totalorder %s35, 0
      %p83 = por %p81, %p82
      %s85 = sadd.s32 %s84, 1
      %p88 = scmp.eq.s32.totalorder %s29, 1
      %p89 = scmp.ne.s32.totalorder %s84, %s86
      %p90 = scmp.eq.s32.totalorder %s29, 0
      %p91 = por %p89, %p90
      %p92 = scmp.ne.s32.totalorder %s84, %s86
      %p93 = scmp.eq.s32.totalorder %s34, 1
      %p94 = por %p92, %p93
      %p95 = scmp.ne.s32.totalorder %s86, %s87
      %p96 = scmp.eq.s32.totalorder %s34, 0
      %p97 = por %p95, %p96
      %p98 = scmp.ne.s32.totalorder %s86, %s87
      %p99 = scmp.eq.s32.totalorder %s35, 1
      %p100 = por %p98, %p99
      %p102 = scmp.ne.s32.totalorder %s87, %s101
      %p103 = scmp.eq.s32.totalorder %s35, 0
      %p104 = por %p102, %p103
      %s106 = sadd.s32 %s105, 1
      %p109 = scmp.eq.s32.totalorder %s29, 1
      %p110 = scmp.ne.s32.totalorder %s105, %s107
      %p111 = scmp.eq.s32.totalorder %s29, 0
      %p112 = por %p110, %p111
      %p113 = scmp.ne.s32.totalorder %s105, %s107
      %p114 = scmp.eq.s32.totalorder %s34, 1
      %p115 = por %p113, %p114
      %p116 = scmp.ne.s32.totalorder %s107, %s108
      %p117 = scmp.eq.s32.totalorder %s34, 0
      %p118 = por %p116, %p117
      %p119 = scmp.ne.s32.totalorder %s107, %s108
      %p120 = scmp.eq.s32.totalorder %s35, 1
      %p121 = por %p119, %p120
      %p123 = scmp.ne.s32.totalorder %s108, %s122
      %p124 = scmp.eq.s32.totalorder %s35, 0
      %p125 = por %p123, %p124
      %s127 = sadd.s32 %s126, 1
      %p130 = scmp.eq.s32.totalorder %s29, 1
      %p131 = scmp.ne.s32.totalorder %s126, %s128
      %p132 = scmp.eq.s32.totalorder %s29, 0
      %p133 = por %p131, %p132
      %p134 = scmp.ne.s32.totalorder %s126, %s128
      %p135 = scmp.eq.s32.totalorder %s34, 1
      %p136 = por %p134, %p135
      %p137 = scmp.ne.s32.totalorder %s128, %s129
      %p138 = scmp.eq.s32.totalorder %s34, 0
      %p139 = por %p137, %p138
      %p140 = scmp.ne.s32.totalorder %s128, %s129
      %p141 = scmp.eq.s32.totalorder %s35, 1
      %p142 = por %p140, %p141
      %p144 = scmp.ne.s32.totalorder %s129, %s143
      %p145 = scmp.eq.s32.totalorder %s35, 0
      %p146 = por %p144, %p145
      %s148 = sadd.s32 %s147, 1
      %p151 = scmp.eq.s32.totalorder %s29, 1
      %p152 = scmp.ne.s32.totalorder %s147, %s149
      %p153 = scmp.eq.s32.totalorder %s29, 0
      %p154 = por %p152, %p153
      %p155 = scmp.ne.s32.totalorder %s147, %s149
      %p156 = scmp.eq.s32.totalorder %s34, 1
      %p157 = por %p155, %p156
      %p158 = scmp.ne.s32.totalorder %s149, %s150
      %p159 = scmp.eq.s32.totalorder %s34, 0
      %p160 = por %p158, %p159
      %p161 = scmp.ne.s32.totalorder %s149, %s150
      %p162 = scmp.eq.s32.totalorder %s35, 1
      %p163 = por %p161, %p162
      %p165 = scmp.ne.s32.totalorder %s150, %s164
      %p166 = scmp.eq.s32.totalorder %s35, 0
      %p167 = por %p165, %p166
      %s169 = sadd.s32 %s168, 1
      %p172 = scmp.eq.s32.totalorder %s29, 1
      %p173 = scmp.ne.s32.totalorder %s168, %s170
      %p174 = scmp.eq.s32.totalorder %s29, 0
      %p175 = por %p173, %p174
      %p176 = scmp.ne.s32.totalorder %s168, %s170
      %p177 = scmp.eq.s32.totalorder %s34, 1
      %p178 = por %p176, %p177
      %p179 = scmp.ne.s32.totalorder %s170, %s171
      %p180 = scmp.eq.s32.totalorder %s34, 0
      %p181 = por %p179, %p180
      %p182 = scmp.ne.s32.totalorder %s170, %s171
      %p183 = scmp.eq.s32.totalorder %s35, 1
      %p184 = por %p182, %p183
      %p186 = scmp.ne.s32.totalorder %s171, %s185
      %p187 = scmp.eq.s32.totalorder %s35, 0
      %p188 = por %p186, %p187
      %s190 = sadd.s32 %s189, 1
      %p193 = scmp.eq.s32.totalorder %s29, 1
      %p194 = scmp.ne.s32.totalorder %s189, %s191
      %p195 = scmp.eq.s32.totalorder %s29, 0
      %p196 = por %p194, %p195
      %p197 = scmp.ne.s32.totalorder %s189, %s191
      %p198 = scmp.eq.s32.totalorder %s34, 1
      %p199 = por %p197, %p198
      %p200 = scmp.ne.s32.totalorder %s191, %s192
      %p201 = scmp.eq.s32.totalorder %s34, 0
      %p202 = por %p200, %p201
      %p203 = scmp.ne.s32.totalorder %s191, %s192
      %p204 = scmp.eq.s32.totalorder %s35, 1
      %p205 = por %p203, %p204
      %p207 = scmp.ne.s32.totalorder %s192, %s206
      %p208 = scmp.eq.s32.totalorder %s35, 0
      %p209 = por %p207, %p208
      %s211 = sadd.s32 %s210, 1
      %p214 = scmp.eq.s32.totalorder %s29, 1
      %p215 = scmp.ne.s32.totalorder %s210, %s212
      %p216 = scmp.eq.s32.totalorder %s29, 0
      %p217 = por %p215, %p216
      %p218 = scmp.ne.s32.totalorder %s210, %s212
      %p219 = scmp.eq.s32.totalorder %s34, 1
      %p220 = por %p218, %p219
      %p221 = scmp.ne.s32.totalorder %s212, %s213
      %p222 = scmp.eq.s32.totalorder %s34, 0
      %p223 = por %p221, %p222
      %p224 = scmp.ne.s32.totalorder %s212, %s213
      %p225 = scmp.eq.s32.totalorder %s35, 1
      %p226 = por %p224, %p225
      %p228 = scmp.ne.s32.totalorder %s213, %s227
      %p229 = scmp.eq.s32.totalorder %s35, 0
      %p230 = por %p228, %p229
      %s232 = sadd.s32 %s231, 1
      %p235 = scmp.eq.s32.totalorder %s29, 1
      %p236 = scmp.ne.s32.totalorder %s231, %s233
      %p237 = scmp.eq.s32.totalorder %s29, 0
      %p238 = por %p236, %p237
      %p239 = scmp.ne.s32.totalorder %s231, %s233
      %p240 = scmp.eq.s32.totalorder %s34, 1
      %p241 = por %p239, %p240
      %p242 = scmp.ne.s32.totalorder %s233, %s234
      %p243 = scmp.eq.s32.totalorder %s34, 0
      %p244 = por %p242, %p243
      %p245 = scmp.ne.s32.totalorder %s233, %s234
      %p246 = scmp.eq.s32.totalorder %s35, 1
      %p247 = por %p245, %p246
      %p249 = scmp.ne.s32.totalorder %s234, %s248
      %p250 = scmp.eq.s32.totalorder %s35, 0
      %p251 = por %p249, %p250
      %s253 = sadd.s32 %s252, 1
      %p256 = scmp.eq.s32.totalorder %s29, 1
      %p257 = scmp.ne.s32.totalorder %s252, %s254
      %p258 = scmp.eq.s32.totalorder %s29, 0
      %p259 = por %p257, %p258
      %p260 = scmp.ne.s32.totalorder %s252, %s254
      %p261 = scmp.eq.s32.totalorder %s34, 1
      %p262 = por %p260, %p261
      %p263 = scmp.ne.s32.totalorder %s254, %s255
      %p264 = scmp.eq.s32.totalorder %s34, 0
      %p265 = por %p263, %p264
      %p266 = scmp.ne.s32.totalorder %s254, %s255
      %p267 = scmp.eq.s32.totalorder %s35, 1
      %p268 = por %p266, %p267
      %p270 = scmp.ne.s32.totalorder %s255, %s269
      %p271 = scmp.eq.s32.totalorder %s35, 0
      %p272 = por %p270, %p271
      %s274 = sadd.s32 %s273, 1
      %p277 = scmp.eq.s32.totalorder %s29, 1
      %p278 = scmp.ne.s32.totalorder %s273, %s275
      %p279 = scmp.eq.s32.totalorder %s29, 0
      %p280 = por %p278, %p279
      %p281 = scmp.ne.s32.totalorder %s273, %s275
      %p282 = scmp.eq.s32.totalorder %s34, 1
      %p283 = por %p281, %p282
      %p284 = scmp.ne.s32.totalorder %s275, %s276
      %p285 = scmp.eq.s32.totalorder %s34, 0
      %p286 = por %p284, %p285
      %p287 = scmp.ne.s32.totalorder %s275, %s276
      %p288 = scmp.eq.s32.totalorder %s35, 1
      %p289 = por %p287, %p288
      %p291 = scmp.ne.s32.totalorder %s276, %s290
      %p292 = scmp.eq.s32.totalorder %s35, 0
      %p293 = por %p291, %p292
      %s295 = sadd.s32 %s294, 1
      %p298 = scmp.eq.s32.totalorder %s29, 1
      %p299 = scmp.ne.s32.totalorder %s294, %s296
      %p300 = scmp.eq.s32.totalorder %s29, 0
      %p301 = por %p299, %p300
      %p302 = scmp.ne.s32.totalorder %s294, %s296
      %p303 = scmp.eq.s32.totalorder %s34, 1
      %p304 = por %p302, %p303
      %p305 = scmp.ne.s32.totalorder %s296, %s297
      %p306 = scmp.eq.s32.totalorder %s34, 0
      %p307 = por %p305, %p306
      %p308 = scmp.ne.s32.totalorder %s296, %s297
      %p309 = scmp.eq.s32.totalorder %s35, 1
      %p310 = por %p308, %p309
      %p312 = scmp.ne.s32.totalorder %s297, %s311
      %p313 = scmp.eq.s32.totalorder %s35, 0
      %p314 = por %p312, %p313
      %s316 = sadd.s32 %s315, 1
      %p319 = scmp.eq.s32.totalorder %s29, 1
      %p320 = scmp.ne.s32.totalorder %s315, %s317
      %p321 = scmp.eq.s32.totalorder %s29, 0
      %p322 = por %p320, %p321
      %p323 = scmp.ne.s32.totalorder %s315, %s317
      %p324 = scmp.eq.s32.totalorder %s34, 1
      %p325 = por %p323, %p324
      %p326 = scmp.ne.s32.totalorder %s317, %s318
      %p327 = scmp.eq.s32.totalorder %s34, 0
      %p328 = por %p326, %p327
      %p329 = scmp.ne.s32.totalorder %s317, %s318
      %p330 = scmp.eq.s32.totalorder %s35, 1
      %p331 = por %p329, %p330
      %p333 = scmp.ne.s32.totalorder %s318, %s332
      %p334 = scmp.eq.s32.totalorder %s35, 0
      %p335 = por %p333, %p334
      %s337 = sadd.s32 %s336, 1
      %p340 = scmp.eq.s32.totalorder %s29, 1
      %p341 = scmp.ne.s32.totalorder %s336, %s338
      %p342 = scmp.eq.s32.totalorder %s29, 0
      %p343 = por %p341, %p342
      %p344 = scmp.ne.s32.totalorder %s336, %s338
      %p345 = scmp.eq.s32.totalorder %s34, 1
      %p346 = por %p344, %p345
      %p347 = scmp.ne.s32.totalorder %s338, %s339
      %p348 = scmp.eq.s32.totalorder %s34, 0
      %p349 = por %p347, %p348
      %p350 = scmp.ne.s32.totalorder %s338, %s339
      %p351 = scmp.eq.s32.totalorder %s35, 1
      %p352 = por %p350, %p351
      %p354 = scmp.ne.s32.totalorder %s339, %s353
      %p355 = scmp.eq.s32.totalorder %s35, 0
      %p356 = por %p354, %p355
      %s357 = ssub.s32 %s29, %s36
      %p358 = scmp.eq.s32.totalorder %s357, 0
      %s360 = sadd.s32 %s359, 1
      %s361 = scalar_select %p358, %s359, %s360
      %p364 = pneg %p358
      %p365 = scmp.eq.s32.totalorder %s29, 1
      %p366 = por %p364, %p365
      %p367 = scmp.ne.s32.totalorder %s359, %s362
      %p368 = scmp.eq.s32.totalorder %s29, 0
      %p369 = por %p367, %p368
      %p370 = scmp.ne.s32.totalorder %s359, %s362
      %p371 = scmp.eq.s32.totalorder %s34, 1
      %p372 = por %p370, %p371
      %p373 = scmp.ne.s32.totalorder %s362, %s363
      %p374 = scmp.eq.s32.totalorder %s34, 0
      %p375 = por %p373, %p374
      %p376 = scmp.ne.s32.totalorder %s362, %s363
      %p377 = scmp.eq.s32.totalorder %s35, 1
      %p378 = por %p376, %p377
      %p380 = scmp.ne.s32.totalorder %s363, %s379
      %p381 = scmp.eq.s32.totalorder %s35, 0
      %p382 = por %p380, %p381
      %p383 = scmp.le.s32.totalorder 1, %s29
      %p384 = scmp.lt.s32.totalorder %s29, 3
      %p385 = pnand %p383, %p384
      %p386 = pneg %p385
      // Predicated region
      $region9: #{generator_forward.1} parent=5 // pred_check
        _
      $region10: #{generator_forward.1} parent=5 // pred_check_branch
        %388 = sbr.rel (%p385) target = $region12
      $region11: #{generator_forward.1} parent=5 // pred_region
        %s389 = ssub.s32 %s29, 1
        // Predicated region
        $region13: #{generator_forward.1} parent=11 // pred_check
          %p390 = pneg %p76
        $region14: #{generator_forward.1} parent=11 // pred_check_branch
          %392 = sbr.rel (%p390) target = $region16
        $region15: #{generator_forward.1} parent=11 // pred_region
          _
        $region16: #{generator_forward.1} parent=11 // pred_fallthru
          _
        // Predicated region
        $region17: #{generator_forward.1} parent=11 // pred_check
          %p393 = pneg %p97
        $region18: #{generator_forward.1} parent=11 // pred_check_branch
          %395 = sbr.rel (%p393) target = $region20
        $region19: #{generator_forward.1} parent=11 // pred_region
          %s397 = ssub.s32 256, 256
          %398 = vsyncadd [#allocation15], %s397
          %s399 = sshll.u32 [#allocation14], 4
          %s400 = int_to_ptr.vmem [resolvable:$true] %s399
          %405 = dma.hbm_to_vmem [thread:$0]  %s2, 256, %s400, [#allocation15], 128, 128, 8
        $region20: #{generator_forward.1} parent=11 // pred_fallthru
          _
        // Predicated region
        $region21: #{generator_forward.1} parent=11 // pred_check
          %p406 = pneg %p118
        $region22: #{generator_forward.1} parent=11 // pred_check_branch
          %408 = sbr.rel (%p406) target = $region24
        $region23: #{generator_forward.1} parent=11 // pred_region
          %s410 = ssub.s32 128, 128
          %411 = vsyncadd [#allocation18], %s410
          %s412 = sshll.u32 [#allocation17], 4
          %s413 = int_to_ptr.vmem [resolvable:$true] %s412
          %418 = dma.hbm_to_vmem [thread:$0]  %s3, 128, %s413, [#allocation18], 64, 64, 4
        $region24: #{generator_forward.1} parent=11 // pred_fallthru
          _
        // Predicated region
        $region25: #{generator_forward.1} parent=11 // pred_check
          %p419 = pneg %p139
        $region26: #{generator_forward.1} parent=11 // pred_check_branch
          %421 = sbr.rel (%p419) target = $region28
        $region27: #{generator_forward.1} parent=11 // pred_region
          %s423 = ssub.s32 128, 128
          %424 = vsyncadd [#allocation18], %s423
          %s426 = sshll.u32 [#allocation19], 4
          %s427 = int_to_ptr.vmem [resolvable:$true] %s426
          %429 = dma.hbm_to_vmem [thread:$0]  %s4, 128, %s427, [#allocation18]
        $region28: #{generator_forward.1} parent=11 // pred_fallthru
          _
        // Predicated region
        $region29: #{generator_forward.1} parent=11 // pred_check
          %p430 = pneg %p160
        $region30: #{generator_forward.1} parent=11 // pred_check_branch
          %432 = sbr.rel (%p430) target = $region32
        $region31: #{generator_forward.1} parent=11 // pred_region
          %s434 = ssub.s32 256, 256
          %435 = vsyncadd [#allocation21], %s434
          %s436 = sshll.u32 [#allocation20], 4
          %s437 = int_to_ptr.vmem [resolvable:$true] %s436
          %442 = dma.hbm_to_vmem [thread:$0]  %s5, 256, %s437, [#allocation21], 128, 128, 8
        $region32: #{generator_forward.1} parent=11 // pred_fallthru
          _
        // Predicated region
        $region33: #{generator_forward.1} parent=11 // pred_check
          %p443 = pneg %p181
        $region34: #{generator_forward.1} parent=11 // pred_check_branch
          %445 = sbr.rel (%p443) target = $region36
        $region35: #{generator_forward.1} parent=11 // pred_region
          _
        $region36: #{generator_forward.1} parent=11 // pred_fallthru
          _
        // Predicated region
        $region37: #{generator_forward.1} parent=11 // pred_check
          %p446 = pneg %p202
        $region38: #{generator_forward.1} parent=11 // pred_check_branch
          %448 = sbr.rel (%p446) target = $region40
        $region39: #{generator_forward.1} parent=11 // pred_region
          %s450 = ssub.s32 128, 128
          %451 = vsyncadd [#allocation21], %s450
          %s453 = sshll.u32 [#allocation22], 4
          %s454 = int_to_ptr.vmem [resolvable:$true] %s453
          %456 = dma.hbm_to_vmem [thread:$0]  %s7, 128, %s454, [#allocation21]
        $region40: #{generator_forward.1} parent=11 // pred_fallthru
          _
        // Predicated region
        $region41: #{generator_forward.1} parent=11 // pred_check
          %p457 = pneg %p223
        $region42: #{generator_forward.1} parent=11 // pred_check_branch
          %459 = sbr.rel (%p457) target = $region44
        $region43: #{generator_forward.1} parent=11 // pred_region
          %s461 = ssub.s32 64, 64
          %462 = vsyncadd [#allocation24], %s461
          %s463 = sshll.u32 [#allocation23], 4
          %s464 = int_to_ptr.vmem [resolvable:$true] %s463
          %469 = dma.hbm_to_vmem [thread:$0]  %s8, 64, %s464, [#allocation24], 32, 32, 2
        $region44: #{generator_forward.1} parent=11 // pred_fallthru
          _
        // Predicated region
        $region45: #{generator_forward.1} parent=11 // pred_check
          %p470 = pneg %p244
        $region46: #{generator_forward.1} parent=11 // pred_check_branch
          %472 = sbr.rel (%p470) target = $region48
        $region47: #{generator_forward.1} parent=11 // pred_region
          %s474 = ssub.s32 64, 64
          %475 = vsyncadd [#allocation24], %s474
          %s477 = sshll.u32 [#allocation25], 4
          %s478 = int_to_ptr.vmem [resolvable:$true] %s477
          %480 = dma.hbm_to_vmem [thread:$0]  %s9, 64, %s478, [#allocation24]
        $region48: #{generator_forward.1} parent=11 // pred_fallthru
          _
        // Predicated region
        $region49: #{generator_forward.1} parent=11 // pred_check
          %p481 = pneg %p265
        $region50: #{generator_forward.1} parent=11 // pred_check_branch
          %483 = sbr.rel (%p481) target = $region52
        $region51: #{generator_forward.1} parent=11 // pred_region
          _
        $region52: #{generator_forward.1} parent=11 // pred_fallthru
          _
        // Predicated region
        $region53: #{generator_forward.1} parent=11 // pred_check
          %p484 = pneg %p286
        $region54: #{generator_forward.1} parent=11 // pred_check_branch
          %486 = sbr.rel (%p484) target = $region56
        $region55: #{generator_forward.1} parent=11 // pred_region
          %s488 = ssub.s32 384, 384
          %489 = vsyncadd [#allocation27], %s488
          %s490 = sshll.u32 [#allocation26], 4
          %s491 = int_to_ptr.vmem [resolvable:$true] %s490
          %496 = dma.hbm_to_vmem [thread:$0]  %s11, 384, %s491, [#allocation27], 32, 32, 2
        $region56: #{generator_forward.1} parent=11 // pred_fallthru
          _
        // Predicated region
        $region57: #{generator_forward.1} parent=11 // pred_check
          %p497 = pneg %p307
        $region58: #{generator_forward.1} parent=11 // pred_check_branch
          %499 = sbr.rel (%p497) target = $region60
        $region59: #{generator_forward.1} parent=11 // pred_region
          _
        $region60: #{generator_forward.1} parent=11 // pred_fallthru
          _
        // Predicated region
        $region61: #{generator_forward.1} parent=11 // pred_check
          %p500 = pneg %p328
        $region62: #{generator_forward.1} parent=11 // pred_check_branch
          %502 = sbr.rel (%p500) target = $region64
        $region63: #{generator_forward.1} parent=11 // pred_region
          _
        $region64: #{generator_forward.1} parent=11 // pred_fallthru
          _
        // Predicated region
        $region65: #{generator_forward.1} parent=11 // pred_check
          %p503 = pneg %p349
        $region66: #{generator_forward.1} parent=11 // pred_check_branch
          %505 = sbr.rel (%p503) target = $region68
        $region67: #{generator_forward.1} parent=11 // pred_region
          _
        $region68: #{generator_forward.1} parent=11 // pred_fallthru
          _
      $region12: #{generator_forward.1} parent=5 // pred_fallthru
        _
      %p506 = scmp.lt.s32.totalorder %s29, 2
      // Predicated region
      $region69: #{generator_forward.1} parent=5 // pred_check
        %p507 = pneg %p506
      $region70: #{generator_forward.1} parent=5 // pred_check_branch
        %509 = sbr.rel (%p507) target = $region72
      $region71: #{generator_forward.1} parent=5 // pred_region
        // Predicated region
        $region73: #{generator_forward.1} parent=71 // pred_check
          %p510 = pneg %p49
        $region74: #{generator_forward.1} parent=71 // pred_check_branch
          %512 = sbr.rel (%p510) target = $region76
        $region75: #{generator_forward.1} parent=71 // pred_region
          %p513 = scmp.lt.s32.totalorder %s29, 1
          %s514 = scalar_select %p513, %s29, 1
          %s515 = smul.addr %s514, 10
          %s516 = smul.addr %s515, 8
          %s517 = scalar_lea.vmem %s0, %s516
        $region76: #{generator_forward.1} parent=71 // pred_fallthru
          _
      $region72: #{generator_forward.1} parent=5 // pred_fallthru
        _
      %p518 = scmp.le.s32.totalorder 1, %s29
      %p519 = scmp.lt.s32.totalorder %s29, 3
      %p520 = pnand %p518, %p519
      %p521 = pneg %p520
      // Predicated region
      $region77: #{generator_forward.1} parent=5 // pred_check
        _
      $region78: #{generator_forward.1} parent=5 // pred_check_branch
        %523 = sbr.rel (%p520) target = $region80
      $region79: #{generator_forward.1} parent=5 // pred_region
        %s524 = ssub.s32 %s29, 1
        // Predicated region
        $region81: #{generator_forward.1} parent=79 // pred_check
          %p525 = pneg %p97
        $region82: #{generator_forward.1} parent=79 // pred_check_branch
          %527 = sbr.rel (%p525) target = $region84
        $region83: #{generator_forward.1} parent=79 // pred_region
          %528 = dma.done [#allocation15], 256
        $region84: #{generator_forward.1} parent=79 // pred_fallthru
          _
        // Predicated region
        $region85: #{generator_forward.1} parent=79 // pred_check
          %p529 = pneg %p118
        $region86: #{generator_forward.1} parent=79 // pred_check_branch
          %531 = sbr.rel (%p529) target = $region88
        $region87: #{generator_forward.1} parent=79 // pred_region
          %532 = dma.done [#allocation18], 128
        $region88: #{generator_forward.1} parent=79 // pred_fallthru
          _
        // Predicated region
        $region89: #{generator_forward.1} parent=79 // pred_check
          %p533 = pneg %p139
        $region90: #{generator_forward.1} parent=79 // pred_check_branch
          %535 = sbr.rel (%p533) target = $region92
        $region91: #{generator_forward.1} parent=79 // pred_region
          %536 = dma.done [#allocation18], 128
        $region92: #{generator_forward.1} parent=79 // pred_fallthru
          _
        // Predicated region
        $region93: #{generator_forward.1} parent=79 // pred_check
          %p537 = pneg %p160
        $region94: #{generator_forward.1} parent=79 // pred_check_branch
          %539 = sbr.rel (%p537) target = $region96
        $region95: #{generator_forward.1} parent=79 // pred_region
          %540 = dma.done [#allocation21], 256
        $region96: #{generator_forward.1} parent=79 // pred_fallthru
          _
        // Predicated region
        $region97: #{generator_forward.1} parent=79 // pred_check
          %p541 = pneg %p202
        $region98: #{generator_forward.1} parent=79 // pred_check_branch
          %543 = sbr.rel (%p541) target = $region100
        $region99: #{generator_forward.1} parent=79 // pred_region
          %544 = dma.done [#allocation21], 128
        $region100: #{generator_forward.1} parent=79 // pred_fallthru
          _
        // Predicated region
        $region101: #{generator_forward.1} parent=79 // pred_check
          %p545 = pneg %p223
        $region102: #{generator_forward.1} parent=79 // pred_check_branch
          %547 = sbr.rel (%p545) target = $region104
        $region103: #{generator_forward.1} parent=79 // pred_region
          %548 = dma.done [#allocation24], 64
        $region104: #{generator_forward.1} parent=79 // pred_fallthru
          _
        // Predicated region
        $region105: #{generator_forward.1} parent=79 // pred_check
          %p549 = pneg %p244
        $region106: #{generator_forward.1} parent=79 // pred_check_branch
          %551 = sbr.rel (%p549) target = $region108
        $region107: #{generator_forward.1} parent=79 // pred_region
          %552 = dma.done [#allocation24], 64
        $region108: #{generator_forward.1} parent=79 // pred_fallthru
          _
        // Predicated region
        $region109: #{generator_forward.1} parent=79 // pred_check
          %p553 = pneg %p286
        $region110: #{generator_forward.1} parent=79 // pred_check_branch
          %555 = sbr.rel (%p553) target = $region112
        $region111: #{generator_forward.1} parent=79 // pred_region
          %556 = dma.done [#allocation27], 384
        $region112: #{generator_forward.1} parent=79 // pred_fallthru
          _
        %p557 = scmp.lt.s32.totalorder %s34, 1
        %s558 = scalar_select %p557, %s34, 1
        %s559 = smul.addr %s558, 10
        %s560 = smul.addr %s559, 8
        %s561 = scalar_lea.vmem %s0, %s560
        %p562 = pneg %p55
        %p563 = pneg %p52
        %p564 = pneg %p76
        %p565 = pneg %p73
        %p566 = pneg %p97
        %p567 = pneg %p94
        %p568 = pneg %p118
        %p569 = pneg %p115
        %p570 = pneg %p139
        %p571 = pneg %p136
        %p572 = pneg %p160
        %p573 = pneg %p157
        %p574 = pneg %p181
        %p575 = pneg %p178
        %p576 = pneg %p202
        %p577 = pneg %p199
        %p578 = pneg %p223
        %p579 = pneg %p220
        %p580 = pneg %p244
        %p581 = pneg %p241
        %p582 = pneg %p265
        %p583 = pneg %p262
        %p584 = pneg %p286
        %p585 = pneg %p283
        %p586 = pneg %p307
        %p587 = pneg %p304
        %p588 = pneg %p328
        %p589 = pneg %p325
        %p590 = pneg %p349
        %p591 = pneg %p346
        %p592 = pneg %p375
        %p593 = pneg %p372
        %s594 = sand.u32 %s362, 1
        %s595 = scalar_lea.sflag [#allocation16], %s594
        %s596 = sand.u32 %s362, 1
        %s597 = scalar_lea.vmem [#allocation28], %s596
        %p598 = scmp.lt.s32.totalorder %s34, 1
        %s599 = scalar_select %p598, %s34, 1
        %s600 = smul.addr %s599, 10
        %s601 = smul.addr %s600, 8
        %s602 = scalar_lea.vmem %s0, %s601
        %vm604 = vcmask 113664
        %605 = vst.msk [vmem:[#allocation2] sm:$0xff] %vm604, 0.0
        %606 = vst.msk [vmem:[#allocation2 + $0x8] sm:$0xff] %vm604, 0.0
        %607 = vst.msk [vmem:[#allocation2 + $0x10] sm:$0xff] %vm604, 0.0
        %608 = vst.msk [vmem:[#allocation2 + $0x18] sm:$0xff] %vm604, 0.0
        %609 = vst.msk [vmem:[#allocation2 + $0x20] sm:$0xff] %vm604, 0.0
        %610 = vst.msk [vmem:[#allocation2 + $0x28] sm:$0xff] %vm604, 0.0
        %611 = vst.msk [vmem:[#allocation2 + $0x30] sm:$0xff] %vm604, 0.0
        %612 = vst.msk [vmem:[#allocation2 + $0x38] sm:$0xff] %vm604, 0.0
        %613 = vst.msk [vmem:[#allocation2 + $0x40] sm:$0xff] %vm604, 0.0
        %614 = vst.msk [vmem:[#allocation2 + $0x48] sm:$0xff] %vm604, 0.0
        %vm615 = vcmask 64512
        %616 = vst.msk [vmem:[#allocation3] sm:$0xff] %vm615, 0.0
        %617 = vst.msk [vmem:[#allocation3 + $0x8] sm:$0xff] %vm615, 0.0
        %618 = vst.msk [vmem:[#allocation3 + $0x10] sm:$0xff] %vm615, 0.0
        %619 = vst.msk [vmem:[#allocation3 + $0x18] sm:$0xff] %vm615, 0.0
        %620 = vst.msk [vmem:[#allocation3 + $0x20] sm:$0xff] %vm615, 0.0
        %621 = vst.msk [vmem:[#allocation3 + $0x28] sm:$0xff] %vm615, 0.0
        %622 = vst.msk [vmem:[#allocation3 + $0x30] sm:$0xff] %vm615, 0.0
        %623 = vst.msk [vmem:[#allocation3 + $0x38] sm:$0xff] %vm615, 0.0
        %624 = vst.msk [vmem:[#allocation3 + $0x40] sm:$0xff] %vm615, 0.0
        %625 = vst.msk [vmem:[#allocation3 + $0x48] sm:$0xff] %vm615, 0.0
        %626 = vst.msk [vmem:[#allocation3 + $0x50] sm:$0xff] %vm615, 0.0
        %627 = vst.msk [vmem:[#allocation3 + $0x58] sm:$0xff] %vm615, 0.0
        %628 = vst.msk [vmem:[#allocation3 + $0x60] sm:$0xff] %vm615, 0.0
        %629 = vst.msk [vmem:[#allocation3 + $0x68] sm:$0xff] %vm615, 0.0
        %630 = vst.msk [vmem:[#allocation3 + $0x70] sm:$0xff] %vm615, 0.0
        %631 = vst.msk [vmem:[#allocation3 + $0x78] sm:$0xff] %vm615, 0.0
        %632 = vst.msk [vmem:[#allocation3 + $0x80] sm:$0xff] %vm615, 0.0
        %633 = vst.msk [vmem:[#allocation3 + $0x88] sm:$0xff] %vm615, 0.0
        %634 = vst.msk [vmem:[#allocation3 + $0x90] sm:$0xff] %vm615, 0.0
        %635 = vst.msk [vmem:[#allocation3 + $0x98] sm:$0xff] %vm615, 0.0
        %636 = vst.msk [vmem:[#allocation3 + $0xa0] sm:$0xff] %vm615, 0.0
        %637 = vst.msk [vmem:[#allocation3 + $0xa8] sm:$0xff] %vm615, 0.0
        %638 = vst.msk [vmem:[#allocation3 + $0xb0] sm:$0xff] %vm615, 0.0
        %639 = vst.msk [vmem:[#allocation3 + $0xb8] sm:$0xff] %vm615, 0.0
        %640 = vst.msk [vmem:[#allocation3 + $0xc0] sm:$0xff] %vm615, 0.0
        %641 = vst.msk [vmem:[#allocation3 + $0xc8] sm:$0xff] %vm615, 0.0
        %642 = vst.msk [vmem:[#allocation3 + $0xd0] sm:$0xff] %vm615, 0.0
        %643 = vst.msk [vmem:[#allocation3 + $0xd8] sm:$0xff] %vm615, 0.0
        %644 = vst.msk [vmem:[#allocation3 + $0xe0] sm:$0xff] %vm615, 0.0
        %645 = vst.msk [vmem:[#allocation3 + $0xe8] sm:$0xff] %vm615, 0.0
        %646 = vst.msk [vmem:[#allocation3 + $0xf0] sm:$0xff] %vm615, 0.0
        %647 = vst.msk [vmem:[#allocation3 + $0xf8] sm:$0xff] %vm615, 0.0
        %648 = vst.msk [vmem:[#allocation3 + $0x100] sm:$0xff] %vm615, 0.0
        %649 = vst.msk [vmem:[#allocation3 + $0x108] sm:$0xff] %vm615, 0.0
        %650 = vst.msk [vmem:[#allocation3 + $0x110] sm:$0xff] %vm615, 0.0
        %651 = vst.msk [vmem:[#allocation3 + $0x118] sm:$0xff] %vm615, 0.0
        %652 = vst.msk [vmem:[#allocation3 + $0x120] sm:$0xff] %vm615, 0.0
        %653 = vst.msk [vmem:[#allocation3 + $0x128] sm:$0xff] %vm615, 0.0
        %654 = vst.msk [vmem:[#allocation3 + $0x130] sm:$0xff] %vm615, 0.0
        %655 = vst.msk [vmem:[#allocation3 + $0x138] sm:$0xff] %vm615, 0.0
        %656 = vst.msk [vmem:[#allocation3 + $0x140] sm:$0xff] %vm615, 0.0
        %657 = vst.msk [vmem:[#allocation3 + $0x148] sm:$0xff] %vm615, 0.0
        %658 = vst.msk [vmem:[#allocation3 + $0x150] sm:$0xff] %vm615, 0.0
        %659 = vst.msk [vmem:[#allocation3 + $0x158] sm:$0xff] %vm615, 0.0
        %660 = vst.msk [vmem:[#allocation3 + $0x160] sm:$0xff] %vm615, 0.0
        %661 = vst.msk [vmem:[#allocation3 + $0x168] sm:$0xff] %vm615, 0.0
        %662 = vst.msk [vmem:[#allocation3 + $0x170] sm:$0xff] %vm615, 0.0
        %663 = vst.msk [vmem:[#allocation3 + $0x178] sm:$0xff] %vm615, 0.0
        %664 = vst.msk [vmem:[#allocation3 + $0x180] sm:$0xff] %vm615, 0.0
        %665 = vst.msk [vmem:[#allocation3 + $0x188] sm:$0xff] %vm615, 0.0
        %666 = vst.msk [vmem:[#allocation3 + $0x190] sm:$0xff] %vm615, 0.0
        %667 = vst.msk [vmem:[#allocation3 + $0x198] sm:$0xff] %vm615, 0.0
        %668 = vst.msk [vmem:[#allocation3 + $0x1a0] sm:$0xff] %vm615, 0.0
        %669 = vst.msk [vmem:[#allocation3 + $0x1a8] sm:$0xff] %vm615, 0.0
        %670 = vst.msk [vmem:[#allocation3 + $0x1b0] sm:$0xff] %vm615, 0.0
        %671 = vst.msk [vmem:[#allocation3 + $0x1b8] sm:$0xff] %vm615, 0.0
        %672 = vst.msk [vmem:[#allocation3 + $0x1c0] sm:$0xff] %vm615, 0.0
        %673 = vst.msk [vmem:[#allocation3 + $0x1c8] sm:$0xff] %vm615, 0.0
        %674 = vst.msk [vmem:[#allocation3 + $0x1d0] sm:$0xff] %vm615, 0.0
        %675 = vst.msk [vmem:[#allocation3 + $0x1d8] sm:$0xff] %vm615, 0.0
        %676 = vst.msk [vmem:[#allocation3 + $0x1e0] sm:$0xff] %vm615, 0.0
        %677 = vst.msk [vmem:[#allocation3 + $0x1e8] sm:$0xff] %vm615, 0.0
        %678 = vst.msk [vmem:[#allocation3 + $0x1f0] sm:$0xff] %vm615, 0.0
        %679 = vst.msk [vmem:[#allocation3 + $0x1f8] sm:$0xff] %vm615, 0.0
        %680 = vst.msk [vmem:[#allocation3 + $0x200] sm:$0xff] %vm615, 0.0
        %681 = vst.msk [vmem:[#allocation3 + $0x208] sm:$0xff] %vm615, 0.0
        %682 = vst.msk [vmem:[#allocation3 + $0x210] sm:$0xff] %vm615, 0.0
        %683 = vst.msk [vmem:[#allocation3 + $0x218] sm:$0xff] %vm615, 0.0
        %684 = vst.msk [vmem:[#allocation3 + $0x220] sm:$0xff] %vm615, 0.0
        %685 = vst.msk [vmem:[#allocation3 + $0x228] sm:$0xff] %vm615, 0.0
        %vm686 = vcmask 80896
        %687 = vst.msk [vmem:[#allocation4] sm:$0xff] %vm686, 0.0
        %688 = vst.msk [vmem:[#allocation4 + $0x8] sm:$0xff] %vm686, 0.0
        %689 = vst.msk [vmem:[#allocation5] sm:$0xff] %vm615, 0.0
        %690 = vst.msk [vmem:[#allocation5 + $0x8] sm:$0xff] %vm615, 0.0
        %691 = vst.msk [vmem:[#allocation5 + $0x10] sm:$0xff] %vm615, 0.0
        %692 = vst.msk [vmem:[#allocation5 + $0x18] sm:$0xff] %vm615, 0.0
        %693 = vst.msk [vmem:[#allocation5 + $0x20] sm:$0xff] %vm615, 0.0
        %694 = vst.msk [vmem:[#allocation5 + $0x28] sm:$0xff] %vm615, 0.0
        %vm695 = vcmask 293888
        %696 = vst.msk [vmem:[#allocation6] sm:$0xff] %vm695, 0.0
        %vm697 = vcmask 130048
        %698 = vst.msk [vmem:[#allocation7] sm:$0xff] %vm697, 0.0
        %699 = vst.msk [vmem:[#allocation7 + $0x8] sm:$0xff] %vm697, 0.0
        %700 = vst.msk [vmem:[#allocation7 + $0x10] sm:$0xff] %vm697, 0.0
        %701 = vst.msk [vmem:[#allocation7 + $0x18] sm:$0xff] %vm697, 0.0
        %702 = vst.msk [vmem:[#allocation7 + $0x20] sm:$0xff] %vm697, 0.0
        %vm703 = vcmask 146432
        %704 = vst.msk [vmem:[#allocation8] sm:$0xff] %vm703, 0.0
        %705 = vst.msk [vmem:[#allocation9] sm:$0xff] %vm697, 0.0
        %706 = vst.msk [vmem:[#allocation9 + $0x8] sm:$0xff] %vm697, 0.0
        %707 = vst.msk [vmem:[#allocation9 + $0x10] sm:$0xff] %vm697, 0.0
        %vm708 = vcmask 420864
        %709 = vst.msk [vmem:[#allocation10] sm:$0xf] %vm708, 0.0
        %vm710 = vcmask 261120
        %711 = vst.msk [vmem:[#allocation11] sm:$0xff] %vm710, 0.0
        %712 = vst.msk [vmem:[#allocation11 + $0x8] sm:$0xff] %vm710, 0.0
        %713 = vst.msk [vmem:[#allocation11 + $0x10] sm:$0xff] %vm710, 0.0
        %714 = vst.msk [vmem:[#allocation11 + $0x18] sm:$0xff] %vm710, 0.0
        %715 = vst.msk [vmem:[#allocation11 + $0x20] sm:$0xff] %vm710, 0.0
        %vm716 = vcmask 306176
        %717 = vst.msk [vmem:[#allocation12] sm:$0xf] %vm716, 0.0
        %718 = vst.msk [vmem:[#allocation13] sm:$0xff] %vm710, 0.0
        %719 = vst.msk [vmem:[#allocation13 + $0x8] sm:$0xff] %vm710, 0.0
        %720 = vst.msk [vmem:[#allocation13 + $0x10] sm:$0xff] %vm710, 0.0
        %721 = vst.msk [vmem:[#allocation13 + $0x18] sm:$0xff] %vm710, 0.0
        %722 = vst.msk [vmem:[#allocation13 + $0x20] sm:$0xff] %vm710, 0.0
        %723 = vst.msk [vmem:[#allocation13 + $0x28] sm:$0xff] %vm710, 0.0
        %724 = vst.msk [vmem:[#allocation13 + $0x30] sm:$0xff] %vm710, 0.0
        %v725 = vld [vmem:[%s602] sm:$0xff]
        %v726 = vld [vmem:[%s602 + $0x8] sm:$0xff]
        %v727 = vld [vmem:[%s602 + $0x10] sm:$0xff]
        %v728 = vld [vmem:[%s602 + $0x18] sm:$0xff]
        %v729 = vld [vmem:[%s602 + $0x20] sm:$0xff]
        %v730 = vld [vmem:[%s602 + $0x28] sm:$0xff]
        %v731 = vld [vmem:[%s602 + $0x30] sm:$0xff]
        %v732 = vld [vmem:[%s602 + $0x38] sm:$0xff]
        %v733 = vld [vmem:[%s602 + $0x40] sm:$0xff]
        %v734 = vld [vmem:[%s602 + $0x48] sm:$0xff]
        %v735 = vld [vmem:[%s1] sm:$0xff]
        %v736 = vld [vmem:[%s1 + $0x8] sm:$0xff]
        %v737 = vld [vmem:[%s1 + $0x10] sm:$0xf]
        %v738 = vld [vmem:[%s1 + $0x14] sm:$0xff]
        %v739 = vld [vmem:[%s1 + $0x1c] sm:$0xff]
        %v740 = vld [vmem:[%s1 + $0x24] sm:$0xf]
        %v741 = vld [vmem:[#allocation14] sm:$0xff]
        %v742 = vld [vmem:[#allocation14 + $0x8] sm:$0xff]
        %753 = vrot.lane.b32.xlu0 %v725, 3
        %v754 = vpop.permute.xlu0 %753
        %755 = vrot.lane.b32.xlu0 %v726, 3
        %v756 = vpop.permute.xlu0 %755
        %757 = vrot.lane.b32.xlu0 %v727, 3
        %v758 = vpop.permute.xlu0 %757
        %759 = vrot.lane.b32.xlu0 %v728, 3
        %v760 = vpop.permute.xlu0 %759
        %761 = vrot.lane.b32.xlu0 %v729, 3
        %v762 = vpop.permute.xlu0 %761
        %763 = vrot.lane.b32.xlu0 %v730, 3
        %v764 = vpop.permute.xlu0 %763
        %765 = vrot.lane.b32.xlu0 %v731, 3
        %v766 = vpop.permute.xlu0 %765
        %767 = vrot.lane.b32.xlu0 %v732, 3
        %v768 = vpop.permute.xlu0 %767
        %769 = vrot.lane.b32.xlu0 %v733, 3
        %v770 = vpop.permute.xlu0 %769
        %771 = vrot.lane.b32.xlu0 %v734, 3
        %v772 = vpop.permute.xlu0 %771
        %vm783 = vcmask 89112
        %784 = vst.msk [vmem:[#allocation2] sm:$0xff] %vm783, %v754
        %785 = vst.msk [vmem:[#allocation2 + $0x8] sm:$0xff] %vm783, %v756
        %786 = vst.msk [vmem:[#allocation2 + $0x10] sm:$0xff] %vm783, %v758
        %787 = vst.msk [vmem:[#allocation2 + $0x18] sm:$0xff] %vm783, %v760
        %788 = vst.msk [vmem:[#allocation2 + $0x20] sm:$0xff] %vm783, %v762
        %789 = vst.msk [vmem:[#allocation2 + $0x28] sm:$0xff] %vm783, %v764
        %790 = vst.msk [vmem:[#allocation2 + $0x30] sm:$0xff] %vm783, %v766
        %791 = vst.msk [vmem:[#allocation2 + $0x38] sm:$0xff] %vm783, %v768
        %792 = vst.msk [vmem:[#allocation2 + $0x40] sm:$0xff] %vm783, %v770
        %793 = vst.msk [vmem:[#allocation2 + $0x48] sm:$0xff] %vm783, %v772
        %v794 = vld [vmem:[#allocation2] sm:$0xff]
        %v795 = vld [vmem:[#allocation2 + $0x8] sm:$0xff]
        %v796 = vld [vmem:[#allocation2 + $0x10] sm:$0xff]
        %v797 = vld [vmem:[#allocation2 + $0x18] sm:$0xff]
        %v798 = vld [vmem:[#allocation2 + $0x20] sm:$0xff]
        %v799 = vld [vmem:[#allocation2 + $0x28] sm:$0xff]
        %v800 = vld [vmem:[#allocation2 + $0x30] sm:$0xff]
        %v801 = vld [vmem:[#allocation2 + $0x38] sm:$0xff]
        %v802 = vld [vmem:[#allocation2 + $0x40] sm:$0xff]
        %v803 = vld [vmem:[#allocation2 + $0x48] sm:$0xff]
        %804 = vst.msk [vmem:[#allocation3] sm:$0xff] %vm615, %v794
        %805 = vst.msk [vmem:[#allocation3 + $0x8] sm:$0xff] %vm615, %v795
        %806 = vst.msk [vmem:[#allocation3 + $0x10] sm:$0xff] %vm615, %v796
        %807 = vst.msk [vmem:[#allocation3 + $0x18] sm:$0xff] %vm615, %v797
        %808 = vst.msk [vmem:[#allocation3 + $0x20] sm:$0xff] %vm615, %v798
        %809 = vst.msk [vmem:[#allocation3 + $0x28] sm:$0xff] %vm615, %v799
        %810 = vst.msk [vmem:[#allocation3 + $0x30] sm:$0xff] %vm615, %v800
        %811 = vst.msk [vmem:[#allocation3 + $0x38] sm:$0xff] %vm615, %v801
        %812 = vst.msk [vmem:[#allocation3 + $0x40] sm:$0xff] %vm615, %v802
        %813 = vst.msk [vmem:[#allocation3 + $0x48] sm:$0xff] %vm615, %v803
        %v814 = vld [vmem:[#allocation2] sm:$0xff]
        %v815 = vld [vmem:[#allocation2 + $0x8] sm:$0xff]
        %v816 = vld [vmem:[#allocation2 + $0x10] sm:$0xff]
        %v817 = vld [vmem:[#allocation2 + $0x18] sm:$0xff]
        %v818 = vld [vmem:[#allocation2 + $0x20] sm:$0xff]
        %v819 = vld [vmem:[#allocation2 + $0x28] sm:$0xff]
        %v820 = vld [vmem:[#allocation2 + $0x30] sm:$0xff]
        %v821 = vld [vmem:[#allocation2 + $0x38] sm:$0xff]
        %v822 = vld [vmem:[#allocation2 + $0x40] sm:$0xff]
        %v823 = vld [vmem:[#allocation2 + $0x48] sm:$0xff]
        %834 = vrot.lane.b32.xlu0 %v814, 127
        %v835 = vpop.permute.xlu0 %834
        %836 = vrot.lane.b32.xlu0 %v815, 127
        %v837 = vpop.permute.xlu0 %836
        %838 = vrot.lane.b32.xlu0 %v816, 127
        %v839 = vpop.permute.xlu0 %838
        %840 = vrot.lane.b32.xlu0 %v817, 127
        %v841 = vpop.permute.xlu0 %840
        %842 = vrot.lane.b32.xlu0 %v818, 127
        %v843 = vpop.permute.xlu0 %842
        %844 = vrot.lane.b32.xlu0 %v819, 127
        %v845 = vpop.permute.xlu0 %844
        %846 = vrot.lane.b32.xlu0 %v820, 127
        %v847 = vpop.permute.xlu0 %846
        %848 = vrot.lane.b32.xlu0 %v821, 127
        %v849 = vpop.permute.xlu0 %848
        %850 = vrot.lane.b32.xlu0 %v822, 127
        %v851 = vpop.permute.xlu0 %850
        %852 = vrot.lane.b32.xlu0 %v823, 127
        %v853 = vpop.permute.xlu0 %852
        %864 = vst.msk [vmem:[#allocation3 + $0x50] sm:$0xff] %vm615, %v835
        %865 = vst.msk [vmem:[#allocation3 + $0x58] sm:$0xff] %vm615, %v837
        %866 = vst.msk [vmem:[#allocation3 + $0x60] sm:$0xff] %vm615, %v839
        %867 = vst.msk [vmem:[#allocation3 + $0x68] sm:$0xff] %vm615, %v841
        %868 = vst.msk [vmem:[#allocation3 + $0x70] sm:$0xff] %vm615, %v843
        %869 = vst.msk [vmem:[#allocation3 + $0x78] sm:$0xff] %vm615, %v845
        %870 = vst.msk [vmem:[#allocation3 + $0x80] sm:$0xff] %vm615, %v847
        %871 = vst.msk [vmem:[#allocation3 + $0x88] sm:$0xff] %vm615, %v849
        %872 = vst.msk [vmem:[#allocation3 + $0x90] sm:$0xff] %vm615, %v851
        %873 = vst.msk [vmem:[#allocation3 + $0x98] sm:$0xff] %vm615, %v853
        %v874 = vld [vmem:[#allocation2] sm:$0xff]
        %v875 = vld [vmem:[#allocation2 + $0x8] sm:$0xff]
        %v876 = vld [vmem:[#allocation2 + $0x10] sm:$0xff]
        %v877 = vld [vmem:[#allocation2 + $0x18] sm:$0xff]
        %v878 = vld [vmem:[#allocation2 + $0x20] sm:$0xff]
        %v879 = vld [vmem:[#allocation2 + $0x28] sm:$0xff]
        %v880 = vld [vmem:[#allocation2 + $0x30] sm:$0xff]
        %v881 = vld [vmem:[#allocation2 + $0x38] sm:$0xff]
        %v882 = vld [vmem:[#allocation2 + $0x40] sm:$0xff]
        %v883 = vld [vmem:[#allocation2 + $0x48] sm:$0xff]
        %894 = vrot.lane.b32.xlu0 %v874, 126
        %v895 = vpop.permute.xlu0 %894
        %896 = vrot.lane.b32.xlu0 %v875, 126
        %v897 = vpop.permute.xlu0 %896
        %898 = vrot.lane.b32.xlu0 %v876, 126
        %v899 = vpop.permute.xlu0 %898
        %900 = vrot.lane.b32.xlu0 %v877, 126
        %v901 = vpop.permute.xlu0 %900
        %902 = vrot.lane.b32.xlu0 %v878, 126
        %v903 = vpop.permute.xlu0 %902
        %904 = vrot.lane.b32.xlu0 %v879, 126
        %v905 = vpop.permute.xlu0 %904
        %906 = vrot.lane.b32.xlu0 %v880, 126
        %v907 = vpop.permute.xlu0 %906
        %908 = vrot.lane.b32.xlu0 %v881, 126
        %v909 = vpop.permute.xlu0 %908
        %910 = vrot.lane.b32.xlu0 %v882, 126
        %v911 = vpop.permute.xlu0 %910
        %912 = vrot.lane.b32.xlu0 %v883, 126
        %v913 = vpop.permute.xlu0 %912
        %924 = vst.msk [vmem:[#allocation3 + $0xa0] sm:$0xff] %vm615, %v895
        %925 = vst.msk [vmem:[#allocation3 + $0xa8] sm:$0xff] %vm615, %v897
        %926 = vst.msk [vmem:[#allocation3 + $0xb0] sm:$0xff] %vm615, %v899
        %927 = vst.msk [vmem:[#allocation3 + $0xb8] sm:$0xff] %vm615, %v901
        %928 = vst.msk [vmem:[#allocation3 + $0xc0] sm:$0xff] %vm615, %v903
        %929 = vst.msk [vmem:[#allocation3 + $0xc8] sm:$0xff] %vm615, %v905
        %930 = vst.msk [vmem:[#allocation3 + $0xd0] sm:$0xff] %vm615, %v907
        %931 = vst.msk [vmem:[#allocation3 + $0xd8] sm:$0xff] %vm615, %v909
        %932 = vst.msk [vmem:[#allocation3 + $0xe0] sm:$0xff] %vm615, %v911
        %933 = vst.msk [vmem:[#allocation3 + $0xe8] sm:$0xff] %vm615, %v913
        %v934 = vld [vmem:[#allocation2] sm:$0xff]
        %v935 = vld [vmem:[#allocation2 + $0x8] sm:$0xff]
        %v936 = vld [vmem:[#allocation2 + $0x10] sm:$0xff]
        %v937 = vld [vmem:[#allocation2 + $0x18] sm:$0xff]
        %v938 = vld [vmem:[#allocation2 + $0x20] sm:$0xff]
        %v939 = vld [vmem:[#allocation2 + $0x28] sm:$0xff]
        %v940 = vld [vmem:[#allocation2 + $0x30] sm:$0xff]
        %v941 = vld [vmem:[#allocation2 + $0x38] sm:$0xff]
        %v942 = vld [vmem:[#allocation2 + $0x40] sm:$0xff]
        %v943 = vld [vmem:[#allocation2 + $0x48] sm:$0xff]
        %954 = vrot.lane.b32.xlu0 %v934, 125
        %v955 = vpop.permute.xlu0 %954
        %956 = vrot.lane.b32.xlu0 %v935, 125
        %v957 = vpop.permute.xlu0 %956
        %958 = vrot.lane.b32.xlu0 %v936, 125
        %v959 = vpop.permute.xlu0 %958
        %960 = vrot.lane.b32.xlu0 %v937, 125
        %v961 = vpop.permute.xlu0 %960
        %962 = vrot.lane.b32.xlu0 %v938, 125
        %v963 = vpop.permute.xlu0 %962
        %964 = vrot.lane.b32.xlu0 %v939, 125
        %v965 = vpop.permute.xlu0 %964
        %966 = vrot.lane.b32.xlu0 %v940, 125
        %v967 = vpop.permute.xlu0 %966
        %968 = vrot.lane.b32.xlu0 %v941, 125
        %v969 = vpop.permute.xlu0 %968
        %970 = vrot.lane.b32.xlu0 %v942, 125
        %v971 = vpop.permute.xlu0 %970
        %972 = vrot.lane.b32.xlu0 %v943, 125
        %v973 = vpop.permute.xlu0 %972
        %984 = vst.msk [vmem:[#allocation3 + $0xf0] sm:$0xff] %vm615, %v955
        %985 = vst.msk [vmem:[#allocation3 + $0xf8] sm:$0xff] %vm615, %v957
        %986 = vst.msk [vmem:[#allocation3 + $0x100] sm:$0xff] %vm615, %v959
        %987 = vst.msk [vmem:[#allocation3 + $0x108] sm:$0xff] %vm615, %v961
        %988 = vst.msk [vmem:[#allocation3 + $0x110] sm:$0xff] %vm615, %v963
        %989 = vst.msk [vmem:[#allocation3 + $0x118] sm:$0xff] %vm615, %v965
        %990 = vst.msk [vmem:[#allocation3 + $0x120] sm:$0xff] %vm615, %v967
        %991 = vst.msk [vmem:[#allocation3 + $0x128] sm:$0xff] %vm615, %v969
        %992 = vst.msk [vmem:[#allocation3 + $0x130] sm:$0xff] %vm615, %v971
        %993 = vst.msk [vmem:[#allocation3 + $0x138] sm:$0xff] %vm615, %v973
        %v994 = vld [vmem:[#allocation2] sm:$0xff]
        %v995 = vld [vmem:[#allocation2 + $0x8] sm:$0xff]
        %v996 = vld [vmem:[#allocation2 + $0x10] sm:$0xff]
        %v997 = vld [vmem:[#allocation2 + $0x18] sm:$0xff]
        %v998 = vld [vmem:[#allocation2 + $0x20] sm:$0xff]
        %v999 = vld [vmem:[#allocation2 + $0x28] sm:$0xff]
        %v1000 = vld [vmem:[#allocation2 + $0x30] sm:$0xff]
        %v1001 = vld [vmem:[#allocation2 + $0x38] sm:$0xff]
        %v1002 = vld [vmem:[#allocation2 + $0x40] sm:$0xff]
        %v1003 = vld [vmem:[#allocation2 + $0x48] sm:$0xff]
        %1014 = vrot.lane.b32.xlu0 %v994, 124
        %v1015 = vpop.permute.xlu0 %1014
        %1016 = vrot.lane.b32.xlu0 %v995, 124
        %v1017 = vpop.permute.xlu0 %1016
        %1018 = vrot.lane.b32.xlu0 %v996, 124
        %v1019 = vpop.permute.xlu0 %1018
        %1020 = vrot.lane.b32.xlu0 %v997, 124
        %v1021 = vpop.permute.xlu0 %1020
        %1022 = vrot.lane.b32.xlu0 %v998, 124
        %v1023 = vpop.permute.xlu0 %1022
        %1024 = vrot.lane.b32.xlu0 %v999, 124
        %v1025 = vpop.permute.xlu0 %1024
        %1026 = vrot.lane.b32.xlu0 %v1000, 124
        %v1027 = vpop.permute.xlu0 %1026
        %1028 = vrot.lane.b32.xlu0 %v1001, 124
        %v1029 = vpop.permute.xlu0 %1028
        %1030 = vrot.lane.b32.xlu0 %v1002, 124
        %v1031 = vpop.permute.xlu0 %1030
        %1032 = vrot.lane.b32.xlu0 %v1003, 124
        %v1033 = vpop.permute.xlu0 %1032
        %1044 = vst.msk [vmem:[#allocation3 + $0x140] sm:$0xff] %vm615, %v1015
        %1045 = vst.msk [vmem:[#allocation3 + $0x148] sm:$0xff] %vm615, %v1017
        %1046 = vst.msk [vmem:[#allocation3 + $0x150] sm:$0xff] %vm615, %v1019
        %1047 = vst.msk [vmem:[#allocation3 + $0x158] sm:$0xff] %vm615, %v1021
        %1048 = vst.msk [vmem:[#allocation3 + $0x160] sm:$0xff] %vm615, %v1023
        %1049 = vst.msk [vmem:[#allocation3 + $0x168] sm:$0xff] %vm615, %v1025
        %1050 = vst.msk [vmem:[#allocation3 + $0x170] sm:$0xff] %vm615, %v1027
        %1051 = vst.msk [vmem:[#allocation3 + $0x178] sm:$0xff] %vm615, %v1029
        %1052 = vst.msk [vmem:[#allocation3 + $0x180] sm:$0xff] %vm615, %v1031
        %1053 = vst.msk [vmem:[#allocation3 + $0x188] sm:$0xff] %vm615, %v1033
        %v1054 = vld [vmem:[#allocation2] sm:$0xff]
        %v1055 = vld [vmem:[#allocation2 + $0x8] sm:$0xff]
        %v1056 = vld [vmem:[#allocation2 + $0x10] sm:$0xff]
        %v1057 = vld [vmem:[#allocation2 + $0x18] sm:$0xff]
        %v1058 = vld [vmem:[#allocation2 + $0x20] sm:$0xff]
        %v1059 = vld [vmem:[#allocation2 + $0x28] sm:$0xff]
        %v1060 = vld [vmem:[#allocation2 + $0x30] sm:$0xff]
        %v1061 = vld [vmem:[#allocation2 + $0x38] sm:$0xff]
        %v1062 = vld [vmem:[#allocation2 + $0x40] sm:$0xff]
        %v1063 = vld [vmem:[#allocation2 + $0x48] sm:$0xff]
        %1074 = vrot.lane.b32.xlu0 %v1054, 123
        %v1075 = vpop.permute.xlu0 %1074
        %1076 = vrot.lane.b32.xlu0 %v1055, 123
        %v1077 = vpop.permute.xlu0 %1076
        %1078 = vrot.lane.b32.xlu0 %v1056, 123
        %v1079 = vpop.permute.xlu0 %1078
        %1080 = vrot.lane.b32.xlu0 %v1057, 123
        %v1081 = vpop.permute.xlu0 %1080
        %1082 = vrot.lane.b32.xlu0 %v1058, 123
        %v1083 = vpop.permute.xlu0 %1082
        %1084 = vrot.lane.b32.xlu0 %v1059, 123
        %v1085 = vpop.permute.xlu0 %1084
        %1086 = vrot.lane.b32.xlu0 %v1060, 123
        %v1087 = vpop.permute.xlu0 %1086
        %1088 = vrot.lane.b32.xlu0 %v1061, 123
        %v1089 = vpop.permute.xlu0 %1088
        %1090 = vrot.lane.b32.xlu0 %v1062, 123
        %v1091 = vpop.permute.xlu0 %1090
        %1092 = vrot.lane.b32.xlu0 %v1063, 123
        %v1093 = vpop.permute.xlu0 %1092
        %1104 = vst.msk [vmem:[#allocation3 + $0x190] sm:$0xff] %vm615, %v1075
        %1105 = vst.msk [vmem:[#allocation3 + $0x198] sm:$0xff] %vm615, %v1077
        %1106 = vst.msk [vmem:[#allocation3 + $0x1a0] sm:$0xff] %vm615, %v1079
        %1107 = vst.msk [vmem:[#allocation3 + $0x1a8] sm:$0xff] %vm615, %v1081
        %1108 = vst.msk [vmem:[#allocation3 + $0x1b0] sm:$0xff] %vm615, %v1083
        %1109 = vst.msk [vmem:[#allocation3 + $0x1b8] sm:$0xff] %vm615, %v1085
        %1110 = vst.msk [vmem:[#allocation3 + $0x1c0] sm:$0xff] %vm615, %v1087
        %1111 = vst.msk [vmem:[#allocation3 + $0x1c8] sm:$0xff] %vm615, %v1089
        %1112 = vst.msk [vmem:[#allocation3 + $0x1d0] sm:$0xff] %vm615, %v1091
        %1113 = vst.msk [vmem:[#allocation3 + $0x1d8] sm:$0xff] %vm615, %v1093
        %v1114 = vld [vmem:[#allocation2] sm:$0xff]
        %v1115 = vld [vmem:[#allocation2 + $0x8] sm:$0xff]
        %v1116 = vld [vmem:[#allocation2 + $0x10] sm:$0xff]
        %v1117 = vld [vmem:[#allocation2 + $0x18] sm:$0xff]
        %v1118 = vld [vmem:[#allocation2 + $0x20] sm:$0xff]
        %v1119 = vld [vmem:[#allocation2 + $0x28] sm:$0xff]
        %v1120 = vld [vmem:[#allocation2 + $0x30] sm:$0xff]
        %v1121 = vld [vmem:[#allocation2 + $0x38] sm:$0xff]
        %v1122 = vld [vmem:[#allocation2 + $0x40] sm:$0xff]
        %v1123 = vld [vmem:[#allocation2 + $0x48] sm:$0xff]
        %1134 = vrot.lane.b32.xlu0 %v1114, 122
        %v1135 = vpop.permute.xlu0 %1134
        %1136 = vrot.lane.b32.xlu0 %v1115, 122
        %v1137 = vpop.permute.xlu0 %1136
        %1138 = vrot.lane.b32.xlu0 %v1116, 122
        %v1139 = vpop.permute.xlu0 %1138
        %1140 = vrot.lane.b32.xlu0 %v1117, 122
        %v1141 = vpop.permute.xlu0 %1140
        %1142 = vrot.lane.b32.xlu0 %v1118, 122
        %v1143 = vpop.permute.xlu0 %1142
        %1144 = vrot.lane.b32.xlu0 %v1119, 122
        %v1145 = vpop.permute.xlu0 %1144
        %1146 = vrot.lane.b32.xlu0 %v1120, 122
        %v1147 = vpop.permute.xlu0 %1146
        %1148 = vrot.lane.b32.xlu0 %v1121, 122
        %v1149 = vpop.permute.xlu0 %1148
        %1150 = vrot.lane.b32.xlu0 %v1122, 122
        %v1151 = vpop.permute.xlu0 %1150
        %1152 = vrot.lane.b32.xlu0 %v1123, 122
        %v1153 = vpop.permute.xlu0 %1152
        %1164 = vst.msk [vmem:[#allocation3 + $0x1e0] sm:$0xff] %vm615, %v1135
        %1165 = vst.msk [vmem:[#allocation3 + $0x1e8] sm:$0xff] %vm615, %v1137
        %1166 = vst.msk [vmem:[#allocation3 + $0x1f0] sm:$0xff] %vm615, %v1139
        %1167 = vst.msk [vmem:[#allocation3 + $0x1f8] sm:$0xff] %vm615, %v1141
        %1168 = vst.msk [vmem:[#allocation3 + $0x200] sm:$0xff] %vm615, %v1143
        %1169 = vst.msk [vmem:[#allocation3 + $0x208] sm:$0xff] %vm615, %v1145
        %1170 = vst.msk [vmem:[#allocation3 + $0x210] sm:$0xff] %vm615, %v1147
        %1171 = vst.msk [vmem:[#allocation3 + $0x218] sm:$0xff] %vm615, %v1149
        %1172 = vst.msk [vmem:[#allocation3 + $0x220] sm:$0xff] %vm615, %v1151
        %1173 = vst.msk [vmem:[#allocation3 + $0x228] sm:$0xff] %vm615, %v1153
        %v1174 = vld [vmem:[#allocation3] sm:$0xff]
        %v1175 = vld [vmem:[#allocation3 + $0x8] sm:$0xff]
        %v1176 = vld [vmem:[#allocation3 + $0x10] sm:$0xff]
        %v1177 = vld [vmem:[#allocation3 + $0x18] sm:$0xff]
        %v1178 = vld [vmem:[#allocation3 + $0x20] sm:$0xff]
        %v1179 = vld [vmem:[#allocation3 + $0x28] sm:$0xff]
        %v1180 = vld [vmem:[#allocation3 + $0x30] sm:$0xff]
        %v1181 = vld [vmem:[#allocation3 + $0x38] sm:$0xff]
        %v1182 = vld [vmem:[#allocation3 + $0x40] sm:$0xff]
        %v1183 = vld [vmem:[#allocation3 + $0x48] sm:$0xff]
        %v1184 = vld [vmem:[#allocation3 + $0x50] sm:$0xff]
        %v1185 = vld [vmem:[#allocation3 + $0x58] sm:$0xff]
        %v1186 = vld [vmem:[#allocation3 + $0x60] sm:$0xff]
        %v1187 = vld [vmem:[#allocation3 + $0x68] sm:$0xff]
        %v1188 = vld [vmem:[#allocation3 + $0x70] sm:$0xff]
        %v1189 = vld [vmem:[#allocation3 + $0x78] sm:$0xff]
        %v1190 = vld [vmem:[#allocation3 + $0x80] sm:$0xff]
        %v1191 = vld [vmem:[#allocation3 + $0x88] sm:$0xff]
        %v1192 = vld [vmem:[#allocation3 + $0x90] sm:$0xff]
        %v1193 = vld [vmem:[#allocation3 + $0x98] sm:$0xff]
        %v1194 = vld [vmem:[#allocation3 + $0xa0] sm:$0xff]
        %v1195 = vld [vmem:[#allocation3 + $0xa8] sm:$0xff]
        %v1196 = vld [vmem:[#allocation3 + $0xb0] sm:$0xff]
        %v1197 = vld [vmem:[#allocation3 + $0xb8] sm:$0xff]
        %v1198 = vld [vmem:[#allocation3 + $0xc0] sm:$0xff]
        %v1199 = vld [vmem:[#allocation3 + $0xc8] sm:$0xff]
        %v1200 = vld [vmem:[#allocation3 + $0xd0] sm:$0xff]
        %v1201 = vld [vmem:[#allocation3 + $0xd8] sm:$0xff]
        %v1202 = vld [vmem:[#allocation3 + $0xe0] sm:$0xff]
        %v1203 = vld [vmem:[#allocation3 + $0xe8] sm:$0xff]
        %v1204 = vld [vmem:[#allocation3 + $0xf0] sm:$0xff]
        %v1205 = vld [vmem:[#allocation3 + $0xf8] sm:$0xff]
        %v1206 = vld [vmem:[#allocation3 + $0x100] sm:$0xff]
        %v1207 = vld [vmem:[#allocation3 + $0x108] sm:$0xff]
        %v1208 = vld [vmem:[#allocation3 + $0x110] sm:$0xff]
        %v1209 = vld [vmem:[#allocation3 + $0x118] sm:$0xff]
        %v1210 = vld [vmem:[#allocation3 + $0x120] sm:$0xff]
        %v1211 = vld [vmem:[#allocation3 + $0x128] sm:$0xff]
        %v1212 = vld [vmem:[#allocation3 + $0x130] sm:$0xff]
        %v1213 = vld [vmem:[#allocation3 + $0x138] sm:$0xff]
        %v1214 = vld [vmem:[#allocation3 + $0x140] sm:$0xff]
        %v1215 = vld [vmem:[#allocation3 + $0x148] sm:$0xff]
        %v1216 = vld [vmem:[#allocation3 + $0x150] sm:$0xff]
        %v1217 = vld [vmem:[#allocation3 + $0x158] sm:$0xff]
        %v1218 = vld [vmem:[#allocation3 + $0x160] sm:$0xff]
        %v1219 = vld [vmem:[#allocation3 + $0x168] sm:$0xff]
        %v1220 = vld [vmem:[#allocation3 + $0x170] sm:$0xff]
        %v1221 = vld [vmem:[#allocation3 + $0x178] sm:$0xff]
        %v1222 = vld [vmem:[#allocation3 + $0x180] sm:$0xff]
        %v1223 = vld [vmem:[#allocation3 + $0x188] sm:$0xff]
        %v1224 = vld [vmem:[#allocation3 + $0x190] sm:$0xff]
        %v1225 = vld [vmem:[#allocation3 + $0x198] sm:$0xff]
        %v1226 = vld [vmem:[#allocation3 + $0x1a0] sm:$0xff]
        %v1227 = vld [vmem:[#allocation3 + $0x1a8] sm:$0xff]
        %v1228 = vld [vmem:[#allocation3 + $0x1b0] sm:$0xff]
        %v1229 = vld [vmem:[#allocation3 + $0x1b8] sm:$0xff]
        %v1230 = vld [vmem:[#allocation3 + $0x1c0] sm:$0xff]
        %v1231 = vld [vmem:[#allocation3 + $0x1c8] sm:$0xff]
        %v1232 = vld [vmem:[#allocation3 + $0x1d0] sm:$0xff]
        %v1233 = vld [vmem:[#allocation3 + $0x1d8] sm:$0xff]
        %v1234 = vld [vmem:[#allocation3 + $0x1e0] sm:$0xff]
        %v1235 = vld [vmem:[#allocation3 + $0x1e8] sm:$0xff]
        %v1236 = vld [vmem:[#allocation3 + $0x1f0] sm:$0xff]
        %v1237 = vld [vmem:[#allocation3 + $0x1f8] sm:$0xff]
        %v1238 = vld [vmem:[#allocation3 + $0x200] sm:$0xff]
        %v1239 = vld [vmem:[#allocation3 + $0x208] sm:$0xff]
        %v1240 = vld [vmem:[#allocation3 + $0x210] sm:$0xff]
        %v1241 = vld [vmem:[#allocation3 + $0x218] sm:$0xff]
        %v1242 = vld [vmem:[#allocation3 + $0x220] sm:$0xff]
        %v1243 = vld [vmem:[#allocation3 + $0x228] sm:$0xff]
        %v1244 = vpack.c.bf16 %v1175, %v1174
        %v1245 = vpack.c.bf16 %v1177, %v1176
        %v1246 = vpack.c.bf16 %v1179, %v1178
        %v1247 = vpack.c.bf16 %v1181, %v1180
        %v1248 = vpack.c.bf16 %v1183, %v1182
        %v1249 = vpack.c.bf16 %v1185, %v1184
        %v1250 = vpack.c.bf16 %v1187, %v1186
        %v1251 = vpack.c.bf16 %v1189, %v1188
        %v1252 = vpack.c.bf16 %v1191, %v1190
        %v1253 = vpack.c.bf16 %v1193, %v1192
        %v1254 = vpack.c.bf16 %v1195, %v1194
        %v1255 = vpack.c.bf16 %v1197, %v1196
        %v1256 = vpack.c.bf16 %v1199, %v1198
        %v1257 = vpack.c.bf16 %v1201, %v1200
        %v1258 = vpack.c.bf16 %v1203, %v1202
        %v1259 = vpack.c.bf16 %v1205, %v1204
        %v1260 = vpack.c.bf16 %v1207, %v1206
        %v1261 = vpack.c.bf16 %v1209, %v1208
        %v1262 = vpack.c.bf16 %v1211, %v1210
        %v1263 = vpack.c.bf16 %v1213, %v1212
        %v1264 = vpack.c.bf16 %v1215, %v1214
        %v1265 = vpack.c.bf16 %v1217, %v1216
        %v1266 = vpack.c.bf16 %v1219, %v1218
        %v1267 = vpack.c.bf16 %v1221, %v1220
        %v1268 = vpack.c.bf16 %v1223, %v1222
        %v1269 = vpack.c.bf16 %v1225, %v1224
        %v1270 = vpack.c.bf16 %v1227, %v1226
        %v1271 = vpack.c.bf16 %v1229, %v1228
        %v1272 = vpack.c.bf16 %v1231, %v1230
        %v1273 = vpack.c.bf16 %v1233, %v1232
        %v1274 = vpack.c.bf16 %v1235, %v1234
        %v1275 = vpack.c.bf16 %v1237, %v1236
        %v1276 = vpack.c.bf16 %v1239, %v1238
        %v1277 = vpack.c.bf16 %v1241, %v1240
        %v1278 = vpack.c.bf16 %v1243, %v1242
        %1280 = vset.pattern.permute.xlu0 0
        %1281 = vperm.xlu0 %1280, %v741
        %v1282 = vpop.permute.xlu0 %1281
        %1285 = vset.pattern.permute.xlu0 0
        %1286 = vperm.xlu0 %1285, %v742
        %v1287 = vpop.permute.xlu0 %1286
        %v1295 = vunpack.c.l.b16 %v735
        %v1296 = vunpack.c.h.b16 %v735
        %v1297 = vunpack.c.l.b16 %v736
        %v1298 = vunpack.c.h.b16 %v736
        %v1299 = vunpack.c.l.b16 %v737
        %v1300 = vunpack.c.l.b16 %v738
        %v1301 = vunpack.c.h.b16 %v738
        %v1302 = vunpack.c.l.b16 %v739
        %v1303 = vunpack.c.h.b16 %v739
        %v1304 = vunpack.c.l.b16 %v740
        %v1305 = vpack.c.b16 %v1300, %v1295
        %v1306 = vpack.c.b16 %v1301, %v1296
        %v1307 = vpack.c.b16 %v1302, %v1297
        %v1308 = vpack.c.b16 %v1303, %v1298
        %v1309 = vpack.c.b16 %v1304, %v1299
        %vm1314 = vcmask 392192
        %v1316 = vsel %vm1314, %v1309, 0
        %1318 = vmatprep.subr.bf16.mxu0 0
        %1319 = vmatpush1.bf16.msra.mxu0 %v1251
        %1320 = vmatprep.subr.bf16.mxu0 0
        %1321 = vmatpush1.bf16.msra.mxu0 %v1250
        %1322 = vmatprep.subr.bf16.mxu0 0
        %1323 = vmatpush1.bf16.msra.mxu0 %v1249
        %1324 = vmatprep.subr.bf16.mxu0 0
        %1325 = vmatpush1.bf16.msra.mxu0 %v1248
        %1326 = vmatprep.subr.bf16.mxu0 0
        %1327 = vmatpush1.bf16.msra.mxu0 %v1247
        %1328 = vmatprep.subr.bf16.mxu0 0
        %1329 = vmatpush1.bf16.msra.mxu0 %v1246
        %1330 = vmatprep.subr.bf16.mxu0 0
        %1331 = vmatpush1.bf16.msra.mxu0 %v1245
        %1332 = vmatprep.subr.bf16.mxu0 0
        %1333 = vmatpush1.bf16.msra.mxu0 %v1244
        %1334 = vmatprep.subr.bf16.mxu0 0
        %1335 = vmatpush2.bf16.msra.mxu0 %v1259
        %1336 = vmatprep.subr.bf16.mxu0 0
        %1337 = vmatpush2.bf16.msra.mxu0 %v1258
        %1338 = vmatprep.subr.bf16.mxu0 0
        %1339 = vmatpush2.bf16.msra.mxu0 %v1257
        %1340 = vmatprep.subr.bf16.mxu0 0
        %1341 = vmatpush2.bf16.msra.mxu0 %v1256
        %1342 = vmatprep.subr.bf16.mxu0 0
        %1343 = vmatpush2.bf16.msra.mxu0 %v1255
        %1344 = vmatprep.subr.bf16.mxu0 0
        %1345 = vmatpush2.bf16.msra.mxu0 %v1254
        %1346 = vmatprep.subr.bf16.mxu0 0
        %1347 = vmatpush2.bf16.msra.mxu0 %v1253
        %1348 = vmatprep.subr.bf16.mxu0 0
        %1349 = vmatpush2.bf16.msra.mxu0 %v1252
        %1350 = vmatprep.mubr.bf16.mxu0 %v1306
        %1351 = vmatmul.mubr.bf16.gmra.mxu0 %v1305
        %v1352 = vpop.f32.mrf.mxu0
        %v1353 = vadd.f32 %v1282, %v1352
        %v1354 = vpop.f32.mrf.mxu0
        %v1355 = vpop.f32.mrf.mxu0
        %v1356 = vadd.f32 %v1287, %v1355
        %v1357 = vpop.f32.mrf.mxu0
        %1358 = vdwg.mxu0
        %1359 = vmatprep.subr.bf16.mxu0 0
        %1360 = vmatpush1.bf16.msra.mxu0 %v1267
        %1361 = vmatprep.subr.bf16.mxu0 0
        %1362 = vmatpush1.bf16.msra.mxu0 %v1266
        %1363 = vmatprep.subr.bf16.mxu0 0
        %1364 = vmatpush1.bf16.msra.mxu0 %v1265
        %1365 = vmatprep.subr.bf16.mxu0 0
        %1366 = vmatpush1.bf16.msra.mxu0 %v1264
        %1367 = vmatprep.subr.bf16.mxu0 0
        %1368 = vmatpush1.bf16.msra.mxu0 %v1263
        %1369 = vmatprep.subr.bf16.mxu0 0
        %1370 = vmatpush1.bf16.msra.mxu0 %v1262
        %1371 = vmatprep.subr.bf16.mxu0 0
        %1372 = vmatpush1.bf16.msra.mxu0 %v1261
        %1373 = vmatprep.subr.bf16.mxu0 0
        %1374 = vmatpush1.bf16.msra.mxu0 %v1260
        %1375 = vmatprep.subr.bf16.mxu0 0
        %1376 = vmatpush2.bf16.msra.mxu0 %v1275
        %1377 = vmatprep.subr.bf16.mxu0 0
        %1378 = vmatpush2.bf16.msra.mxu0 %v1274
        %1379 = vmatprep.subr.bf16.mxu0 0
        %1380 = vmatpush2.bf16.msra.mxu0 %v1273
        %1381 = vmatprep.subr.bf16.mxu0 0
        %1382 = vmatpush2.bf16.msra.mxu0 %v1272
        %1383 = vmatprep.subr.bf16.mxu0 0
        %1384 = vmatpush2.bf16.msra.mxu0 %v1271
        %1385 = vmatprep.subr.bf16.mxu0 0
        %1386 = vmatpush2.bf16.msra.mxu0 %v1270
        %1387 = vmatprep.subr.bf16.mxu0 0
        %1388 = vmatpush2.bf16.msra.mxu0 %v1269
        %1389 = vmatprep.subr.bf16.mxu0 0
        %1390 = vmatpush2.bf16.msra.mxu0 %v1268
        %1391 = vmatprep.mubr.bf16.mxu0 %v1308
        %1392 = vmatmul.mubr.bf16.gmra.mxu0 %v1307
        %v1393 = vpop.f32.mrf.mxu0
        %v1394 = vadd.f32 %v1353, %v1393
        %v1395 = vpop.f32.mrf.mxu0
        %v1396 = vpop.f32.mrf.mxu0
        %v1397 = vadd.f32 %v1356, %v1396
        %v1398 = vpop.f32.mrf.mxu0
        %1399 = vdwg.mxu0
        %1400 = vmatprep.subr.bf16.mxu0 0
        %1401 = vmatpush1.bf16.msra.mxu0 0
        %1402 = vmatprep.subr.bf16.mxu0 0
        %1403 = vmatpush1.bf16.msra.mxu0 0
        %1404 = vmatprep.subr.bf16.mxu0 0
        %1405 = vmatpush1.bf16.msra.mxu0 0
        %1406 = vmatprep.subr.bf16.mxu0 0
        %1407 = vmatpush1.bf16.msra.mxu0 0
        %1408 = vmatprep.subr.bf16.mxu0 0
        %1409 = vmatpush1.bf16.msra.mxu0 0
        %1410 = vmatprep.subr.bf16.mxu0 0
        %1411 = vmatpush1.bf16.msra.mxu0 %v1278
        %1412 = vmatprep.subr.bf16.mxu0 0
        %1413 = vmatpush1.bf16.msra.mxu0 %v1277
        %1414 = vmatprep.subr.bf16.mxu0 0
        %1415 = vmatpush1.bf16.msra.mxu0 %v1276
        %1416 = vmatprep.subr.bf16.mxu0 0
        %1417 = vmatpush2.bf16.msra.mxu0 0
        %1418 = vmatprep.subr.bf16.mxu0 0
        %1419 = vmatpush2.bf16.msra.mxu0 0
        %1420 = vmatprep.subr.bf16.mxu0 0
        %1421 = vmatpush2.bf16.msra.mxu0 0
        %1422 = vmatprep.subr.bf16.mxu0 0
        %1423 = vmatpush2.bf16.msra.mxu0 0
        %1424 = vmatprep.subr.bf16.mxu0 0
        %1425 = vmatpush2.bf16.msra.mxu0 0
        %1426 = vmatprep.subr.bf16.mxu0 0
        %1427 = vmatpush2.bf16.msra.mxu0 0
        %1428 = vmatprep.subr.bf16.mxu0 0
        %1429 = vmatpush2.bf16.msra.mxu0 0
        %1430 = vmatprep.subr.bf16.mxu0 0
        %1431 = vmatpush2.bf16.msra.mxu0 0
        %1432 = vmatprep.mubr.bf16.mxu0 0
        %1433 = vmatmul.mubr.bf16.gmra.mxu0 %v1316
        %v1434 = vpop.f32.mrf.mxu0
        %v1435 = vadd.f32 %v1394, %v1434
        %v1436 = vpop.f32.mrf.mxu0
        %v1437 = vpop.f32.mrf.mxu0
        %v1438 = vadd.f32 %v1397, %v1437
        %v1439 = vpop.f32.mrf.mxu0
        %1440 = vdwg.mxu0
        %vm1441 = vcmp.gt.f32.partialorder %v1435, 0.0
        %vm1442 = vcmp.gt.f32.partialorder %v1438, 0.0
        %v1443 = vmul.f32 %v1435, 0.1
        %v1444 = vmul.f32 %v1438, 0.1
        %v1445 = vsel %vm1441, %v1435, %v1443
        %v1446 = vsel %vm1442, %v1438, %v1444
        %1449 = vrot.lane.b32.xlu0 %v1445, 1
        %v1450 = vpop.permute.xlu0 %1449
        %1451 = vrot.lane.b32.xlu0 %v1446, 1
        %v1452 = vpop.permute.xlu0 %1451
        %vm1455 = vcmask 72712
        %1456 = vst.msk [vmem:[#allocation4] sm:$0xff] %vm1455, %v1450
        %1457 = vst.msk [vmem:[#allocation4 + $0x8] sm:$0xff] %vm1455, %v1452
        %v1458 = vld [vmem:[#allocation4] sm:$0xff]
        %v1459 = vld [vmem:[#allocation4 + $0x8] sm:$0xff]
        %1460 = vst.msk [vmem:[#allocation5] sm:$0xff] %vm615, %v1458
        %1461 = vst.msk [vmem:[#allocation5 + $0x8] sm:$0xff] %vm615, %v1459
        %v1462 = vld [vmem:[#allocation4] sm:$0xff]
        %v1463 = vld [vmem:[#allocation4 + $0x8] sm:$0xff]
        %1466 = vrot.lane.b32.xlu0 %v1462, 127
        %v1467 = vpop.permute.xlu0 %1466
        %1468 = vrot.lane.b32.xlu0 %v1463, 127
        %v1469 = vpop.permute.xlu0 %1468
        %1472 = vst.msk [vmem:[#allocation5 + $0x10] sm:$0xff] %vm615, %v1467
        %1473 = vst.msk [vmem:[#allocation5 + $0x18] sm:$0xff] %vm615, %v1469
        %v1474 = vld [vmem:[#allocation4] sm:$0xff]
        %v1475 = vld [vmem:[#allocation4 + $0x8] sm:$0xff]
        %1478 = vrot.lane.b32.xlu0 %v1474, 126
        %v1479 = vpop.permute.xlu0 %1478
        %1480 = vrot.lane.b32.xlu0 %v1475, 126
        %v1481 = vpop.permute.xlu0 %1480
        %1484 = vst.msk [vmem:[#allocation5 + $0x20] sm:$0xff] %vm615, %v1479
        %1485 = vst.msk [vmem:[#allocation5 + $0x28] sm:$0xff] %vm615, %v1481
        %v1486 = vld [vmem:[#allocation5] sm:$0xff]
        %v1487 = vld [vmem:[#allocation5 + $0x8] sm:$0xff]
        %v1488 = vld [vmem:[#allocation5 + $0x10] sm:$0xff]
        %v1489 = vld [vmem:[#allocation5 + $0x18] sm:$0xff]
        %v1490 = vld [vmem:[#allocation5 + $0x20] sm:$0xff]
        %v1491 = vld [vmem:[#allocation5 + $0x28] sm:$0xff]
        %v1492 = vpack.c.bf16 %v1487, %v1486
        %v1493 = vpack.c.bf16 %v1489, %v1488
        %v1494 = vpack.c.bf16 %v1491, %v1490
        %v1495 = vld [vmem:[#allocation17] sm:$0xf]
        %v1497 = vsel %vm1314, %v1495, 0
        %1499 = vmatprep.subr.bf16.mxu0 0
        %1500 = vmatpush1.bf16.msra.mxu0 0
        %1501 = vmatprep.subr.bf16.mxu0 0
        %1502 = vmatpush1.bf16.msra.mxu0 0
        %1503 = vmatprep.subr.bf16.mxu0 0
        %1504 = vmatpush1.bf16.msra.mxu0 0
        %1505 = vmatprep.subr.bf16.mxu0 0
        %1506 = vmatpush1.bf16.msra.mxu0 0
        %1507 = vmatprep.subr.bf16.mxu0 0
        %1508 = vmatpush1.bf16.msra.mxu0 0
        %1509 = vmatprep.subr.bf16.mxu0 0
        %1510 = vmatpush1.bf16.msra.mxu0 %v1494
        %1511 = vmatprep.subr.bf16.mxu0 0
        %1512 = vmatpush1.bf16.msra.mxu0 %v1493
        %1513 = vmatprep.subr.bf16.mxu0 0
        %1514 = vmatpush1.bf16.msra.mxu0 %v1492
        %1515 = vmatprep.subr.bf16.mxu0 0
        %1516 = vmatpush2.bf16.msra.mxu0 0
        %1517 = vmatprep.subr.bf16.mxu0 0
        %1518 = vmatpush2.bf16.msra.mxu0 0
        %1519 = vmatprep.subr.bf16.mxu0 0
        %1520 = vmatpush2.bf16.msra.mxu0 0
        %1521 = vmatprep.subr.bf16.mxu0 0
        %1522 = vmatpush2.bf16.msra.mxu0 0
        %1523 = vmatprep.subr.bf16.mxu0 0
        %1524 = vmatpush2.bf16.msra.mxu0 0
        %1525 = vmatprep.subr.bf16.mxu0 0
        %1526 = vmatpush2.bf16.msra.mxu0 0
        %1527 = vmatprep.subr.bf16.mxu0 0
        %1528 = vmatpush2.bf16.msra.mxu0 0
        %1529 = vmatprep.subr.bf16.mxu0 0
        %1530 = vmatpush2.bf16.msra.mxu0 0
        %1531 = vmatprep.mubr.bf16.mxu0 0
        %1532 = vmatmul.mubr.bf16.gmra.mxu0 %v1497
        %v1533 = vpop.f32.mrf.mxu0
        %v1534 = vadd.f32 0.0, %v1533
        %v1535 = vpop.f32.mrf.mxu0
        %v1536 = vpop.f32.mrf.mxu0
        %v1537 = vpop.f32.mrf.mxu0
        %1538 = vdwg.mxu0
        %v1539 = vld [vmem:[#allocation20] sm:$0xff]
        %s1540 = scalar_lea.vmem [#allocation17], 4
        %v1541 = vld [vmem:[%s1540] sm:$0xf]
        %v1543 = vsel %vm1314, %v1541, 0
        %1545 = vmatprep.subr.bf16.mxu0 0
        %1546 = vmatpush1.bf16.msra.mxu0 0
        %1547 = vmatprep.subr.bf16.mxu0 0
        %1548 = vmatpush1.bf16.msra.mxu0 0
        %1549 = vmatprep.subr.bf16.mxu0 0
        %1550 = vmatpush1.bf16.msra.mxu0 0
        %1551 = vmatprep.subr.bf16.mxu0 0
        %1552 = vmatpush1.bf16.msra.mxu0 0
        %1553 = vmatprep.subr.bf16.mxu0 0
        %1554 = vmatpush1.bf16.msra.mxu0 0
        %1555 = vmatprep.subr.bf16.mxu0 0
        %1556 = vmatpush1.bf16.msra.mxu0 %v1494
        %1557 = vmatprep.subr.bf16.mxu0 0
        %1558 = vmatpush1.bf16.msra.mxu0 %v1493
        %1559 = vmatprep.subr.bf16.mxu0 0
        %1560 = vmatpush1.bf16.msra.mxu0 %v1492
        %1561 = vmatprep.subr.bf16.mxu0 0
        %1562 = vmatpush2.bf16.msra.mxu0 0
        %1563 = vmatprep.subr.bf16.mxu0 0
        %1564 = vmatpush2.bf16.msra.mxu0 0
        %1565 = vmatprep.subr.bf16.mxu0 0
        %1566 = vmatpush2.bf16.msra.mxu0 0
        %1567 = vmatprep.subr.bf16.mxu0 0
        %1568 = vmatpush2.bf16.msra.mxu0 0
        %1569 = vmatprep.subr.bf16.mxu0 0
        %1570 = vmatpush2.bf16.msra.mxu0 0
        %1571 = vmatprep.subr.bf16.mxu0 0
        %1572 = vmatpush2.bf16.msra.mxu0 0
        %1573 = vmatprep.subr.bf16.mxu0 0
        %1574 = vmatpush2.bf16.msra.mxu0 0
        %1575 = vmatprep.subr.bf16.mxu0 0
        %1576 = vmatpush2.bf16.msra.mxu0 0
        %1577 = vmatprep.mubr.bf16.mxu0 0
        %1578 = vmatmul.mubr.bf16.gmra.mxu0 %v1543
        %v1579 = vpop.f32.mrf.mxu0
        %v1580 = vadd.f32 0.0, %v1579
        %v1581 = vpop.f32.mrf.mxu0
        %v1582 = vpop.f32.mrf.mxu0
        %v1583 = vpop.f32.mrf.mxu0
        %1584 = vdwg.mxu0
        %s1585 = scalar_lea.vmem [#allocation20], 8
        %v1586 = vld [vmem:[%s1585] sm:$0xff]
        %v1588 = vsel %vm615, %v1580, 0
        %1590 = vmatprep.subr.mxu0 0.0
        %1591 = vmatpush1.msra.mxu0 0.0
        %1592 = vmatprep.subr.mxu0 0.0
        %1593 = vmatpush1.msra.mxu0 0.0
        %1594 = vmatprep.subr.mxu0 0.0
        %1595 = vmatpush1.msra.mxu0 0.0
        %1596 = vmatprep.subr.mxu0 0.0
        %1597 = vmatpush1.msra.mxu0 0.0
        %1598 = vmatprep.subr.mxu0 0.0
        %1599 = vmatpush1.msra.mxu0 0.0
        %1600 = vmatprep.subr.mxu0 0.0
        %1601 = vmatpush1.msra.mxu0 0.0
        %1602 = vmatprep.subr.mxu0 0.0
        %1603 = vmatpush1.msra.mxu0 0.0
        %1604 = vmatprep.subr.mxu0 0.0
        %1605 = vmatpush1.msra.mxu0 0.0
        %1606 = vmatprep.subr.mxu0 0.0
        %1607 = vmatpush1.msra.mxu0 0.0
        %1608 = vmatprep.subr.mxu0 0.0
        %1609 = vmatpush1.msra.mxu0 0.0
        %1610 = vmatprep.subr.mxu0 0.0
        %1611 = vmatpush1.msra.mxu0 0.0
        %1612 = vmatprep.subr.mxu0 0.0
        %1613 = vmatpush1.msra.mxu0 0.0
        %1614 = vmatprep.subr.mxu0 0.0
        %1615 = vmatpush1.msra.mxu0 0.0
        %1616 = vmatprep.subr.mxu0 0.0
        %1617 = vmatpush1.msra.mxu0 0.0
        %1618 = vmatprep.subr.mxu0 0.0
        %1619 = vmatpush1.msra.mxu0 0.0
        %1620 = vmatprep.subr.mxu0 0.0
        %1621 = vmatpush1.msra.mxu0 %v1586
        %1622 = vmatprep.subr.mxu0 0.0
        %1623 = vmatpush2.msra.mxu0 0.0
        %1624 = vmatprep.subr.mxu0 0.0
        %1625 = vmatpush2.msra.mxu0 0.0
        %1626 = vmatprep.subr.mxu0 0.0
        %1627 = vmatpush2.msra.mxu0 0.0
        %1628 = vmatprep.subr.mxu0 0.0
        %1629 = vmatpush2.msra.mxu0 0.0
        %1630 = vmatprep.subr.mxu0 0.0
        %1631 = vmatpush2.msra.mxu0 0.0
        %1632 = vmatprep.subr.mxu0 0.0
        %1633 = vmatpush2.msra.mxu0 0.0
        %1634 = vmatprep.subr.mxu0 0.0
        %1635 = vmatpush2.msra.mxu0 0.0
        %1636 = vmatprep.subr.mxu0 0.0
        %1637 = vmatpush2.msra.mxu0 0.0
        %1638 = vmatprep.subr.mxu0 0.0
        %1639 = vmatpush2.msra.mxu0 0.0
        %1640 = vmatprep.subr.mxu0 0.0
        %1641 = vmatpush2.msra.mxu0 0.0
        %1642 = vmatprep.subr.mxu0 0.0
        %1643 = vmatpush2.msra.mxu0 0.0
        %1644 = vmatprep.subr.mxu0 0.0
        %1645 = vmatpush2.msra.mxu0 0.0
        %1646 = vmatprep.subr.mxu0 0.0
        %1647 = vmatpush2.msra.mxu0 0.0
        %1648 = vmatprep.subr.mxu0 0.0
        %1649 = vmatpush2.msra.mxu0 0.0
        %1650 = vmatprep.subr.mxu0 0.0
        %1651 = vmatpush2.msra.mxu0 0.0
        %1652 = vmatprep.subr.mxu0 0.0
        %1653 = vmatpush2.msra.mxu0 0.0
        %1654 = vmatprep.mubr.f32.mxu0 0.0
        %1655 = vmatmul.mubr.f32.gmra.mxu0 %v1588
        %v1656 = vpop.f32.mrf.mxu0
        %v1657 = vadd.f32 0.0, %v1656
        %v1658 = vpop.f32.mrf.mxu0
        %1659 = vdwg.mxu0
        %v1661 = vsel %vm615, %v1534, 0
        %1663 = vmatprep.subr.mxu0 0.0
        %1664 = vmatpush1.msra.mxu0 0.0
        %1665 = vmatprep.subr.mxu0 0.0
        %1666 = vmatpush1.msra.mxu0 0.0
        %1667 = vmatprep.subr.mxu0 0.0
        %1668 = vmatpush1.msra.mxu0 0.0
        %1669 = vmatprep.subr.mxu0 0.0
        %1670 = vmatpush1.msra.mxu0 0.0
        %1671 = vmatprep.subr.mxu0 0.0
        %1672 = vmatpush1.msra.mxu0 0.0
        %1673 = vmatprep.subr.mxu0 0.0
        %1674 = vmatpush1.msra.mxu0 0.0
        %1675 = vmatprep.subr.mxu0 0.0
        %1676 = vmatpush1.msra.mxu0 0.0
        %1677 = vmatprep.subr.mxu0 0.0
        %1678 = vmatpush1.msra.mxu0 0.0
        %1679 = vmatprep.subr.mxu0 0.0
        %1680 = vmatpush1.msra.mxu0 0.0
        %1681 = vmatprep.subr.mxu0 0.0
        %1682 = vmatpush1.msra.mxu0 0.0
        %1683 = vmatprep.subr.mxu0 0.0
        %1684 = vmatpush1.msra.mxu0 0.0
        %1685 = vmatprep.subr.mxu0 0.0
        %1686 = vmatpush1.msra.mxu0 0.0
        %1687 = vmatprep.subr.mxu0 0.0
        %1688 = vmatpush1.msra.mxu0 0.0
        %1689 = vmatprep.subr.mxu0 0.0
        %1690 = vmatpush1.msra.mxu0 0.0
        %1691 = vmatprep.subr.mxu0 0.0
        %1692 = vmatpush1.msra.mxu0 0.0
        %1693 = vmatprep.subr.mxu0 0.0
        %1694 = vmatpush1.msra.mxu0 %v1539
        %1695 = vmatprep.subr.mxu0 0.0
        %1696 = vmatpush2.msra.mxu0 0.0
        %1697 = vmatprep.subr.mxu0 0.0
        %1698 = vmatpush2.msra.mxu0 0.0
        %1699 = vmatprep.subr.mxu0 0.0
        %1700 = vmatpush2.msra.mxu0 0.0
        %1701 = vmatprep.subr.mxu0 0.0
        %1702 = vmatpush2.msra.mxu0 0.0
        %1703 = vmatprep.subr.mxu0 0.0
        %1704 = vmatpush2.msra.mxu0 0.0
        %1705 = vmatprep.subr.mxu0 0.0
        %1706 = vmatpush2.msra.mxu0 0.0
        %1707 = vmatprep.subr.mxu0 0.0
        %1708 = vmatpush2.msra.mxu0 0.0
        %1709 = vmatprep.subr.mxu0 0.0
        %1710 = vmatpush2.msra.mxu0 0.0
        %1711 = vmatprep.subr.mxu0 0.0
        %1712 = vmatpush2.msra.mxu0 0.0
        %1713 = vmatprep.subr.mxu0 0.0
        %1714 = vmatpush2.msra.mxu0 0.0
        %1715 = vmatprep.subr.mxu0 0.0
        %1716 = vmatpush2.msra.mxu0 0.0
        %1717 = vmatprep.subr.mxu0 0.0
        %1718 = vmatpush2.msra.mxu0 0.0
        %1719 = vmatprep.subr.mxu0 0.0
        %1720 = vmatpush2.msra.mxu0 0.0
        %1721 = vmatprep.subr.mxu0 0.0
        %1722 = vmatpush2.msra.mxu0 0.0
        %1723 = vmatprep.subr.mxu0 0.0
        %1724 = vmatpush2.msra.mxu0 0.0
        %1725 = vmatprep.subr.mxu0 0.0
        %1726 = vmatpush2.msra.mxu0 0.0
        %1727 = vmatprep.mubr.f32.mxu0 0.0
        %1728 = vmatmul.mubr.f32.gmra.mxu0 %v1661
        %v1729 = vpop.f32.mrf.mxu0
        %v1730 = vadd.f32 %v1657, %v1729
        %v1731 = vpop.f32.mrf.mxu0
        %1732 = vdwg.mxu0
        %v1733 = vld [vmem:[#allocation19] sm:$0xff]
        %1735 = vset.pattern.permute.xlu0 0
        %1736 = vperm.xlu0 %1735, %v1733
        %v1737 = vpop.permute.xlu0 %1736
        %v1739 = vadd.f32 %v1730, %v1737
        %vm1740 = vcmp.gt.f32.partialorder %v1739, 0.0
        %v1741 = vmul.f32 %v1739, 0.1
        %v1742 = vsel %vm1740, %v1739, %v1741
        %v1743 = vld [vmem:[%s6] sm:$0xf]
        %v1744 = vld [vmem:[#allocation22] sm:$0xff]
        %1746 = vrot.lane.b32.xlu0 %v1742, 10
        %v1747 = vpop.permute.xlu0 %1746
        %vm1749 = vcmask 212048
        %1750 = vst.msk [vmem:[#allocation6] sm:$0xff] %vm1749, %v1747
        %v1751 = vld [vmem:[#allocation6] sm:$0xff]
        %1753 = vrot.lane.b32.xlu0 %v1751, 119
        %v1754 = vpop.permute.xlu0 %1753
        %1756 = vst.msk [vmem:[#allocation7] sm:$0xff] %vm697, %v1754
        %v1757 = vld [vmem:[#allocation6] sm:$0xff]
        %1759 = vrot.lane.b32.xlu0 %v1757, 118
        %v1760 = vpop.permute.xlu0 %1759
        %1762 = vst.msk [vmem:[#allocation7 + $0x8] sm:$0xff] %vm697, %v1760
        %v1763 = vld [vmem:[#allocation6] sm:$0xff]
        %1765 = vrot.lane.b32.xlu0 %v1763, 117
        %v1766 = vpop.permute.xlu0 %1765
        %1768 = vst.msk [vmem:[#allocation7 + $0x10] sm:$0xff] %vm697, %v1766
        %v1769 = vld [vmem:[#allocation7] sm:$0xff]
        %v1770 = vld [vmem:[#allocation7 + $0x8] sm:$0xff]
        %v1771 = vld [vmem:[#allocation7 + $0x10] sm:$0xff]
        %v1772 = vld [vmem:[#allocation7 + $0x18] sm:$0xff]
        %v1773 = vld [vmem:[#allocation7 + $0x20] sm:$0xff]
        %v1774 = vpack.c.bf16 %v1770, %v1769
        %v1775 = vpack.c.bf16 %v1772, %v1771
        %v1776 = vpack.c.bf16 %v1773, %v1773
        %1778 = vset.pattern.permute.xlu0 0
        %1779 = vperm.xlu0 %1778, %v1744
        %v1780 = vpop.permute.xlu0 %1779
        %vm1782 = vcmask 326656
        %v1784 = vsel %vm1782, %v1743, 0
        %vm1786 = vcmask 1043456
        %v1788 = vsel %vm1786, %v1776, 0
        %1790 = vmatprep.subr.bf16.mxu0 0
        %1791 = vmatpush1.bf16.msra.mxu0 0
        %1792 = vmatprep.subr.bf16.mxu0 0
        %1793 = vmatpush1.bf16.msra.mxu0 0
        %1794 = vmatprep.subr.bf16.mxu0 0
        %1795 = vmatpush1.bf16.msra.mxu0 0
        %1796 = vmatprep.subr.bf16.mxu0 0
        %1797 = vmatpush1.bf16.msra.mxu0 0
        %1798 = vmatprep.subr.bf16.mxu0 0
        %1799 = vmatpush1.bf16.msra.mxu0 0
        %1800 = vmatprep.subr.bf16.mxu0 0
        %1801 = vmatpush1.bf16.msra.mxu0 %v1788
        %1802 = vmatprep.subr.bf16.mxu0 0
        %1803 = vmatpush1.bf16.msra.mxu0 %v1775
        %1804 = vmatprep.subr.bf16.mxu0 0
        %1805 = vmatpush1.bf16.msra.mxu0 %v1774
        %1806 = vmatprep.subr.bf16.mxu0 0
        %1807 = vmatpush2.bf16.msra.mxu0 0
        %1808 = vmatprep.subr.bf16.mxu0 0
        %1809 = vmatpush2.bf16.msra.mxu0 0
        %1810 = vmatprep.subr.bf16.mxu0 0
        %1811 = vmatpush2.bf16.msra.mxu0 0
        %1812 = vmatprep.subr.bf16.mxu0 0
        %1813 = vmatpush2.bf16.msra.mxu0 0
        %1814 = vmatprep.subr.bf16.mxu0 0
        %1815 = vmatpush2.bf16.msra.mxu0 0
        %1816 = vmatprep.subr.bf16.mxu0 0
        %1817 = vmatpush2.bf16.msra.mxu0 0
        %1818 = vmatprep.subr.bf16.mxu0 0
        %1819 = vmatpush2.bf16.msra.mxu0 0
        %1820 = vmatprep.subr.bf16.mxu0 0
        %1821 = vmatpush2.bf16.msra.mxu0 0
        %1822 = vmatprep.mubr.bf16.mxu0 0
        %1823 = vmatmul.mubr.bf16.gmra.mxu0 %v1784
        %v1824 = vpop.f32.mrf.mxu0
        %v1825 = vadd.f32 %v1780, %v1824
        %v1826 = vpop.f32.mrf.mxu0
        %v1827 = vpop.f32.mrf.mxu0
        %v1828 = vpop.f32.mrf.mxu0
        %1829 = vdwg.mxu0
        %vm1830 = vcmp.gt.f32.partialorder %v1825, 0.0
        %v1831 = vmul.f32 %v1825, 0.1
        %v1832 = vsel %vm1830, %v1825, %v1831
        %s1833 = scalar_lea.vmem %s6, 4
        %v1834 = vld [vmem:[%s1833] sm:$0xf]
        %v1835 = vld [vmem:[#allocation22] sm:$0xff]
        %1837 = vrot.lane.b32.xlu0 %v1832, 10
        %v1838 = vpop.permute.xlu0 %1837
        %1840 = vst.msk [vmem:[#allocation6] sm:$0xff] %vm1749, %v1838
        %v1841 = vld [vmem:[#allocation6] sm:$0xff]
        %1843 = vrot.lane.b32.xlu0 %v1841, 119
        %v1844 = vpop.permute.xlu0 %1843
        %1846 = vst.msk [vmem:[#allocation7] sm:$0xff] %vm697, %v1844
        %v1847 = vld [vmem:[#allocation6] sm:$0xff]
        %1849 = vrot.lane.b32.xlu0 %v1847, 118
        %v1850 = vpop.permute.xlu0 %1849
        %1852 = vst.msk [vmem:[#allocation7 + $0x8] sm:$0xff] %vm697, %v1850
        %v1853 = vld [vmem:[#allocation6] sm:$0xff]
        %1855 = vrot.lane.b32.xlu0 %v1853, 117
        %v1856 = vpop.permute.xlu0 %1855
        %1858 = vst.msk [vmem:[#allocation7 + $0x10] sm:$0xff] %vm697, %v1856
        %v1859 = vld [vmem:[#allocation7] sm:$0xff]
        %v1860 = vld [vmem:[#allocation7 + $0x8] sm:$0xff]
        %v1861 = vld [vmem:[#allocation7 + $0x10] sm:$0xff]
        %v1862 = vld [vmem:[#allocation7 + $0x18] sm:$0xff]
        %v1863 = vld [vmem:[#allocation7 + $0x20] sm:$0xff]
        %v1864 = vpack.c.bf16 %v1860, %v1859
        %v1865 = vpack.c.bf16 %v1862, %v1861
        %v1866 = vpack.c.bf16 %v1863, %v1863
        %1868 = vset.pattern.permute.xlu0 1
        %1869 = vperm.xlu0 %1868, %v1835
        %v1870 = vpop.permute.xlu0 %1869
        %v1873 = vsel %vm1782, %v1834, 0
        %v1876 = vsel %vm1786, %v1866, 0
        %1878 = vmatprep.subr.bf16.mxu0 0
        %1879 = vmatpush1.bf16.msra.mxu0 0
        %1880 = vmatprep.subr.bf16.mxu0 0
        %1881 = vmatpush1.bf16.msra.mxu0 0
        %1882 = vmatprep.subr.bf16.mxu0 0
        %1883 = vmatpush1.bf16.msra.mxu0 0
        %1884 = vmatprep.subr.bf16.mxu0 0
        %1885 = vmatpush1.bf16.msra.mxu0 0
        %1886 = vmatprep.subr.bf16.mxu0 0
        %1887 = vmatpush1.bf16.msra.mxu0 0
        %1888 = vmatprep.subr.bf16.mxu0 0
        %1889 = vmatpush1.bf16.msra.mxu0 %v1876
        %1890 = vmatprep.subr.bf16.mxu0 0
        %1891 = vmatpush1.bf16.msra.mxu0 %v1865
        %1892 = vmatprep.subr.bf16.mxu0 0
        %1893 = vmatpush1.bf16.msra.mxu0 %v1864
        %1894 = vmatprep.subr.bf16.mxu0 0
        %1895 = vmatpush2.bf16.msra.mxu0 0
        %1896 = vmatprep.subr.bf16.mxu0 0
        %1897 = vmatpush2.bf16.msra.mxu0 0
        %1898 = vmatprep.subr.bf16.mxu0 0
        %1899 = vmatpush2.bf16.msra.mxu0 0
        %1900 = vmatprep.subr.bf16.mxu0 0
        %1901 = vmatpush2.bf16.msra.mxu0 0
        %1902 = vmatprep.subr.bf16.mxu0 0
        %1903 = vmatpush2.bf16.msra.mxu0 0
        %1904 = vmatprep.subr.bf16.mxu0 0
        %1905 = vmatpush2.bf16.msra.mxu0 0
        %1906 = vmatprep.subr.bf16.mxu0 0
        %1907 = vmatpush2.bf16.msra.mxu0 0
        %1908 = vmatprep.subr.bf16.mxu0 0
        %1909 = vmatpush2.bf16.msra.mxu0 0
        %1910 = vmatprep.mubr.bf16.mxu0 0
        %1911 = vmatmul.mubr.bf16.gmra.mxu0 %v1873
        %v1912 = vpop.f32.mrf.mxu0
        %v1913 = vadd.f32 %v1870, %v1912
        %v1914 = vpop.f32.mrf.mxu0
        %v1915 = vpop.f32.mrf.mxu0
        %v1916 = vpop.f32.mrf.mxu0
        %1917 = vdwg.mxu0
        %v1918 = vadd.f32 %v1913, %v1739
        %vm1919 = vcmp.gt.f32.partialorder %v1918, 0.0
        %v1920 = vmul.f32 %v1918, 0.1
        %v1921 = vsel %vm1919, %v1918, %v1920
        %s1922 = scalar_lea.vmem %s6, 8
        %v1923 = vld [vmem:[%s1922] sm:$0xf]
        %v1924 = vld [vmem:[#allocation22] sm:$0xff]
        %1926 = vrot.lane.b32.xlu0 %v1921, 10
        %v1927 = vpop.permute.xlu0 %1926
        %1929 = vst.msk [vmem:[#allocation6] sm:$0xff] %vm1749, %v1927
        %v1930 = vld [vmem:[#allocation6] sm:$0xff]
        %1932 = vrot.lane.b32.xlu0 %v1930, 121
        %v1933 = vpop.permute.xlu0 %1932
        %1935 = vst.msk [vmem:[#allocation7] sm:$0xff] %vm697, %v1933
        %v1936 = vld [vmem:[#allocation6] sm:$0xff]
        %1938 = vrot.lane.b32.xlu0 %v1936, 118
        %v1939 = vpop.permute.xlu0 %1938
        %1941 = vst.msk [vmem:[#allocation7 + $0x8] sm:$0xff] %vm697, %v1939
        %v1942 = vld [vmem:[#allocation6] sm:$0xff]
        %1944 = vrot.lane.b32.xlu0 %v1942, 115
        %v1945 = vpop.permute.xlu0 %1944
        %1947 = vst.msk [vmem:[#allocation7 + $0x10] sm:$0xff] %vm697, %v1945
        %v1948 = vld [vmem:[#allocation7] sm:$0xff]
        %v1949 = vld [vmem:[#allocation7 + $0x8] sm:$0xff]
        %v1950 = vld [vmem:[#allocation7 + $0x10] sm:$0xff]
        %v1951 = vld [vmem:[#allocation7 + $0x18] sm:$0xff]
        %v1952 = vld [vmem:[#allocation7 + $0x20] sm:$0xff]
        %v1953 = vpack.c.bf16 %v1949, %v1948
        %v1954 = vpack.c.bf16 %v1951, %v1950
        %v1955 = vpack.c.bf16 %v1952, %v1952
        %1957 = vset.pattern.permute.xlu0 2
        %1958 = vperm.xlu0 %1957, %v1924
        %v1959 = vpop.permute.xlu0 %1958
        %v1962 = vsel %vm1782, %v1923, 0
        %v1965 = vsel %vm1786, %v1955, 0
        %1967 = vmatprep.subr.bf16.mxu0 0
        %1968 = vmatpush1.bf16.msra.mxu0 0
        %1969 = vmatprep.subr.bf16.mxu0 0
        %1970 = vmatpush1.bf16.msra.mxu0 0
        %1971 = vmatprep.subr.bf16.mxu0 0
        %1972 = vmatpush1.bf16.msra.mxu0 0
        %1973 = vmatprep.subr.bf16.mxu0 0
        %1974 = vmatpush1.bf16.msra.mxu0 0
        %1975 = vmatprep.subr.bf16.mxu0 0
        %1976 = vmatpush1.bf16.msra.mxu0 0
        %1977 = vmatprep.subr.bf16.mxu0 0
        %1978 = vmatpush1.bf16.msra.mxu0 %v1965
        %1979 = vmatprep.subr.bf16.mxu0 0
        %1980 = vmatpush1.bf16.msra.mxu0 %v1954
        %1981 = vmatprep.subr.bf16.mxu0 0
        %1982 = vmatpush1.bf16.msra.mxu0 %v1953
        %1983 = vmatprep.subr.bf16.mxu0 0
        %1984 = vmatpush2.bf16.msra.mxu0 0
        %1985 = vmatprep.subr.bf16.mxu0 0
        %1986 = vmatpush2.bf16.msra.mxu0 0
        %1987 = vmatprep.subr.bf16.mxu0 0
        %1988 = vmatpush2.bf16.msra.mxu0 0
        %1989 = vmatprep.subr.bf16.mxu0 0
        %1990 = vmatpush2.bf16.msra.mxu0 0
        %1991 = vmatprep.subr.bf16.mxu0 0
        %1992 = vmatpush2.bf16.msra.mxu0 0
        %1993 = vmatprep.subr.bf16.mxu0 0
        %1994 = vmatpush2.bf16.msra.mxu0 0
        %1995 = vmatprep.subr.bf16.mxu0 0
        %1996 = vmatpush2.bf16.msra.mxu0 0
        %1997 = vmatprep.subr.bf16.mxu0 0
        %1998 = vmatpush2.bf16.msra.mxu0 0
        %1999 = vmatprep.mubr.bf16.mxu0 0
        %2000 = vmatmul.mubr.bf16.gmra.mxu0 %v1962
        %v2001 = vpop.f32.mrf.mxu0
        %v2002 = vadd.f32 %v1959, %v2001
        %v2003 = vpop.f32.mrf.mxu0
        %v2004 = vpop.f32.mrf.mxu0
        %v2005 = vpop.f32.mrf.mxu0
        %2006 = vdwg.mxu0
        %vm2007 = vcmp.gt.f32.partialorder %v2002, 0.0
        %v2008 = vmul.f32 %v2002, 0.1
        %v2009 = vsel %vm2007, %v2002, %v2008
        %s2010 = scalar_lea.vmem %s6, 12
        %v2011 = vld [vmem:[%s2010] sm:$0xf]
        %v2012 = vld [vmem:[#allocation22] sm:$0xff]
        %2014 = vrot.lane.b32.xlu0 %v2009, 10
        %v2015 = vpop.permute.xlu0 %2014
        %2017 = vst.msk [vmem:[#allocation6] sm:$0xff] %vm1749, %v2015
        %v2018 = vld [vmem:[#allocation6] sm:$0xff]
        %2020 = vrot.lane.b32.xlu0 %v2018, 119
        %v2021 = vpop.permute.xlu0 %2020
        %2023 = vst.msk [vmem:[#allocation7] sm:$0xff] %vm697, %v2021
        %v2024 = vld [vmem:[#allocation6] sm:$0xff]
        %2026 = vrot.lane.b32.xlu0 %v2024, 118
        %v2027 = vpop.permute.xlu0 %2026
        %2029 = vst.msk [vmem:[#allocation7 + $0x8] sm:$0xff] %vm697, %v2027
        %v2030 = vld [vmem:[#allocation6] sm:$0xff]
        %2032 = vrot.lane.b32.xlu0 %v2030, 117
        %v2033 = vpop.permute.xlu0 %2032
        %2035 = vst.msk [vmem:[#allocation7 + $0x10] sm:$0xff] %vm697, %v2033
        %v2036 = vld [vmem:[#allocation7] sm:$0xff]
        %v2037 = vld [vmem:[#allocation7 + $0x8] sm:$0xff]
        %v2038 = vld [vmem:[#allocation7 + $0x10] sm:$0xff]
        %v2039 = vld [vmem:[#allocation7 + $0x18] sm:$0xff]
        %v2040 = vld [vmem:[#allocation7 + $0x20] sm:$0xff]
        %v2041 = vpack.c.bf16 %v2037, %v2036
        %v2042 = vpack.c.bf16 %v2039, %v2038
        %v2043 = vpack.c.bf16 %v2040, %v2040
        %2045 = vset.pattern.permute.xlu0 3
        %2046 = vperm.xlu0 %2045, %v2012
        %v2047 = vpop.permute.xlu0 %2046
        %v2050 = vsel %vm1782, %v2011, 0
        %v2053 = vsel %vm1786, %v2043, 0
        %2055 = vmatprep.subr.bf16.mxu0 0
        %2056 = vmatpush1.bf16.msra.mxu0 0
        %2057 = vmatprep.subr.bf16.mxu0 0
        %2058 = vmatpush1.bf16.msra.mxu0 0
        %2059 = vmatprep.subr.bf16.mxu0 0
        %2060 = vmatpush1.bf16.msra.mxu0 0
        %2061 = vmatprep.subr.bf16.mxu0 0
        %2062 = vmatpush1.bf16.msra.mxu0 0
        %2063 = vmatprep.subr.bf16.mxu0 0
        %2064 = vmatpush1.bf16.msra.mxu0 0
        %2065 = vmatprep.subr.bf16.mxu0 0
        %2066 = vmatpush1.bf16.msra.mxu0 %v2053
        %2067 = vmatprep.subr.bf16.mxu0 0
        %2068 = vmatpush1.bf16.msra.mxu0 %v2042
        %2069 = vmatprep.subr.bf16.mxu0 0
        %2070 = vmatpush1.bf16.msra.mxu0 %v2041
        %2071 = vmatprep.subr.bf16.mxu0 0
        %2072 = vmatpush2.bf16.msra.mxu0 0
        %2073 = vmatprep.subr.bf16.mxu0 0
        %2074 = vmatpush2.bf16.msra.mxu0 0
        %2075 = vmatprep.subr.bf16.mxu0 0
        %2076 = vmatpush2.bf16.msra.mxu0 0
        %2077 = vmatprep.subr.bf16.mxu0 0
        %2078 = vmatpush2.bf16.msra.mxu0 0
        %2079 = vmatprep.subr.bf16.mxu0 0
        %2080 = vmatpush2.bf16.msra.mxu0 0
        %2081 = vmatprep.subr.bf16.mxu0 0
        %2082 = vmatpush2.bf16.msra.mxu0 0
        %2083 = vmatprep.subr.bf16.mxu0 0
        %2084 = vmatpush2.bf16.msra.mxu0 0
        %2085 = vmatprep.subr.bf16.mxu0 0
        %2086 = vmatpush2.bf16.msra.mxu0 0
        %2087 = vmatprep.mubr.bf16.mxu0 0
        %2088 = vmatmul.mubr.bf16.gmra.mxu0 %v2050
        %v2089 = vpop.f32.mrf.mxu0
        %v2090 = vadd.f32 %v2047, %v2089
        %v2091 = vpop.f32.mrf.mxu0
        %v2092 = vpop.f32.mrf.mxu0
        %v2093 = vpop.f32.mrf.mxu0
        %2094 = vdwg.mxu0
        %v2095 = vadd.f32 %v2090, %v1918
        %vm2096 = vcmp.gt.f32.partialorder %v2095, 0.0
        %v2097 = vmul.f32 %v2095, 0.1
        %v2098 = vsel %vm2096, %v2095, %v2097
        %s2099 = scalar_lea.vmem %s6, 16
        %v2100 = vld [vmem:[%s2099] sm:$0xf]
        %v2101 = vld [vmem:[#allocation22] sm:$0xff]
        %2103 = vrot.lane.b32.xlu0 %v2098, 10
        %v2104 = vpop.permute.xlu0 %2103
        %2106 = vst.msk [vmem:[#allocation6] sm:$0xff] %vm1749, %v2104
        %v2107 = vld [vmem:[#allocation6] sm:$0xff]
        %2109 = vrot.lane.b32.xlu0 %v2107, 123
        %v2110 = vpop.permute.xlu0 %2109
        %2112 = vst.msk [vmem:[#allocation7] sm:$0xff] %vm697, %v2110
        %v2113 = vld [vmem:[#allocation6] sm:$0xff]
        %2115 = vrot.lane.b32.xlu0 %v2113, 118
        %v2116 = vpop.permute.xlu0 %2115
        %2118 = vst.msk [vmem:[#allocation7 + $0x8] sm:$0xff] %vm697, %v2116
        %v2119 = vld [vmem:[#allocation6] sm:$0xff]
        %2121 = vrot.lane.b32.xlu0 %v2119, 113
        %v2122 = vpop.permute.xlu0 %2121
        %2124 = vst.msk [vmem:[#allocation7 + $0x10] sm:$0xff] %vm697, %v2122
        %v2125 = vld [vmem:[#allocation7] sm:$0xff]
        %v2126 = vld [vmem:[#allocation7 + $0x8] sm:$0xff]
        %v2127 = vld [vmem:[#allocation7 + $0x10] sm:$0xff]
        %v2128 = vld [vmem:[#allocation7 + $0x18] sm:$0xff]
        %v2129 = vld [vmem:[#allocation7 + $0x20] sm:$0xff]
        %v2130 = vpack.c.bf16 %v2126, %v2125
        %v2131 = vpack.c.bf16 %v2128, %v2127
        %v2132 = vpack.c.bf16 %v2129, %v2129
        %2134 = vset.pattern.permute.xlu0 4
        %2135 = vperm.xlu0 %2134, %v2101
        %v2136 = vpop.permute.xlu0 %2135
        %v2139 = vsel %vm1782, %v2100, 0
        %v2142 = vsel %vm1786, %v2132, 0
        %2144 = vmatprep.subr.bf16.mxu0 0
        %2145 = vmatpush1.bf16.msra.mxu0 0
        %2146 = vmatprep.subr.bf16.mxu0 0
        %2147 = vmatpush1.bf16.msra.mxu0 0
        %2148 = vmatprep.subr.bf16.mxu0 0
        %2149 = vmatpush1.bf16.msra.mxu0 0
        %2150 = vmatprep.subr.bf16.mxu0 0
        %2151 = vmatpush1.bf16.msra.mxu0 0
        %2152 = vmatprep.subr.bf16.mxu0 0
        %2153 = vmatpush1.bf16.msra.mxu0 0
        %2154 = vmatprep.subr.bf16.mxu0 0
        %2155 = vmatpush1.bf16.msra.mxu0 %v2142
        %2156 = vmatprep.subr.bf16.mxu0 0
        %2157 = vmatpush1.bf16.msra.mxu0 %v2131
        %2158 = vmatprep.subr.bf16.mxu0 0
        %2159 = vmatpush1.bf16.msra.mxu0 %v2130
        %2160 = vmatprep.subr.bf16.mxu0 0
        %2161 = vmatpush2.bf16.msra.mxu0 0
        %2162 = vmatprep.subr.bf16.mxu0 0
        %2163 = vmatpush2.bf16.msra.mxu0 0
        %2164 = vmatprep.subr.bf16.mxu0 0
        %2165 = vmatpush2.bf16.msra.mxu0 0
        %2166 = vmatprep.subr.bf16.mxu0 0
        %2167 = vmatpush2.bf16.msra.mxu0 0
        %2168 = vmatprep.subr.bf16.mxu0 0
        %2169 = vmatpush2.bf16.msra.mxu0 0
        %2170 = vmatprep.subr.bf16.mxu0 0
        %2171 = vmatpush2.bf16.msra.mxu0 0
        %2172 = vmatprep.subr.bf16.mxu0 0
        %2173 = vmatpush2.bf16.msra.mxu0 0
        %2174 = vmatprep.subr.bf16.mxu0 0
        %2175 = vmatpush2.bf16.msra.mxu0 0
        %2176 = vmatprep.mubr.bf16.mxu0 0
        %2177 = vmatmul.mubr.bf16.gmra.mxu0 %v2139
        %v2178 = vpop.f32.mrf.mxu0
        %v2179 = vadd.f32 %v2136, %v2178
        %v2180 = vpop.f32.mrf.mxu0
        %v2181 = vpop.f32.mrf.mxu0
        %v2182 = vpop.f32.mrf.mxu0
        %2183 = vdwg.mxu0
        %vm2184 = vcmp.gt.f32.partialorder %v2179, 0.0
        %v2185 = vmul.f32 %v2179, 0.1
        %v2186 = vsel %vm2184, %v2179, %v2185
        %s2187 = scalar_lea.vmem %s6, 20
        %v2188 = vld [vmem:[%s2187] sm:$0xf]
        %v2189 = vld [vmem:[#allocation22] sm:$0xff]
        %2191 = vrot.lane.b32.xlu0 %v2186, 10
        %v2192 = vpop.permute.xlu0 %2191
        %2194 = vst.msk [vmem:[#allocation6] sm:$0xff] %vm1749, %v2192
        %v2195 = vld [vmem:[#allocation6] sm:$0xff]
        %2197 = vrot.lane.b32.xlu0 %v2195, 119
        %v2198 = vpop.permute.xlu0 %2197
        %2200 = vst.msk [vmem:[#allocation7] sm:$0xff] %vm697, %v2198
        %v2201 = vld [vmem:[#allocation6] sm:$0xff]
        %2203 = vrot.lane.b32.xlu0 %v2201, 118
        %v2204 = vpop.permute.xlu0 %2203
        %2206 = vst.msk [vmem:[#allocation7 + $0x8] sm:$0xff] %vm697, %v2204
        %v2207 = vld [vmem:[#allocation6] sm:$0xff]
        %2209 = vrot.lane.b32.xlu0 %v2207, 117
        %v2210 = vpop.permute.xlu0 %2209
        %2212 = vst.msk [vmem:[#allocation7 + $0x10] sm:$0xff] %vm697, %v2210
        %v2213 = vld [vmem:[#allocation7] sm:$0xff]
        %v2214 = vld [vmem:[#allocation7 + $0x8] sm:$0xff]
        %v2215 = vld [vmem:[#allocation7 + $0x10] sm:$0xff]
        %v2216 = vld [vmem:[#allocation7 + $0x18] sm:$0xff]
        %v2217 = vld [vmem:[#allocation7 + $0x20] sm:$0xff]
        %v2218 = vpack.c.bf16 %v2214, %v2213
        %v2219 = vpack.c.bf16 %v2216, %v2215
        %v2220 = vpack.c.bf16 %v2217, %v2217
        %2222 = vset.pattern.permute.xlu0 5
        %2223 = vperm.xlu0 %2222, %v2189
        %v2224 = vpop.permute.xlu0 %2223
        %v2227 = vsel %vm1782, %v2188, 0
        %v2230 = vsel %vm1786, %v2220, 0
        %2232 = vmatprep.subr.bf16.mxu0 0
        %2233 = vmatpush1.bf16.msra.mxu0 0
        %2234 = vmatprep.subr.bf16.mxu0 0
        %2235 = vmatpush1.bf16.msra.mxu0 0
        %2236 = vmatprep.subr.bf16.mxu0 0
        %2237 = vmatpush1.bf16.msra.mxu0 0
        %2238 = vmatprep.subr.bf16.mxu0 0
        %2239 = vmatpush1.bf16.msra.mxu0 0
        %2240 = vmatprep.subr.bf16.mxu0 0
        %2241 = vmatpush1.bf16.msra.mxu0 0
        %2242 = vmatprep.subr.bf16.mxu0 0
        %2243 = vmatpush1.bf16.msra.mxu0 %v2230
        %2244 = vmatprep.subr.bf16.mxu0 0
        %2245 = vmatpush1.bf16.msra.mxu0 %v2219
        %2246 = vmatprep.subr.bf16.mxu0 0
        %2247 = vmatpush1.bf16.msra.mxu0 %v2218
        %2248 = vmatprep.subr.bf16.mxu0 0
        %2249 = vmatpush2.bf16.msra.mxu0 0
        %2250 = vmatprep.subr.bf16.mxu0 0
        %2251 = vmatpush2.bf16.msra.mxu0 0
        %2252 = vmatprep.subr.bf16.mxu0 0
        %2253 = vmatpush2.bf16.msra.mxu0 0
        %2254 = vmatprep.subr.bf16.mxu0 0
        %2255 = vmatpush2.bf16.msra.mxu0 0
        %2256 = vmatprep.subr.bf16.mxu0 0
        %2257 = vmatpush2.bf16.msra.mxu0 0
        %2258 = vmatprep.subr.bf16.mxu0 0
        %2259 = vmatpush2.bf16.msra.mxu0 0
        %2260 = vmatprep.subr.bf16.mxu0 0
        %2261 = vmatpush2.bf16.msra.mxu0 0
        %2262 = vmatprep.subr.bf16.mxu0 0
        %2263 = vmatpush2.bf16.msra.mxu0 0
        %2264 = vmatprep.mubr.bf16.mxu0 0
        %2265 = vmatmul.mubr.bf16.gmra.mxu0 %v2227
        %v2266 = vpop.f32.mrf.mxu0
        %v2267 = vadd.f32 %v2224, %v2266
        %v2268 = vpop.f32.mrf.mxu0
        %v2269 = vpop.f32.mrf.mxu0
        %v2270 = vpop.f32.mrf.mxu0
        %2271 = vdwg.mxu0
        %v2272 = vadd.f32 %v2267, %v2095
        %s2273 = scalar_lea.vmem %s6, 24
        %v2274 = vld [vmem:[%s2273] sm:$0xf]
        %v2275 = vld [vmem:[#allocation22] sm:$0xff]
        %2276 = vst.msk [vmem:[#allocation6] sm:$0xff] %vm1749, %v1747
        %v2277 = vld [vmem:[#allocation6] sm:$0xff]
        %2279 = vrot.lane.b32.xlu0 %v2277, 120
        %v2280 = vpop.permute.xlu0 %2279
        %2282 = vst.msk [vmem:[#allocation7] sm:$0xff] %vm697, %v2280
        %v2283 = vld [vmem:[#allocation6] sm:$0xff]
        %2285 = vrot.lane.b32.xlu0 %v2283, 119
        %v2286 = vpop.permute.xlu0 %2285
        %2288 = vst.msk [vmem:[#allocation7 + $0x8] sm:$0xff] %vm697, %v2286
        %v2289 = vld [vmem:[#allocation6] sm:$0xff]
        %2291 = vrot.lane.b32.xlu0 %v2289, 118
        %v2292 = vpop.permute.xlu0 %2291
        %2294 = vst.msk [vmem:[#allocation7 + $0x10] sm:$0xff] %vm697, %v2292
        %v2295 = vld [vmem:[#allocation6] sm:$0xff]
        %2297 = vrot.lane.b32.xlu0 %v2295, 117
        %v2298 = vpop.permute.xlu0 %2297
        %2300 = vst.msk [vmem:[#allocation7 + $0x18] sm:$0xff] %vm697, %v2298
        %v2301 = vld [vmem:[#allocation6] sm:$0xff]
        %2303 = vrot.lane.b32.xlu0 %v2301, 116
        %v2304 = vpop.permute.xlu0 %2303
        %2306 = vst.msk [vmem:[#allocation7 + $0x20] sm:$0xff] %vm697, %v2304
        %v2307 = vld [vmem:[#allocation7] sm:$0xff]
        %v2308 = vld [vmem:[#allocation7 + $0x8] sm:$0xff]
        %v2309 = vld [vmem:[#allocation7 + $0x10] sm:$0xff]
        %v2310 = vld [vmem:[#allocation7 + $0x18] sm:$0xff]
        %v2311 = vld [vmem:[#allocation7 + $0x20] sm:$0xff]
        %v2312 = vpack.c.bf16 %v2308, %v2307
        %v2313 = vpack.c.bf16 %v2310, %v2309
        %v2314 = vpack.c.bf16 %v2311, %v2311
        %2316 = vset.pattern.permute.xlu0 6
        %2317 = vperm.xlu0 %2316, %v2275
        %v2318 = vpop.permute.xlu0 %2317
        %v2321 = vsel %vm1782, %v2274, 0
        %v2324 = vsel %vm1786, %v2314, 0
        %2326 = vmatprep.subr.bf16.mxu0 0
        %2327 = vmatpush1.bf16.msra.mxu0 0
        %2328 = vmatprep.subr.bf16.mxu0 0
        %2329 = vmatpush1.bf16.msra.mxu0 0
        %2330 = vmatprep.subr.bf16.mxu0 0
        %2331 = vmatpush1.bf16.msra.mxu0 0
        %2332 = vmatprep.subr.bf16.mxu0 0
        %2333 = vmatpush1.bf16.msra.mxu0 0
        %2334 = vmatprep.subr.bf16.mxu0 0
        %2335 = vmatpush1.bf16.msra.mxu0 0
        %2336 = vmatprep.subr.bf16.mxu0 0
        %2337 = vmatpush1.bf16.msra.mxu0 %v2324
        %2338 = vmatprep.subr.bf16.mxu0 0
        %2339 = vmatpush1.bf16.msra.mxu0 %v2313
        %2340 = vmatprep.subr.bf16.mxu0 0
        %2341 = vmatpush1.bf16.msra.mxu0 %v2312
        %2342 = vmatprep.subr.bf16.mxu0 0
        %2343 = vmatpush2.bf16.msra.mxu0 0
        %2344 = vmatprep.subr.bf16.mxu0 0
        %2345 = vmatpush2.bf16.msra.mxu0 0
        %2346 = vmatprep.subr.bf16.mxu0 0
        %2347 = vmatpush2.bf16.msra.mxu0 0
        %2348 = vmatprep.subr.bf16.mxu0 0
        %2349 = vmatpush2.bf16.msra.mxu0 0
        %2350 = vmatprep.subr.bf16.mxu0 0
        %2351 = vmatpush2.bf16.msra.mxu0 0
        %2352 = vmatprep.subr.bf16.mxu0 0
        %2353 = vmatpush2.bf16.msra.mxu0 0
        %2354 = vmatprep.subr.bf16.mxu0 0
        %2355 = vmatpush2.bf16.msra.mxu0 0
        %2356 = vmatprep.subr.bf16.mxu0 0
        %2357 = vmatpush2.bf16.msra.mxu0 0
        %2358 = vmatprep.mubr.bf16.mxu0 0
        %2359 = vmatmul.mubr.bf16.gmra.mxu0 %v2321
        %v2360 = vpop.f32.mrf.mxu0
        %v2361 = vadd.f32 %v2318, %v2360
        %v2362 = vpop.f32.mrf.mxu0
        %v2363 = vpop.f32.mrf.mxu0
        %v2364 = vpop.f32.mrf.mxu0
        %2365 = vdwg.mxu0
        %vm2366 = vcmp.gt.f32.partialorder %v2361, 0.0
        %v2367 = vmul.f32 %v2361, 0.1
        %v2368 = vsel %vm2366, %v2361, %v2367
        %s2369 = scalar_lea.vmem %s6, 28
        %v2370 = vld [vmem:[%s2369] sm:$0xf]
        %v2371 = vld [vmem:[#allocation22] sm:$0xff]
        %2373 = vrot.lane.b32.xlu0 %v2368, 10
        %v2374 = vpop.permute.xlu0 %2373
        %2376 = vst.msk [vmem:[#allocation6] sm:$0xff] %vm1749, %v2374
        %v2377 = vld [vmem:[#allocation6] sm:$0xff]
        %2379 = vrot.lane.b32.xlu0 %v2377, 120
        %v2380 = vpop.permute.xlu0 %2379
        %2382 = vst.msk [vmem:[#allocation7] sm:$0xff] %vm697, %v2380
        %v2383 = vld [vmem:[#allocation6] sm:$0xff]
        %2385 = vrot.lane.b32.xlu0 %v2383, 119
        %v2386 = vpop.permute.xlu0 %2385
        %2388 = vst.msk [vmem:[#allocation7 + $0x8] sm:$0xff] %vm697, %v2386
        %v2389 = vld [vmem:[#allocation6] sm:$0xff]
        %2391 = vrot.lane.b32.xlu0 %v2389, 118
        %v2392 = vpop.permute.xlu0 %2391
        %2394 = vst.msk [vmem:[#allocation7 + $0x10] sm:$0xff] %vm697, %v2392
        %v2395 = vld [vmem:[#allocation6] sm:$0xff]
        %2397 = vrot.lane.b32.xlu0 %v2395, 117
        %v2398 = vpop.permute.xlu0 %2397
        %2400 = vst.msk [vmem:[#allocation7 + $0x18] sm:$0xff] %vm697, %v2398
        %v2401 = vld [vmem:[#allocation6] sm:$0xff]
        %2403 = vrot.lane.b32.xlu0 %v2401, 116
        %v2404 = vpop.permute.xlu0 %2403
        %2406 = vst.msk [vmem:[#allocation7 + $0x20] sm:$0xff] %vm697, %v2404
        %v2407 = vld [vmem:[#allocation7] sm:$0xff]
        %v2408 = vld [vmem:[#allocation7 + $0x8] sm:$0xff]
        %v2409 = vld [vmem:[#allocation7 + $0x10] sm:$0xff]
        %v2410 = vld [vmem:[#allocation7 + $0x18] sm:$0xff]
        %v2411 = vld [vmem:[#allocation7 + $0x20] sm:$0xff]
        %v2412 = vpack.c.bf16 %v2408, %v2407
        %v2413 = vpack.c.bf16 %v2410, %v2409
        %v2414 = vpack.c.bf16 %v2411, %v2411
        %2416 = vset.pattern.permute.xlu0 7
        %2417 = vperm.xlu0 %2416, %v2371
        %v2418 = vpop.permute.xlu0 %2417
        %v2421 = vsel %vm1782, %v2370, 0
        %v2424 = vsel %vm1786, %v2414, 0
        %2426 = vmatprep.subr.bf16.mxu0 0
        %2427 = vmatpush1.bf16.msra.mxu0 0
        %2428 = vmatprep.subr.bf16.mxu0 0
        %2429 = vmatpush1.bf16.msra.mxu0 0
        %2430 = vmatprep.subr.bf16.mxu0 0
        %2431 = vmatpush1.bf16.msra.mxu0 0
        %2432 = vmatprep.subr.bf16.mxu0 0
        %2433 = vmatpush1.bf16.msra.mxu0 0
        %2434 = vmatprep.subr.bf16.mxu0 0
        %2435 = vmatpush1.bf16.msra.mxu0 0
        %2436 = vmatprep.subr.bf16.mxu0 0
        %2437 = vmatpush1.bf16.msra.mxu0 %v2424
        %2438 = vmatprep.subr.bf16.mxu0 0
        %2439 = vmatpush1.bf16.msra.mxu0 %v2413
        %2440 = vmatprep.subr.bf16.mxu0 0
        %2441 = vmatpush1.bf16.msra.mxu0 %v2412
        %2442 = vmatprep.subr.bf16.mxu0 0
        %2443 = vmatpush2.bf16.msra.mxu0 0
        %2444 = vmatprep.subr.bf16.mxu0 0
        %2445 = vmatpush2.bf16.msra.mxu0 0
        %2446 = vmatprep.subr.bf16.mxu0 0
        %2447 = vmatpush2.bf16.msra.mxu0 0
        %2448 = vmatprep.subr.bf16.mxu0 0
        %2449 = vmatpush2.bf16.msra.mxu0 0
        %2450 = vmatprep.subr.bf16.mxu0 0
        %2451 = vmatpush2.bf16.msra.mxu0 0
        %2452 = vmatprep.subr.bf16.mxu0 0
        %2453 = vmatpush2.bf16.msra.mxu0 0
        %2454 = vmatprep.subr.bf16.mxu0 0
        %2455 = vmatpush2.bf16.msra.mxu0 0
        %2456 = vmatprep.subr.bf16.mxu0 0
        %2457 = vmatpush2.bf16.msra.mxu0 0
        %2458 = vmatprep.mubr.bf16.mxu0 0
        %2459 = vmatmul.mubr.bf16.gmra.mxu0 %v2421
        %v2460 = vpop.f32.mrf.mxu0
        %v2461 = vadd.f32 %v2418, %v2460
        %v2462 = vpop.f32.mrf.mxu0
        %v2463 = vpop.f32.mrf.mxu0
        %v2464 = vpop.f32.mrf.mxu0
        %2465 = vdwg.mxu0
        %v2466 = vadd.f32 %v2461, %v1739
        %vm2467 = vcmp.gt.f32.partialorder %v2466, 0.0
        %v2468 = vmul.f32 %v2466, 0.1
        %v2469 = vsel %vm2467, %v2466, %v2468
        %s2470 = scalar_lea.vmem %s6, 32
        %v2471 = vld [vmem:[%s2470] sm:$0xf]
        %v2472 = vld [vmem:[#allocation22] sm:$0xff]
        %2474 = vrot.lane.b32.xlu0 %v2469, 10
        %v2475 = vpop.permute.xlu0 %2474
        %2477 = vst.msk [vmem:[#allocation6] sm:$0xff] %vm1749, %v2475
        %v2478 = vld [vmem:[#allocation6] sm:$0xff]
        %2480 = vrot.lane.b32.xlu0 %v2478, 124
        %v2481 = vpop.permute.xlu0 %2480
        %2483 = vst.msk [vmem:[#allocation7] sm:$0xff] %vm697, %v2481
        %v2484 = vld [vmem:[#allocation6] sm:$0xff]
        %2486 = vrot.lane.b32.xlu0 %v2484, 121
        %v2487 = vpop.permute.xlu0 %2486
        %2489 = vst.msk [vmem:[#allocation7 + $0x8] sm:$0xff] %vm697, %v2487
        %v2490 = vld [vmem:[#allocation6] sm:$0xff]
        %2492 = vrot.lane.b32.xlu0 %v2490, 118
        %v2493 = vpop.permute.xlu0 %2492
        %2495 = vst.msk [vmem:[#allocation7 + $0x10] sm:$0xff] %vm697, %v2493
        %v2496 = vld [vmem:[#allocation6] sm:$0xff]
        %2498 = vrot.lane.b32.xlu0 %v2496, 115
        %v2499 = vpop.permute.xlu0 %2498
        %2501 = vst.msk [vmem:[#allocation7 + $0x18] sm:$0xff] %vm697, %v2499
        %v2502 = vld [vmem:[#allocation6] sm:$0xff]
        %2504 = vrot.lane.b32.xlu0 %v2502, 112
        %v2505 = vpop.permute.xlu0 %2504
        %2507 = vst.msk [vmem:[#allocation7 + $0x20] sm:$0xff] %vm697, %v2505
        %v2508 = vld [vmem:[#allocation7] sm:$0xff]
        %v2509 = vld [vmem:[#allocation7 + $0x8] sm:$0xff]
        %v2510 = vld [vmem:[#allocation7 + $0x10] sm:$0xff]
        %v2511 = vld [vmem:[#allocation7 + $0x18] sm:$0xff]
        %v2512 = vld [vmem:[#allocation7 + $0x20] sm:$0xff]
        %v2513 = vpack.c.bf16 %v2509, %v2508
        %v2514 = vpack.c.bf16 %v2511, %v2510
        %v2515 = vpack.c.bf16 %v2512, %v2512
        %2517 = vset.pattern.permute.xlu0 8
        %2518 = vperm.xlu0 %2517, %v2472
        %v2519 = vpop.permute.xlu0 %2518
        %v2522 = vsel %vm1782, %v2471, 0
        %v2525 = vsel %vm1786, %v2515, 0
        %2527 = vmatprep.subr.bf16.mxu0 0
        %2528 = vmatpush1.bf16.msra.mxu0 0
        %2529 = vmatprep.subr.bf16.mxu0 0
        %2530 = vmatpush1.bf16.msra.mxu0 0
        %2531 = vmatprep.subr.bf16.mxu0 0
        %2532 = vmatpush1.bf16.msra.mxu0 0
        %2533 = vmatprep.subr.bf16.mxu0 0
        %2534 = vmatpush1.bf16.msra.mxu0 0
        %2535 = vmatprep.subr.bf16.mxu0 0
        %2536 = vmatpush1.bf16.msra.mxu0 0
        %2537 = vmatprep.subr.bf16.mxu0 0
        %2538 = vmatpush1.bf16.msra.mxu0 %v2525
        %2539 = vmatprep.subr.bf16.mxu0 0
        %2540 = vmatpush1.bf16.msra.mxu0 %v2514
        %2541 = vmatprep.subr.bf16.mxu0 0
        %2542 = vmatpush1.bf16.msra.mxu0 %v2513
        %2543 = vmatprep.subr.bf16.mxu0 0
        %2544 = vmatpush2.bf16.msra.mxu0 0
        %2545 = vmatprep.subr.bf16.mxu0 0
        %2546 = vmatpush2.bf16.msra.mxu0 0
        %2547 = vmatprep.subr.bf16.mxu0 0
        %2548 = vmatpush2.bf16.msra.mxu0 0
        %2549 = vmatprep.subr.bf16.mxu0 0
        %2550 = vmatpush2.bf16.msra.mxu0 0
        %2551 = vmatprep.subr.bf16.mxu0 0
        %2552 = vmatpush2.bf16.msra.mxu0 0
        %2553 = vmatprep.subr.bf16.mxu0 0
        %2554 = vmatpush2.bf16.msra.mxu0 0
        %2555 = vmatprep.subr.bf16.mxu0 0
        %2556 = vmatpush2.bf16.msra.mxu0 0
        %2557 = vmatprep.subr.bf16.mxu0 0
        %2558 = vmatpush2.bf16.msra.mxu0 0
        %2559 = vmatprep.mubr.bf16.mxu0 0
        %2560 = vmatmul.mubr.bf16.gmra.mxu0 %v2522
        %v2561 = vpop.f32.mrf.mxu0
        %v2562 = vadd.f32 %v2519, %v2561
        %v2563 = vpop.f32.mrf.mxu0
        %v2564 = vpop.f32.mrf.mxu0
        %v2565 = vpop.f32.mrf.mxu0
        %2566 = vdwg.mxu0
        %vm2567 = vcmp.gt.f32.partialorder %v2562, 0.0
        %v2568 = vmul.f32 %v2562, 0.1
        %v2569 = vsel %vm2567, %v2562, %v2568
        %s2570 = scalar_lea.vmem %s6, 36
        %v2571 = vld [vmem:[%s2570] sm:$0xf]
        %v2572 = vld [vmem:[#allocation22] sm:$0xff]
        %2574 = vrot.lane.b32.xlu0 %v2569, 10
        %v2575 = vpop.permute.xlu0 %2574
        %2577 = vst.msk [vmem:[#allocation6] sm:$0xff] %vm1749, %v2575
        %v2578 = vld [vmem:[#allocation6] sm:$0xff]
        %2580 = vrot.lane.b32.xlu0 %v2578, 120
        %v2581 = vpop.permute.xlu0 %2580
        %2583 = vst.msk [vmem:[#allocation7] sm:$0xff] %vm697, %v2581
        %v2584 = vld [vmem:[#allocation6] sm:$0xff]
        %2586 = vrot.lane.b32.xlu0 %v2584, 119
        %v2587 = vpop.permute.xlu0 %2586
        %2589 = vst.msk [vmem:[#allocation7 + $0x8] sm:$0xff] %vm697, %v2587
        %v2590 = vld [vmem:[#allocation6] sm:$0xff]
        %2592 = vrot.lane.b32.xlu0 %v2590, 118
        %v2593 = vpop.permute.xlu0 %2592
        %2595 = vst.msk [vmem:[#allocation7 + $0x10] sm:$0xff] %vm697, %v2593
        %v2596 = vld [vmem:[#allocation6] sm:$0xff]
        %2598 = vrot.lane.b32.xlu0 %v2596, 117
        %v2599 = vpop.permute.xlu0 %2598
        %2601 = vst.msk [vmem:[#allocation7 + $0x18] sm:$0xff] %vm697, %v2599
        %v2602 = vld [vmem:[#allocation6] sm:$0xff]
        %2604 = vrot.lane.b32.xlu0 %v2602, 116
        %v2605 = vpop.permute.xlu0 %2604
        %2607 = vst.msk [vmem:[#allocation7 + $0x20] sm:$0xff] %vm697, %v2605
        %v2608 = vld [vmem:[#allocation7] sm:$0xff]
        %v2609 = vld [vmem:[#allocation7 + $0x8] sm:$0xff]
        %v2610 = vld [vmem:[#allocation7 + $0x10] sm:$0xff]
        %v2611 = vld [vmem:[#allocation7 + $0x18] sm:$0xff]
        %v2612 = vld [vmem:[#allocation7 + $0x20] sm:$0xff]
        %v2613 = vpack.c.bf16 %v2609, %v2608
        %v2614 = vpack.c.bf16 %v2611, %v2610
        %v2615 = vpack.c.bf16 %v2612, %v2612
        %2617 = vset.pattern.permute.xlu0 9
        %2618 = vperm.xlu0 %2617, %v2572
        %v2619 = vpop.permute.xlu0 %2618
        %v2622 = vsel %vm1782, %v2571, 0
        %v2625 = vsel %vm1786, %v2615, 0
        %2627 = vmatprep.subr.bf16.mxu0 0
        %2628 = vmatpush1.bf16.msra.mxu0 0
        %2629 = vmatprep.subr.bf16.mxu0 0
        %2630 = vmatpush1.bf16.msra.mxu0 0
        %2631 = vmatprep.subr.bf16.mxu0 0
        %2632 = vmatpush1.bf16.msra.mxu0 0
        %2633 = vmatprep.subr.bf16.mxu0 0
        %2634 = vmatpush1.bf16.msra.mxu0 0
        %2635 = vmatprep.subr.bf16.mxu0 0
        %2636 = vmatpush1.bf16.msra.mxu0 0
        %2637 = vmatprep.subr.bf16.mxu0 0
        %2638 = vmatpush1.bf16.msra.mxu0 %v2625
        %2639 = vmatprep.subr.bf16.mxu0 0
        %2640 = vmatpush1.bf16.msra.mxu0 %v2614
        %2641 = vmatprep.subr.bf16.mxu0 0
        %2642 = vmatpush1.bf16.msra.mxu0 %v2613
        %2643 = vmatprep.subr.bf16.mxu0 0
        %2644 = vmatpush2.bf16.msra.mxu0 0
        %2645 = vmatprep.subr.bf16.mxu0 0
        %2646 = vmatpush2.bf16.msra.mxu0 0
        %2647 = vmatprep.subr.bf16.mxu0 0
        %2648 = vmatpush2.bf16.msra.mxu0 0
        %2649 = vmatprep.subr.bf16.mxu0 0
        %2650 = vmatpush2.bf16.msra.mxu0 0
        %2651 = vmatprep.subr.bf16.mxu0 0
        %2652 = vmatpush2.bf16.msra.mxu0 0
        %2653 = vmatprep.subr.bf16.mxu0 0
        %2654 = vmatpush2.bf16.msra.mxu0 0
        %2655 = vmatprep.subr.bf16.mxu0 0
        %2656 = vmatpush2.bf16.msra.mxu0 0
        %2657 = vmatprep.subr.bf16.mxu0 0
        %2658 = vmatpush2.bf16.msra.mxu0 0
        %2659 = vmatprep.mubr.bf16.mxu0 0
        %2660 = vmatmul.mubr.bf16.gmra.mxu0 %v2622
        %v2661 = vpop.f32.mrf.mxu0
        %v2662 = vadd.f32 %v2619, %v2661
        %v2663 = vpop.f32.mrf.mxu0
        %v2664 = vpop.f32.mrf.mxu0
        %v2665 = vpop.f32.mrf.mxu0
        %2666 = vdwg.mxu0
        %v2667 = vadd.f32 %v2662, %v2466
        %vm2668 = vcmp.gt.f32.partialorder %v2667, 0.0
        %v2669 = vmul.f32 %v2667, 0.1
        %v2670 = vsel %vm2668, %v2667, %v2669
        %s2671 = scalar_lea.vmem %s6, 40
        %v2672 = vld [vmem:[%s2671] sm:$0xf]
        %v2673 = vld [vmem:[#allocation22] sm:$0xff]
        %2675 = vrot.lane.b32.xlu0 %v2670, 10
        %v2676 = vpop.permute.xlu0 %2675
        %2678 = vst.msk [vmem:[#allocation6] sm:$0xff] %vm1749, %v2676
        %v2679 = vld [vmem:[#allocation6] sm:$0xff]
        %2680 = vst.msk [vmem:[#allocation7] sm:$0xff] %vm697, %v2679
        %v2681 = vld [vmem:[#allocation6] sm:$0xff]
        %2683 = vrot.lane.b32.xlu0 %v2681, 123
        %v2684 = vpop.permute.xlu0 %2683
        %2686 = vst.msk [vmem:[#allocation7 + $0x8] sm:$0xff] %vm697, %v2684
        %v2687 = vld [vmem:[#allocation6] sm:$0xff]
        %2689 = vrot.lane.b32.xlu0 %v2687, 118
        %v2690 = vpop.permute.xlu0 %2689
        %2692 = vst.msk [vmem:[#allocation7 + $0x10] sm:$0xff] %vm697, %v2690
        %v2693 = vld [vmem:[#allocation6] sm:$0xff]
        %2695 = vrot.lane.b32.xlu0 %v2693, 113
        %v2696 = vpop.permute.xlu0 %2695
        %2698 = vst.msk [vmem:[#allocation7 + $0x18] sm:$0xff] %vm697, %v2696
        %v2699 = vld [vmem:[#allocation6] sm:$0xff]
        %2701 = vrot.lane.b32.xlu0 %v2699, 108
        %v2702 = vpop.permute.xlu0 %2701
        %2704 = vst.msk [vmem:[#allocation7 + $0x20] sm:$0xff] %vm697, %v2702
        %v2705 = vld [vmem:[#allocation7] sm:$0xff]
        %v2706 = vld [vmem:[#allocation7 + $0x8] sm:$0xff]
        %v2707 = vld [vmem:[#allocation7 + $0x10] sm:$0xff]
        %v2708 = vld [vmem:[#allocation7 + $0x18] sm:$0xff]
        %v2709 = vld [vmem:[#allocation7 + $0x20] sm:$0xff]
        %v2710 = vpack.c.bf16 %v2706, %v2705
        %v2711 = vpack.c.bf16 %v2708, %v2707
        %v2712 = vpack.c.bf16 %v2709, %v2709
        %2714 = vset.pattern.permute.xlu0 10
        %2715 = vperm.xlu0 %2714, %v2673
        %v2716 = vpop.permute.xlu0 %2715
        %v2719 = vsel %vm1782, %v2672, 0
        %v2722 = vsel %vm1786, %v2712, 0
        %2724 = vmatprep.subr.bf16.mxu0 0
        %2725 = vmatpush1.bf16.msra.mxu0 0
        %2726 = vmatprep.subr.bf16.mxu0 0
        %2727 = vmatpush1.bf16.msra.mxu0 0
        %2728 = vmatprep.subr.bf16.mxu0 0
        %2729 = vmatpush1.bf16.msra.mxu0 0
        %2730 = vmatprep.subr.bf16.mxu0 0
        %2731 = vmatpush1.bf16.msra.mxu0 0
        %2732 = vmatprep.subr.bf16.mxu0 0
        %2733 = vmatpush1.bf16.msra.mxu0 0
        %2734 = vmatprep.subr.bf16.mxu0 0
        %2735 = vmatpush1.bf16.msra.mxu0 %v2722
        %2736 = vmatprep.subr.bf16.mxu0 0
        %2737 = vmatpush1.bf16.msra.mxu0 %v2711
        %2738 = vmatprep.subr.bf16.mxu0 0
        %2739 = vmatpush1.bf16.msra.mxu0 %v2710
        %2740 = vmatprep.subr.bf16.mxu0 0
        %2741 = vmatpush2.bf16.msra.mxu0 0
        %2742 = vmatprep.subr.bf16.mxu0 0
        %2743 = vmatpush2.bf16.msra.mxu0 0
        %2744 = vmatprep.subr.bf16.mxu0 0
        %2745 = vmatpush2.bf16.msra.mxu0 0
        %2746 = vmatprep.subr.bf16.mxu0 0
        %2747 = vmatpush2.bf16.msra.mxu0 0
        %2748 = vmatprep.subr.bf16.mxu0 0
        %2749 = vmatpush2.bf16.msra.mxu0 0
        %2750 = vmatprep.subr.bf16.mxu0 0
        %2751 = vmatpush2.bf16.msra.mxu0 0
        %2752 = vmatprep.subr.bf16.mxu0 0
        %2753 = vmatpush2.bf16.msra.mxu0 0
        %2754 = vmatprep.subr.bf16.mxu0 0
        %2755 = vmatpush2.bf16.msra.mxu0 0
        %2756 = vmatprep.mubr.bf16.mxu0 0
        %2757 = vmatmul.mubr.bf16.gmra.mxu0 %v2719
        %v2758 = vpop.f32.mrf.mxu0
        %v2759 = vadd.f32 %v2716, %v2758
        %v2760 = vpop.f32.mrf.mxu0
        %v2761 = vpop.f32.mrf.mxu0
        %v2762 = vpop.f32.mrf.mxu0
        %2763 = vdwg.mxu0
        %vm2764 = vcmp.gt.f32.partialorder %v2759, 0.0
        %v2765 = vmul.f32 %v2759, 0.1
        %v2766 = vsel %vm2764, %v2759, %v2765
        %s2767 = scalar_lea.vmem %s6, 44
        %v2768 = vld [vmem:[%s2767] sm:$0xf]
        %v2769 = vld [vmem:[#allocation22] sm:$0xff]
        %2771 = vrot.lane.b32.xlu0 %v2766, 10
        %v2772 = vpop.permute.xlu0 %2771
        %2774 = vst.msk [vmem:[#allocation6] sm:$0xff] %vm1749, %v2772
        %v2775 = vld [vmem:[#allocation6] sm:$0xff]
        %2777 = vrot.lane.b32.xlu0 %v2775, 120
        %v2778 = vpop.permute.xlu0 %2777
        %2780 = vst.msk [vmem:[#allocation7] sm:$0xff] %vm697, %v2778
        %v2781 = vld [vmem:[#allocation6] sm:$0xff]
        %2783 = vrot.lane.b32.xlu0 %v2781, 119
        %v2784 = vpop.permute.xlu0 %2783
        %2786 = vst.msk [vmem:[#allocation7 + $0x8] sm:$0xff] %vm697, %v2784
        %v2787 = vld [vmem:[#allocation6] sm:$0xff]
        %2789 = vrot.lane.b32.xlu0 %v2787, 118
        %v2790 = vpop.permute.xlu0 %2789
        %2792 = vst.msk [vmem:[#allocation7 + $0x10] sm:$0xff] %vm697, %v2790
        %v2793 = vld [vmem:[#allocation6] sm:$0xff]
        %2795 = vrot.lane.b32.xlu0 %v2793, 117
        %v2796 = vpop.permute.xlu0 %2795
        %2798 = vst.msk [vmem:[#allocation7 + $0x18] sm:$0xff] %vm697, %v2796
        %v2799 = vld [vmem:[#allocation6] sm:$0xff]
        %2801 = vrot.lane.b32.xlu0 %v2799, 116
        %v2802 = vpop.permute.xlu0 %2801
        %2804 = vst.msk [vmem:[#allocation7 + $0x20] sm:$0xff] %vm697, %v2802
        %v2805 = vld [vmem:[#allocation7] sm:$0xff]
        %v2806 = vld [vmem:[#allocation7 + $0x8] sm:$0xff]
        %v2807 = vld [vmem:[#allocation7 + $0x10] sm:$0xff]
        %v2808 = vld [vmem:[#allocation7 + $0x18] sm:$0xff]
        %v2809 = vld [vmem:[#allocation7 + $0x20] sm:$0xff]
        %v2810 = vpack.c.bf16 %v2806, %v2805
        %v2811 = vpack.c.bf16 %v2808, %v2807
        %v2812 = vpack.c.bf16 %v2809, %v2809
        %2814 = vset.pattern.permute.xlu0 11
        %2815 = vperm.xlu0 %2814, %v2769
        %v2816 = vpop.permute.xlu0 %2815
        %v2819 = vsel %vm1782, %v2768, 0
        %v2822 = vsel %vm1786, %v2812, 0
        %2824 = vmatprep.subr.bf16.mxu0 0
        %2825 = vmatpush1.bf16.msra.mxu0 0
        %2826 = vmatprep.subr.bf16.mxu0 0
        %2827 = vmatpush1.bf16.msra.mxu0 0
        %2828 = vmatprep.subr.bf16.mxu0 0
        %2829 = vmatpush1.bf16.msra.mxu0 0
        %2830 = vmatprep.subr.bf16.mxu0 0
        %2831 = vmatpush1.bf16.msra.mxu0 0
        %2832 = vmatprep.subr.bf16.mxu0 0
        %2833 = vmatpush1.bf16.msra.mxu0 0
        %2834 = vmatprep.subr.bf16.mxu0 0
        %2835 = vmatpush1.bf16.msra.mxu0 %v2822
        %2836 = vmatprep.subr.bf16.mxu0 0
        %2837 = vmatpush1.bf16.msra.mxu0 %v2811
        %2838 = vmatprep.subr.bf16.mxu0 0
        %2839 = vmatpush1.bf16.msra.mxu0 %v2810
        %2840 = vmatprep.subr.bf16.mxu0 0
        %2841 = vmatpush2.bf16.msra.mxu0 0
        %2842 = vmatprep.subr.bf16.mxu0 0
        %2843 = vmatpush2.bf16.msra.mxu0 0
        %2844 = vmatprep.subr.bf16.mxu0 0
        %2845 = vmatpush2.bf16.msra.mxu0 0
        %2846 = vmatprep.subr.bf16.mxu0 0
        %2847 = vmatpush2.bf16.msra.mxu0 0
        %2848 = vmatprep.subr.bf16.mxu0 0
        %2849 = vmatpush2.bf16.msra.mxu0 0
        %2850 = vmatprep.subr.bf16.mxu0 0
        %2851 = vmatpush2.bf16.msra.mxu0 0
        %2852 = vmatprep.subr.bf16.mxu0 0
        %2853 = vmatpush2.bf16.msra.mxu0 0
        %2854 = vmatprep.subr.bf16.mxu0 0
        %2855 = vmatpush2.bf16.msra.mxu0 0
        %2856 = vmatprep.mubr.bf16.mxu0 0
        %2857 = vmatmul.mubr.bf16.gmra.mxu0 %v2819
        %v2858 = vpop.f32.mrf.mxu0
        %v2859 = vadd.f32 %v2816, %v2858
        %v2860 = vpop.f32.mrf.mxu0
        %v2861 = vpop.f32.mrf.mxu0
        %v2862 = vpop.f32.mrf.mxu0
        %2863 = vdwg.mxu0
        %v2864 = vadd.f32 %v2859, %v2667
        %v2865 = vadd.f32 %v2272, %v2864
        %v2866 = vmul.f32 %v2865, 0.5
        %vm2867 = vcmp.gt.f32.partialorder %v2866, 0.0
        %v2868 = vmul.f32 %v2866, 0.1
        %v2869 = vsel %vm2867, %v2866, %v2868
        %2871 = vrot.lane.b32.xlu0 %v2869, 1
        %v2872 = vpop.permute.xlu0 %2871
        %vm2874 = vcmask 138248
        %2875 = vst.msk [vmem:[#allocation8] sm:$0xff] %vm2874, %v2872
        %v2876 = vld [vmem:[#allocation8] sm:$0xff]
        %2877 = vst.msk [vmem:[#allocation9] sm:$0xff] %vm697, %v2876
        %v2878 = vld [vmem:[#allocation8] sm:$0xff]
        %2880 = vrot.lane.b32.xlu0 %v2878, 127
        %v2881 = vpop.permute.xlu0 %2880
        %2883 = vst.msk [vmem:[#allocation9 + $0x8] sm:$0xff] %vm697, %v2881
        %v2884 = vld [vmem:[#allocation8] sm:$0xff]
        %2886 = vrot.lane.b32.xlu0 %v2884, 126
        %v2887 = vpop.permute.xlu0 %2886
        %2889 = vst.msk [vmem:[#allocation9 + $0x10] sm:$0xff] %vm697, %v2887
        %v2890 = vld [vmem:[#allocation9] sm:$0xff]
        %v2891 = vld [vmem:[#allocation9 + $0x8] sm:$0xff]
        %v2892 = vld [vmem:[#allocation9 + $0x10] sm:$0xff]
        %v2893 = vpack.c.bf16 %v2891, %v2890
        %v2894 = vpack.c.bf16 %v2892, %v2892
        %v2895 = vld [vmem:[#allocation23] sm:$0x3]
        %vm2896 = vcmask 195584
        %v2898 = vsel %vm2896, %v2895, 0
        %v2901 = vsel %vm1786, %v2894, 0
        %2903 = vmatprep.subr.bf16.mxu0 0
        %2904 = vmatpush1.bf16.msra.mxu0 0
        %2905 = vmatprep.subr.bf16.mxu0 0
        %2906 = vmatpush1.bf16.msra.mxu0 0
        %2907 = vmatprep.subr.bf16.mxu0 0
        %2908 = vmatpush1.bf16.msra.mxu0 0
        %2909 = vmatprep.subr.bf16.mxu0 0
        %2910 = vmatpush1.bf16.msra.mxu0 0
        %2911 = vmatprep.subr.bf16.mxu0 0
        %2912 = vmatpush1.bf16.msra.mxu0 0
        %2913 = vmatprep.subr.bf16.mxu0 0
        %2914 = vmatpush1.bf16.msra.mxu0 0
        %2915 = vmatprep.subr.bf16.mxu0 0
        %2916 = vmatpush1.bf16.msra.mxu0 %v2901
        %2917 = vmatprep.subr.bf16.mxu0 0
        %2918 = vmatpush1.bf16.msra.mxu0 %v2893
        %2919 = vmatprep.subr.bf16.mxu0 0
        %2920 = vmatpush2.bf16.msra.mxu0 0
        %2921 = vmatprep.subr.bf16.mxu0 0
        %2922 = vmatpush2.bf16.msra.mxu0 0
        %2923 = vmatprep.subr.bf16.mxu0 0
        %2924 = vmatpush2.bf16.msra.mxu0 0
        %2925 = vmatprep.subr.bf16.mxu0 0
        %2926 = vmatpush2.bf16.msra.mxu0 0
        %2927 = vmatprep.subr.bf16.mxu0 0
        %2928 = vmatpush2.bf16.msra.mxu0 0
        %2929 = vmatprep.subr.bf16.mxu0 0
        %2930 = vmatpush2.bf16.msra.mxu0 0
        %2931 = vmatprep.subr.bf16.mxu0 0
        %2932 = vmatpush2.bf16.msra.mxu0 0
        %2933 = vmatprep.subr.bf16.mxu0 0
        %2934 = vmatpush2.bf16.msra.mxu0 0
        %2935 = vmatprep.mubr.bf16.mxu0 0
        %2936 = vmatmul.mubr.bf16.gmra.mxu0 %v2898
        %v2937 = vpop.f32.mrf.mxu0
        %v2938 = vadd.f32 0.0, %v2937
        %v2939 = vpop.f32.mrf.mxu0
        %v2940 = vpop.f32.mrf.mxu0
        %v2941 = vpop.f32.mrf.mxu0
        %2942 = vdwg.mxu0
        %v2943 = vld [vmem:[%s10] sm:$0xff]
        %v2944 = vld [vmem:[%s10 + $0x8] sm:$0xff]
        %s2945 = scalar_lea.vmem [#allocation23], 2
        %v2946 = vld [vmem:[%s2945] sm:$0x3]
        %v2948 = vsel %vm2896, %v2946, 0
        %2950 = vmatprep.subr.bf16.mxu0 0
        %2951 = vmatpush1.bf16.msra.mxu0 0
        %2952 = vmatprep.subr.bf16.mxu0 0
        %2953 = vmatpush1.bf16.msra.mxu0 0
        %2954 = vmatprep.subr.bf16.mxu0 0
        %2955 = vmatpush1.bf16.msra.mxu0 0
        %2956 = vmatprep.subr.bf16.mxu0 0
        %2957 = vmatpush1.bf16.msra.mxu0 0
        %2958 = vmatprep.subr.bf16.mxu0 0
        %2959 = vmatpush1.bf16.msra.mxu0 0
        %2960 = vmatprep.subr.bf16.mxu0 0
        %2961 = vmatpush1.bf16.msra.mxu0 0
        %2962 = vmatprep.subr.bf16.mxu0 0
        %2963 = vmatpush1.bf16.msra.mxu0 %v2901
        %2964 = vmatprep.subr.bf16.mxu0 0
        %2965 = vmatpush1.bf16.msra.mxu0 %v2893
        %2966 = vmatprep.subr.bf16.mxu0 0
        %2967 = vmatpush2.bf16.msra.mxu0 0
        %2968 = vmatprep.subr.bf16.mxu0 0
        %2969 = vmatpush2.bf16.msra.mxu0 0
        %2970 = vmatprep.subr.bf16.mxu0 0
        %2971 = vmatpush2.bf16.msra.mxu0 0
        %2972 = vmatprep.subr.bf16.mxu0 0
        %2973 = vmatpush2.bf16.msra.mxu0 0
        %2974 = vmatprep.subr.bf16.mxu0 0
        %2975 = vmatpush2.bf16.msra.mxu0 0
        %2976 = vmatprep.subr.bf16.mxu0 0
        %2977 = vmatpush2.bf16.msra.mxu0 0
        %2978 = vmatprep.subr.bf16.mxu0 0
        %2979 = vmatpush2.bf16.msra.mxu0 0
        %2980 = vmatprep.subr.bf16.mxu0 0
        %2981 = vmatpush2.bf16.msra.mxu0 0
        %2982 = vmatprep.mubr.bf16.mxu0 0
        %2983 = vmatmul.mubr.bf16.gmra.mxu0 %v2948
        %v2984 = vpop.f32.mrf.mxu0
        %v2985 = vadd.f32 0.0, %v2984
        %v2986 = vpop.f32.mrf.mxu0
        %v2987 = vpop.f32.mrf.mxu0
        %v2988 = vpop.f32.mrf.mxu0
        %2989 = vdwg.mxu0
        %s2990 = scalar_lea.vmem %s10, 16
        %v2991 = vld [vmem:[%s2990] sm:$0xff]
        %v2992 = vld [vmem:[%s2990 + $0x8] sm:$0xff]
        %v2994 = vsel %vm697, %v2985, 0
        %2996 = vmatprep.subr.mxu0 0.0
        %2997 = vmatpush1.msra.mxu0 0.0
        %2998 = vmatprep.subr.mxu0 0.0
        %2999 = vmatpush1.msra.mxu0 0.0
        %3000 = vmatprep.subr.mxu0 0.0
        %3001 = vmatpush1.msra.mxu0 0.0
        %3002 = vmatprep.subr.mxu0 0.0
        %3003 = vmatpush1.msra.mxu0 0.0
        %3004 = vmatprep.subr.mxu0 0.0
        %3005 = vmatpush1.msra.mxu0 0.0
        %3006 = vmatprep.subr.mxu0 0.0
        %3007 = vmatpush1.msra.mxu0 0.0
        %3008 = vmatprep.subr.mxu0 0.0
        %3009 = vmatpush1.msra.mxu0 0.0
        %3010 = vmatprep.subr.mxu0 0.0
        %3011 = vmatpush1.msra.mxu0 0.0
        %3012 = vmatprep.subr.mxu0 0.0
        %3013 = vmatpush1.msra.mxu0 0.0
        %3014 = vmatprep.subr.mxu0 0.0
        %3015 = vmatpush1.msra.mxu0 0.0
        %3016 = vmatprep.subr.mxu0 0.0
        %3017 = vmatpush1.msra.mxu0 0.0
        %3018 = vmatprep.subr.mxu0 0.0
        %3019 = vmatpush1.msra.mxu0 0.0
        %3020 = vmatprep.subr.mxu0 0.0
        %3021 = vmatpush1.msra.mxu0 0.0
        %3022 = vmatprep.subr.mxu0 0.0
        %3023 = vmatpush1.msra.mxu0 0.0
        %3024 = vmatprep.subr.mxu0 0.0
        %3025 = vmatpush1.msra.mxu0 %v2992
        %3026 = vmatprep.subr.mxu0 0.0
        %3027 = vmatpush1.msra.mxu0 %v2991
        %3028 = vmatprep.subr.mxu0 0.0
        %3029 = vmatpush2.msra.mxu0 0.0
        %3030 = vmatprep.subr.mxu0 0.0
        %3031 = vmatpush2.msra.mxu0 0.0
        %3032 = vmatprep.subr.mxu0 0.0
        %3033 = vmatpush2.msra.mxu0 0.0
        %3034 = vmatprep.subr.mxu0 0.0
        %3035 = vmatpush2.msra.mxu0 0.0
        %3036 = vmatprep.subr.mxu0 0.0
        %3037 = vmatpush2.msra.mxu0 0.0
        %3038 = vmatprep.subr.mxu0 0.0
        %3039 = vmatpush2.msra.mxu0 0.0
        %3040 = vmatprep.subr.mxu0 0.0
        %3041 = vmatpush2.msra.mxu0 0.0
        %3042 = vmatprep.subr.mxu0 0.0
        %3043 = vmatpush2.msra.mxu0 0.0
        %3044 = vmatprep.subr.mxu0 0.0
        %3045 = vmatpush2.msra.mxu0 0.0
        %3046 = vmatprep.subr.mxu0 0.0
        %3047 = vmatpush2.msra.mxu0 0.0
        %3048 = vmatprep.subr.mxu0 0.0
        %3049 = vmatpush2.msra.mxu0 0.0
        %3050 = vmatprep.subr.mxu0 0.0
        %3051 = vmatpush2.msra.mxu0 0.0
        %3052 = vmatprep.subr.mxu0 0.0
        %3053 = vmatpush2.msra.mxu0 0.0
        %3054 = vmatprep.subr.mxu0 0.0
        %3055 = vmatpush2.msra.mxu0 0.0
        %3056 = vmatprep.subr.mxu0 0.0
        %3057 = vmatpush2.msra.mxu0 0.0
        %3058 = vmatprep.subr.mxu0 0.0
        %3059 = vmatpush2.msra.mxu0 0.0
        %3060 = vmatprep.mubr.f32.mxu0 0.0
        %3061 = vmatmul.mubr.f32.gmra.mxu0 %v2994
        %v3062 = vpop.f32.mrf.mxu0
        %v3063 = vadd.f32 0.0, %v3062
        %v3064 = vpop.f32.mrf.mxu0
        %3065 = vdwg.mxu0
        %v3067 = vsel %vm697, %v2938, 0
        %3069 = vmatprep.subr.mxu0 0.0
        %3070 = vmatpush1.msra.mxu0 0.0
        %3071 = vmatprep.subr.mxu0 0.0
        %3072 = vmatpush1.msra.mxu0 0.0
        %3073 = vmatprep.subr.mxu0 0.0
        %3074 = vmatpush1.msra.mxu0 0.0
        %3075 = vmatprep.subr.mxu0 0.0
        %3076 = vmatpush1.msra.mxu0 0.0
        %3077 = vmatprep.subr.mxu0 0.0
        %3078 = vmatpush1.msra.mxu0 0.0
        %3079 = vmatprep.subr.mxu0 0.0
        %3080 = vmatpush1.msra.mxu0 0.0
        %3081 = vmatprep.subr.mxu0 0.0
        %3082 = vmatpush1.msra.mxu0 0.0
        %3083 = vmatprep.subr.mxu0 0.0
        %3084 = vmatpush1.msra.mxu0 0.0
        %3085 = vmatprep.subr.mxu0 0.0
        %3086 = vmatpush1.msra.mxu0 0.0
        %3087 = vmatprep.subr.mxu0 0.0
        %3088 = vmatpush1.msra.mxu0 0.0
        %3089 = vmatprep.subr.mxu0 0.0
        %3090 = vmatpush1.msra.mxu0 0.0
        %3091 = vmatprep.subr.mxu0 0.0
        %3092 = vmatpush1.msra.mxu0 0.0
        %3093 = vmatprep.subr.mxu0 0.0
        %3094 = vmatpush1.msra.mxu0 0.0
        %3095 = vmatprep.subr.mxu0 0.0
        %3096 = vmatpush1.msra.mxu0 0.0
        %3097 = vmatprep.subr.mxu0 0.0
        %3098 = vmatpush1.msra.mxu0 %v2944
        %3099 = vmatprep.subr.mxu0 0.0
        %3100 = vmatpush1.msra.mxu0 %v2943
        %3101 = vmatprep.subr.mxu0 0.0
        %3102 = vmatpush2.msra.mxu0 0.0
        %3103 = vmatprep.subr.mxu0 0.0
        %3104 = vmatpush2.msra.mxu0 0.0
        %3105 = vmatprep.subr.mxu0 0.0
        %3106 = vmatpush2.msra.mxu0 0.0
        %3107 = vmatprep.subr.mxu0 0.0
        %3108 = vmatpush2.msra.mxu0 0.0
        %3109 = vmatprep.subr.mxu0 0.0
        %3110 = vmatpush2.msra.mxu0 0.0
        %3111 = vmatprep.subr.mxu0 0.0
        %3112 = vmatpush2.msra.mxu0 0.0
        %3113 = vmatprep.subr.mxu0 0.0
        %3114 = vmatpush2.msra.mxu0 0.0
        %3115 = vmatprep.subr.mxu0 0.0
        %3116 = vmatpush2.msra.mxu0 0.0
        %3117 = vmatprep.subr.mxu0 0.0
        %3118 = vmatpush2.msra.mxu0 0.0
        %3119 = vmatprep.subr.mxu0 0.0
        %3120 = vmatpush2.msra.mxu0 0.0
        %3121 = vmatprep.subr.mxu0 0.0
        %3122 = vmatpush2.msra.mxu0 0.0
        %3123 = vmatprep.subr.mxu0 0.0
        %3124 = vmatpush2.msra.mxu0 0.0
        %3125 = vmatprep.subr.mxu0 0.0
        %3126 = vmatpush2.msra.mxu0 0.0
        %3127 = vmatprep.subr.mxu0 0.0
        %3128 = vmatpush2.msra.mxu0 0.0
        %3129 = vmatprep.subr.mxu0 0.0
        %3130 = vmatpush2.msra.mxu0 0.0
        %3131 = vmatprep.subr.mxu0 0.0
        %3132 = vmatpush2.msra.mxu0 0.0
        %3133 = vmatprep.mubr.f32.mxu0 0.0
        %3134 = vmatmul.mubr.f32.gmra.mxu0 %v3067
        %v3135 = vpop.f32.mrf.mxu0
        %v3136 = vadd.f32 %v3063, %v3135
        %v3137 = vpop.f32.mrf.mxu0
        %3138 = vdwg.mxu0
        %v3139 = vld [vmem:[#allocation25] sm:$0xf]
        %3141 = vset.pattern.permute.xlu0 0
        %3142 = vperm.xlu0 %3141, %v3139
        %v3143 = vpop.permute.xlu0 %3142
        %v3145 = vadd.f32 %v3136, %v3143
        %vm3146 = vcmp.gt.f32.partialorder %v3145, 0.0
        %v3147 = vmul.f32 %v3145, 0.1
        %v3148 = vsel %vm3146, %v3145, %v3147
        %v3149 = vld [vmem:[#allocation26] sm:$0x3]
        %v3150 = vld [vmem:[%s12] sm:$0xf]
        %3152 = vrot.lane.b32.xlu0 %v3148, 10
        %v3153 = vpop.permute.xlu0 %3152
        %vm3155 = vcmask 339024
        %3156 = vst.msk [vmem:[#allocation10] sm:$0xf] %vm3155, %v3153
        %v3157 = vld [vmem:[#allocation10] sm:$0xf]
        %3159 = vrot.lane.b32.xlu0 %v3157, 119
        %v3160 = vpop.permute.xlu0 %3159
        %vm3162 = vcmask 257024
        %3163 = vst.msk [vmem:[#allocation11] sm:$0xf] %vm3162, %v3160
        %v3164 = vld [vmem:[#allocation10] sm:$0xf]
        %3166 = vrot.lane.b32.xlu0 %v3164, 118
        %v3167 = vpop.permute.xlu0 %3166
        %3169 = vst.msk [vmem:[#allocation11 + $0x8] sm:$0xf] %vm3162, %v3167
        %v3170 = vld [vmem:[#allocation10] sm:$0xf]
        %3172 = vrot.lane.b32.xlu0 %v3170, 117
        %v3173 = vpop.permute.xlu0 %3172
        %3175 = vst.msk [vmem:[#allocation11 + $0x10] sm:$0xf] %vm3162, %v3173
        %v3176 = vld [vmem:[#allocation11] sm:$0xff]
        %v3177 = vld [vmem:[#allocation11 + $0x8] sm:$0xff]
        %v3178 = vld [vmem:[#allocation11 + $0x10] sm:$0xff]
        %v3179 = vld [vmem:[#allocation11 + $0x18] sm:$0xff]
        %v3180 = vld [vmem:[#allocation11 + $0x20] sm:$0xff]
        %v3181 = vpack.c.bf16 %v3177, %v3176
        %v3182 = vpack.c.bf16 %v3179, %v3178
        %v3183 = vpack.c.bf16 %v3180, %v3180
        %3185 = vset.pattern.permute.xlu0 0
        %3186 = vperm.xlu0 %3185, %v3150
        %v3187 = vpop.permute.xlu0 %3186
        %v3190 = vsel %vm1782, %v3149, 0
        %v3193 = vsel %vm1786, %v3183, 0
        %3195 = vmatprep.subr.bf16.mxu0 0
        %3196 = vmatpush1.bf16.msra.mxu0 0
        %3197 = vmatprep.subr.bf16.mxu0 0
        %3198 = vmatpush1.bf16.msra.mxu0 0
        %3199 = vmatprep.subr.bf16.mxu0 0
        %3200 = vmatpush1.bf16.msra.mxu0 0
        %3201 = vmatprep.subr.bf16.mxu0 0
        %3202 = vmatpush1.bf16.msra.mxu0 0
        %3203 = vmatprep.subr.bf16.mxu0 0
        %3204 = vmatpush1.bf16.msra.mxu0 0
        %3205 = vmatprep.subr.bf16.mxu0 0
        %3206 = vmatpush1.bf16.msra.mxu0 %v3193
        %3207 = vmatprep.subr.bf16.mxu0 0
        %3208 = vmatpush1.bf16.msra.mxu0 %v3182
        %3209 = vmatprep.subr.bf16.mxu0 0
        %3210 = vmatpush1.bf16.msra.mxu0 %v3181
        %3211 = vmatprep.subr.bf16.mxu0 0
        %3212 = vmatpush2.bf16.msra.mxu0 0
        %3213 = vmatprep.subr.bf16.mxu0 0
        %3214 = vmatpush2.bf16.msra.mxu0 0
        %3215 = vmatprep.subr.bf16.mxu0 0
        %3216 = vmatpush2.bf16.msra.mxu0 0
        %3217 = vmatprep.subr.bf16.mxu0 0
        %3218 = vmatpush2.bf16.msra.mxu0 0
        %3219 = vmatprep.subr.bf16.mxu0 0
        %3220 = vmatpush2.bf16.msra.mxu0 0
        %3221 = vmatprep.subr.bf16.mxu0 0
        %3222 = vmatpush2.bf16.msra.mxu0 0
        %3223 = vmatprep.subr.bf16.mxu0 0
        %3224 = vmatpush2.bf16.msra.mxu0 0
        %3225 = vmatprep.subr.bf16.mxu0 0
        %3226 = vmatpush2.bf16.msra.mxu0 0
        %3227 = vmatprep.mubr.bf16.mxu0 0
        %3228 = vmatmul.mubr.bf16.gmra.mxu0 %v3190
        %v3229 = vpop.f32.mrf.mxu0
        %v3230 = vadd.f32 %v3187, %v3229
        %v3231 = vpop.f32.mrf.mxu0
        %v3232 = vpop.f32.mrf.mxu0
        %v3233 = vpop.f32.mrf.mxu0
        %3234 = vdwg.mxu0
        %vm3235 = vcmp.gt.f32.partialorder %v3230, 0.0
        %v3236 = vmul.f32 %v3230, 0.1
        %v3237 = vsel %vm3235, %v3230, %v3236
        %s3238 = scalar_lea.vmem [#allocation26], 2
        %v3239 = vld [vmem:[%s3238] sm:$0x3]
        %v3240 = vld [vmem:[%s12] sm:$0xf]
        %3242 = vrot.lane.b32.xlu0 %v3237, 10
        %v3243 = vpop.permute.xlu0 %3242
        %3245 = vst.msk [vmem:[#allocation10] sm:$0xf] %vm3155, %v3243
        %v3246 = vld [vmem:[#allocation10] sm:$0xf]
        %3248 = vrot.lane.b32.xlu0 %v3246, 119
        %v3249 = vpop.permute.xlu0 %3248
        %3251 = vst.msk [vmem:[#allocation11] sm:$0xf] %vm3162, %v3249
        %v3252 = vld [vmem:[#allocation10] sm:$0xf]
        %3254 = vrot.lane.b32.xlu0 %v3252, 118
        %v3255 = vpop.permute.xlu0 %3254
        %3257 = vst.msk [vmem:[#allocation11 + $0x8] sm:$0xf] %vm3162, %v3255
        %v3258 = vld [vmem:[#allocation10] sm:$0xf]
        %3260 = vrot.lane.b32.xlu0 %v3258, 117
        %v3261 = vpop.permute.xlu0 %3260
        %3263 = vst.msk [vmem:[#allocation11 + $0x10] sm:$0xf] %vm3162, %v3261
        %v3264 = vld [vmem:[#allocation11] sm:$0xff]
        %v3265 = vld [vmem:[#allocation11 + $0x8] sm:$0xff]
        %v3266 = vld [vmem:[#allocation11 + $0x10] sm:$0xff]
        %v3267 = vld [vmem:[#allocation11 + $0x18] sm:$0xff]
        %v3268 = vld [vmem:[#allocation11 + $0x20] sm:$0xff]
        %v3269 = vpack.c.bf16 %v3265, %v3264
        %v3270 = vpack.c.bf16 %v3267, %v3266
        %v3271 = vpack.c.bf16 %v3268, %v3268
        %3273 = vset.pattern.permute.xlu0 1
        %3274 = vperm.xlu0 %3273, %v3240
        %v3275 = vpop.permute.xlu0 %3274
        %v3278 = vsel %vm1782, %v3239, 0
        %v3281 = vsel %vm1786, %v3271, 0
        %3283 = vmatprep.subr.bf16.mxu0 0
        %3284 = vmatpush1.bf16.msra.mxu0 0
        %3285 = vmatprep.subr.bf16.mxu0 0
        %3286 = vmatpush1.bf16.msra.mxu0 0
        %3287 = vmatprep.subr.bf16.mxu0 0
        %3288 = vmatpush1.bf16.msra.mxu0 0
        %3289 = vmatprep.subr.bf16.mxu0 0
        %3290 = vmatpush1.bf16.msra.mxu0 0
        %3291 = vmatprep.subr.bf16.mxu0 0
        %3292 = vmatpush1.bf16.msra.mxu0 0
        %3293 = vmatprep.subr.bf16.mxu0 0
        %3294 = vmatpush1.bf16.msra.mxu0 %v3281
        %3295 = vmatprep.subr.bf16.mxu0 0
        %3296 = vmatpush1.bf16.msra.mxu0 %v3270
        %3297 = vmatprep.subr.bf16.mxu0 0
        %3298 = vmatpush1.bf16.msra.mxu0 %v3269
        %3299 = vmatprep.subr.bf16.mxu0 0
        %3300 = vmatpush2.bf16.msra.mxu0 0
        %3301 = vmatprep.subr.bf16.mxu0 0
        %3302 = vmatpush2.bf16.msra.mxu0 0
        %3303 = vmatprep.subr.bf16.mxu0 0
        %3304 = vmatpush2.bf16.msra.mxu0 0
        %3305 = vmatprep.subr.bf16.mxu0 0
        %3306 = vmatpush2.bf16.msra.mxu0 0
        %3307 = vmatprep.subr.bf16.mxu0 0
        %3308 = vmatpush2.bf16.msra.mxu0 0
        %3309 = vmatprep.subr.bf16.mxu0 0
        %3310 = vmatpush2.bf16.msra.mxu0 0
        %3311 = vmatprep.subr.bf16.mxu0 0
        %3312 = vmatpush2.bf16.msra.mxu0 0
        %3313 = vmatprep.subr.bf16.mxu0 0
        %3314 = vmatpush2.bf16.msra.mxu0 0
        %3315 = vmatprep.mubr.bf16.mxu0 0
        %3316 = vmatmul.mubr.bf16.gmra.mxu0 %v3278
        %v3317 = vpop.f32.mrf.mxu0
        %v3318 = vadd.f32 %v3275, %v3317
        %v3319 = vpop.f32.mrf.mxu0
        %v3320 = vpop.f32.mrf.mxu0
        %v3321 = vpop.f32.mrf.mxu0
        %3322 = vdwg.mxu0
        %v3323 = vadd.f32 %v3318, %v3145
        %vm3324 = vcmp.gt.f32.partialorder %v3323, 0.0
        %v3325 = vmul.f32 %v3323, 0.1
        %v3326 = vsel %vm3324, %v3323, %v3325
        %s3327 = scalar_lea.vmem [#allocation26], 4
        %v3328 = vld [vmem:[%s3327] sm:$0x3]
        %v3329 = vld [vmem:[%s12] sm:$0xf]
        %3331 = vrot.lane.b32.xlu0 %v3326, 10
        %v3332 = vpop.permute.xlu0 %3331
        %3334 = vst.msk [vmem:[#allocation10] sm:$0xf] %vm3155, %v3332
        %v3335 = vld [vmem:[#allocation10] sm:$0xf]
        %3337 = vrot.lane.b32.xlu0 %v3335, 121
        %v3338 = vpop.permute.xlu0 %3337
        %3340 = vst.msk [vmem:[#allocation11] sm:$0xf] %vm3162, %v3338
        %v3341 = vld [vmem:[#allocation10] sm:$0xf]
        %3343 = vrot.lane.b32.xlu0 %v3341, 118
        %v3344 = vpop.permute.xlu0 %3343
        %3346 = vst.msk [vmem:[#allocation11 + $0x8] sm:$0xf] %vm3162, %v3344
        %v3347 = vld [vmem:[#allocation10] sm:$0xf]
        %3349 = vrot.lane.b32.xlu0 %v3347, 115
        %v3350 = vpop.permute.xlu0 %3349
        %3352 = vst.msk [vmem:[#allocation11 + $0x10] sm:$0xf] %vm3162, %v3350
        %v3353 = vld [vmem:[#allocation11] sm:$0xff]
        %v3354 = vld [vmem:[#allocation11 + $0x8] sm:$0xff]
        %v3355 = vld [vmem:[#allocation11 + $0x10] sm:$0xff]
        %v3356 = vld [vmem:[#allocation11 + $0x18] sm:$0xff]
        %v3357 = vld [vmem:[#allocation11 + $0x20] sm:$0xff]
        %v3358 = vpack.c.bf16 %v3354, %v3353
        %v3359 = vpack.c.bf16 %v3356, %v3355
        %v3360 = vpack.c.bf16 %v3357, %v3357
        %3362 = vset.pattern.permute.xlu0 2
        %3363 = vperm.xlu0 %3362, %v3329
        %v3364 = vpop.permute.xlu0 %3363
        %v3367 = vsel %vm1782, %v3328, 0
        %v3370 = vsel %vm1786, %v3360, 0
        %3372 = vmatprep.subr.bf16.mxu0 0
        %3373 = vmatpush1.bf16.msra.mxu0 0
        %3374 = vmatprep.subr.bf16.mxu0 0
        %3375 = vmatpush1.bf16.msra.mxu0 0
        %3376 = vmatprep.subr.bf16.mxu0 0
        %3377 = vmatpush1.bf16.msra.mxu0 0
        %3378 = vmatprep.subr.bf16.mxu0 0
        %3379 = vmatpush1.bf16.msra.mxu0 0
        %3380 = vmatprep.subr.bf16.mxu0 0
        %3381 = vmatpush1.bf16.msra.mxu0 0
        %3382 = vmatprep.subr.bf16.mxu0 0
        %3383 = vmatpush1.bf16.msra.mxu0 %v3370
        %3384 = vmatprep.subr.bf16.mxu0 0
        %3385 = vmatpush1.bf16.msra.mxu0 %v3359
        %3386 = vmatprep.subr.bf16.mxu0 0
        %3387 = vmatpush1.bf16.msra.mxu0 %v3358
        %3388 = vmatprep.subr.bf16.mxu0 0
        %3389 = vmatpush2.bf16.msra.mxu0 0
        %3390 = vmatprep.subr.bf16.mxu0 0
        %3391 = vmatpush2.bf16.msra.mxu0 0
        %3392 = vmatprep.subr.bf16.mxu0 0
        %3393 = vmatpush2.bf16.msra.mxu0 0
        %3394 = vmatprep.subr.bf16.mxu0 0
        %3395 = vmatpush2.bf16.msra.mxu0 0
        %3396 = vmatprep.subr.bf16.mxu0 0
        %3397 = vmatpush2.bf16.msra.mxu0 0
        %3398 = vmatprep.subr.bf16.mxu0 0
        %3399 = vmatpush2.bf16.msra.mxu0 0
        %3400 = vmatprep.subr.bf16.mxu0 0
        %3401 = vmatpush2.bf16.msra.mxu0 0
        %3402 = vmatprep.subr.bf16.mxu0 0
        %3403 = vmatpush2.bf16.msra.mxu0 0
        %3404 = vmatprep.mubr.bf16.mxu0 0
        %3405 = vmatmul.mubr.bf16.gmra.mxu0 %v3367
        %v3406 = vpop.f32.mrf.mxu0
        %v3407 = vadd.f32 %v3364, %v3406
        %v3408 = vpop.f32.mrf.mxu0
        %v3409 = vpop.f32.mrf.mxu0
        %v3410 = vpop.f32.mrf.mxu0
        %3411 = vdwg.mxu0
        %vm3412 = vcmp.gt.f32.partialorder %v3407, 0.0
        %v3413 = vmul.f32 %v3407, 0.1
        %v3414 = vsel %vm3412, %v3407, %v3413
        %s3415 = scalar_lea.vmem [#allocation26], 6
        %v3416 = vld [vmem:[%s3415] sm:$0x3]
        %v3417 = vld [vmem:[%s12] sm:$0xf]
        %3419 = vrot.lane.b32.xlu0 %v3414, 10
        %v3420 = vpop.permute.xlu0 %3419
        %3422 = vst.msk [vmem:[#allocation10] sm:$0xf] %vm3155, %v3420
        %v3423 = vld [vmem:[#allocation10] sm:$0xf]
        %3425 = vrot.lane.b32.xlu0 %v3423, 119
        %v3426 = vpop.permute.xlu0 %3425
        %3428 = vst.msk [vmem:[#allocation11] sm:$0xf] %vm3162, %v3426
        %v3429 = vld [vmem:[#allocation10] sm:$0xf]
        %3431 = vrot.lane.b32.xlu0 %v3429, 118
        %v3432 = vpop.permute.xlu0 %3431
        %3434 = vst.msk [vmem:[#allocation11 + $0x8] sm:$0xf] %vm3162, %v3432
        %v3435 = vld [vmem:[#allocation10] sm:$0xf]
        %3437 = vrot.lane.b32.xlu0 %v3435, 117
        %v3438 = vpop.permute.xlu0 %3437
        %3440 = vst.msk [vmem:[#allocation11 + $0x10] sm:$0xf] %vm3162, %v3438
        %v3441 = vld [vmem:[#allocation11] sm:$0xff]
        %v3442 = vld [vmem:[#allocation11 + $0x8] sm:$0xff]
        %v3443 = vld [vmem:[#allocation11 + $0x10] sm:$0xff]
        %v3444 = vld [vmem:[#allocation11 + $0x18] sm:$0xff]
        %v3445 = vld [vmem:[#allocation11 + $0x20] sm:$0xff]
        %v3446 = vpack.c.bf16 %v3442, %v3441
        %v3447 = vpack.c.bf16 %v3444, %v3443
        %v3448 = vpack.c.bf16 %v3445, %v3445
        %3450 = vset.pattern.permute.xlu0 3
        %3451 = vperm.xlu0 %3450, %v3417
        %v3452 = vpop.permute.xlu0 %3451
        %v3455 = vsel %vm1782, %v3416, 0
        %v3458 = vsel %vm1786, %v3448, 0
        %3460 = vmatprep.subr.bf16.mxu0 0
        %3461 = vmatpush1.bf16.msra.mxu0 0
        %3462 = vmatprep.subr.bf16.mxu0 0
        %3463 = vmatpush1.bf16.msra.mxu0 0
        %3464 = vmatprep.subr.bf16.mxu0 0
        %3465 = vmatpush1.bf16.msra.mxu0 0
        %3466 = vmatprep.subr.bf16.mxu0 0
        %3467 = vmatpush1.bf16.msra.mxu0 0
        %3468 = vmatprep.subr.bf16.mxu0 0
        %3469 = vmatpush1.bf16.msra.mxu0 0
        %3470 = vmatprep.subr.bf16.mxu0 0
        %3471 = vmatpush1.bf16.msra.mxu0 %v3458
        %3472 = vmatprep.subr.bf16.mxu0 0
        %3473 = vmatpush1.bf16.msra.mxu0 %v3447
        %3474 = vmatprep.subr.bf16.mxu0 0
        %3475 = vmatpush1.bf16.msra.mxu0 %v3446
        %3476 = vmatprep.subr.bf16.mxu0 0
        %3477 = vmatpush2.bf16.msra.mxu0 0
        %3478 = vmatprep.subr.bf16.mxu0 0
        %3479 = vmatpush2.bf16.msra.mxu0 0
        %3480 = vmatprep.subr.bf16.mxu0 0
        %3481 = vmatpush2.bf16.msra.mxu0 0
        %3482 = vmatprep.subr.bf16.mxu0 0
        %3483 = vmatpush2.bf16.msra.mxu0 0
        %3484 = vmatprep.subr.bf16.mxu0 0
        %3485 = vmatpush2.bf16.msra.mxu0 0
        %3486 = vmatprep.subr.bf16.mxu0 0
        %3487 = vmatpush2.bf16.msra.mxu0 0
        %3488 = vmatprep.subr.bf16.mxu0 0
        %3489 = vmatpush2.bf16.msra.mxu0 0
        %3490 = vmatprep.subr.bf16.mxu0 0
        %3491 = vmatpush2.bf16.msra.mxu0 0
        %3492 = vmatprep.mubr.bf16.mxu0 0
        %3493 = vmatmul.mubr.bf16.gmra.mxu0 %v3455
        %v3494 = vpop.f32.mrf.mxu0
        %v3495 = vadd.f32 %v3452, %v3494
        %v3496 = vpop.f32.mrf.mxu0
        %v3497 = vpop.f32.mrf.mxu0
        %v3498 = vpop.f32.mrf.mxu0
        %3499 = vdwg.mxu0
        %v3500 = vadd.f32 %v3495, %v3323
        %vm3501 = vcmp.gt.f32.partialorder %v3500, 0.0
        %v3502 = vmul.f32 %v3500, 0.1
        %v3503 = vsel %vm3501, %v3500, %v3502
        %s3504 = scalar_lea.vmem [#allocation26], 8
        %v3505 = vld [vmem:[%s3504] sm:$0x3]
        %v3506 = vld [vmem:[%s12] sm:$0xf]
        %3508 = vrot.lane.b32.xlu0 %v3503, 10
        %v3509 = vpop.permute.xlu0 %3508
        %3511 = vst.msk [vmem:[#allocation10] sm:$0xf] %vm3155, %v3509
        %v3512 = vld [vmem:[#allocation10] sm:$0xf]
        %3514 = vrot.lane.b32.xlu0 %v3512, 123
        %v3515 = vpop.permute.xlu0 %3514
        %3517 = vst.msk [vmem:[#allocation11] sm:$0xf] %vm3162, %v3515
        %v3518 = vld [vmem:[#allocation10] sm:$0xf]
        %3520 = vrot.lane.b32.xlu0 %v3518, 118
        %v3521 = vpop.permute.xlu0 %3520
        %3523 = vst.msk [vmem:[#allocation11 + $0x8] sm:$0xf] %vm3162, %v3521
        %v3524 = vld [vmem:[#allocation10] sm:$0xf]
        %3526 = vrot.lane.b32.xlu0 %v3524, 113
        %v3527 = vpop.permute.xlu0 %3526
        %3529 = vst.msk [vmem:[#allocation11 + $0x10] sm:$0xf] %vm3162, %v3527
        %v3530 = vld [vmem:[#allocation11] sm:$0xff]
        %v3531 = vld [vmem:[#allocation11 + $0x8] sm:$0xff]
        %v3532 = vld [vmem:[#allocation11 + $0x10] sm:$0xff]
        %v3533 = vld [vmem:[#allocation11 + $0x18] sm:$0xff]
        %v3534 = vld [vmem:[#allocation11 + $0x20] sm:$0xff]
        %v3535 = vpack.c.bf16 %v3531, %v3530
        %v3536 = vpack.c.bf16 %v3533, %v3532
        %v3537 = vpack.c.bf16 %v3534, %v3534
        %3539 = vset.pattern.permute.xlu0 4
        %3540 = vperm.xlu0 %3539, %v3506
        %v3541 = vpop.permute.xlu0 %3540
        %v3544 = vsel %vm1782, %v3505, 0
        %v3547 = vsel %vm1786, %v3537, 0
        %3549 = vmatprep.subr.bf16.mxu0 0
        %3550 = vmatpush1.bf16.msra.mxu0 0
        %3551 = vmatprep.subr.bf16.mxu0 0
        %3552 = vmatpush1.bf16.msra.mxu0 0
        %3553 = vmatprep.subr.bf16.mxu0 0
        %3554 = vmatpush1.bf16.msra.mxu0 0
        %3555 = vmatprep.subr.bf16.mxu0 0
        %3556 = vmatpush1.bf16.msra.mxu0 0
        %3557 = vmatprep.subr.bf16.mxu0 0
        %3558 = vmatpush1.bf16.msra.mxu0 0
        %3559 = vmatprep.subr.bf16.mxu0 0
        %3560 = vmatpush1.bf16.msra.mxu0 %v3547
        %3561 = vmatprep.subr.bf16.mxu0 0
        %3562 = vmatpush1.bf16.msra.mxu0 %v3536
        %3563 = vmatprep.subr.bf16.mxu0 0
        %3564 = vmatpush1.bf16.msra.mxu0 %v3535
        %3565 = vmatprep.subr.bf16.mxu0 0
        %3566 = vmatpush2.bf16.msra.mxu0 0
        %3567 = vmatprep.subr.bf16.mxu0 0
        %3568 = vmatpush2.bf16.msra.mxu0 0
        %3569 = vmatprep.subr.bf16.mxu0 0
        %3570 = vmatpush2.bf16.msra.mxu0 0
        %3571 = vmatprep.subr.bf16.mxu0 0
        %3572 = vmatpush2.bf16.msra.mxu0 0
        %3573 = vmatprep.subr.bf16.mxu0 0
        %3574 = vmatpush2.bf16.msra.mxu0 0
        %3575 = vmatprep.subr.bf16.mxu0 0
        %3576 = vmatpush2.bf16.msra.mxu0 0
        %3577 = vmatprep.subr.bf16.mxu0 0
        %3578 = vmatpush2.bf16.msra.mxu0 0
        %3579 = vmatprep.subr.bf16.mxu0 0
        %3580 = vmatpush2.bf16.msra.mxu0 0
        %3581 = vmatprep.mubr.bf16.mxu0 0
        %3582 = vmatmul.mubr.bf16.gmra.mxu0 %v3544
        %v3583 = vpop.f32.mrf.mxu0
        %v3584 = vadd.f32 %v3541, %v3583
        %v3585 = vpop.f32.mrf.mxu0
        %v3586 = vpop.f32.mrf.mxu0
        %v3587 = vpop.f32.mrf.mxu0
        %3588 = vdwg.mxu0
        %vm3589 = vcmp.gt.f32.partialorder %v3584, 0.0
        %v3590 = vmul.f32 %v3584, 0.1
        %v3591 = vsel %vm3589, %v3584, %v3590
        %s3592 = scalar_lea.vmem [#allocation26], 10
        %v3593 = vld [vmem:[%s3592] sm:$0x3]
        %v3594 = vld [vmem:[%s12] sm:$0xf]
        %3596 = vrot.lane.b32.xlu0 %v3591, 10
        %v3597 = vpop.permute.xlu0 %3596
        %3599 = vst.msk [vmem:[#allocation10] sm:$0xf] %vm3155, %v3597
        %v3600 = vld [vmem:[#allocation10] sm:$0xf]
        %3602 = vrot.lane.b32.xlu0 %v3600, 119
        %v3603 = vpop.permute.xlu0 %3602
        %3605 = vst.msk [vmem:[#allocation11] sm:$0xf] %vm3162, %v3603
        %v3606 = vld [vmem:[#allocation10] sm:$0xf]
        %3608 = vrot.lane.b32.xlu0 %v3606, 118
        %v3609 = vpop.permute.xlu0 %3608
        %3611 = vst.msk [vmem:[#allocation11 + $0x8] sm:$0xf] %vm3162, %v3609
        %v3612 = vld [vmem:[#allocation10] sm:$0xf]
        %3614 = vrot.lane.b32.xlu0 %v3612, 117
        %v3615 = vpop.permute.xlu0 %3614
        %3617 = vst.msk [vmem:[#allocation11 + $0x10] sm:$0xf] %vm3162, %v3615
        %v3618 = vld [vmem:[#allocation11] sm:$0xff]
        %v3619 = vld [vmem:[#allocation11 + $0x8] sm:$0xff]
        %v3620 = vld [vmem:[#allocation11 + $0x10] sm:$0xff]
        %v3621 = vld [vmem:[#allocation11 + $0x18] sm:$0xff]
        %v3622 = vld [vmem:[#allocation11 + $0x20] sm:$0xff]
        %v3623 = vpack.c.bf16 %v3619, %v3618
        %v3624 = vpack.c.bf16 %v3621, %v3620
        %v3625 = vpack.c.bf16 %v3622, %v3622
        %3627 = vset.pattern.permute.xlu0 5
        %3628 = vperm.xlu0 %3627, %v3594
        %v3629 = vpop.permute.xlu0 %3628
        %v3632 = vsel %vm1782, %v3593, 0
        %v3635 = vsel %vm1786, %v3625, 0
        %3637 = vmatprep.subr.bf16.mxu0 0
        %3638 = vmatpush1.bf16.msra.mxu0 0
        %3639 = vmatprep.subr.bf16.mxu0 0
        %3640 = vmatpush1.bf16.msra.mxu0 0
        %3641 = vmatprep.subr.bf16.mxu0 0
        %3642 = vmatpush1.bf16.msra.mxu0 0
        %3643 = vmatprep.subr.bf16.mxu0 0
        %3644 = vmatpush1.bf16.msra.mxu0 0
        %3645 = vmatprep.subr.bf16.mxu0 0
        %3646 = vmatpush1.bf16.msra.mxu0 0
        %3647 = vmatprep.subr.bf16.mxu0 0
        %3648 = vmatpush1.bf16.msra.mxu0 %v3635
        %3649 = vmatprep.subr.bf16.mxu0 0
        %3650 = vmatpush1.bf16.msra.mxu0 %v3624
        %3651 = vmatprep.subr.bf16.mxu0 0
        %3652 = vmatpush1.bf16.msra.mxu0 %v3623
        %3653 = vmatprep.subr.bf16.mxu0 0
        %3654 = vmatpush2.bf16.msra.mxu0 0
        %3655 = vmatprep.subr.bf16.mxu0 0
        %3656 = vmatpush2.bf16.msra.mxu0 0
        %3657 = vmatprep.subr.bf16.mxu0 0
        %3658 = vmatpush2.bf16.msra.mxu0 0
        %3659 = vmatprep.subr.bf16.mxu0 0
        %3660 = vmatpush2.bf16.msra.mxu0 0
        %3661 = vmatprep.subr.bf16.mxu0 0
        %3662 = vmatpush2.bf16.msra.mxu0 0
        %3663 = vmatprep.subr.bf16.mxu0 0
        %3664 = vmatpush2.bf16.msra.mxu0 0
        %3665 = vmatprep.subr.bf16.mxu0 0
        %3666 = vmatpush2.bf16.msra.mxu0 0
        %3667 = vmatprep.subr.bf16.mxu0 0
        %3668 = vmatpush2.bf16.msra.mxu0 0
        %3669 = vmatprep.mubr.bf16.mxu0 0
        %3670 = vmatmul.mubr.bf16.gmra.mxu0 %v3632
        %v3671 = vpop.f32.mrf.mxu0
        %v3672 = vadd.f32 %v3629, %v3671
        %v3673 = vpop.f32.mrf.mxu0
        %v3674 = vpop.f32.mrf.mxu0
        %v3675 = vpop.f32.mrf.mxu0
        %3676 = vdwg.mxu0
        %v3677 = vadd.f32 %v3672, %v3500
        %s3678 = scalar_lea.vmem [#allocation26], 12
        %v3679 = vld [vmem:[%s3678] sm:$0x3]
        %v3680 = vld [vmem:[%s12] sm:$0xf]
        %3681 = vst.msk [vmem:[#allocation10] sm:$0xf] %vm3155, %v3153
        %v3682 = vld [vmem:[#allocation10] sm:$0xf]
        %3684 = vrot.lane.b32.xlu0 %v3682, 120
        %v3685 = vpop.permute.xlu0 %3684
        %3687 = vst.msk [vmem:[#allocation11] sm:$0xf] %vm3162, %v3685
        %v3688 = vld [vmem:[#allocation10] sm:$0xf]
        %3690 = vrot.lane.b32.xlu0 %v3688, 119
        %v3691 = vpop.permute.xlu0 %3690
        %3693 = vst.msk [vmem:[#allocation11 + $0x8] sm:$0xf] %vm3162, %v3691
        %v3694 = vld [vmem:[#allocation10] sm:$0xf]
        %3696 = vrot.lane.b32.xlu0 %v3694, 118
        %v3697 = vpop.permute.xlu0 %3696
        %3699 = vst.msk [vmem:[#allocation11 + $0x10] sm:$0xf] %vm3162, %v3697
        %v3700 = vld [vmem:[#allocation10] sm:$0xf]
        %3702 = vrot.lane.b32.xlu0 %v3700, 117
        %v3703 = vpop.permute.xlu0 %3702
        %3705 = vst.msk [vmem:[#allocation11 + $0x18] sm:$0xf] %vm3162, %v3703
        %v3706 = vld [vmem:[#allocation10] sm:$0xf]
        %3708 = vrot.lane.b32.xlu0 %v3706, 116
        %v3709 = vpop.permute.xlu0 %3708
        %3711 = vst.msk [vmem:[#allocation11 + $0x20] sm:$0xf] %vm3162, %v3709
        %v3712 = vld [vmem:[#allocation11] sm:$0xff]
        %v3713 = vld [vmem:[#allocation11 + $0x8] sm:$0xff]
        %v3714 = vld [vmem:[#allocation11 + $0x10] sm:$0xff]
        %v3715 = vld [vmem:[#allocation11 + $0x18] sm:$0xff]
        %v3716 = vld [vmem:[#allocation11 + $0x20] sm:$0xff]
        %v3717 = vpack.c.bf16 %v3713, %v3712
        %v3718 = vpack.c.bf16 %v3715, %v3714
        %v3719 = vpack.c.bf16 %v3716, %v3716
        %3721 = vset.pattern.permute.xlu0 6
        %3722 = vperm.xlu0 %3721, %v3680
        %v3723 = vpop.permute.xlu0 %3722
        %v3726 = vsel %vm1782, %v3679, 0
        %v3729 = vsel %vm1786, %v3719, 0
        %3731 = vmatprep.subr.bf16.mxu0 0
        %3732 = vmatpush1.bf16.msra.mxu0 0
        %3733 = vmatprep.subr.bf16.mxu0 0
        %3734 = vmatpush1.bf16.msra.mxu0 0
        %3735 = vmatprep.subr.bf16.mxu0 0
        %3736 = vmatpush1.bf16.msra.mxu0 0
        %3737 = vmatprep.subr.bf16.mxu0 0
        %3738 = vmatpush1.bf16.msra.mxu0 0
        %3739 = vmatprep.subr.bf16.mxu0 0
        %3740 = vmatpush1.bf16.msra.mxu0 0
        %3741 = vmatprep.subr.bf16.mxu0 0
        %3742 = vmatpush1.bf16.msra.mxu0 %v3729
        %3743 = vmatprep.subr.bf16.mxu0 0
        %3744 = vmatpush1.bf16.msra.mxu0 %v3718
        %3745 = vmatprep.subr.bf16.mxu0 0
        %3746 = vmatpush1.bf16.msra.mxu0 %v3717
        %3747 = vmatprep.subr.bf16.mxu0 0
        %3748 = vmatpush2.bf16.msra.mxu0 0
        %3749 = vmatprep.subr.bf16.mxu0 0
        %3750 = vmatpush2.bf16.msra.mxu0 0
        %3751 = vmatprep.subr.bf16.mxu0 0
        %3752 = vmatpush2.bf16.msra.mxu0 0
        %3753 = vmatprep.subr.bf16.mxu0 0
        %3754 = vmatpush2.bf16.msra.mxu0 0
        %3755 = vmatprep.subr.bf16.mxu0 0
        %3756 = vmatpush2.bf16.msra.mxu0 0
        %3757 = vmatprep.subr.bf16.mxu0 0
        %3758 = vmatpush2.bf16.msra.mxu0 0
        %3759 = vmatprep.subr.bf16.mxu0 0
        %3760 = vmatpush2.bf16.msra.mxu0 0
        %3761 = vmatprep.subr.bf16.mxu0 0
        %3762 = vmatpush2.bf16.msra.mxu0 0
        %3763 = vmatprep.mubr.bf16.mxu0 0
        %3764 = vmatmul.mubr.bf16.gmra.mxu0 %v3726
        %v3765 = vpop.f32.mrf.mxu0
        %v3766 = vadd.f32 %v3723, %v3765
        %v3767 = vpop.f32.mrf.mxu0
        %v3768 = vpop.f32.mrf.mxu0
        %v3769 = vpop.f32.mrf.mxu0
        %3770 = vdwg.mxu0
        %vm3771 = vcmp.gt.f32.partialorder %v3766, 0.0
        %v3772 = vmul.f32 %v3766, 0.1
        %v3773 = vsel %vm3771, %v3766, %v3772
        %s3774 = scalar_lea.vmem [#allocation26], 14
        %v3775 = vld [vmem:[%s3774] sm:$0x3]
        %v3776 = vld [vmem:[%s12] sm:$0xf]
        %3778 = vrot.lane.b32.xlu0 %v3773, 10
        %v3779 = vpop.permute.xlu0 %3778
        %3781 = vst.msk [vmem:[#allocation10] sm:$0xf] %vm3155, %v3779
        %v3782 = vld [vmem:[#allocation10] sm:$0xf]
        %3784 = vrot.lane.b32.xlu0 %v3782, 120
        %v3785 = vpop.permute.xlu0 %3784
        %3787 = vst.msk [vmem:[#allocation11] sm:$0xf] %vm3162, %v3785
        %v3788 = vld [vmem:[#allocation10] sm:$0xf]
        %3790 = vrot.lane.b32.xlu0 %v3788, 119
        %v3791 = vpop.permute.xlu0 %3790
        %3793 = vst.msk [vmem:[#allocation11 + $0x8] sm:$0xf] %vm3162, %v3791
        %v3794 = vld [vmem:[#allocation10] sm:$0xf]
        %3796 = vrot.lane.b32.xlu0 %v3794, 118
        %v3797 = vpop.permute.xlu0 %3796
        %3799 = vst.msk [vmem:[#allocation11 + $0x10] sm:$0xf] %vm3162, %v3797
        %v3800 = vld [vmem:[#allocation10] sm:$0xf]
        %3802 = vrot.lane.b32.xlu0 %v3800, 117
        %v3803 = vpop.permute.xlu0 %3802
        %3805 = vst.msk [vmem:[#allocation11 + $0x18] sm:$0xf] %vm3162, %v3803
        %v3806 = vld [vmem:[#allocation10] sm:$0xf]
        %3808 = vrot.lane.b32.xlu0 %v3806, 116
        %v3809 = vpop.permute.xlu0 %3808
        %3811 = vst.msk [vmem:[#allocation11 + $0x20] sm:$0xf] %vm3162, %v3809
        %v3812 = vld [vmem:[#allocation11] sm:$0xff]
        %v3813 = vld [vmem:[#allocation11 + $0x8] sm:$0xff]
        %v3814 = vld [vmem:[#allocation11 + $0x10] sm:$0xff]
        %v3815 = vld [vmem:[#allocation11 + $0x18] sm:$0xff]
        %v3816 = vld [vmem:[#allocation11 + $0x20] sm:$0xff]
        %v3817 = vpack.c.bf16 %v3813, %v3812
        %v3818 = vpack.c.bf16 %v3815, %v3814
        %v3819 = vpack.c.bf16 %v3816, %v3816
        %3821 = vset.pattern.permute.xlu0 7
        %3822 = vperm.xlu0 %3821, %v3776
        %v3823 = vpop.permute.xlu0 %3822
        %v3826 = vsel %vm1782, %v3775, 0
        %v3829 = vsel %vm1786, %v3819, 0
        %3831 = vmatprep.subr.bf16.mxu0 0
        %3832 = vmatpush1.bf16.msra.mxu0 0
        %3833 = vmatprep.subr.bf16.mxu0 0
        %3834 = vmatpush1.bf16.msra.mxu0 0
        %3835 = vmatprep.subr.bf16.mxu0 0
        %3836 = vmatpush1.bf16.msra.mxu0 0
        %3837 = vmatprep.subr.bf16.mxu0 0
        %3838 = vmatpush1.bf16.msra.mxu0 0
        %3839 = vmatprep.subr.bf16.mxu0 0
        %3840 = vmatpush1.bf16.msra.mxu0 0
        %3841 = vmatprep.subr.bf16.mxu0 0
        %3842 = vmatpush1.bf16.msra.mxu0 %v3829
        %3843 = vmatprep.subr.bf16.mxu0 0
        %3844 = vmatpush1.bf16.msra.mxu0 %v3818
        %3845 = vmatprep.subr.bf16.mxu0 0
        %3846 = vmatpush1.bf16.msra.mxu0 %v3817
        %3847 = vmatprep.subr.bf16.mxu0 0
        %3848 = vmatpush2.bf16.msra.mxu0 0
        %3849 = vmatprep.subr.bf16.mxu0 0
        %3850 = vmatpush2.bf16.msra.mxu0 0
        %3851 = vmatprep.subr.bf16.mxu0 0
        %3852 = vmatpush2.bf16.msra.mxu0 0
        %3853 = vmatprep.subr.bf16.mxu0 0
        %3854 = vmatpush2.bf16.msra.mxu0 0
        %3855 = vmatprep.subr.bf16.mxu0 0
        %3856 = vmatpush2.bf16.msra.mxu0 0
        %3857 = vmatprep.subr.bf16.mxu0 0
        %3858 = vmatpush2.bf16.msra.mxu0 0
        %3859 = vmatprep.subr.bf16.mxu0 0
        %3860 = vmatpush2.bf16.msra.mxu0 0
        %3861 = vmatprep.subr.bf16.mxu0 0
        %3862 = vmatpush2.bf16.msra.mxu0 0
        %3863 = vmatprep.mubr.bf16.mxu0 0
        %3864 = vmatmul.mubr.bf16.gmra.mxu0 %v3826
        %v3865 = vpop.f32.mrf.mxu0
        %v3866 = vadd.f32 %v3823, %v3865
        %v3867 = vpop.f32.mrf.mxu0
        %v3868 = vpop.f32.mrf.mxu0
        %v3869 = vpop.f32.mrf.mxu0
        %3870 = vdwg.mxu0
        %v3871 = vadd.f32 %v3866, %v3145
        %vm3872 = vcmp.gt.f32.partialorder %v3871, 0.0
        %v3873 = vmul.f32 %v3871, 0.1
        %v3874 = vsel %vm3872, %v3871, %v3873
        %s3875 = scalar_lea.vmem [#allocation26], 16
        %v3876 = vld [vmem:[%s3875] sm:$0x3]
        %v3877 = vld [vmem:[%s12] sm:$0xf]
        %3879 = vrot.lane.b32.xlu0 %v3874, 10
        %v3880 = vpop.permute.xlu0 %3879
        %3882 = vst.msk [vmem:[#allocation10] sm:$0xf] %vm3155, %v3880
        %v3883 = vld [vmem:[#allocation10] sm:$0xf]
        %3885 = vrot.lane.b32.xlu0 %v3883, 124
        %v3886 = vpop.permute.xlu0 %3885
        %3888 = vst.msk [vmem:[#allocation11] sm:$0xf] %vm3162, %v3886
        %v3889 = vld [vmem:[#allocation10] sm:$0xf]
        %3891 = vrot.lane.b32.xlu0 %v3889, 121
        %v3892 = vpop.permute.xlu0 %3891
        %3894 = vst.msk [vmem:[#allocation11 + $0x8] sm:$0xf] %vm3162, %v3892
        %v3895 = vld [vmem:[#allocation10] sm:$0xf]
        %3897 = vrot.lane.b32.xlu0 %v3895, 118
        %v3898 = vpop.permute.xlu0 %3897
        %3900 = vst.msk [vmem:[#allocation11 + $0x10] sm:$0xf] %vm3162, %v3898
        %v3901 = vld [vmem:[#allocation10] sm:$0xf]
        %3903 = vrot.lane.b32.xlu0 %v3901, 115
        %v3904 = vpop.permute.xlu0 %3903
        %3906 = vst.msk [vmem:[#allocation11 + $0x18] sm:$0xf] %vm3162, %v3904
        %v3907 = vld [vmem:[#allocation10] sm:$0xf]
        %3909 = vrot.lane.b32.xlu0 %v3907, 112
        %v3910 = vpop.permute.xlu0 %3909
        %3912 = vst.msk [vmem:[#allocation11 + $0x20] sm:$0xf] %vm3162, %v3910
        %v3913 = vld [vmem:[#allocation11] sm:$0xff]
        %v3914 = vld [vmem:[#allocation11 + $0x8] sm:$0xff]
        %v3915 = vld [vmem:[#allocation11 + $0x10] sm:$0xff]
        %v3916 = vld [vmem:[#allocation11 + $0x18] sm:$0xff]
        %v3917 = vld [vmem:[#allocation11 + $0x20] sm:$0xff]
        %v3918 = vpack.c.bf16 %v3914, %v3913
        %v3919 = vpack.c.bf16 %v3916, %v3915
        %v3920 = vpack.c.bf16 %v3917, %v3917
        %3922 = vset.pattern.permute.xlu0 8
        %3923 = vperm.xlu0 %3922, %v3877
        %v3924 = vpop.permute.xlu0 %3923
        %v3927 = vsel %vm1782, %v3876, 0
        %v3930 = vsel %vm1786, %v3920, 0
        %3932 = vmatprep.subr.bf16.mxu0 0
        %3933 = vmatpush1.bf16.msra.mxu0 0
        %3934 = vmatprep.subr.bf16.mxu0 0
        %3935 = vmatpush1.bf16.msra.mxu0 0
        %3936 = vmatprep.subr.bf16.mxu0 0
        %3937 = vmatpush1.bf16.msra.mxu0 0
        %3938 = vmatprep.subr.bf16.mxu0 0
        %3939 = vmatpush1.bf16.msra.mxu0 0
        %3940 = vmatprep.subr.bf16.mxu0 0
        %3941 = vmatpush1.bf16.msra.mxu0 0
        %3942 = vmatprep.subr.bf16.mxu0 0
        %3943 = vmatpush1.bf16.msra.mxu0 %v3930
        %3944 = vmatprep.subr.bf16.mxu0 0
        %3945 = vmatpush1.bf16.msra.mxu0 %v3919
        %3946 = vmatprep.subr.bf16.mxu0 0
        %3947 = vmatpush1.bf16.msra.mxu0 %v3918
        %3948 = vmatprep.subr.bf16.mxu0 0
        %3949 = vmatpush2.bf16.msra.mxu0 0
        %3950 = vmatprep.subr.bf16.mxu0 0
        %3951 = vmatpush2.bf16.msra.mxu0 0
        %3952 = vmatprep.subr.bf16.mxu0 0
        %3953 = vmatpush2.bf16.msra.mxu0 0
        %3954 = vmatprep.subr.bf16.mxu0 0
        %3955 = vmatpush2.bf16.msra.mxu0 0
        %3956 = vmatprep.subr.bf16.mxu0 0
        %3957 = vmatpush2.bf16.msra.mxu0 0
        %3958 = vmatprep.subr.bf16.mxu0 0
        %3959 = vmatpush2.bf16.msra.mxu0 0
        %3960 = vmatprep.subr.bf16.mxu0 0
        %3961 = vmatpush2.bf16.msra.mxu0 0
        %3962 = vmatprep.subr.bf16.mxu0 0
        %3963 = vmatpush2.bf16.msra.mxu0 0
        %3964 = vmatprep.mubr.bf16.mxu0 0
        %3965 = vmatmul.mubr.bf16.gmra.mxu0 %v3927
        %v3966 = vpop.f32.mrf.mxu0
        %v3967 = vadd.f32 %v3924, %v3966
        %v3968 = vpop.f32.mrf.mxu0
        %v3969 = vpop.f32.mrf.mxu0
        %v3970 = vpop.f32.mrf.mxu0
        %3971 = vdwg.mxu0
        %vm3972 = vcmp.gt.f32.partialorder %v3967, 0.0
        %v3973 = vmul.f32 %v3967, 0.1
        %v3974 = vsel %vm3972, %v3967, %v3973
        %s3975 = scalar_lea.vmem [#allocation26], 18
        %v3976 = vld [vmem:[%s3975] sm:$0x3]
        %v3977 = vld [vmem:[%s12] sm:$0xf]
        %3979 = vrot.lane.b32.xlu0 %v3974, 10
        %v3980 = vpop.permute.xlu0 %3979
        %3982 = vst.msk [vmem:[#allocation10] sm:$0xf] %vm3155, %v3980
        %v3983 = vld [vmem:[#allocation10] sm:$0xf]
        %3985 = vrot.lane.b32.xlu0 %v3983, 120
        %v3986 = vpop.permute.xlu0 %3985
        %3988 = vst.msk [vmem:[#allocation11] sm:$0xf] %vm3162, %v3986
        %v3989 = vld [vmem:[#allocation10] sm:$0xf]
        %3991 = vrot.lane.b32.xlu0 %v3989, 119
        %v3992 = vpop.permute.xlu0 %3991
        %3994 = vst.msk [vmem:[#allocation11 + $0x8] sm:$0xf] %vm3162, %v3992
        %v3995 = vld [vmem:[#allocation10] sm:$0xf]
        %3997 = vrot.lane.b32.xlu0 %v3995, 118
        %v3998 = vpop.permute.xlu0 %3997
        %4000 = vst.msk [vmem:[#allocation11 + $0x10] sm:$0xf] %vm3162, %v3998
        %v4001 = vld [vmem:[#allocation10] sm:$0xf]
        %4003 = vrot.lane.b32.xlu0 %v4001, 117
        %v4004 = vpop.permute.xlu0 %4003
        %4006 = vst.msk [vmem:[#allocation11 + $0x18] sm:$0xf] %vm3162, %v4004
        %v4007 = vld [vmem:[#allocation10] sm:$0xf]
        %4009 = vrot.lane.b32.xlu0 %v4007, 116
        %v4010 = vpop.permute.xlu0 %4009
        %4012 = vst.msk [vmem:[#allocation11 + $0x20] sm:$0xf] %vm3162, %v4010
        %v4013 = vld [vmem:[#allocation11] sm:$0xff]
        %v4014 = vld [vmem:[#allocation11 + $0x8] sm:$0xff]
        %v4015 = vld [vmem:[#allocation11 + $0x10] sm:$0xff]
        %v4016 = vld [vmem:[#allocation11 + $0x18] sm:$0xff]
        %v4017 = vld [vmem:[#allocation11 + $0x20] sm:$0xff]
        %v4018 = vpack.c.bf16 %v4014, %v4013
        %v4019 = vpack.c.bf16 %v4016, %v4015
        %v4020 = vpack.c.bf16 %v4017, %v4017
        %4022 = vset.pattern.permute.xlu0 9
        %4023 = vperm.xlu0 %4022, %v3977
        %v4024 = vpop.permute.xlu0 %4023
        %v4027 = vsel %vm1782, %v3976, 0
        %v4030 = vsel %vm1786, %v4020, 0
        %4032 = vmatprep.subr.bf16.mxu0 0
        %4033 = vmatpush1.bf16.msra.mxu0 0
        %4034 = vmatprep.subr.bf16.mxu0 0
        %4035 = vmatpush1.bf16.msra.mxu0 0
        %4036 = vmatprep.subr.bf16.mxu0 0
        %4037 = vmatpush1.bf16.msra.mxu0 0
        %4038 = vmatprep.subr.bf16.mxu0 0
        %4039 = vmatpush1.bf16.msra.mxu0 0
        %4040 = vmatprep.subr.bf16.mxu0 0
        %4041 = vmatpush1.bf16.msra.mxu0 0
        %4042 = vmatprep.subr.bf16.mxu0 0
        %4043 = vmatpush1.bf16.msra.mxu0 %v4030
        %4044 = vmatprep.subr.bf16.mxu0 0
        %4045 = vmatpush1.bf16.msra.mxu0 %v4019
        %4046 = vmatprep.subr.bf16.mxu0 0
        %4047 = vmatpush1.bf16.msra.mxu0 %v4018
        %4048 = vmatprep.subr.bf16.mxu0 0
        %4049 = vmatpush2.bf16.msra.mxu0 0
        %4050 = vmatprep.subr.bf16.mxu0 0
        %4051 = vmatpush2.bf16.msra.mxu0 0
        %4052 = vmatprep.subr.bf16.mxu0 0
        %4053 = vmatpush2.bf16.msra.mxu0 0
        %4054 = vmatprep.subr.bf16.mxu0 0
        %4055 = vmatpush2.bf16.msra.mxu0 0
        %4056 = vmatprep.subr.bf16.mxu0 0
        %4057 = vmatpush2.bf16.msra.mxu0 0
        %4058 = vmatprep.subr.bf16.mxu0 0
        %4059 = vmatpush2.bf16.msra.mxu0 0
        %4060 = vmatprep.subr.bf16.mxu0 0
        %4061 = vmatpush2.bf16.msra.mxu0 0
        %4062 = vmatprep.subr.bf16.mxu0 0
        %4063 = vmatpush2.bf16.msra.mxu0 0
        %4064 = vmatprep.mubr.bf16.mxu0 0
        %4065 = vmatmul.mubr.bf16.gmra.mxu0 %v4027
        %v4066 = vpop.f32.mrf.mxu0
        %v4067 = vadd.f32 %v4024, %v4066
        %v4068 = vpop.f32.mrf.mxu0
        %v4069 = vpop.f32.mrf.mxu0
        %v4070 = vpop.f32.mrf.mxu0
        %4071 = vdwg.mxu0
        %v4072 = vadd.f32 %v4067, %v3871
        %vm4073 = vcmp.gt.f32.partialorder %v4072, 0.0
        %v4074 = vmul.f32 %v4072, 0.1
        %v4075 = vsel %vm4073, %v4072, %v4074
        %s4076 = scalar_lea.vmem [#allocation26], 20
        %v4077 = vld [vmem:[%s4076] sm:$0x3]
        %v4078 = vld [vmem:[%s12] sm:$0xf]
        %4080 = vrot.lane.b32.xlu0 %v4075, 10
        %v4081 = vpop.permute.xlu0 %4080
        %4083 = vst.msk [vmem:[#allocation10] sm:$0xf] %vm3155, %v4081
        %v4084 = vld [vmem:[#allocation10] sm:$0xf]
        %4085 = vst.msk [vmem:[#allocation11] sm:$0xf] %vm3162, %v4084
        %v4086 = vld [vmem:[#allocation10] sm:$0xf]
        %4088 = vrot.lane.b32.xlu0 %v4086, 123
        %v4089 = vpop.permute.xlu0 %4088
        %4091 = vst.msk [vmem:[#allocation11 + $0x8] sm:$0xf] %vm3162, %v4089
        %v4092 = vld [vmem:[#allocation10] sm:$0xf]
        %4094 = vrot.lane.b32.xlu0 %v4092, 118
        %v4095 = vpop.permute.xlu0 %4094
        %4097 = vst.msk [vmem:[#allocation11 + $0x10] sm:$0xf] %vm3162, %v4095
        %v4098 = vld [vmem:[#allocation10] sm:$0xf]
        %4100 = vrot.lane.b32.xlu0 %v4098, 113
        %v4101 = vpop.permute.xlu0 %4100
        %4103 = vst.msk [vmem:[#allocation11 + $0x18] sm:$0xf] %vm3162, %v4101
        %v4104 = vld [vmem:[#allocation10] sm:$0xf]
        %4106 = vrot.lane.b32.xlu0 %v4104, 108
        %v4107 = vpop.permute.xlu0 %4106
        %4109 = vst.msk [vmem:[#allocation11 + $0x20] sm:$0xf] %vm3162, %v4107
        %v4110 = vld [vmem:[#allocation11] sm:$0xff]
        %v4111 = vld [vmem:[#allocation11 + $0x8] sm:$0xff]
        %v4112 = vld [vmem:[#allocation11 + $0x10] sm:$0xff]
        %v4113 = vld [vmem:[#allocation11 + $0x18] sm:$0xff]
        %v4114 = vld [vmem:[#allocation11 + $0x20] sm:$0xff]
        %v4115 = vpack.c.bf16 %v4111, %v4110
        %v4116 = vpack.c.bf16 %v4113, %v4112
        %v4117 = vpack.c.bf16 %v4114, %v4114
        %4119 = vset.pattern.permute.xlu0 10
        %4120 = vperm.xlu0 %4119, %v4078
        %v4121 = vpop.permute.xlu0 %4120
        %v4124 = vsel %vm1782, %v4077, 0
        %v4127 = vsel %vm1786, %v4117, 0
        %4129 = vmatprep.subr.bf16.mxu0 0
        %4130 = vmatpush1.bf16.msra.mxu0 0
        %4131 = vmatprep.subr.bf16.mxu0 0
        %4132 = vmatpush1.bf16.msra.mxu0 0
        %4133 = vmatprep.subr.bf16.mxu0 0
        %4134 = vmatpush1.bf16.msra.mxu0 0
        %4135 = vmatprep.subr.bf16.mxu0 0
        %4136 = vmatpush1.bf16.msra.mxu0 0
        %4137 = vmatprep.subr.bf16.mxu0 0
        %4138 = vmatpush1.bf16.msra.mxu0 0
        %4139 = vmatprep.subr.bf16.mxu0 0
        %4140 = vmatpush1.bf16.msra.mxu0 %v4127
        %4141 = vmatprep.subr.bf16.mxu0 0
        %4142 = vmatpush1.bf16.msra.mxu0 %v4116
        %4143 = vmatprep.subr.bf16.mxu0 0
        %4144 = vmatpush1.bf16.msra.mxu0 %v4115
        %4145 = vmatprep.subr.bf16.mxu0 0
        %4146 = vmatpush2.bf16.msra.mxu0 0
        %4147 = vmatprep.subr.bf16.mxu0 0
        %4148 = vmatpush2.bf16.msra.mxu0 0
        %4149 = vmatprep.subr.bf16.mxu0 0
        %4150 = vmatpush2.bf16.msra.mxu0 0
        %4151 = vmatprep.subr.bf16.mxu0 0
        %4152 = vmatpush2.bf16.msra.mxu0 0
        %4153 = vmatprep.subr.bf16.mxu0 0
        %4154 = vmatpush2.bf16.msra.mxu0 0
        %4155 = vmatprep.subr.bf16.mxu0 0
        %4156 = vmatpush2.bf16.msra.mxu0 0
        %4157 = vmatprep.subr.bf16.mxu0 0
        %4158 = vmatpush2.bf16.msra.mxu0 0
        %4159 = vmatprep.subr.bf16.mxu0 0
        %4160 = vmatpush2.bf16.msra.mxu0 0
        %4161 = vmatprep.mubr.bf16.mxu0 0
        %4162 = vmatmul.mubr.bf16.gmra.mxu0 %v4124
        %v4163 = vpop.f32.mrf.mxu0
        %v4164 = vadd.f32 %v4121, %v4163
        %v4165 = vpop.f32.mrf.mxu0
        %v4166 = vpop.f32.mrf.mxu0
        %v4167 = vpop.f32.mrf.mxu0
        %4168 = vdwg.mxu0
        %vm4169 = vcmp.gt.f32.partialorder %v4164, 0.0
        %v4170 = vmul.f32 %v4164, 0.1
        %v4171 = vsel %vm4169, %v4164, %v4170
        %s4172 = scalar_lea.vmem [#allocation26], 22
        %v4173 = vld [vmem:[%s4172] sm:$0x3]
        %v4174 = vld [vmem:[%s12] sm:$0xf]
        %4176 = vrot.lane.b32.xlu0 %v4171, 10
        %v4177 = vpop.permute.xlu0 %4176
        %4179 = vst.msk [vmem:[#allocation10] sm:$0xf] %vm3155, %v4177
        %v4180 = vld [vmem:[#allocation10] sm:$0xf]
        %4182 = vrot.lane.b32.xlu0 %v4180, 120
        %v4183 = vpop.permute.xlu0 %4182
        %4185 = vst.msk [vmem:[#allocation11] sm:$0xf] %vm3162, %v4183
        %v4186 = vld [vmem:[#allocation10] sm:$0xf]
        %4188 = vrot.lane.b32.xlu0 %v4186, 119
        %v4189 = vpop.permute.xlu0 %4188
        %4191 = vst.msk [vmem:[#allocation11 + $0x8] sm:$0xf] %vm3162, %v4189
        %v4192 = vld [vmem:[#allocation10] sm:$0xf]
        %4194 = vrot.lane.b32.xlu0 %v4192, 118
        %v4195 = vpop.permute.xlu0 %4194
        %4197 = vst.msk [vmem:[#allocation11 + $0x10] sm:$0xf] %vm3162, %v4195
        %v4198 = vld [vmem:[#allocation10] sm:$0xf]
        %4200 = vrot.lane.b32.xlu0 %v4198, 117
        %v4201 = vpop.permute.xlu0 %4200
        %4203 = vst.msk [vmem:[#allocation11 + $0x18] sm:$0xf] %vm3162, %v4201
        %v4204 = vld [vmem:[#allocation10] sm:$0xf]
        %4206 = vrot.lane.b32.xlu0 %v4204, 116
        %v4207 = vpop.permute.xlu0 %4206
        %4209 = vst.msk [vmem:[#allocation11 + $0x20] sm:$0xf] %vm3162, %v4207
        %v4210 = vld [vmem:[#allocation11] sm:$0xff]
        %v4211 = vld [vmem:[#allocation11 + $0x8] sm:$0xff]
        %v4212 = vld [vmem:[#allocation11 + $0x10] sm:$0xff]
        %v4213 = vld [vmem:[#allocation11 + $0x18] sm:$0xff]
        %v4214 = vld [vmem:[#allocation11 + $0x20] sm:$0xff]
        %v4215 = vpack.c.bf16 %v4211, %v4210
        %v4216 = vpack.c.bf16 %v4213, %v4212
        %v4217 = vpack.c.bf16 %v4214, %v4214
        %4219 = vset.pattern.permute.xlu0 11
        %4220 = vperm.xlu0 %4219, %v4174
        %v4221 = vpop.permute.xlu0 %4220
        %v4224 = vsel %vm1782, %v4173, 0
        %v4227 = vsel %vm1786, %v4217, 0
        %4229 = vmatprep.subr.bf16.mxu0 0
        %4230 = vmatpush1.bf16.msra.mxu0 0
        %4231 = vmatprep.subr.bf16.mxu0 0
        %4232 = vmatpush1.bf16.msra.mxu0 0
        %4233 = vmatprep.subr.bf16.mxu0 0
        %4234 = vmatpush1.bf16.msra.mxu0 0
        %4235 = vmatprep.subr.bf16.mxu0 0
        %4236 = vmatpush1.bf16.msra.mxu0 0
        %4237 = vmatprep.subr.bf16.mxu0 0
        %4238 = vmatpush1.bf16.msra.mxu0 0
        %4239 = vmatprep.subr.bf16.mxu0 0
        %4240 = vmatpush1.bf16.msra.mxu0 %v4227
        %4241 = vmatprep.subr.bf16.mxu0 0
        %4242 = vmatpush1.bf16.msra.mxu0 %v4216
        %4243 = vmatprep.subr.bf16.mxu0 0
        %4244 = vmatpush1.bf16.msra.mxu0 %v4215
        %4245 = vmatprep.subr.bf16.mxu0 0
        %4246 = vmatpush2.bf16.msra.mxu0 0
        %4247 = vmatprep.subr.bf16.mxu0 0
        %4248 = vmatpush2.bf16.msra.mxu0 0
        %4249 = vmatprep.subr.bf16.mxu0 0
        %4250 = vmatpush2.bf16.msra.mxu0 0
        %4251 = vmatprep.subr.bf16.mxu0 0
        %4252 = vmatpush2.bf16.msra.mxu0 0
        %4253 = vmatprep.subr.bf16.mxu0 0
        %4254 = vmatpush2.bf16.msra.mxu0 0
        %4255 = vmatprep.subr.bf16.mxu0 0
        %4256 = vmatpush2.bf16.msra.mxu0 0
        %4257 = vmatprep.subr.bf16.mxu0 0
        %4258 = vmatpush2.bf16.msra.mxu0 0
        %4259 = vmatprep.subr.bf16.mxu0 0
        %4260 = vmatpush2.bf16.msra.mxu0 0
        %4261 = vmatprep.mubr.bf16.mxu0 0
        %4262 = vmatmul.mubr.bf16.gmra.mxu0 %v4224
        %v4263 = vpop.f32.mrf.mxu0
        %v4264 = vadd.f32 %v4221, %v4263
        %v4265 = vpop.f32.mrf.mxu0
        %v4266 = vpop.f32.mrf.mxu0
        %v4267 = vpop.f32.mrf.mxu0
        %4268 = vdwg.mxu0
        %v4269 = vadd.f32 %v4264, %v4072
        %v4270 = vadd.f32 %v3677, %v4269
        %v4271 = vmul.f32 %v4270, 0.5
        %vm4272 = vcmp.gt.f32.partialorder %v4271, 0.0
        %v4273 = vmul.f32 %v4271, 0.1
        %v4274 = vsel %vm4272, %v4271, %v4273
        %v4275 = vld [vmem:[%s13] sm:$0x1]
        %4277 = vrot.lane.b32.xlu0 %v4274, 3
        %v4278 = vpop.permute.xlu0 %4277
        %vm4280 = vcmask 281624
        %4281 = vst.msk [vmem:[#allocation12] sm:$0xf] %vm4280, %v4278
        %v4282 = vld [vmem:[#allocation12] sm:$0xf]
        %4283 = vst.msk [vmem:[#allocation13] sm:$0xf] %vm3162, %v4282
        %v4284 = vld [vmem:[#allocation12] sm:$0xf]
        %4286 = vrot.lane.b32.xlu0 %v4284, 127
        %v4287 = vpop.permute.xlu0 %4286
        %4289 = vst.msk [vmem:[#allocation13 + $0x8] sm:$0xf] %vm3162, %v4287
        %v4290 = vld [vmem:[#allocation12] sm:$0xf]
        %4292 = vrot.lane.b32.xlu0 %v4290, 126
        %v4293 = vpop.permute.xlu0 %4292
        %4295 = vst.msk [vmem:[#allocation13 + $0x10] sm:$0xf] %vm3162, %v4293
        %v4296 = vld [vmem:[#allocation12] sm:$0xf]
        %4298 = vrot.lane.b32.xlu0 %v4296, 125
        %v4299 = vpop.permute.xlu0 %4298
        %4301 = vst.msk [vmem:[#allocation13 + $0x18] sm:$0xf] %vm3162, %v4299
        %v4302 = vld [vmem:[#allocation12] sm:$0xf]
        %4304 = vrot.lane.b32.xlu0 %v4302, 124
        %v4305 = vpop.permute.xlu0 %4304
        %4307 = vst.msk [vmem:[#allocation13 + $0x20] sm:$0xf] %vm3162, %v4305
        %v4308 = vld [vmem:[#allocation12] sm:$0xf]
        %4310 = vrot.lane.b32.xlu0 %v4308, 123
        %v4311 = vpop.permute.xlu0 %4310
        %4313 = vst.msk [vmem:[#allocation13 + $0x28] sm:$0xf] %vm3162, %v4311
        %v4314 = vld [vmem:[#allocation12] sm:$0xf]
        %4316 = vrot.lane.b32.xlu0 %v4314, 122
        %v4317 = vpop.permute.xlu0 %4316
        %4319 = vst.msk [vmem:[#allocation13 + $0x30] sm:$0xf] %vm3162, %v4317
        %v4320 = vld [vmem:[#allocation13] sm:$0xff]
        %v4321 = vld [vmem:[#allocation13 + $0x8] sm:$0xff]
        %v4322 = vld [vmem:[#allocation13 + $0x10] sm:$0xff]
        %v4323 = vld [vmem:[#allocation13 + $0x18] sm:$0xff]
        %v4324 = vld [vmem:[#allocation13 + $0x20] sm:$0xff]
        %v4325 = vld [vmem:[#allocation13 + $0x28] sm:$0xff]
        %v4326 = vld [vmem:[#allocation13 + $0x30] sm:$0xff]
        %v4327 = vpack.c.bf16 %v4321, %v4320
        %v4328 = vpack.c.bf16 %v4323, %v4322
        %v4329 = vpack.c.bf16 %v4325, %v4324
        %v4330 = vpack.c.bf16 %v4326, %v4326
        %vm4331 = vcmask 457728
        %v4333 = vsel %vm4331, %v4275, 0
        %v4336 = vsel %vm1786, %v4330, 0
        %4338 = vmatprep.subr.bf16.mxu0 0
        %4339 = vmatpush1.bf16.msra.mxu0 0
        %4340 = vmatprep.subr.bf16.mxu0 0
        %4341 = vmatpush1.bf16.msra.mxu0 0
        %4342 = vmatprep.subr.bf16.mxu0 0
        %4343 = vmatpush1.bf16.msra.mxu0 0
        %4344 = vmatprep.subr.bf16.mxu0 0
        %4345 = vmatpush1.bf16.msra.mxu0 0
        %4346 = vmatprep.subr.bf16.mxu0 0
        %4347 = vmatpush1.bf16.msra.mxu0 %v4336
        %4348 = vmatprep.subr.bf16.mxu0 0
        %4349 = vmatpush1.bf16.msra.mxu0 %v4329
        %4350 = vmatprep.subr.bf16.mxu0 0
        %4351 = vmatpush1.bf16.msra.mxu0 %v4328
        %4352 = vmatprep.subr.bf16.mxu0 0
        %4353 = vmatpush1.bf16.msra.mxu0 %v4327
        %4354 = vmatprep.subr.bf16.mxu0 0
        %4355 = vmatpush2.bf16.msra.mxu0 0
        %4356 = vmatprep.subr.bf16.mxu0 0
        %4357 = vmatpush2.bf16.msra.mxu0 0
        %4358 = vmatprep.subr.bf16.mxu0 0
        %4359 = vmatpush2.bf16.msra.mxu0 0
        %4360 = vmatprep.subr.bf16.mxu0 0
        %4361 = vmatpush2.bf16.msra.mxu0 0
        %4362 = vmatprep.subr.bf16.mxu0 0
        %4363 = vmatpush2.bf16.msra.mxu0 0
        %4364 = vmatprep.subr.bf16.mxu0 0
        %4365 = vmatpush2.bf16.msra.mxu0 0
        %4366 = vmatprep.subr.bf16.mxu0 0
        %4367 = vmatpush2.bf16.msra.mxu0 0
        %4368 = vmatprep.subr.bf16.mxu0 0
        %4369 = vmatpush2.bf16.msra.mxu0 0
        %4370 = vmatprep.mubr.bf16.mxu0 0
        %4371 = vmatmul.mubr.bf16.gmra.mxu0 %v4333
        %v4372 = vpop.f32.mrf.mxu0
        %v4373 = vadd.f32 0.0, %v4372
        %v4374 = vpop.f32.mrf.mxu0
        %v4375 = vpop.f32.mrf.mxu0
        %v4376 = vpop.f32.mrf.mxu0
        %4377 = vdwg.mxu0
        %v4378 = vtanh.pop %v4373
        %v4379 = vld [vmem:[%s14] sm:$0xff]
        %v4380 = vld [vmem:[%s14 + $0x8] sm:$0xff]
        %v4381 = vld [vmem:[%s14 + $0x10] sm:$0xff]
        %v4382 = vld [vmem:[%s14 + $0x18] sm:$0xff]
        %s4383 = scalar_lea.vmem %s14, 32
        %v4384 = vld [vmem:[%s4383] sm:$0xff]
        %v4385 = vld [vmem:[%s4383 + $0x8] sm:$0xff]
        %v4386 = vld [vmem:[%s4383 + $0x10] sm:$0xff]
        %v4387 = vld [vmem:[%s4383 + $0x18] sm:$0xff]
        %v4389 = vrot.slane %v4378, 1
        %v4390 = vsel %vm710, %v4389, 0
        %4392 = vmatprep.subr.mxu0 0.0
        %4393 = vmatpush1.msra.mxu0 0.0
        %4394 = vmatprep.subr.mxu0 0.0
        %4395 = vmatpush1.msra.mxu0 0.0
        %4396 = vmatprep.subr.mxu0 0.0
        %4397 = vmatpush1.msra.mxu0 0.0
        %4398 = vmatprep.subr.mxu0 0.0
        %4399 = vmatpush1.msra.mxu0 0.0
        %4400 = vmatprep.subr.mxu0 0.0
        %4401 = vmatpush1.msra.mxu0 0.0
        %4402 = vmatprep.subr.mxu0 0.0
        %4403 = vmatpush1.msra.mxu0 0.0
        %4404 = vmatprep.subr.mxu0 0.0
        %4405 = vmatpush1.msra.mxu0 0.0
        %4406 = vmatprep.subr.mxu0 0.0
        %4407 = vmatpush1.msra.mxu0 0.0
        %4408 = vmatprep.subr.mxu0 0.0
        %4409 = vmatpush1.msra.mxu0 0.0
        %4410 = vmatprep.subr.mxu0 0.0
        %4411 = vmatpush1.msra.mxu0 0.0
        %4412 = vmatprep.subr.mxu0 0.0
        %4413 = vmatpush1.msra.mxu0 0.0
        %4414 = vmatprep.subr.mxu0 0.0
        %4415 = vmatpush1.msra.mxu0 0.0
        %4416 = vmatprep.subr.mxu0 0.0
        %4417 = vmatpush1.msra.mxu0 %v4387
        %4418 = vmatprep.subr.mxu0 0.0
        %4419 = vmatpush1.msra.mxu0 %v4386
        %4420 = vmatprep.subr.mxu0 0.0
        %4421 = vmatpush1.msra.mxu0 %v4385
        %4422 = vmatprep.subr.mxu0 0.0
        %4423 = vmatpush1.msra.mxu0 %v4384
        %4424 = vmatprep.subr.mxu0 0.0
        %4425 = vmatpush2.msra.mxu0 0.0
        %4426 = vmatprep.subr.mxu0 0.0
        %4427 = vmatpush2.msra.mxu0 0.0
        %4428 = vmatprep.subr.mxu0 0.0
        %4429 = vmatpush2.msra.mxu0 0.0
        %4430 = vmatprep.subr.mxu0 0.0
        %4431 = vmatpush2.msra.mxu0 0.0
        %4432 = vmatprep.subr.mxu0 0.0
        %4433 = vmatpush2.msra.mxu0 0.0
        %4434 = vmatprep.subr.mxu0 0.0
        %4435 = vmatpush2.msra.mxu0 0.0
        %4436 = vmatprep.subr.mxu0 0.0
        %4437 = vmatpush2.msra.mxu0 0.0
        %4438 = vmatprep.subr.mxu0 0.0
        %4439 = vmatpush2.msra.mxu0 0.0
        %4440 = vmatprep.subr.mxu0 0.0
        %4441 = vmatpush2.msra.mxu0 0.0
        %4442 = vmatprep.subr.mxu0 0.0
        %4443 = vmatpush2.msra.mxu0 0.0
        %4444 = vmatprep.subr.mxu0 0.0
        %4445 = vmatpush2.msra.mxu0 0.0
        %4446 = vmatprep.subr.mxu0 0.0
        %4447 = vmatpush2.msra.mxu0 0.0
        %4448 = vmatprep.subr.mxu0 0.0
        %4449 = vmatpush2.msra.mxu0 0.0
        %4450 = vmatprep.subr.mxu0 0.0
        %4451 = vmatpush2.msra.mxu0 0.0
        %4452 = vmatprep.subr.mxu0 0.0
        %4453 = vmatpush2.msra.mxu0 0.0
        %4454 = vmatprep.subr.mxu0 0.0
        %4455 = vmatpush2.msra.mxu0 0.0
        %4456 = vmatprep.mubr.f32.mxu0 0.0
        %4457 = vmatmul.mubr.f32.gmra.mxu0 %v4390
        %v4458 = vpop.f32.mrf.mxu0
        %v4459 = vadd.f32 0.0, %v4458
        %v4460 = vpop.f32.mrf.mxu0
        %4461 = vdwg.mxu0
        %v4462 = vsel %vm710, %v4378, 0
        %4464 = vmatprep.subr.mxu0 0.0
        %4465 = vmatpush1.msra.mxu0 0.0
        %4466 = vmatprep.subr.mxu0 0.0
        %4467 = vmatpush1.msra.mxu0 0.0
        %4468 = vmatprep.subr.mxu0 0.0
        %4469 = vmatpush1.msra.mxu0 0.0
        %4470 = vmatprep.subr.mxu0 0.0
        %4471 = vmatpush1.msra.mxu0 0.0
        %4472 = vmatprep.subr.mxu0 0.0
        %4473 = vmatpush1.msra.mxu0 0.0
        %4474 = vmatprep.subr.mxu0 0.0
        %4475 = vmatpush1.msra.mxu0 0.0
        %4476 = vmatprep.subr.mxu0 0.0
        %4477 = vmatpush1.msra.mxu0 0.0
        %4478 = vmatprep.subr.mxu0 0.0
        %4479 = vmatpush1.msra.mxu0 0.0
        %4480 = vmatprep.subr.mxu0 0.0
        %4481 = vmatpush1.msra.mxu0 0.0
        %4482 = vmatprep.subr.mxu0 0.0
        %4483 = vmatpush1.msra.mxu0 0.0
        %4484 = vmatprep.subr.mxu0 0.0
        %4485 = vmatpush1.msra.mxu0 0.0
        %4486 = vmatprep.subr.mxu0 0.0
        %4487 = vmatpush1.msra.mxu0 0.0
        %4488 = vmatprep.subr.mxu0 0.0
        %4489 = vmatpush1.msra.mxu0 %v4382
        %4490 = vmatprep.subr.mxu0 0.0
        %4491 = vmatpush1.msra.mxu0 %v4381
        %4492 = vmatprep.subr.mxu0 0.0
        %4493 = vmatpush1.msra.mxu0 %v4380
        %4494 = vmatprep.subr.mxu0 0.0
        %4495 = vmatpush1.msra.mxu0 %v4379
        %4496 = vmatprep.subr.mxu0 0.0
        %4497 = vmatpush2.msra.mxu0 0.0
        %4498 = vmatprep.subr.mxu0 0.0
        %4499 = vmatpush2.msra.mxu0 0.0
        %4500 = vmatprep.subr.mxu0 0.0
        %4501 = vmatpush2.msra.mxu0 0.0
        %4502 = vmatprep.subr.mxu0 0.0
        %4503 = vmatpush2.msra.mxu0 0.0
        %4504 = vmatprep.subr.mxu0 0.0
        %4505 = vmatpush2.msra.mxu0 0.0
        %4506 = vmatprep.subr.mxu0 0.0
        %4507 = vmatpush2.msra.mxu0 0.0
        %4508 = vmatprep.subr.mxu0 0.0
        %4509 = vmatpush2.msra.mxu0 0.0
        %4510 = vmatprep.subr.mxu0 0.0
        %4511 = vmatpush2.msra.mxu0 0.0
        %4512 = vmatprep.subr.mxu0 0.0
        %4513 = vmatpush2.msra.mxu0 0.0
        %4514 = vmatprep.subr.mxu0 0.0
        %4515 = vmatpush2.msra.mxu0 0.0
        %4516 = vmatprep.subr.mxu0 0.0
        %4517 = vmatpush2.msra.mxu0 0.0
        %4518 = vmatprep.subr.mxu0 0.0
        %4519 = vmatpush2.msra.mxu0 0.0
        %4520 = vmatprep.subr.mxu0 0.0
        %4521 = vmatpush2.msra.mxu0 0.0
        %4522 = vmatprep.subr.mxu0 0.0
        %4523 = vmatpush2.msra.mxu0 0.0
        %4524 = vmatprep.subr.mxu0 0.0
        %4525 = vmatpush2.msra.mxu0 0.0
        %4526 = vmatprep.subr.mxu0 0.0
        %4527 = vmatpush2.msra.mxu0 0.0
        %4528 = vmatprep.mubr.f32.mxu0 0.0
        %4529 = vmatmul.mubr.f32.gmra.mxu0 %v4462
        %v4530 = vpop.f32.mrf.mxu0
        %v4531 = vadd.f32 %v4459, %v4530
        %v4532 = vpop.f32.mrf.mxu0
        %4533 = vdwg.mxu0
        %vm4534 = vcmask 516096
        %4535 = vst.msk [vmem:[%s597] sm:$0x1] %vm4534, %v4531
        %s4536 = sand.u32 %s362, 1
        %s4537 = scalar_lea.sflag [#allocation16], %s4536
        %s4538 = sand.u32 %s362, 1
        %s4539 = scalar_lea.vmem [#allocation28], %s4538
        // Predicated region
        $region113: #{generator_forward.1} parent=79 // pred_check
          %p4540 = pneg %p372
        $region114: #{generator_forward.1} parent=79 // pred_check_branch
          %4542 = sbr.rel (%p4540) target = $region116
        $region115: #{generator_forward.1} parent=79 // pred_region
          %s4544 = ssub.s32 16, 16
          %4545 = vsyncadd %s4537, %s4544
          %s4546 = smul.addr %s34, 16
          %s4547 = scalar_lea.hbm %s15, %s4546
          %s4549 = sshll.u32 %s4539, 4
          %s4550 = int_to_ptr.vmem [resolvable:$true] %s4549
          %4552 = dma.vmem_to_hbm [thread:$0]  %s4550, 16, %s4547, %s4537
        $region116: #{generator_forward.1} parent=79 // pred_fallthru
          _
      $region80: #{generator_forward.1} parent=5 // pred_fallthru
        _
      %p4553 = scmp.le.s32.totalorder 2, %s29
      // Predicated region
      $region117: #{generator_forward.1} parent=5 // pred_check
        %p4554 = pneg %p4553
      $region118: #{generator_forward.1} parent=5 // pred_check_branch
        %4556 = sbr.rel (%p4554) target = $region120
      $region119: #{generator_forward.1} parent=5 // pred_region
        %s4557 = ssub.s32 %s29, 2
        // Predicated region
        $region121: #{generator_forward.1} parent=119 // pred_check
          %p4558 = pneg %p378
        $region122: #{generator_forward.1} parent=119 // pred_check_branch
          %4560 = sbr.rel (%p4558) target = $region124
        $region123: #{generator_forward.1} parent=119 // pred_region
          %s4561 = sand.u32 %s363, 1
          %s4562 = scalar_lea.sflag [#allocation16], %s4561
          %s4563 = sand.u32 %s363, 1
          %s4564 = scalar_lea.vmem [#allocation28], %s4563
          %4565 = dma.done %s4562, 16
        $region124: #{generator_forward.1} parent=119 // pred_fallthru
          _
      $region120: #{generator_forward.1} parent=5 // pred_fallthru
        _
    $region6: #{generator_forward.1} parent=1 // loop_footer
      %s33 = sadd.s32 1, %s29
    $region7: #{generator_forward.1} parent=1 // loop_footer_branch
      %28 = sbr.rel target = $region3
    $region8: #{generator_forward.1} parent=1 // loop_exit
      _
    %4566 = vsyncpa [#allocation15], 1
    %s4567 = scalar_lea.sflag [#allocation15], 1
    %4568 = vsyncpa %s4567, 1
    %4569 = vsyncpa [#allocation18], 1
    %4570 = vsyncpa [#allocation21], 1
    %4571 = vsyncpa [#allocation24], 1
    %4572 = vsyncpa [#allocation27], 1
    %4573 = vsyncpa [#allocation16], 1
    %s4574 = scalar_lea.sflag [#allocation16], 1
    %4575 = vsyncpa %s4574, 1

</llo_original>
